<compile_context>
chip_gen: v6e
topology: v6e:2x2x1
jax: 0.10.0
libtpu: 0.0.40
codegen_flags: <defaults>
</compile_context>

<pallas_src>
import jax
import jax.numpy as jnp
from jax import lax
from jax.experimental import pallas as pl
from jax.experimental.pallas import tpu as pltpu


BASE_CHANNELS = 8
LATENT_DIM = 16
OUTPUT_DIM = 4                      # contact=True
FC_LEN = 25                         # spatial length of the fc output
LENGTHS = (50, 100, 200, 400, 778, 778)          # spatial length after each conv
CHANNELS = (BASE_CHANNELS * 32, BASE_CHANNELS * 16, BASE_CHANNELS * 8,
            BASE_CHANNELS * 4, BASE_CHANNELS * 2, BASE_CHANNELS, OUTPUT_DIM)


# ------------------------------ kernel helpers ------------------------------ #

def _nearest_matrix(l_in, l_out):
    """(l_in, l_out) 0/1 selection matrix for torch 'nearest' interpolation.

    Column d has a single 1 at row floor(d * l_in / l_out).  Built exactly with
    integer iota + compares (i == floor(k/L)  <=>  i*L <= k < (i+1)*L), so no
    division is needed in-kernel.
    """
    rows = lax.broadcasted_iota(jnp.int32, (l_in, l_out), 0)
    cols = lax.broadcasted_iota(jnp.int32, (l_in, l_out), 1)
    k = cols * l_in                      # d * L_in   (<= 311K, fits int32)
    lo = rows * l_out                    # i * L_out
    sel = (k >= lo) & (k < lo + l_out)
    return jnp.where(sel, 1.0, 0.0).astype(jnp.float32)


def _conv_stage(x, up, w_ref, relu):
    """[optional nearest upsample] + Conv1d(k=3, pad=1, bias folded) [+ ReLU].

    x     : (Cin, L_in) f32 activation, NCL layout (channels=sublanes, length=lanes)
    up    : None or (L_in, L_out) f32 selection matrix (MXU nearest upsample)
    w_ref : (Cout, 3*Cin + 1) bf16 ref; taps laid out [k=0 | k=1 | k=2 | bias]
    """
    if up is not None:
        x = jnp.dot(x, up, preferred_element_type=jnp.float32)      # (Cin, L_out)
    cin, length = x.shape
    zero = jnp.zeros((cin, 1), jnp.float32)
    xpad = jnp.concatenate([zero, x, zero], axis=1)                  # (Cin, L+2)
    # im2col: the three taps stacked along the (sublane) channel axis, plus a
    # ones-row so the bias rides along in the same MXU matmul.
    col = jnp.concatenate(
        [xpad[:, 0:length], xpad[:, 1:length + 1], xpad[:, 2:length + 2],
         jnp.ones((1, length), jnp.float32)],
        axis=0)                                                      # (3Cin+1, L)
    y = jnp.dot(w_ref[...], col.astype(jnp.bfloat16),
                preferred_element_type=jnp.float32)                  # (Cout, L)
    if relu:
        y = jnp.maximum(y, 0.0)
    return y


# ------------------------------ fused kernel ------------------------------- #

def _decoder_kernel(lat_ref,                        # SMEM (B, latent_dim) f32
                    w1c_ref, b1c_ref,               # (16,128,50) bf16, (128,50) f32
                    w2_ref, w3_ref, w4_ref, w5_ref, w6_ref,   # bf16 (Cout, 3Cin+1)
                    o_ref,                          # (1, 4, 778) f32
                    up2_ref, up3_ref, up4_ref, up5_ref):      # VMEM f32 scratch
    b = pl.program_id(0)

    # Build the nearest-neighbour selection matrices once; scratch persists
    # across the sequential batch grid, so later iterations reuse them.
    @pl.when(b == 0)
    def _():
        up2_ref[...] = _nearest_matrix(LENGTHS[0], LENGTHS[1])
        up3_ref[...] = _nearest_matrix(LENGTHS[1], LENGTHS[2])
        up4_ref[...] = _nearest_matrix(LENGTHS[2], LENGTHS[3])
        up5_ref[...] = _nearest_matrix(LENGTHS[3], LENGTHS[4])

    # Stage 1: folded fc + interpolate(50) + conv1, as 16 scalar FMAs + ReLU.
    x = b1c_ref[...]                                   # (128, 50) f32
    for d in range(LATENT_DIM):                        # static unroll
        x = x + lat_ref[b, d] * w1c_ref[d].astype(jnp.float32)
    x = jnp.maximum(x, 0.0)                            # (128, 50)

    x = _conv_stage(x, up2_ref[...], w2_ref, True)     # (64, 100)
    x = _conv_stage(x, up3_ref[...], w3_ref, True)     # (32, 200)
    x = _conv_stage(x, up4_ref[...], w4_ref, True)     # (16, 400)
    x = _conv_stage(x, up5_ref[...], w5_ref, True)     # (8, 778)
    x = _conv_stage(x, None,         w6_ref, False)    # (4, 778) == NCW slab

    o_ref[0] = x.astype(o_ref.dtype)


# ------------------------------ host wrapper ------------------------------- #

def decoder_forward(latent, kp):
    batch = latent.shape[0]

    def _full(arr):
        nd = arr.ndim
        return pl.BlockSpec(arr.shape, lambda b, nd=nd: (0,) * nd)

    ordered = [kp["w1c"], kp["b1c"],
               kp["w2"], kp["w3"], kp["w4"], kp["w5"], kp["w6"]]

    in_specs = [pl.BlockSpec(memory_space=pltpu.MemorySpace.SMEM)]   # latent
    in_specs += [_full(a) for a in ordered]

    # Advisory cost estimate for the XLA scheduler.
    flops = 2 * LATENT_DIM * CHANNELS[1] * LENGTHS[0]          # stage-1 FMAs
    l_in = LENGTHS[0]
    for i in range(1, 6):
        cin, cout, l_out = CHANNELS[i], CHANNELS[i + 1], LENGTHS[i]
        if l_out != l_in:
            flops += 2 * cin * l_in * l_out                    # upsample matmul
        flops += 2 * cout * (3 * cin + 1) * l_out              # im2col conv matmul
        l_in = l_out
    flops *= batch
    bytes_accessed = (sum(a.size * a.dtype.itemsize for a in ordered)
                      + latent.size * latent.dtype.itemsize
                      + batch * OUTPUT_DIM * LENGTHS[-1] * 4)

    return pl.pallas_call(
        _decoder_kernel,
        out_shape=jax.ShapeDtypeStruct((batch, OUTPUT_DIM, LENGTHS[-1]),
                                       jnp.float32),
        grid=(batch,),
        in_specs=in_specs,
        out_specs=pl.BlockSpec((1, OUTPUT_DIM, LENGTHS[-1]), lambda b: (b, 0, 0)),
        scratch_shapes=[
            pltpu.VMEM((LENGTHS[0], LENGTHS[1]), jnp.float32),   # up 50 -> 100
            pltpu.VMEM((LENGTHS[1], LENGTHS[2]), jnp.float32),   # up 100 -> 200
            pltpu.VMEM((LENGTHS[2], LENGTHS[3]), jnp.float32),   # up 200 -> 400
            pltpu.VMEM((LENGTHS[3], LENGTHS[4]), jnp.float32),   # up 400 -> 778
        ],
        compiler_params=pltpu.CompilerParams(
            # "arbitrary": keep the tiny batch on one TensorCore so the weight
            # set is DMA'd once (constant block index) and not duplicated per
            # core on v7x.
            dimension_semantics=("arbitrary",),
            vmem_limit_bytes=32 * 1024 * 1024),
        cost_estimate=pl.CostEstimate(flops=int(flops), transcendentals=0,
                                      bytes_accessed=int(bytes_accessed)),
    )(latent, *ordered)


# ------------------------- parameters / reference -------------------------- #

def init_torch_params(key):
    """Random parameters in the PyTorch layouts (Linear: (out,in), Conv1d: (Cout,Cin,3))."""
    p = {}
    keys = jax.random.split(key, 14)
    fc_out = CHANNELS[0] * FC_LEN
    p["fc_w"] = (jax.random.normal(keys[0], (fc_out, LATENT_DIM), jnp.float32)
                 / jnp.sqrt(float(LATENT_DIM)))
    p["fc_b"] = 0.01 * jax.random.normal(keys[1], (fc_out,), jnp.float32)
    for i in range(6):
        cin, cout = CHANNELS[i], CHANNELS[i + 1]
        p[f"w{i+1}"] = (jax.random.normal(keys[2 + 2 * i], (cout, cin, 3),
                                          jnp.float32) / jnp.sqrt(3.0 * cin))
        p[f"b{i+1}"] = 0.01 * jax.random.normal(keys[3 + 2 * i], (cout,),
                                                jnp.float32)
    return p


def to_kernel_params(tp):
    """Host-side one-time re-layout of the torch params for the fused kernel."""
    kp = {}
    idx = (jnp.arange(LENGTHS[0]) * FC_LEN) // LENGTHS[0]

    def fc_up_conv1(lat, with_fc_bias):
        x = lat @ tp["fc_w"].T
        if with_fc_bias:
            x = x + tp["fc_b"][None, :]
        x = x.reshape(-1, CHANNELS[0], FC_LEN)[:, :, idx]
        return lax.conv_general_dilated(
            x, tp["w1"], window_strides=(1,), padding=((1, 1),),
            dimension_numbers=("NCH", "OIH", "NCH"))

    # Fold fc + upsample(25->50) + conv1 (all linear) into one affine map.
    eye = jnp.eye(LATENT_DIM, dtype=jnp.float32)
    kp["w1c"] = fc_up_conv1(eye, False).astype(jnp.bfloat16)             # (16,128,50)
    kp["b1c"] = (fc_up_conv1(jnp.zeros((1, LATENT_DIM), jnp.float32), True)[0]
                 + tp["b1"][:, None]).astype(jnp.float32)                 # (128,50)

    for i in range(1, 6):
        w = tp[f"w{i+1}"]                                  # (Cout, Cin, 3)
        cout, cin, k = w.shape
        w_flat = jnp.transpose(w, (0, 2, 1)).reshape(cout, k * cin)
        w_aug = jnp.concatenate([w_flat, tp[f"b{i+1}"][:, None]], axis=1)
        kp[f"w{i+1}"] = w_aug.astype(jnp.bfloat16)          # (Cout, 3Cin+1)
    return kp


def reference_forward(latent, tp):
    """Independent pure-JAX/XLA reference matching the PyTorch forward."""
    b = latent.shape[0]
    x = latent @ tp["fc_w"].T + tp["fc_b"][None, :]
    x = x.reshape(b, CHANNELS[0], FC_LEN)
    plan = [(50, "w1", "b1", True), (100, "w2", "b2", True),
            (200, "w3", "b3", True), (400, "w4", "b4", True),
            (778, "w5", "b5", True), (None, "w6", "b6", False)]
    for l_out, wn, bn, relu in plan:
        if l_out is not None:
            l_in = x.shape[2]
            idx = (jnp.arange(l_out) * l_in) // l_out
            x = x[:, :, idx]
        x = lax.conv_general_dilated(
            x, tp[wn], window_strides=(1,), padding=((1, 1),),
            dimension_numbers=("NCH", "OIH", "NCH"))
        x = x + tp[bn][None, :, None]
        if relu:
            x = jnp.maximum(x, 0.0)
    return x


# ---------------------------------- main ------------------------------------ #

if __name__ == "__main__":
    BATCH = 2
    key = jax.random.PRNGKey(0)
    k_param, k_latent = jax.random.split(key)

    tp = init_torch_params(k_param)
    kp = to_kernel_params(tp)
    latent = jax.random.normal(k_latent, (BATCH, LATENT_DIM), jnp.float32)

    fwd = jax.jit(decoder_forward)
    out = jax.block_until_ready(fwd(latent, kp))

    assert out.shape == (BATCH, OUTPUT_DIM, LENGTHS[-1]), out.shape
    assert bool(jnp.all(jnp.isfinite(out)))

    # Numerical check against the independent XLA reference (loose tolerance:
    # kernel uses bf16 weights/activations on the MXU with f32 accumulation).
    ref = jax.block_until_ready(jax.jit(reference_forward)(latent, tp))
    max_err = float(jnp.max(jnp.abs(out - ref)))
    scale = float(jnp.max(jnp.abs(ref)))
    assert max_err <= 0.08 + 0.08 * scale, (max_err, scale)

    print("KERNEL_OK")
</pallas_src>

<mosaic_0001>
module attributes {stable_mosaic.version = 11 : i64} {
  func.func @_decoder_kernel(%arg0: i32, %arg1: memref<2x16xf32, #tpu.memory_space<smem>>, %arg2: memref<16x128x50xbf16, #tpu.memory_space<vmem>>, %arg3: memref<128x50xf32, #tpu.memory_space<vmem>>, %arg4: memref<64x385xbf16, #tpu.memory_space<vmem>>, %arg5: memref<32x193xbf16, #tpu.memory_space<vmem>>, %arg6: memref<16x97xbf16, #tpu.memory_space<vmem>>, %arg7: memref<8x49xbf16, #tpu.memory_space<vmem>>, %arg8: memref<4x25xbf16, #tpu.memory_space<vmem>>, %arg9: memref<1x4x778xf32, #tpu.memory_space<vmem>>, %arg10: memref<50x100xf32, #tpu.memory_space<vmem>>, %arg11: memref<100x200xf32, #tpu.memory_space<vmem>>, %arg12: memref<200x400xf32, #tpu.memory_space<vmem>>, %arg13: memref<400x778xf32, #tpu.memory_space<vmem>>) attributes {dimension_semantics = [#tpu.dimension_semantics<arbitrary>], iteration_bounds = array<i64: 2>, scalar_prefetch = 0 : i64, scratch_operands = 4 : i64, tpu.core_type = #tpu.core_type<tc>, window_params = [{transform_indices = @transform_0, window_bounds = array<i64: 2, 16>}, {pipeline_mode = #tpu.pipeline_mode<synchronous>, transform_indices = @transform_1, window_bounds = array<i64: 16, 128, 50>}, {pipeline_mode = #tpu.pipeline_mode<synchronous>, transform_indices = @transform_2, window_bounds = array<i64: 128, 50>}, {pipeline_mode = #tpu.pipeline_mode<synchronous>, transform_indices = @transform_3, window_bounds = array<i64: 64, 385>}, {pipeline_mode = #tpu.pipeline_mode<synchronous>, transform_indices = @transform_4, window_bounds = array<i64: 32, 193>}, {pipeline_mode = #tpu.pipeline_mode<synchronous>, transform_indices = @transform_5, window_bounds = array<i64: 16, 97>}, {pipeline_mode = #tpu.pipeline_mode<synchronous>, transform_indices = @transform_6, window_bounds = array<i64: 8, 49>}, {pipeline_mode = #tpu.pipeline_mode<synchronous>, transform_indices = @transform_7, window_bounds = array<i64: 4, 25>}, {transform_indices = @transform_8, window_bounds = array<i64: 1, 4, 778>}]} {
    %c0_i32 = arith.constant 0 : i32
    %0 = arith.cmpi eq, %arg0, %c0_i32 : i32
    %1 = arith.extui %0 : i1 to i32
    %c0_i32_0 = arith.constant 0 : i32
    %2 = arith.cmpi ne, %1, %c0_i32_0 : i32
    scf.if %2 {
      %203 = tpu.iota {dimensions = array<i32: 0>} : vector<50x100xi32>
      %204 = tpu.iota {dimensions = array<i32: 1>} : vector<50x100xi32>
      %c50_i32 = arith.constant 50 : i32
      %205 = vector.broadcast %c50_i32 : i32 to vector<50x100xi32>
      %206 = arith.muli %204, %205 : vector<50x100xi32>
      %c100_i32 = arith.constant 100 : i32
      %207 = vector.broadcast %c100_i32 : i32 to vector<50x100xi32>
      %208 = arith.muli %203, %207 : vector<50x100xi32>
      %209 = arith.cmpi sge, %206, %208 : vector<50x100xi32>
      %c100_i32_95 = arith.constant 100 : i32
      %210 = vector.broadcast %c100_i32_95 : i32 to vector<50x100xi32>
      %211 = arith.addi %208, %210 : vector<50x100xi32>
      %212 = arith.cmpi slt, %206, %211 : vector<50x100xi32>
      %213 = arith.andi %209, %212 : vector<50x100xi1>
      %cst_96 = arith.constant 1.000000e+00 : f32
      %cst_97 = arith.constant 0.000000e+00 : f32
      %214 = vector.broadcast %cst_96 : f32 to vector<50x100xf32>
      %215 = vector.broadcast %cst_97 : f32 to vector<50x100xf32>
      %216 = arith.select %213, %214, %215 : vector<50x100xi1>, vector<50x100xf32>
      %c0_98 = arith.constant 0 : index
      %c0_99 = arith.constant 0 : index
      %217 = vector.load %arg10[%c0_98, %c0_99] : memref<50x100xf32, #tpu.memory_space<vmem>>, vector<50x100xf32>
      tpu.vector_store %arg10[%c0_98, %c0_99], %216 {strides = array<i32>} : memref<50x100xf32, #tpu.memory_space<vmem>>, vector<50x100xf32>,
      %218 = tpu.iota {dimensions = array<i32: 0>} : vector<100x200xi32>
      %219 = tpu.iota {dimensions = array<i32: 1>} : vector<100x200xi32>
      %c100_i32_100 = arith.constant 100 : i32
      %220 = vector.broadcast %c100_i32_100 : i32 to vector<100x200xi32>
      %221 = arith.muli %219, %220 : vector<100x200xi32>
      %c200_i32 = arith.constant 200 : i32
      %222 = vector.broadcast %c200_i32 : i32 to vector<100x200xi32>
      %223 = arith.muli %218, %222 : vector<100x200xi32>
      %224 = arith.cmpi sge, %221, %223 : vector<100x200xi32>
      %c200_i32_101 = arith.constant 200 : i32
      %225 = vector.broadcast %c200_i32_101 : i32 to vector<100x200xi32>
      %226 = arith.addi %223, %225 : vector<100x200xi32>
      %227 = arith.cmpi slt, %221, %226 : vector<100x200xi32>
      %228 = arith.andi %224, %227 : vector<100x200xi1>
      %cst_102 = arith.constant 1.000000e+00 : f32
      %cst_103 = arith.constant 0.000000e+00 : f32
      %229 = vector.broadcast %cst_102 : f32 to vector<100x200xf32>
      %230 = vector.broadcast %cst_103 : f32 to vector<100x200xf32>
      %231 = arith.select %228, %229, %230 : vector<100x200xi1>, vector<100x200xf32>
      %c0_104 = arith.constant 0 : index
      %c0_105 = arith.constant 0 : index
      %232 = vector.load %arg11[%c0_104, %c0_105] : memref<100x200xf32, #tpu.memory_space<vmem>>, vector<100x200xf32>
      tpu.vector_store %arg11[%c0_104, %c0_105], %231 {strides = array<i32>} : memref<100x200xf32, #tpu.memory_space<vmem>>, vector<100x200xf32>,
      %233 = tpu.iota {dimensions = array<i32: 0>} : vector<200x400xi32>
      %234 = tpu.iota {dimensions = array<i32: 1>} : vector<200x400xi32>
      %c200_i32_106 = arith.constant 200 : i32
      %235 = vector.broadcast %c200_i32_106 : i32 to vector<200x400xi32>
      %236 = arith.muli %234, %235 : vector<200x400xi32>
      %c400_i32 = arith.constant 400 : i32
      %237 = vector.broadcast %c400_i32 : i32 to vector<200x400xi32>
      %238 = arith.muli %233, %237 : vector<200x400xi32>
      %239 = arith.cmpi sge, %236, %238 : vector<200x400xi32>
      %c400_i32_107 = arith.constant 400 : i32
      %240 = vector.broadcast %c400_i32_107 : i32 to vector<200x400xi32>
      %241 = arith.addi %238, %240 : vector<200x400xi32>
      %242 = arith.cmpi slt, %236, %241 : vector<200x400xi32>
      %243 = arith.andi %239, %242 : vector<200x400xi1>
      %cst_108 = arith.constant 1.000000e+00 : f32
      %cst_109 = arith.constant 0.000000e+00 : f32
      %244 = vector.broadcast %cst_108 : f32 to vector<200x400xf32>
      %245 = vector.broadcast %cst_109 : f32 to vector<200x400xf32>
      %246 = arith.select %243, %244, %245 : vector<200x400xi1>, vector<200x400xf32>
      %c0_110 = arith.constant 0 : index
      %c0_111 = arith.constant 0 : index
      %247 = vector.load %arg12[%c0_110, %c0_111] : memref<200x400xf32, #tpu.memory_space<vmem>>, vector<200x400xf32>
      tpu.vector_store %arg12[%c0_110, %c0_111], %246 {strides = array<i32>} : memref<200x400xf32, #tpu.memory_space<vmem>>, vector<200x400xf32>,
      %248 = tpu.iota {dimensions = array<i32: 0>} : vector<400x778xi32>
      %249 = tpu.iota {dimensions = array<i32: 1>} : vector<400x778xi32>
      %c400_i32_112 = arith.constant 400 : i32
      %250 = vector.broadcast %c400_i32_112 : i32 to vector<400x778xi32>
      %251 = arith.muli %249, %250 : vector<400x778xi32>
      %c778_i32 = arith.constant 778 : i32
      %252 = vector.broadcast %c778_i32 : i32 to vector<400x778xi32>
      %253 = arith.muli %248, %252 : vector<400x778xi32>
      %254 = arith.cmpi sge, %251, %253 : vector<400x778xi32>
      %c778_i32_113 = arith.constant 778 : i32
      %255 = vector.broadcast %c778_i32_113 : i32 to vector<400x778xi32>
      %256 = arith.addi %253, %255 : vector<400x778xi32>
      %257 = arith.cmpi slt, %251, %256 : vector<400x778xi32>
      %258 = arith.andi %254, %257 : vector<400x778xi1>
      %cst_114 = arith.constant 1.000000e+00 : f32
      %cst_115 = arith.constant 0.000000e+00 : f32
      %259 = vector.broadcast %cst_114 : f32 to vector<400x778xf32>
      %260 = vector.broadcast %cst_115 : f32 to vector<400x778xf32>
      %261 = arith.select %258, %259, %260 : vector<400x778xi1>, vector<400x778xf32>
      %c0_116 = arith.constant 0 : index
      %c0_117 = arith.constant 0 : index
      %262 = vector.load %arg13[%c0_116, %c0_117] : memref<400x778xf32, #tpu.memory_space<vmem>>, vector<400x778xf32>
      tpu.vector_store %arg13[%c0_116, %c0_117], %261 {strides = array<i32>} : memref<400x778xf32, #tpu.memory_space<vmem>>, vector<400x778xf32>,
    } else {
    }
    %c0 = arith.constant 0 : index
    %c0_1 = arith.constant 0 : index
    %3 = vector.load %arg3[%c0, %c0_1] : memref<128x50xf32, #tpu.memory_space<vmem>>, vector<128x50xf32>
    %4 = arith.index_cast %arg0 : i32 to index
    %c0_2 = arith.constant 0 : index
    %5 = memref.load %arg1[%4, %c0_2] : memref<2x16xf32, #tpu.memory_space<smem>>
    %c0_3 = arith.constant 0 : index
    %c0_4 = arith.constant 0 : index
    %c0_5 = arith.constant 0 : index
    %6 = vector.load %arg2[%c0_3, %c0_4, %c0_5] : memref<16x128x50xbf16, #tpu.memory_space<vmem>>, vector<1x128x50xbf16>
    %7 = vector.shape_cast %6 : vector<1x128x50xbf16> to vector<128x50xbf16>
    %8 = arith.extf %7 : vector<128x50xbf16> to vector<128x50xf32>
    %9 = vector.broadcast %5 : f32 to vector<128x50xf32>
    %10 = arith.mulf %9, %8 : vector<128x50xf32>
    %11 = arith.addf %3, %10 : vector<128x50xf32>
    %12 = arith.index_cast %arg0 : i32 to index
    %c1 = arith.constant 1 : index
    %13 = memref.load %arg1[%12, %c1] : memref<2x16xf32, #tpu.memory_space<smem>>
    %c1_6 = arith.constant 1 : index
    %c0_7 = arith.constant 0 : index
    %c0_8 = arith.constant 0 : index
    %14 = vector.load %arg2[%c1_6, %c0_7, %c0_8] : memref<16x128x50xbf16, #tpu.memory_space<vmem>>, vector<1x128x50xbf16>
    %15 = vector.shape_cast %14 : vector<1x128x50xbf16> to vector<128x50xbf16>
    %16 = arith.extf %15 : vector<128x50xbf16> to vector<128x50xf32>
    %17 = vector.broadcast %13 : f32 to vector<128x50xf32>
    %18 = arith.mulf %17, %16 : vector<128x50xf32>
    %19 = arith.addf %11, %18 : vector<128x50xf32>
    %20 = arith.index_cast %arg0 : i32 to index
    %c2 = arith.constant 2 : index
    %21 = memref.load %arg1[%20, %c2] : memref<2x16xf32, #tpu.memory_space<smem>>
    %c2_9 = arith.constant 2 : index
    %c0_10 = arith.constant 0 : index
    %c0_11 = arith.constant 0 : index
    %22 = vector.load %arg2[%c2_9, %c0_10, %c0_11] : memref<16x128x50xbf16, #tpu.memory_space<vmem>>, vector<1x128x50xbf16>
    %23 = vector.shape_cast %22 : vector<1x128x50xbf16> to vector<128x50xbf16>
    %24 = arith.extf %23 : vector<128x50xbf16> to vector<128x50xf32>
    %25 = vector.broadcast %21 : f32 to vector<128x50xf32>
    %26 = arith.mulf %25, %24 : vector<128x50xf32>
    %27 = arith.addf %19, %26 : vector<128x50xf32>
    %28 = arith.index_cast %arg0 : i32 to index
    %c3 = arith.constant 3 : index
    %29 = memref.load %arg1[%28, %c3] : memref<2x16xf32, #tpu.memory_space<smem>>
    %c3_12 = arith.constant 3 : index
    %c0_13 = arith.constant 0 : index
    %c0_14 = arith.constant 0 : index
    %30 = vector.load %arg2[%c3_12, %c0_13, %c0_14] : memref<16x128x50xbf16, #tpu.memory_space<vmem>>, vector<1x128x50xbf16>
    %31 = vector.shape_cast %30 : vector<1x128x50xbf16> to vector<128x50xbf16>
    %32 = arith.extf %31 : vector<128x50xbf16> to vector<128x50xf32>
    %33 = vector.broadcast %29 : f32 to vector<128x50xf32>
    %34 = arith.mulf %33, %32 : vector<128x50xf32>
    %35 = arith.addf %27, %34 : vector<128x50xf32>
    %36 = arith.index_cast %arg0 : i32 to index
    %c4 = arith.constant 4 : index
    %37 = memref.load %arg1[%36, %c4] : memref<2x16xf32, #tpu.memory_space<smem>>
    %c4_15 = arith.constant 4 : index
    %c0_16 = arith.constant 0 : index
    %c0_17 = arith.constant 0 : index
    %38 = vector.load %arg2[%c4_15, %c0_16, %c0_17] : memref<16x128x50xbf16, #tpu.memory_space<vmem>>, vector<1x128x50xbf16>
    %39 = vector.shape_cast %38 : vector<1x128x50xbf16> to vector<128x50xbf16>
    %40 = arith.extf %39 : vector<128x50xbf16> to vector<128x50xf32>
    %41 = vector.broadcast %37 : f32 to vector<128x50xf32>
    %42 = arith.mulf %41, %40 : vector<128x50xf32>
    %43 = arith.addf %35, %42 : vector<128x50xf32>
    %44 = arith.index_cast %arg0 : i32 to index
    %c5 = arith.constant 5 : index
    %45 = memref.load %arg1[%44, %c5] : memref<2x16xf32, #tpu.memory_space<smem>>
    %c5_18 = arith.constant 5 : index
    %c0_19 = arith.constant 0 : index
    %c0_20 = arith.constant 0 : index
    %46 = vector.load %arg2[%c5_18, %c0_19, %c0_20] : memref<16x128x50xbf16, #tpu.memory_space<vmem>>, vector<1x128x50xbf16>
    %47 = vector.shape_cast %46 : vector<1x128x50xbf16> to vector<128x50xbf16>
    %48 = arith.extf %47 : vector<128x50xbf16> to vector<128x50xf32>
    %49 = vector.broadcast %45 : f32 to vector<128x50xf32>
    %50 = arith.mulf %49, %48 : vector<128x50xf32>
    %51 = arith.addf %43, %50 : vector<128x50xf32>
    %52 = arith.index_cast %arg0 : i32 to index
    %c6 = arith.constant 6 : index
    %53 = memref.load %arg1[%52, %c6] : memref<2x16xf32, #tpu.memory_space<smem>>
    %c6_21 = arith.constant 6 : index
    %c0_22 = arith.constant 0 : index
    %c0_23 = arith.constant 0 : index
    %54 = vector.load %arg2[%c6_21, %c0_22, %c0_23] : memref<16x128x50xbf16, #tpu.memory_space<vmem>>, vector<1x128x50xbf16>
    %55 = vector.shape_cast %54 : vector<1x128x50xbf16> to vector<128x50xbf16>
    %56 = arith.extf %55 : vector<128x50xbf16> to vector<128x50xf32>
    %57 = vector.broadcast %53 : f32 to vector<128x50xf32>
    %58 = arith.mulf %57, %56 : vector<128x50xf32>
    %59 = arith.addf %51, %58 : vector<128x50xf32>
    %60 = arith.index_cast %arg0 : i32 to index
    %c7 = arith.constant 7 : index
    %61 = memref.load %arg1[%60, %c7] : memref<2x16xf32, #tpu.memory_space<smem>>
    %c7_24 = arith.constant 7 : index
    %c0_25 = arith.constant 0 : index
    %c0_26 = arith.constant 0 : index
    %62 = vector.load %arg2[%c7_24, %c0_25, %c0_26] : memref<16x128x50xbf16, #tpu.memory_space<vmem>>, vector<1x128x50xbf16>
    %63 = vector.shape_cast %62 : vector<1x128x50xbf16> to vector<128x50xbf16>
    %64 = arith.extf %63 : vector<128x50xbf16> to vector<128x50xf32>
    %65 = vector.broadcast %61 : f32 to vector<128x50xf32>
    %66 = arith.mulf %65, %64 : vector<128x50xf32>
    %67 = arith.addf %59, %66 : vector<128x50xf32>
    %68 = arith.index_cast %arg0 : i32 to index
    %c8 = arith.constant 8 : index
    %69 = memref.load %arg1[%68, %c8] : memref<2x16xf32, #tpu.memory_space<smem>>
    %c8_27 = arith.constant 8 : index
    %c0_28 = arith.constant 0 : index
    %c0_29 = arith.constant 0 : index
    %70 = vector.load %arg2[%c8_27, %c0_28, %c0_29] : memref<16x128x50xbf16, #tpu.memory_space<vmem>>, vector<1x128x50xbf16>
    %71 = vector.shape_cast %70 : vector<1x128x50xbf16> to vector<128x50xbf16>
    %72 = arith.extf %71 : vector<128x50xbf16> to vector<128x50xf32>
    %73 = vector.broadcast %69 : f32 to vector<128x50xf32>
    %74 = arith.mulf %73, %72 : vector<128x50xf32>
    %75 = arith.addf %67, %74 : vector<128x50xf32>
    %76 = arith.index_cast %arg0 : i32 to index
    %c9 = arith.constant 9 : index
    %77 = memref.load %arg1[%76, %c9] : memref<2x16xf32, #tpu.memory_space<smem>>
    %c9_30 = arith.constant 9 : index
    %c0_31 = arith.constant 0 : index
    %c0_32 = arith.constant 0 : index
    %78 = vector.load %arg2[%c9_30, %c0_31, %c0_32] : memref<16x128x50xbf16, #tpu.memory_space<vmem>>, vector<1x128x50xbf16>
    %79 = vector.shape_cast %78 : vector<1x128x50xbf16> to vector<128x50xbf16>
    %80 = arith.extf %79 : vector<128x50xbf16> to vector<128x50xf32>
    %81 = vector.broadcast %77 : f32 to vector<128x50xf32>
    %82 = arith.mulf %81, %80 : vector<128x50xf32>
    %83 = arith.addf %75, %82 : vector<128x50xf32>
    %84 = arith.index_cast %arg0 : i32 to index
    %c10 = arith.constant 10 : index
    %85 = memref.load %arg1[%84, %c10] : memref<2x16xf32, #tpu.memory_space<smem>>
    %c10_33 = arith.constant 10 : index
    %c0_34 = arith.constant 0 : index
    %c0_35 = arith.constant 0 : index
    %86 = vector.load %arg2[%c10_33, %c0_34, %c0_35] : memref<16x128x50xbf16, #tpu.memory_space<vmem>>, vector<1x128x50xbf16>
    %87 = vector.shape_cast %86 : vector<1x128x50xbf16> to vector<128x50xbf16>
    %88 = arith.extf %87 : vector<128x50xbf16> to vector<128x50xf32>
    %89 = vector.broadcast %85 : f32 to vector<128x50xf32>
    %90 = arith.mulf %89, %88 : vector<128x50xf32>
    %91 = arith.addf %83, %90 : vector<128x50xf32>
    %92 = arith.index_cast %arg0 : i32 to index
    %c11 = arith.constant 11 : index
    %93 = memref.load %arg1[%92, %c11] : memref<2x16xf32, #tpu.memory_space<smem>>
    %c11_36 = arith.constant 11 : index
    %c0_37 = arith.constant 0 : index
    %c0_38 = arith.constant 0 : index
    %94 = vector.load %arg2[%c11_36, %c0_37, %c0_38] : memref<16x128x50xbf16, #tpu.memory_space<vmem>>, vector<1x128x50xbf16>
    %95 = vector.shape_cast %94 : vector<1x128x50xbf16> to vector<128x50xbf16>
    %96 = arith.extf %95 : vector<128x50xbf16> to vector<128x50xf32>
    %97 = vector.broadcast %93 : f32 to vector<128x50xf32>
    %98 = arith.mulf %97, %96 : vector<128x50xf32>
    %99 = arith.addf %91, %98 : vector<128x50xf32>
    %100 = arith.index_cast %arg0 : i32 to index
    %c12 = arith.constant 12 : index
    %101 = memref.load %arg1[%100, %c12] : memref<2x16xf32, #tpu.memory_space<smem>>
    %c12_39 = arith.constant 12 : index
    %c0_40 = arith.constant 0 : index
    %c0_41 = arith.constant 0 : index
    %102 = vector.load %arg2[%c12_39, %c0_40, %c0_41] : memref<16x128x50xbf16, #tpu.memory_space<vmem>>, vector<1x128x50xbf16>
    %103 = vector.shape_cast %102 : vector<1x128x50xbf16> to vector<128x50xbf16>
    %104 = arith.extf %103 : vector<128x50xbf16> to vector<128x50xf32>
    %105 = vector.broadcast %101 : f32 to vector<128x50xf32>
    %106 = arith.mulf %105, %104 : vector<128x50xf32>
    %107 = arith.addf %99, %106 : vector<128x50xf32>
    %108 = arith.index_cast %arg0 : i32 to index
    %c13 = arith.constant 13 : index
    %109 = memref.load %arg1[%108, %c13] : memref<2x16xf32, #tpu.memory_space<smem>>
    %c13_42 = arith.constant 13 : index
    %c0_43 = arith.constant 0 : index
    %c0_44 = arith.constant 0 : index
    %110 = vector.load %arg2[%c13_42, %c0_43, %c0_44] : memref<16x128x50xbf16, #tpu.memory_space<vmem>>, vector<1x128x50xbf16>
    %111 = vector.shape_cast %110 : vector<1x128x50xbf16> to vector<128x50xbf16>
    %112 = arith.extf %111 : vector<128x50xbf16> to vector<128x50xf32>
    %113 = vector.broadcast %109 : f32 to vector<128x50xf32>
    %114 = arith.mulf %113, %112 : vector<128x50xf32>
    %115 = arith.addf %107, %114 : vector<128x50xf32>
    %116 = arith.index_cast %arg0 : i32 to index
    %c14 = arith.constant 14 : index
    %117 = memref.load %arg1[%116, %c14] : memref<2x16xf32, #tpu.memory_space<smem>>
    %c14_45 = arith.constant 14 : index
    %c0_46 = arith.constant 0 : index
    %c0_47 = arith.constant 0 : index
    %118 = vector.load %arg2[%c14_45, %c0_46, %c0_47] : memref<16x128x50xbf16, #tpu.memory_space<vmem>>, vector<1x128x50xbf16>
    %119 = vector.shape_cast %118 : vector<1x128x50xbf16> to vector<128x50xbf16>
    %120 = arith.extf %119 : vector<128x50xbf16> to vector<128x50xf32>
    %121 = vector.broadcast %117 : f32 to vector<128x50xf32>
    %122 = arith.mulf %121, %120 : vector<128x50xf32>
    %123 = arith.addf %115, %122 : vector<128x50xf32>
    %124 = arith.index_cast %arg0 : i32 to index
    %c15 = arith.constant 15 : index
    %125 = memref.load %arg1[%124, %c15] : memref<2x16xf32, #tpu.memory_space<smem>>
    %c15_48 = arith.constant 15 : index
    %c0_49 = arith.constant 0 : index
    %c0_50 = arith.constant 0 : index
    %126 = vector.load %arg2[%c15_48, %c0_49, %c0_50] : memref<16x128x50xbf16, #tpu.memory_space<vmem>>, vector<1x128x50xbf16>
    %127 = vector.shape_cast %126 : vector<1x128x50xbf16> to vector<128x50xbf16>
    %128 = arith.extf %127 : vector<128x50xbf16> to vector<128x50xf32>
    %129 = vector.broadcast %125 : f32 to vector<128x50xf32>
    %130 = arith.mulf %129, %128 : vector<128x50xf32>
    %131 = arith.addf %123, %130 : vector<128x50xf32>
    %cst = arith.constant 0.000000e+00 : f32
    %132 = vector.broadcast %cst : f32 to vector<128x50xf32>
    %133 = arith.maximumf %131, %132 : vector<128x50xf32>
    %c0_51 = arith.constant 0 : index
    %c0_52 = arith.constant 0 : index
    %134 = vector.load %arg10[%c0_51, %c0_52] : memref<50x100xf32, #tpu.memory_space<vmem>>, vector<50x100xf32>
    %cst_53 = arith.constant dense<0.000000e+00> : vector<128x100xf32>
    %135 = tpu.matmul %133, %134, %cst_53 {dimension_numbers = #tpu.dot_dimension_numbers<[1], [0], [0], [1], [0, 0, 1, 1], [], []>} : vector<128x50xf32>, vector<50x100xf32>, vector<128x100xf32> -> vector<128x100xf32>
    %cst_54 = arith.constant 0.000000e+00 : f32
    %136 = vector.broadcast %cst_54 : f32 to vector<128x1xf32>
    %137 = tpu.concatenate %136, %135, %136 in 1 : vector<128x1xf32>, vector<128x100xf32>, vector<128x1xf32> -> vector<128x102xf32>
    %138 = vector.extract_strided_slice %137 {offsets = [0, 0], sizes = [128, 100], strides = [1, 1]} : vector<128x102xf32> to vector<128x100xf32>
    %139 = vector.extract_strided_slice %137 {offsets = [0, 1], sizes = [128, 100], strides = [1, 1]} : vector<128x102xf32> to vector<128x100xf32>
    %140 = vector.extract_strided_slice %137 {offsets = [0, 2], sizes = [128, 100], strides = [1, 1]} : vector<128x102xf32> to vector<128x100xf32>
    %cst_55 = arith.constant 1.000000e+00 : f32
    %141 = vector.broadcast %cst_55 : f32 to vector<1x100xf32>
    %142 = tpu.concatenate %138, %139, %140, %141 in 0 : vector<128x100xf32>, vector<128x100xf32>, vector<128x100xf32>, vector<1x100xf32> -> vector<385x100xf32>
    %c0_56 = arith.constant 0 : index
    %c0_57 = arith.constant 0 : index
    %143 = vector.load %arg4[%c0_56, %c0_57] : memref<64x385xbf16, #tpu.memory_space<vmem>>, vector<64x385xbf16>
    %144 = arith.truncf %142 : vector<385x100xf32> to vector<385x100xbf16>
    %cst_58 = arith.constant dense<0.000000e+00> : vector<64x100xf32>
    %145 = tpu.matmul %143, %144, %cst_58 {dimension_numbers = #tpu.dot_dimension_numbers<[1], [0], [0], [1], [0, 0, 1, 1], [], []>} : vector<64x385xbf16>, vector<385x100xbf16>, vector<64x100xf32> -> vector<64x100xf32>
    %cst_59 = arith.constant 0.000000e+00 : f32
    %146 = vector.broadcast %cst_59 : f32 to vector<64x100xf32>
    %147 = arith.maximumf %145, %146 : vector<64x100xf32>
    %c0_60 = arith.constant 0 : index
    %c0_61 = arith.constant 0 : index
    %148 = vector.load %arg11[%c0_60, %c0_61] : memref<100x200xf32, #tpu.memory_space<vmem>>, vector<100x200xf32>
    %cst_62 = arith.constant dense<0.000000e+00> : vector<64x200xf32>
    %149 = tpu.matmul %147, %148, %cst_62 {dimension_numbers = #tpu.dot_dimension_numbers<[1], [0], [0], [1], [0, 0, 1, 1], [], []>} : vector<64x100xf32>, vector<100x200xf32>, vector<64x200xf32> -> vector<64x200xf32>
    %cst_63 = arith.constant 0.000000e+00 : f32
    %150 = vector.broadcast %cst_63 : f32 to vector<64x1xf32>
    %151 = tpu.concatenate %150, %149, %150 in 1 : vector<64x1xf32>, vector<64x200xf32>, vector<64x1xf32> -> vector<64x202xf32>
    %152 = vector.extract_strided_slice %151 {offsets = [0, 0], sizes = [64, 200], strides = [1, 1]} : vector<64x202xf32> to vector<64x200xf32>
    %153 = vector.extract_strided_slice %151 {offsets = [0, 1], sizes = [64, 200], strides = [1, 1]} : vector<64x202xf32> to vector<64x200xf32>
    %154 = vector.extract_strided_slice %151 {offsets = [0, 2], sizes = [64, 200], strides = [1, 1]} : vector<64x202xf32> to vector<64x200xf32>
    %cst_64 = arith.constant 1.000000e+00 : f32
    %155 = vector.broadcast %cst_64 : f32 to vector<1x200xf32>
    %156 = tpu.concatenate %152, %153, %154, %155 in 0 : vector<64x200xf32>, vector<64x200xf32>, vector<64x200xf32>, vector<1x200xf32> -> vector<193x200xf32>
    %c0_65 = arith.constant 0 : index
    %c0_66 = arith.constant 0 : index
    %157 = vector.load %arg5[%c0_65, %c0_66] : memref<32x193xbf16, #tpu.memory_space<vmem>>, vector<32x193xbf16>
    %158 = arith.truncf %156 : vector<193x200xf32> to vector<193x200xbf16>
    %cst_67 = arith.constant dense<0.000000e+00> : vector<32x200xf32>
    %159 = tpu.matmul %157, %158, %cst_67 {dimension_numbers = #tpu.dot_dimension_numbers<[1], [0], [0], [1], [0, 0, 1, 1], [], []>} : vector<32x193xbf16>, vector<193x200xbf16>, vector<32x200xf32> -> vector<32x200xf32>
    %cst_68 = arith.constant 0.000000e+00 : f32
    %160 = vector.broadcast %cst_68 : f32 to vector<32x200xf32>
    %161 = arith.maximumf %159, %160 : vector<32x200xf32>
    %c0_69 = arith.constant 0 : index
    %c0_70 = arith.constant 0 : index
    %162 = vector.load %arg12[%c0_69, %c0_70] : memref<200x400xf32, #tpu.memory_space<vmem>>, vector<200x400xf32>
    %cst_71 = arith.constant dense<0.000000e+00> : vector<32x400xf32>
    %163 = tpu.matmul %161, %162, %cst_71 {dimension_numbers = #tpu.dot_dimension_numbers<[1], [0], [0], [1], [0, 0, 1, 1], [], []>} : vector<32x200xf32>, vector<200x400xf32>, vector<32x400xf32> -> vector<32x400xf32>
    %cst_72 = arith.constant 0.000000e+00 : f32
    %164 = vector.broadcast %cst_72 : f32 to vector<32x1xf32>
    %165 = tpu.concatenate %164, %163, %164 in 1 : vector<32x1xf32>, vector<32x400xf32>, vector<32x1xf32> -> vector<32x402xf32>
    %166 = vector.extract_strided_slice %165 {offsets = [0, 0], sizes = [32, 400], strides = [1, 1]} : vector<32x402xf32> to vector<32x400xf32>
    %167 = vector.extract_strided_slice %165 {offsets = [0, 1], sizes = [32, 400], strides = [1, 1]} : vector<32x402xf32> to vector<32x400xf32>
    %168 = vector.extract_strided_slice %165 {offsets = [0, 2], sizes = [32, 400], strides = [1, 1]} : vector<32x402xf32> to vector<32x400xf32>
    %cst_73 = arith.constant 1.000000e+00 : f32
    %169 = vector.broadcast %cst_73 : f32 to vector<1x400xf32>
    %170 = tpu.concatenate %166, %167, %168, %169 in 0 : vector<32x400xf32>, vector<32x400xf32>, vector<32x400xf32>, vector<1x400xf32> -> vector<97x400xf32>
    %c0_74 = arith.constant 0 : index
    %c0_75 = arith.constant 0 : index
    %171 = vector.load %arg6[%c0_74, %c0_75] : memref<16x97xbf16, #tpu.memory_space<vmem>>, vector<16x97xbf16>
    %172 = arith.truncf %170 : vector<97x400xf32> to vector<97x400xbf16>
    %cst_76 = arith.constant dense<0.000000e+00> : vector<16x400xf32>
    %173 = tpu.matmul %171, %172, %cst_76 {dimension_numbers = #tpu.dot_dimension_numbers<[1], [0], [0], [1], [0, 0, 1, 1], [], []>} : vector<16x97xbf16>, vector<97x400xbf16>, vector<16x400xf32> -> vector<16x400xf32>
    %cst_77 = arith.constant 0.000000e+00 : f32
    %174 = vector.broadcast %cst_77 : f32 to vector<16x400xf32>
    %175 = arith.maximumf %173, %174 : vector<16x400xf32>
    %c0_78 = arith.constant 0 : index
    %c0_79 = arith.constant 0 : index
    %176 = vector.load %arg13[%c0_78, %c0_79] : memref<400x778xf32, #tpu.memory_space<vmem>>, vector<400x778xf32>
    %cst_80 = arith.constant dense<0.000000e+00> : vector<16x778xf32>
    %177 = tpu.matmul %175, %176, %cst_80 {dimension_numbers = #tpu.dot_dimension_numbers<[1], [0], [0], [1], [0, 0, 1, 1], [], []>} : vector<16x400xf32>, vector<400x778xf32>, vector<16x778xf32> -> vector<16x778xf32>
    %cst_81 = arith.constant 0.000000e+00 : f32
    %178 = vector.broadcast %cst_81 : f32 to vector<16x1xf32>
    %179 = tpu.concatenate %178, %177, %178 in 1 : vector<16x1xf32>, vector<16x778xf32>, vector<16x1xf32> -> vector<16x780xf32>
    %180 = vector.extract_strided_slice %179 {offsets = [0, 0], sizes = [16, 778], strides = [1, 1]} : vector<16x780xf32> to vector<16x778xf32>
    %181 = vector.extract_strided_slice %179 {offsets = [0, 1], sizes = [16, 778], strides = [1, 1]} : vector<16x780xf32> to vector<16x778xf32>
    %182 = vector.extract_strided_slice %179 {offsets = [0, 2], sizes = [16, 778], strides = [1, 1]} : vector<16x780xf32> to vector<16x778xf32>
    %cst_82 = arith.constant 1.000000e+00 : f32
    %183 = vector.broadcast %cst_82 : f32 to vector<1x778xf32>
    %184 = tpu.concatenate %180, %181, %182, %183 in 0 : vector<16x778xf32>, vector<16x778xf32>, vector<16x778xf32>, vector<1x778xf32> -> vector<49x778xf32>
    %c0_83 = arith.constant 0 : index
    %c0_84 = arith.constant 0 : index
    %185 = vector.load %arg7[%c0_83, %c0_84] : memref<8x49xbf16, #tpu.memory_space<vmem>>, vector<8x49xbf16>
    %186 = arith.truncf %184 : vector<49x778xf32> to vector<49x778xbf16>
    %cst_85 = arith.constant dense<0.000000e+00> : vector<8x778xf32>
    %187 = tpu.matmul %185, %186, %cst_85 {dimension_numbers = #tpu.dot_dimension_numbers<[1], [0], [0], [1], [0, 0, 1, 1], [], []>} : vector<8x49xbf16>, vector<49x778xbf16>, vector<8x778xf32> -> vector<8x778xf32>
    %cst_86 = arith.constant 0.000000e+00 : f32
    %188 = vector.broadcast %cst_86 : f32 to vector<8x778xf32>
    %189 = arith.maximumf %187, %188 : vector<8x778xf32>
    %cst_87 = arith.constant 0.000000e+00 : f32
    %190 = vector.broadcast %cst_87 : f32 to vector<8x1xf32>
    %191 = tpu.concatenate %190, %189, %190 in 1 : vector<8x1xf32>, vector<8x778xf32>, vector<8x1xf32> -> vector<8x780xf32>
    %192 = vector.extract_strided_slice %191 {offsets = [0, 0], sizes = [8, 778], strides = [1, 1]} : vector<8x780xf32> to vector<8x778xf32>
    %193 = vector.extract_strided_slice %191 {offsets = [0, 1], sizes = [8, 778], strides = [1, 1]} : vector<8x780xf32> to vector<8x778xf32>
    %194 = vector.extract_strided_slice %191 {offsets = [0, 2], sizes = [8, 778], strides = [1, 1]} : vector<8x780xf32> to vector<8x778xf32>
    %cst_88 = arith.constant 1.000000e+00 : f32
    %195 = vector.broadcast %cst_88 : f32 to vector<1x778xf32>
    %196 = tpu.concatenate %192, %193, %194, %195 in 0 : vector<8x778xf32>, vector<8x778xf32>, vector<8x778xf32>, vector<1x778xf32> -> vector<25x778xf32>
    %c0_89 = arith.constant 0 : index
    %c0_90 = arith.constant 0 : index
    %197 = vector.load %arg8[%c0_89, %c0_90] : memref<4x25xbf16, #tpu.memory_space<vmem>>, vector<4x25xbf16>
    %198 = arith.truncf %196 : vector<25x778xf32> to vector<25x778xbf16>
    %cst_91 = arith.constant dense<0.000000e+00> : vector<4x778xf32>
    %199 = tpu.matmul %197, %198, %cst_91 {dimension_numbers = #tpu.dot_dimension_numbers<[1], [0], [0], [1], [0, 0, 1, 1], [], []>} : vector<4x25xbf16>, vector<25x778xbf16>, vector<4x778xf32> -> vector<4x778xf32>
    %c0_92 = arith.constant 0 : index
    %c0_93 = arith.constant 0 : index
    %c0_94 = arith.constant 0 : index
    %200 = vector.load %arg9[%c0_92, %c0_93, %c0_94] : memref<1x4x778xf32, #tpu.memory_space<vmem>>, vector<1x4x778xf32>
    %201 = vector.shape_cast %200 : vector<1x4x778xf32> to vector<4x778xf32>
    %202 = vector.shape_cast %199 : vector<4x778xf32> to vector<1x4x778xf32>
    tpu.vector_store %arg9[%c0_92, %c0_93, %c0_94], %202 {strides = array<i32>} : memref<1x4x778xf32, #tpu.memory_space<vmem>>, vector<1x4x778xf32>,
    return
  }
  func.func @transform_0(%arg0: i32) -> (i32, i32) {
    %c0_i32 = arith.constant 0 : i32
    %c0_i32_0 = arith.constant 0 : i32
    %c0_i32_1 = arith.constant 0 : i32
    return %c0_i32, %c0_i32_0 : i32, i32
  }
  func.func @transform_1(%arg0: i32) -> (i32, i32, i32) {
    %c0_i32 = arith.constant 0 : i32
    %c0_i32_0 = arith.constant 0 : i32
    %c0_i32_1 = arith.constant 0 : i32
    %c0_i32_2 = arith.constant 0 : i32
    return %c0_i32, %c0_i32_0, %c0_i32_1 : i32, i32, i32
  }
  func.func @transform_2(%arg0: i32) -> (i32, i32) {
    %c0_i32 = arith.constant 0 : i32
    %c0_i32_0 = arith.constant 0 : i32
    %c0_i32_1 = arith.constant 0 : i32
    return %c0_i32, %c0_i32_0 : i32, i32
  }
  func.func @transform_3(%arg0: i32) -> (i32, i32) {
    %c0_i32 = arith.constant 0 : i32
    %c0_i32_0 = arith.constant 0 : i32
    %c0_i32_1 = arith.constant 0 : i32
    return %c0_i32, %c0_i32_0 : i32, i32
  }
  func.func @transform_4(%arg0: i32) -> (i32, i32) {
    %c0_i32 = arith.constant 0 : i32
    %c0_i32_0 = arith.constant 0 : i32
    %c0_i32_1 = arith.constant 0 : i32
    return %c0_i32, %c0_i32_0 : i32, i32
  }
  func.func @transform_5(%arg0: i32) -> (i32, i32) {
    %c0_i32 = arith.constant 0 : i32
    %c0_i32_0 = arith.constant 0 : i32
    %c0_i32_1 = arith.constant 0 : i32
    return %c0_i32, %c0_i32_0 : i32, i32
  }
  func.func @transform_6(%arg0: i32) -> (i32, i32) {
    %c0_i32 = arith.constant 0 : i32
    %c0_i32_0 = arith.constant 0 : i32
    %c0_i32_1 = arith.constant 0 : i32
    return %c0_i32, %c0_i32_0 : i32, i32
  }
  func.func @transform_7(%arg0: i32) -> (i32, i32) {
    %c0_i32 = arith.constant 0 : i32
    %c0_i32_0 = arith.constant 0 : i32
    %c0_i32_1 = arith.constant 0 : i32
    return %c0_i32, %c0_i32_0 : i32, i32
  }
  func.func @transform_8(%arg0: i32) -> (i32, i32, i32) {
    %c0_i32 = arith.constant 0 : i32
    %c0_i32_0 = arith.constant 0 : i32
    %c0_i32_1 = arith.constant 0 : i32
    return %arg0, %c0_i32, %c0_i32_0 : i32, i32, i32
  }
}

</mosaic_0001>

<llo_original>
// kernel: decoder_forward.1
$region0: #{decoder_forward.1}
  #allocation0 [shape = 'u32[]', space=smem, size = 0x4, offset = 0x4, fixed_abs, tag = 'smem constant byte address 0x4 - core index']
  #allocation1 [shape = 'u32[144,128]{1,0:T(1,128)}', space=vmem, size = 0x12000, scoped, tag = 'internal scratch']
  #allocation2 [shape = 'f32[50,100]{1,0:T(8,128)}', space=vmem, size = 0x7000, scoped, tag = 'scratch operand']
  #allocation3 [shape = 'f32[100,200]{1,0:T(8,128)}', space=vmem, size = 0x1a000, scoped, tag = 'scratch operand']
  #allocation4 [shape = 'f32[200,400]{1,0:T(8,128)}', space=vmem, size = 0x64000, scoped, tag = 'scratch operand']
  #allocation5 [shape = 'f32[400,778]{1,0:T(8,128)}', space=vmem, size = 0x15e000, scoped, tag = 'scratch operand']
  %s0 = inlined_call_operand.vmem [shape: f32[2,16], index: 0, kind: input, shape index: {}]
  %s1 = inlined_call_operand.vmem [shape: bf16[16,128,50], index: 1, kind: input, shape index: {}]
  %s2 = inlined_call_operand.vmem [shape: f32[128,50], index: 2, kind: input, shape index: {}]
  %s3 = inlined_call_operand.vmem [shape: bf16[64,385], index: 3, kind: input, shape index: {}]
  %s4 = inlined_call_operand.vmem [shape: bf16[32,193], index: 4, kind: input, shape index: {}]
  %s5 = inlined_call_operand.vmem [shape: bf16[16,97], index: 5, kind: input, shape index: {}]
  %s6 = inlined_call_operand.vmem [shape: bf16[8,49], index: 6, kind: input, shape index: {}]
  %s7 = inlined_call_operand.vmem [shape: bf16[4,25], index: 7, kind: input, shape index: {}]
  %s8 = inlined_call_operand.hbm [shape: f32[2,4,778], index: 8, kind: output, shape index: {}]
  %s9 = sld [smem:[#allocation0]]
  $region73: #{decoder_forward.1} parent=0
    _
  %s11 = ssub.s32 1, %s9
  %s12 = scalar_select 0, %s11, %s9
  $region1: #{decoder_forward.1} parent=0
    #allocation6 [shape = 'u8[1024]{0}', space=smem, size = 0x400, scoped, tag = 'input window, operand 0, single buffered']
    #allocation7 [shape = 's32[2]{0}', space=sflag, size = 0x8, scoped, tag = 'scoped memory for decoder_forward.1']
    #allocation8 [shape = 's32[2]{0}', space=sflag, size = 0x8, scoped, tag = 'scoped memory for decoder_forward.1']
    #allocation9 [shape = 'u8[28672]{0}', space=vmem, size = 0x7000, scoped, tag = 'output window, operand 0']
    %13 = vsyncpa [#allocation8], 0
    %14 = vsyncpa [#allocation7], 0
    %s15 = scalar_lea.sflag [#allocation7], 1
    %16 = vsyncpa %s15, 0
    loop: start=0, step=1, limit=4
    $region2: #{decoder_forward.1} parent=1 // loop_pre_header
      _
    $region3: #{decoder_forward.1} parent=1 // loop_header
      %s18 = sphi 0, %s22
      %p19 = scmp.ge.s32.totalorder %s18, 4
      %s26 = sphi 0, %s26
      %s28 = sphi 0, %s26
      %s29 = sphi 0, %s28
      %s43 = sphi 0, %s29
      %s47 = sphi 0, %s47
      %s49 = sphi 0, %s47
      %s50 = sphi 0, %s49
      %s64 = sphi 0, %s50
      %s68 = sphi 0, %s68
      %s70 = sphi 0, %s68
      %s71 = sphi 0, %s70
      %s85 = sphi 0, %s71
      %s89 = sphi 0, %s89
      %s91 = sphi 0, %s89
      %s92 = sphi 0, %s91
      %s106 = sphi 0, %s92
      %s110 = sphi 0, %s110
      %s112 = sphi 0, %s110
      %s113 = sphi 0, %s112
      %s127 = sphi 0, %s113
      %s131 = sphi 0, %s131
      %s133 = sphi 0, %s131
      %s134 = sphi 0, %s133
      %s148 = sphi 0, %s134
      %s152 = sphi 0, %s152
      %s154 = sphi 0, %s152
      %s155 = sphi 0, %s154
      %s169 = sphi 0, %s155
      %s173 = sphi 0, %s173
      %s175 = sphi 0, %s173
      %s176 = sphi 0, %s175
      %s190 = sphi 0, %s176
      %s196 = sphi 0, %s198
      %s199 = sphi 0, %s196
      %s200 = sphi 0, %s199
      %s216 = sphi 0, %s200
    $region4: #{decoder_forward.1} parent=1 // loop_header_branch
      %21 = sbr.rel (%p19) target = $region8
    $region5: #{decoder_forward.1} parent=1 // loop_body
      %s23 = ssub.s32 %s18, 1
      %s24 = ssub.s32 %s18, 2
      %s25 = sadd.s32 %s18, 1
      %s27 = sadd.s32 %s26, 1
      %p30 = scmp.eq.s32.totalorder %s18, 1
      %p31 = scmp.ne.s32.totalorder %s26, %s28
      %p32 = scmp.eq.s32.totalorder %s18, 0
      %p33 = por %p31, %p32
      %p34 = scmp.ne.s32.totalorder %s26, %s28
      %p35 = scmp.eq.s32.totalorder %s23, 1
      %p36 = por %p34, %p35
      %p37 = scmp.ne.s32.totalorder %s28, %s29
      %p38 = scmp.eq.s32.totalorder %s23, 0
      %p39 = por %p37, %p38
      %p40 = scmp.ne.s32.totalorder %s28, %s29
      %p41 = scmp.eq.s32.totalorder %s24, 1
      %p42 = por %p40, %p41
      %p44 = scmp.ne.s32.totalorder %s29, %s43
      %p45 = scmp.eq.s32.totalorder %s24, 0
      %p46 = por %p44, %p45
      %s48 = sadd.s32 %s47, 1
      %p51 = scmp.eq.s32.totalorder %s18, 1
      %p52 = scmp.ne.s32.totalorder %s47, %s49
      %p53 = scmp.eq.s32.totalorder %s18, 0
      %p54 = por %p52, %p53
      %p55 = scmp.ne.s32.totalorder %s47, %s49
      %p56 = scmp.eq.s32.totalorder %s23, 1
      %p57 = por %p55, %p56
      %p58 = scmp.ne.s32.totalorder %s49, %s50
      %p59 = scmp.eq.s32.totalorder %s23, 0
      %p60 = por %p58, %p59
      %p61 = scmp.ne.s32.totalorder %s49, %s50
      %p62 = scmp.eq.s32.totalorder %s24, 1
      %p63 = por %p61, %p62
      %p65 = scmp.ne.s32.totalorder %s50, %s64
      %p66 = scmp.eq.s32.totalorder %s24, 0
      %p67 = por %p65, %p66
      %s69 = sadd.s32 %s68, 1
      %p72 = scmp.eq.s32.totalorder %s18, 1
      %p73 = scmp.ne.s32.totalorder %s68, %s70
      %p74 = scmp.eq.s32.totalorder %s18, 0
      %p75 = por %p73, %p74
      %p76 = scmp.ne.s32.totalorder %s68, %s70
      %p77 = scmp.eq.s32.totalorder %s23, 1
      %p78 = por %p76, %p77
      %p79 = scmp.ne.s32.totalorder %s70, %s71
      %p80 = scmp.eq.s32.totalorder %s23, 0
      %p81 = por %p79, %p80
      %p82 = scmp.ne.s32.totalorder %s70, %s71
      %p83 = scmp.eq.s32.totalorder %s24, 1
      %p84 = por %p82, %p83
      %p86 = scmp.ne.s32.totalorder %s71, %s85
      %p87 = scmp.eq.s32.totalorder %s24, 0
      %p88 = por %p86, %p87
      %s90 = sadd.s32 %s89, 1
      %p93 = scmp.eq.s32.totalorder %s18, 1
      %p94 = scmp.ne.s32.totalorder %s89, %s91
      %p95 = scmp.eq.s32.totalorder %s18, 0
      %p96 = por %p94, %p95
      %p97 = scmp.ne.s32.totalorder %s89, %s91
      %p98 = scmp.eq.s32.totalorder %s23, 1
      %p99 = por %p97, %p98
      %p100 = scmp.ne.s32.totalorder %s91, %s92
      %p101 = scmp.eq.s32.totalorder %s23, 0
      %p102 = por %p100, %p101
      %p103 = scmp.ne.s32.totalorder %s91, %s92
      %p104 = scmp.eq.s32.totalorder %s24, 1
      %p105 = por %p103, %p104
      %p107 = scmp.ne.s32.totalorder %s92, %s106
      %p108 = scmp.eq.s32.totalorder %s24, 0
      %p109 = por %p107, %p108
      %s111 = sadd.s32 %s110, 1
      %p114 = scmp.eq.s32.totalorder %s18, 1
      %p115 = scmp.ne.s32.totalorder %s110, %s112
      %p116 = scmp.eq.s32.totalorder %s18, 0
      %p117 = por %p115, %p116
      %p118 = scmp.ne.s32.totalorder %s110, %s112
      %p119 = scmp.eq.s32.totalorder %s23, 1
      %p120 = por %p118, %p119
      %p121 = scmp.ne.s32.totalorder %s112, %s113
      %p122 = scmp.eq.s32.totalorder %s23, 0
      %p123 = por %p121, %p122
      %p124 = scmp.ne.s32.totalorder %s112, %s113
      %p125 = scmp.eq.s32.totalorder %s24, 1
      %p126 = por %p124, %p125
      %p128 = scmp.ne.s32.totalorder %s113, %s127
      %p129 = scmp.eq.s32.totalorder %s24, 0
      %p130 = por %p128, %p129
      %s132 = sadd.s32 %s131, 1
      %p135 = scmp.eq.s32.totalorder %s18, 1
      %p136 = scmp.ne.s32.totalorder %s131, %s133
      %p137 = scmp.eq.s32.totalorder %s18, 0
      %p138 = por %p136, %p137
      %p139 = scmp.ne.s32.totalorder %s131, %s133
      %p140 = scmp.eq.s32.totalorder %s23, 1
      %p141 = por %p139, %p140
      %p142 = scmp.ne.s32.totalorder %s133, %s134
      %p143 = scmp.eq.s32.totalorder %s23, 0
      %p144 = por %p142, %p143
      %p145 = scmp.ne.s32.totalorder %s133, %s134
      %p146 = scmp.eq.s32.totalorder %s24, 1
      %p147 = por %p145, %p146
      %p149 = scmp.ne.s32.totalorder %s134, %s148
      %p150 = scmp.eq.s32.totalorder %s24, 0
      %p151 = por %p149, %p150
      %s153 = sadd.s32 %s152, 1
      %p156 = scmp.eq.s32.totalorder %s18, 1
      %p157 = scmp.ne.s32.totalorder %s152, %s154
      %p158 = scmp.eq.s32.totalorder %s18, 0
      %p159 = por %p157, %p158
      %p160 = scmp.ne.s32.totalorder %s152, %s154
      %p161 = scmp.eq.s32.totalorder %s23, 1
      %p162 = por %p160, %p161
      %p163 = scmp.ne.s32.totalorder %s154, %s155
      %p164 = scmp.eq.s32.totalorder %s23, 0
      %p165 = por %p163, %p164
      %p166 = scmp.ne.s32.totalorder %s154, %s155
      %p167 = scmp.eq.s32.totalorder %s24, 1
      %p168 = por %p166, %p167
      %p170 = scmp.ne.s32.totalorder %s155, %s169
      %p171 = scmp.eq.s32.totalorder %s24, 0
      %p172 = por %p170, %p171
      %s174 = sadd.s32 %s173, 1
      %p177 = scmp.eq.s32.totalorder %s18, 1
      %p178 = scmp.ne.s32.totalorder %s173, %s175
      %p179 = scmp.eq.s32.totalorder %s18, 0
      %p180 = por %p178, %p179
      %p181 = scmp.ne.s32.totalorder %s173, %s175
      %p182 = scmp.eq.s32.totalorder %s23, 1
      %p183 = por %p181, %p182
      %p184 = scmp.ne.s32.totalorder %s175, %s176
      %p185 = scmp.eq.s32.totalorder %s23, 0
      %p186 = por %p184, %p185
      %p187 = scmp.ne.s32.totalorder %s175, %s176
      %p188 = scmp.eq.s32.totalorder %s24, 1
      %p189 = por %p187, %p188
      %p191 = scmp.ne.s32.totalorder %s176, %s190
      %p192 = scmp.eq.s32.totalorder %s24, 0
      %p193 = por %p191, %p192
      %s194 = ssub.s32 %s18, %s25
      %p195 = scmp.eq.s32.totalorder %s194, 0
      %s197 = sadd.s32 %s196, 1
      %s198 = scalar_select %p195, %s196, %s197
      %p201 = pneg %p195
      %p202 = scmp.eq.s32.totalorder %s18, 1
      %p203 = por %p201, %p202
      %p204 = scmp.ne.s32.totalorder %s196, %s199
      %p205 = scmp.eq.s32.totalorder %s18, 0
      %p206 = por %p204, %p205
      %p207 = scmp.ne.s32.totalorder %s196, %s199
      %p208 = scmp.eq.s32.totalorder %s23, 1
      %p209 = por %p207, %p208
      %p210 = scmp.ne.s32.totalorder %s199, %s200
      %p211 = scmp.eq.s32.totalorder %s23, 0
      %p212 = por %p210, %p211
      %p213 = scmp.ne.s32.totalorder %s199, %s200
      %p214 = scmp.eq.s32.totalorder %s24, 1
      %p215 = por %p213, %p214
      %p217 = scmp.ne.s32.totalorder %s200, %s216
      %p218 = scmp.eq.s32.totalorder %s24, 0
      %p219 = por %p217, %p218
      %p220 = scmp.le.s32.totalorder 1, %s18
      %p221 = scmp.lt.s32.totalorder %s18, 3
      %p222 = pnand %p220, %p221
      %p223 = pneg %p222
      // Predicated region
      $region9: #{decoder_forward.1} parent=5 // pred_check
        _
      $region10: #{decoder_forward.1} parent=5 // pred_check_branch
        %225 = sbr.rel (%p222) target = $region12
      $region11: #{decoder_forward.1} parent=5 // pred_region
        %s226 = ssub.s32 %s18, 1
        // Predicated region
        $region13: #{decoder_forward.1} parent=11 // pred_check
          %p227 = pneg %p39
        $region14: #{decoder_forward.1} parent=11 // pred_check_branch
          %229 = sbr.rel (%p227) target = $region16
        $region15: #{decoder_forward.1} parent=11 // pred_region
          %s231 = ssub.s32 32, 32
          %232 = vsyncadd [#allocation8], %s231
          %s234 = sshll.u32 %s0, 4
          %s235 = int_to_ptr.vmem [resolvable:$true] %s234
          %237 = dma.vmem_to_smem %s235, 32, [#allocation6], [#allocation8]
        $region16: #{decoder_forward.1} parent=11 // pred_fallthru
          _
        // Predicated region
        $region17: #{decoder_forward.1} parent=11 // pred_check
          %p238 = pneg %p60
        $region18: #{decoder_forward.1} parent=11 // pred_check_branch
          %240 = sbr.rel (%p238) target = $region20
        $region19: #{decoder_forward.1} parent=11 // pred_region
          _
        $region20: #{decoder_forward.1} parent=11 // pred_fallthru
          _
        // Predicated region
        $region21: #{decoder_forward.1} parent=11 // pred_check
          %p241 = pneg %p81
        $region22: #{decoder_forward.1} parent=11 // pred_check_branch
          %243 = sbr.rel (%p241) target = $region24
        $region23: #{decoder_forward.1} parent=11 // pred_region
          _
        $region24: #{decoder_forward.1} parent=11 // pred_fallthru
          _
        // Predicated region
        $region25: #{decoder_forward.1} parent=11 // pred_check
          %p244 = pneg %p102
        $region26: #{decoder_forward.1} parent=11 // pred_check_branch
          %246 = sbr.rel (%p244) target = $region28
        $region27: #{decoder_forward.1} parent=11 // pred_region
          _
        $region28: #{decoder_forward.1} parent=11 // pred_fallthru
          _
        // Predicated region
        $region29: #{decoder_forward.1} parent=11 // pred_check
          %p247 = pneg %p123
        $region30: #{decoder_forward.1} parent=11 // pred_check_branch
          %249 = sbr.rel (%p247) target = $region32
        $region31: #{decoder_forward.1} parent=11 // pred_region
          _
        $region32: #{decoder_forward.1} parent=11 // pred_fallthru
          _
        // Predicated region
        $region33: #{decoder_forward.1} parent=11 // pred_check
          %p250 = pneg %p144
        $region34: #{decoder_forward.1} parent=11 // pred_check_branch
          %252 = sbr.rel (%p250) target = $region36
        $region35: #{decoder_forward.1} parent=11 // pred_region
          _
        $region36: #{decoder_forward.1} parent=11 // pred_fallthru
          _
        // Predicated region
        $region37: #{decoder_forward.1} parent=11 // pred_check
          %p253 = pneg %p165
        $region38: #{decoder_forward.1} parent=11 // pred_check_branch
          %255 = sbr.rel (%p253) target = $region40
        $region39: #{decoder_forward.1} parent=11 // pred_region
          _
        $region40: #{decoder_forward.1} parent=11 // pred_fallthru
          _
        // Predicated region
        $region41: #{decoder_forward.1} parent=11 // pred_check
          %p256 = pneg %p186
        $region42: #{decoder_forward.1} parent=11 // pred_check_branch
          %258 = sbr.rel (%p256) target = $region44
        $region43: #{decoder_forward.1} parent=11 // pred_region
          _
        $region44: #{decoder_forward.1} parent=11 // pred_fallthru
          _
      $region12: #{decoder_forward.1} parent=5 // pred_fallthru
        _
      %p259 = scmp.lt.s32.totalorder %s18, 2
      // Predicated region
      $region45: #{decoder_forward.1} parent=5 // pred_check
        %p260 = pneg %p259
      $region46: #{decoder_forward.1} parent=5 // pred_check_branch
        %262 = sbr.rel (%p260) target = $region48
      $region47: #{decoder_forward.1} parent=5 // pred_region
        _
      $region48: #{decoder_forward.1} parent=5 // pred_fallthru
        _
      %p263 = scmp.le.s32.totalorder 1, %s18
      %p264 = scmp.lt.s32.totalorder %s18, 3
      %p265 = pnand %p263, %p264
      %p266 = pneg %p265
      // Predicated region
      $region49: #{decoder_forward.1} parent=5 // pred_check
        _
      $region50: #{decoder_forward.1} parent=5 // pred_check_branch
        %268 = sbr.rel (%p265) target = $region52
      $region51: #{decoder_forward.1} parent=5 // pred_region
        %s269 = ssub.s32 %s18, 1
        // Predicated region
        $region53: #{decoder_forward.1} parent=51 // pred_check
          %p270 = pneg %p39
        $region54: #{decoder_forward.1} parent=51 // pred_check_branch
          %272 = sbr.rel (%p270) target = $region56
        $region55: #{decoder_forward.1} parent=51 // pred_region
          %273 = dma.done [#allocation8], 32
        $region56: #{decoder_forward.1} parent=51 // pred_fallthru
          _
        %274 = sfence
        %p275 = pneg %p39
        %p276 = pneg %p36
        %p277 = pneg %p60
        %p278 = pneg %p57
        %p279 = pneg %p81
        %p280 = pneg %p78
        %p281 = pneg %p102
        %p282 = pneg %p99
        %p283 = pneg %p123
        %p284 = pneg %p120
        %p285 = pneg %p144
        %p286 = pneg %p141
        %p287 = pneg %p165
        %p288 = pneg %p162
        %p289 = pneg %p186
        %p290 = pneg %p183
        %p291 = pneg %p212
        %p292 = pneg %p209
        %s293 = sand.u32 %s199, 1
        %s294 = scalar_lea.sflag [#allocation7], %s293
        %s295 = sand.u32 %s199, 1
        %s296 = smul.addr %s295, 28
        %s297 = scalar_lea.vmem [#allocation9], %s296
        %p299 = scmp.eq.s32.totalorder %s23, 0
        // Predicated region
        $region57: #{decoder_forward.1} parent=51 // pred_check
          %p300 = pneg %p299
        $region58: #{decoder_forward.1} parent=51 // pred_check_branch
          %302 = sbr.rel (%p300) target = $region60
        $region59: #{decoder_forward.1} parent=51 // pred_region
          %v303 = vlaneseq
          %v304 = vshrl.u32 %v303, 7
          %v305 = vadd.s32 %v304, 8
          %v306 = vadd.s32 %v304, 16
          %v307 = vadd.s32 %v304, 24
          %v308 = vadd.s32 %v304, 32
          %v309 = vadd.s32 %v304, 40
          %v310 = vadd.s32 %v304, 48
          %v311 = vlaneseq
          %v312 = vand.u32 %v311, 127
          %v313 = vmul.u32 %v312, 50
          %v314 = vmul.u32 %v304, 100
          %v315 = vmul.u32 %v305, 100
          %v316 = vmul.u32 %v306, 100
          %v317 = vmul.u32 %v307, 100
          %v318 = vmul.u32 %v308, 100
          %v319 = vmul.u32 %v309, 100
          %v320 = vmul.u32 %v310, 100
          %vm321 = vcmp.ge.s32.totalorder %v313, %v314
          %vm322 = vcmp.ge.s32.totalorder %v313, %v315
          %vm323 = vcmp.ge.s32.totalorder %v313, %v316
          %vm324 = vcmp.ge.s32.totalorder %v313, %v317
          %vm325 = vcmp.ge.s32.totalorder %v313, %v318
          %vm326 = vcmp.ge.s32.totalorder %v313, %v319
          %vm327 = vcmp.ge.s32.totalorder %v313, %v320
          %v328 = vadd.s32 %v314, 100
          %v329 = vadd.s32 %v315, 100
          %v330 = vadd.s32 %v316, 100
          %v331 = vadd.s32 %v317, 100
          %v332 = vadd.s32 %v318, 100
          %v333 = vadd.s32 %v319, 100
          %v334 = vadd.s32 %v320, 100
          %vm335 = vcmp.lt.s32.totalorder %v313, %v328
          %vm336 = vcmp.lt.s32.totalorder %v313, %v329
          %vm337 = vcmp.lt.s32.totalorder %v313, %v330
          %vm338 = vcmp.lt.s32.totalorder %v313, %v331
          %vm339 = vcmp.lt.s32.totalorder %v313, %v332
          %vm340 = vcmp.lt.s32.totalorder %v313, %v333
          %vm341 = vcmp.lt.s32.totalorder %v313, %v334
          %vm342 = vmand %vm321, %vm335
          %vm343 = vmand %vm322, %vm336
          %vm344 = vmand %vm323, %vm337
          %vm345 = vmand %vm324, %vm338
          %vm346 = vmand %vm325, %vm339
          %vm347 = vmand %vm326, %vm340
          %vm348 = vmand %vm327, %vm341
          %v349 = vsel %vm342, 1.0, 0.0
          %v350 = vsel %vm343, 1.0, 0.0
          %v351 = vsel %vm344, 1.0, 0.0
          %v352 = vsel %vm345, 1.0, 0.0
          %v353 = vsel %vm346, 1.0, 0.0
          %v354 = vsel %vm347, 1.0, 0.0
          %v355 = vsel %vm348, 1.0, 0.0
          %vm356 = vcmask 818176
          %357 = vst.msk [vmem:[#allocation2] sm:$0xff] %vm356, %v349
          %358 = vst.msk [vmem:[#allocation2 + $0x8] sm:$0xff] %vm356, %v350
          %359 = vst.msk [vmem:[#allocation2 + $0x10] sm:$0xff] %vm356, %v351
          %360 = vst.msk [vmem:[#allocation2 + $0x18] sm:$0xff] %vm356, %v352
          %361 = vst.msk [vmem:[#allocation2 + $0x20] sm:$0xff] %vm356, %v353
          %362 = vst.msk [vmem:[#allocation2 + $0x28] sm:$0xff] %vm356, %v354
          %vm363 = vcmask 812032
          %364 = vst.msk [vmem:[#allocation2 + $0x30] sm:$0x3] %vm363, %v355
          %v365 = vadd.s32 %v304, 56
          %v366 = vadd.s32 %v304, 64
          %v367 = vadd.s32 %v304, 72
          %v368 = vadd.s32 %v304, 80
          %v369 = vadd.s32 %v304, 88
          %v370 = vadd.s32 %v304, 96
          %v371 = vadd.s32 %v312, 128
          %v372 = vmul.u32 %v312, 100
          %v373 = vmul.u32 %v371, 100
          %v374 = vmul.u32 %v304, 200
          %v375 = vmul.u32 %v305, 200
          %v376 = vmul.u32 %v306, 200
          %v377 = vmul.u32 %v307, 200
          %v378 = vmul.u32 %v308, 200
          %v379 = vmul.u32 %v309, 200
          %v380 = vmul.u32 %v310, 200
          %v381 = vmul.u32 %v365, 200
          %v382 = vmul.u32 %v366, 200
          %v383 = vmul.u32 %v367, 200
          %v384 = vmul.u32 %v368, 200
          %v385 = vmul.u32 %v369, 200
          %v386 = vmul.u32 %v370, 200
          %vm387 = vcmp.ge.s32.totalorder %v372, %v374
          %vm388 = vcmp.ge.s32.totalorder %v373, %v374
          %vm389 = vcmp.ge.s32.totalorder %v372, %v375
          %vm390 = vcmp.ge.s32.totalorder %v373, %v375
          %vm391 = vcmp.ge.s32.totalorder %v372, %v376
          %vm392 = vcmp.ge.s32.totalorder %v373, %v376
          %vm393 = vcmp.ge.s32.totalorder %v372, %v377
          %vm394 = vcmp.ge.s32.totalorder %v373, %v377
          %vm395 = vcmp.ge.s32.totalorder %v372, %v378
          %vm396 = vcmp.ge.s32.totalorder %v373, %v378
          %vm397 = vcmp.ge.s32.totalorder %v372, %v379
          %vm398 = vcmp.ge.s32.totalorder %v373, %v379
          %vm399 = vcmp.ge.s32.totalorder %v372, %v380
          %vm400 = vcmp.ge.s32.totalorder %v373, %v380
          %vm401 = vcmp.ge.s32.totalorder %v372, %v381
          %vm402 = vcmp.ge.s32.totalorder %v373, %v381
          %vm403 = vcmp.ge.s32.totalorder %v372, %v382
          %vm404 = vcmp.ge.s32.totalorder %v373, %v382
          %vm405 = vcmp.ge.s32.totalorder %v372, %v383
          %vm406 = vcmp.ge.s32.totalorder %v373, %v383
          %vm407 = vcmp.ge.s32.totalorder %v372, %v384
          %vm408 = vcmp.ge.s32.totalorder %v373, %v384
          %vm409 = vcmp.ge.s32.totalorder %v372, %v385
          %vm410 = vcmp.ge.s32.totalorder %v373, %v385
          %vm411 = vcmp.ge.s32.totalorder %v372, %v386
          %vm412 = vcmp.ge.s32.totalorder %v373, %v386
          %v413 = vadd.s32 %v374, 200
          %v414 = vadd.s32 %v375, 200
          %v415 = vadd.s32 %v376, 200
          %v416 = vadd.s32 %v377, 200
          %v417 = vadd.s32 %v378, 200
          %v418 = vadd.s32 %v379, 200
          %v419 = vadd.s32 %v380, 200
          %v420 = vadd.s32 %v381, 200
          %v421 = vadd.s32 %v382, 200
          %v422 = vadd.s32 %v383, 200
          %v423 = vadd.s32 %v384, 200
          %v424 = vadd.s32 %v385, 200
          %v425 = vadd.s32 %v386, 200
          %vm426 = vcmp.lt.s32.totalorder %v372, %v413
          %vm427 = vcmp.lt.s32.totalorder %v373, %v413
          %vm428 = vcmp.lt.s32.totalorder %v372, %v414
          %vm429 = vcmp.lt.s32.totalorder %v373, %v414
          %vm430 = vcmp.lt.s32.totalorder %v372, %v415
          %vm431 = vcmp.lt.s32.totalorder %v373, %v415
          %vm432 = vcmp.lt.s32.totalorder %v372, %v416
          %vm433 = vcmp.lt.s32.totalorder %v373, %v416
          %vm434 = vcmp.lt.s32.totalorder %v372, %v417
          %vm435 = vcmp.lt.s32.totalorder %v373, %v417
          %vm436 = vcmp.lt.s32.totalorder %v372, %v418
          %vm437 = vcmp.lt.s32.totalorder %v373, %v418
          %vm438 = vcmp.lt.s32.totalorder %v372, %v419
          %vm439 = vcmp.lt.s32.totalorder %v373, %v419
          %vm440 = vcmp.lt.s32.totalorder %v372, %v420
          %vm441 = vcmp.lt.s32.totalorder %v373, %v420
          %vm442 = vcmp.lt.s32.totalorder %v372, %v421
          %vm443 = vcmp.lt.s32.totalorder %v373, %v421
          %vm444 = vcmp.lt.s32.totalorder %v372, %v422
          %vm445 = vcmp.lt.s32.totalorder %v373, %v422
          %vm446 = vcmp.lt.s32.totalorder %v372, %v423
          %vm447 = vcmp.lt.s32.totalorder %v373, %v423
          %vm448 = vcmp.lt.s32.totalorder %v372, %v424
          %vm449 = vcmp.lt.s32.totalorder %v373, %v424
          %vm450 = vcmp.lt.s32.totalorder %v372, %v425
          %vm451 = vcmp.lt.s32.totalorder %v373, %v425
          %vm452 = vmand %vm387, %vm426
          %vm453 = vmand %vm388, %vm427
          %vm454 = vmand %vm389, %vm428
          %vm455 = vmand %vm390, %vm429
          %vm456 = vmand %vm391, %vm430
          %vm457 = vmand %vm392, %vm431
          %vm458 = vmand %vm393, %vm432
          %vm459 = vmand %vm394, %vm433
          %vm460 = vmand %vm395, %vm434
          %vm461 = vmand %vm396, %vm435
          %vm462 = vmand %vm397, %vm436
          %vm463 = vmand %vm398, %vm437
          %vm464 = vmand %vm399, %vm438
          %vm465 = vmand %vm400, %vm439
          %vm466 = vmand %vm401, %vm440
          %vm467 = vmand %vm402, %vm441
          %vm468 = vmand %vm403, %vm442
          %vm469 = vmand %vm404, %vm443
          %vm470 = vmand %vm405, %vm444
          %vm471 = vmand %vm406, %vm445
          %vm472 = vmand %vm407, %vm446
          %vm473 = vmand %vm408, %vm447
          %vm474 = vmand %vm409, %vm448
          %vm475 = vmand %vm410, %vm449
          %vm476 = vmand %vm411, %vm450
          %vm477 = vmand %vm412, %vm451
          %v478 = vsel %vm452, 1.0, 0.0
          %v479 = vsel %vm453, 1.0, 0.0
          %v480 = vsel %vm454, 1.0, 0.0
          %v481 = vsel %vm455, 1.0, 0.0
          %v482 = vsel %vm456, 1.0, 0.0
          %v483 = vsel %vm457, 1.0, 0.0
          %v484 = vsel %vm458, 1.0, 0.0
          %v485 = vsel %vm459, 1.0, 0.0
          %v486 = vsel %vm460, 1.0, 0.0
          %v487 = vsel %vm461, 1.0, 0.0
          %v488 = vsel %vm462, 1.0, 0.0
          %v489 = vsel %vm463, 1.0, 0.0
          %v490 = vsel %vm464, 1.0, 0.0
          %v491 = vsel %vm465, 1.0, 0.0
          %v492 = vsel %vm466, 1.0, 0.0
          %v493 = vsel %vm467, 1.0, 0.0
          %v494 = vsel %vm468, 1.0, 0.0
          %v495 = vsel %vm469, 1.0, 0.0
          %v496 = vsel %vm470, 1.0, 0.0
          %v497 = vsel %vm471, 1.0, 0.0
          %v498 = vsel %vm472, 1.0, 0.0
          %v499 = vsel %vm473, 1.0, 0.0
          %v500 = vsel %vm474, 1.0, 0.0
          %v501 = vsel %vm475, 1.0, 0.0
          %v502 = vsel %vm476, 1.0, 0.0
          %v503 = vsel %vm477, 1.0, 0.0
          %504 = vst [vmem:[#allocation3] sm:$0xff] %v478
          %vm505 = vcmask 588800
          %506 = vst.msk [vmem:[#allocation3 + $0x8] sm:$0xff] %vm505, %v479
          %507 = vst [vmem:[#allocation3 + $0x10] sm:$0xff] %v480
          %508 = vst.msk [vmem:[#allocation3 + $0x18] sm:$0xff] %vm505, %v481
          %509 = vst [vmem:[#allocation3 + $0x20] sm:$0xff] %v482
          %510 = vst.msk [vmem:[#allocation3 + $0x28] sm:$0xff] %vm505, %v483
          %511 = vst [vmem:[#allocation3 + $0x30] sm:$0xff] %v484
          %512 = vst.msk [vmem:[#allocation3 + $0x38] sm:$0xff] %vm505, %v485
          %513 = vst [vmem:[#allocation3 + $0x40] sm:$0xff] %v486
          %514 = vst.msk [vmem:[#allocation3 + $0x48] sm:$0xff] %vm505, %v487
          %515 = vst [vmem:[#allocation3 + $0x50] sm:$0xff] %v488
          %516 = vst.msk [vmem:[#allocation3 + $0x58] sm:$0xff] %vm505, %v489
          %517 = vst [vmem:[#allocation3 + $0x60] sm:$0xff] %v490
          %518 = vst.msk [vmem:[#allocation3 + $0x68] sm:$0xff] %vm505, %v491
          %519 = vst [vmem:[#allocation3 + $0x70] sm:$0xff] %v492
          %520 = vst.msk [vmem:[#allocation3 + $0x78] sm:$0xff] %vm505, %v493
          %521 = vst [vmem:[#allocation3 + $0x80] sm:$0xff] %v494
          %522 = vst.msk [vmem:[#allocation3 + $0x88] sm:$0xff] %vm505, %v495
          %523 = vst [vmem:[#allocation3 + $0x90] sm:$0xff] %v496
          %524 = vst.msk [vmem:[#allocation3 + $0x98] sm:$0xff] %vm505, %v497
          %525 = vst [vmem:[#allocation3 + $0xa0] sm:$0xff] %v498
          %526 = vst.msk [vmem:[#allocation3 + $0xa8] sm:$0xff] %vm505, %v499
          %527 = vst [vmem:[#allocation3 + $0xb0] sm:$0xff] %v500
          %528 = vst.msk [vmem:[#allocation3 + $0xb8] sm:$0xff] %vm505, %v501
          %529 = vst [vmem:[#allocation3 + $0xc0] sm:$0xf] %v502
          %vm530 = vcmask 584704
          %531 = vst.msk [vmem:[#allocation3 + $0xc8] sm:$0xf] %vm530, %v503
          %v532 = vadd.s32 %v304, 104
          %v533 = vadd.s32 %v304, 112
          %v534 = vadd.s32 %v304, 120
          %v535 = vadd.s32 %v304, 128
          %v536 = vadd.s32 %v304, 136
          %v537 = vadd.s32 %v304, 144
          %v538 = vadd.s32 %v304, 152
          %v539 = vadd.s32 %v304, 160
          %v540 = vadd.s32 %v304, 168
          %v541 = vadd.s32 %v304, 176
          %v542 = vadd.s32 %v304, 184
          %v543 = vadd.s32 %v304, 192
          %v544 = vadd.s32 %v312, 256
          %v545 = vadd.s32 %v312, 384
          %v546 = vmul.u32 %v312, 200
          %v547 = vmul.u32 %v371, 200
          %v548 = vmul.u32 %v544, 200
          %v549 = vmul.u32 %v545, 200
          %v550 = vmul.u32 %v304, 400
          %v551 = vmul.u32 %v305, 400
          %v552 = vmul.u32 %v306, 400
          %v553 = vmul.u32 %v307, 400
          %v554 = vmul.u32 %v308, 400
          %v555 = vmul.u32 %v309, 400
          %v556 = vmul.u32 %v310, 400
          %v557 = vmul.u32 %v365, 400
          %v558 = vmul.u32 %v366, 400
          %v559 = vmul.u32 %v367, 400
          %v560 = vmul.u32 %v368, 400
          %v561 = vmul.u32 %v369, 400
          %v562 = vmul.u32 %v370, 400
          %v563 = vmul.u32 %v532, 400
          %v564 = vmul.u32 %v533, 400
          %v565 = vmul.u32 %v534, 400
          %v566 = vmul.u32 %v535, 400
          %v567 = vmul.u32 %v536, 400
          %v568 = vmul.u32 %v537, 400
          %v569 = vmul.u32 %v538, 400
          %v570 = vmul.u32 %v539, 400
          %v571 = vmul.u32 %v540, 400
          %v572 = vmul.u32 %v541, 400
          %v573 = vmul.u32 %v542, 400
          %v574 = vmul.u32 %v543, 400
          %vm575 = vcmp.ge.s32.totalorder %v546, %v550
          %vm576 = vcmp.ge.s32.totalorder %v547, %v550
          %vm577 = vcmp.ge.s32.totalorder %v548, %v550
          %vm578 = vcmp.ge.s32.totalorder %v549, %v550
          %vm579 = vcmp.ge.s32.totalorder %v546, %v551
          %vm580 = vcmp.ge.s32.totalorder %v547, %v551
          %vm581 = vcmp.ge.s32.totalorder %v548, %v551
          %vm582 = vcmp.ge.s32.totalorder %v549, %v551
          %vm583 = vcmp.ge.s32.totalorder %v546, %v552
          %vm584 = vcmp.ge.s32.totalorder %v547, %v552
          %vm585 = vcmp.ge.s32.totalorder %v548, %v552
          %vm586 = vcmp.ge.s32.totalorder %v549, %v552
          %vm587 = vcmp.ge.s32.totalorder %v546, %v553
          %vm588 = vcmp.ge.s32.totalorder %v547, %v553
          %vm589 = vcmp.ge.s32.totalorder %v548, %v553
          %vm590 = vcmp.ge.s32.totalorder %v549, %v553
          %vm591 = vcmp.ge.s32.totalorder %v546, %v554
          %vm592 = vcmp.ge.s32.totalorder %v547, %v554
          %vm593 = vcmp.ge.s32.totalorder %v548, %v554
          %vm594 = vcmp.ge.s32.totalorder %v549, %v554
          %vm595 = vcmp.ge.s32.totalorder %v546, %v555
          %vm596 = vcmp.ge.s32.totalorder %v547, %v555
          %vm597 = vcmp.ge.s32.totalorder %v548, %v555
          %vm598 = vcmp.ge.s32.totalorder %v549, %v555
          %vm599 = vcmp.ge.s32.totalorder %v546, %v556
          %vm600 = vcmp.ge.s32.totalorder %v547, %v556
          %vm601 = vcmp.ge.s32.totalorder %v548, %v556
          %vm602 = vcmp.ge.s32.totalorder %v549, %v556
          %vm603 = vcmp.ge.s32.totalorder %v546, %v557
          %vm604 = vcmp.ge.s32.totalorder %v547, %v557
          %vm605 = vcmp.ge.s32.totalorder %v548, %v557
          %vm606 = vcmp.ge.s32.totalorder %v549, %v557
          %vm607 = vcmp.ge.s32.totalorder %v546, %v558
          %vm608 = vcmp.ge.s32.totalorder %v547, %v558
          %vm609 = vcmp.ge.s32.totalorder %v548, %v558
          %vm610 = vcmp.ge.s32.totalorder %v549, %v558
          %vm611 = vcmp.ge.s32.totalorder %v546, %v559
          %vm612 = vcmp.ge.s32.totalorder %v547, %v559
          %vm613 = vcmp.ge.s32.totalorder %v548, %v559
          %vm614 = vcmp.ge.s32.totalorder %v549, %v559
          %vm615 = vcmp.ge.s32.totalorder %v546, %v560
          %vm616 = vcmp.ge.s32.totalorder %v547, %v560
          %vm617 = vcmp.ge.s32.totalorder %v548, %v560
          %vm618 = vcmp.ge.s32.totalorder %v549, %v560
          %vm619 = vcmp.ge.s32.totalorder %v546, %v561
          %vm620 = vcmp.ge.s32.totalorder %v547, %v561
          %vm621 = vcmp.ge.s32.totalorder %v548, %v561
          %vm622 = vcmp.ge.s32.totalorder %v549, %v561
          %vm623 = vcmp.ge.s32.totalorder %v546, %v562
          %vm624 = vcmp.ge.s32.totalorder %v547, %v562
          %vm625 = vcmp.ge.s32.totalorder %v548, %v562
          %vm626 = vcmp.ge.s32.totalorder %v549, %v562
          %vm627 = vcmp.ge.s32.totalorder %v546, %v563
          %vm628 = vcmp.ge.s32.totalorder %v547, %v563
          %vm629 = vcmp.ge.s32.totalorder %v548, %v563
          %vm630 = vcmp.ge.s32.totalorder %v549, %v563
          %vm631 = vcmp.ge.s32.totalorder %v546, %v564
          %vm632 = vcmp.ge.s32.totalorder %v547, %v564
          %vm633 = vcmp.ge.s32.totalorder %v548, %v564
          %vm634 = vcmp.ge.s32.totalorder %v549, %v564
          %vm635 = vcmp.ge.s32.totalorder %v546, %v565
          %vm636 = vcmp.ge.s32.totalorder %v547, %v565
          %vm637 = vcmp.ge.s32.totalorder %v548, %v565
          %vm638 = vcmp.ge.s32.totalorder %v549, %v565
          %vm639 = vcmp.ge.s32.totalorder %v546, %v566
          %vm640 = vcmp.ge.s32.totalorder %v547, %v566
          %vm641 = vcmp.ge.s32.totalorder %v548, %v566
          %vm642 = vcmp.ge.s32.totalorder %v549, %v566
          %vm643 = vcmp.ge.s32.totalorder %v546, %v567
          %vm644 = vcmp.ge.s32.totalorder %v547, %v567
          %vm645 = vcmp.ge.s32.totalorder %v548, %v567
          %vm646 = vcmp.ge.s32.totalorder %v549, %v567
          %vm647 = vcmp.ge.s32.totalorder %v546, %v568
          %vm648 = vcmp.ge.s32.totalorder %v547, %v568
          %vm649 = vcmp.ge.s32.totalorder %v548, %v568
          %vm650 = vcmp.ge.s32.totalorder %v549, %v568
          %vm651 = vcmp.ge.s32.totalorder %v546, %v569
          %vm652 = vcmp.ge.s32.totalorder %v547, %v569
          %vm653 = vcmp.ge.s32.totalorder %v548, %v569
          %vm654 = vcmp.ge.s32.totalorder %v549, %v569
          %vm655 = vcmp.ge.s32.totalorder %v546, %v570
          %vm656 = vcmp.ge.s32.totalorder %v547, %v570
          %vm657 = vcmp.ge.s32.totalorder %v548, %v570
          %vm658 = vcmp.ge.s32.totalorder %v549, %v570
          %vm659 = vcmp.ge.s32.totalorder %v546, %v571
          %vm660 = vcmp.ge.s32.totalorder %v547, %v571
          %vm661 = vcmp.ge.s32.totalorder %v548, %v571
          %vm662 = vcmp.ge.s32.totalorder %v549, %v571
          %vm663 = vcmp.ge.s32.totalorder %v546, %v572
          %vm664 = vcmp.ge.s32.totalorder %v547, %v572
          %vm665 = vcmp.ge.s32.totalorder %v548, %v572
          %vm666 = vcmp.ge.s32.totalorder %v549, %v572
          %vm667 = vcmp.ge.s32.totalorder %v546, %v573
          %vm668 = vcmp.ge.s32.totalorder %v547, %v573
          %vm669 = vcmp.ge.s32.totalorder %v548, %v573
          %vm670 = vcmp.ge.s32.totalorder %v549, %v573
          %vm671 = vcmp.ge.s32.totalorder %v546, %v574
          %vm672 = vcmp.ge.s32.totalorder %v547, %v574
          %vm673 = vcmp.ge.s32.totalorder %v548, %v574
          %vm674 = vcmp.ge.s32.totalorder %v549, %v574
          %v675 = vadd.s32 %v550, 400
          %v676 = vadd.s32 %v551, 400
          %v677 = vadd.s32 %v552, 400
          %v678 = vadd.s32 %v553, 400
          %v679 = vadd.s32 %v554, 400
          %v680 = vadd.s32 %v555, 400
          %v681 = vadd.s32 %v556, 400
          %v682 = vadd.s32 %v557, 400
          %v683 = vadd.s32 %v558, 400
          %v684 = vadd.s32 %v559, 400
          %v685 = vadd.s32 %v560, 400
          %v686 = vadd.s32 %v561, 400
          %v687 = vadd.s32 %v562, 400
          %v688 = vadd.s32 %v563, 400
          %v689 = vadd.s32 %v564, 400
          %v690 = vadd.s32 %v565, 400
          %v691 = vadd.s32 %v566, 400
          %v692 = vadd.s32 %v567, 400
          %v693 = vadd.s32 %v568, 400
          %v694 = vadd.s32 %v569, 400
          %v695 = vadd.s32 %v570, 400
          %v696 = vadd.s32 %v571, 400
          %v697 = vadd.s32 %v572, 400
          %v698 = vadd.s32 %v573, 400
          %v699 = vadd.s32 %v574, 400
          %vm700 = vcmp.lt.s32.totalorder %v546, %v675
          %vm701 = vcmp.lt.s32.totalorder %v547, %v675
          %vm702 = vcmp.lt.s32.totalorder %v548, %v675
          %vm703 = vcmp.lt.s32.totalorder %v549, %v675
          %vm704 = vcmp.lt.s32.totalorder %v546, %v676
          %vm705 = vcmp.lt.s32.totalorder %v547, %v676
          %vm706 = vcmp.lt.s32.totalorder %v548, %v676
          %vm707 = vcmp.lt.s32.totalorder %v549, %v676
          %vm708 = vcmp.lt.s32.totalorder %v546, %v677
          %vm709 = vcmp.lt.s32.totalorder %v547, %v677
          %vm710 = vcmp.lt.s32.totalorder %v548, %v677
          %vm711 = vcmp.lt.s32.totalorder %v549, %v677
          %vm712 = vcmp.lt.s32.totalorder %v546, %v678
          %vm713 = vcmp.lt.s32.totalorder %v547, %v678
          %vm714 = vcmp.lt.s32.totalorder %v548, %v678
          %vm715 = vcmp.lt.s32.totalorder %v549, %v678
          %vm716 = vcmp.lt.s32.totalorder %v546, %v679
          %vm717 = vcmp.lt.s32.totalorder %v547, %v679
          %vm718 = vcmp.lt.s32.totalorder %v548, %v679
          %vm719 = vcmp.lt.s32.totalorder %v549, %v679
          %vm720 = vcmp.lt.s32.totalorder %v546, %v680
          %vm721 = vcmp.lt.s32.totalorder %v547, %v680
          %vm722 = vcmp.lt.s32.totalorder %v548, %v680
          %vm723 = vcmp.lt.s32.totalorder %v549, %v680
          %vm724 = vcmp.lt.s32.totalorder %v546, %v681
          %vm725 = vcmp.lt.s32.totalorder %v547, %v681
          %vm726 = vcmp.lt.s32.totalorder %v548, %v681
          %vm727 = vcmp.lt.s32.totalorder %v549, %v681
          %vm728 = vcmp.lt.s32.totalorder %v546, %v682
          %vm729 = vcmp.lt.s32.totalorder %v547, %v682
          %vm730 = vcmp.lt.s32.totalorder %v548, %v682
          %vm731 = vcmp.lt.s32.totalorder %v549, %v682
          %vm732 = vcmp.lt.s32.totalorder %v546, %v683
          %vm733 = vcmp.lt.s32.totalorder %v547, %v683
          %vm734 = vcmp.lt.s32.totalorder %v548, %v683
          %vm735 = vcmp.lt.s32.totalorder %v549, %v683
          %vm736 = vcmp.lt.s32.totalorder %v546, %v684
          %vm737 = vcmp.lt.s32.totalorder %v547, %v684
          %vm738 = vcmp.lt.s32.totalorder %v548, %v684
          %vm739 = vcmp.lt.s32.totalorder %v549, %v684
          %vm740 = vcmp.lt.s32.totalorder %v546, %v685
          %vm741 = vcmp.lt.s32.totalorder %v547, %v685
          %vm742 = vcmp.lt.s32.totalorder %v548, %v685
          %vm743 = vcmp.lt.s32.totalorder %v549, %v685
          %vm744 = vcmp.lt.s32.totalorder %v546, %v686
          %vm745 = vcmp.lt.s32.totalorder %v547, %v686
          %vm746 = vcmp.lt.s32.totalorder %v548, %v686
          %vm747 = vcmp.lt.s32.totalorder %v549, %v686
          %vm748 = vcmp.lt.s32.totalorder %v546, %v687
          %vm749 = vcmp.lt.s32.totalorder %v547, %v687
          %vm750 = vcmp.lt.s32.totalorder %v548, %v687
          %vm751 = vcmp.lt.s32.totalorder %v549, %v687
          %vm752 = vcmp.lt.s32.totalorder %v546, %v688
          %vm753 = vcmp.lt.s32.totalorder %v547, %v688
          %vm754 = vcmp.lt.s32.totalorder %v548, %v688
          %vm755 = vcmp.lt.s32.totalorder %v549, %v688
          %vm756 = vcmp.lt.s32.totalorder %v546, %v689
          %vm757 = vcmp.lt.s32.totalorder %v547, %v689
          %vm758 = vcmp.lt.s32.totalorder %v548, %v689
          %vm759 = vcmp.lt.s32.totalorder %v549, %v689
          %vm760 = vcmp.lt.s32.totalorder %v546, %v690
          %vm761 = vcmp.lt.s32.totalorder %v547, %v690
          %vm762 = vcmp.lt.s32.totalorder %v548, %v690
          %vm763 = vcmp.lt.s32.totalorder %v549, %v690
          %vm764 = vcmp.lt.s32.totalorder %v546, %v691
          %vm765 = vcmp.lt.s32.totalorder %v547, %v691
          %vm766 = vcmp.lt.s32.totalorder %v548, %v691
          %vm767 = vcmp.lt.s32.totalorder %v549, %v691
          %vm768 = vcmp.lt.s32.totalorder %v546, %v692
          %vm769 = vcmp.lt.s32.totalorder %v547, %v692
          %vm770 = vcmp.lt.s32.totalorder %v548, %v692
          %vm771 = vcmp.lt.s32.totalorder %v549, %v692
          %vm772 = vcmp.lt.s32.totalorder %v546, %v693
          %vm773 = vcmp.lt.s32.totalorder %v547, %v693
          %vm774 = vcmp.lt.s32.totalorder %v548, %v693
          %vm775 = vcmp.lt.s32.totalorder %v549, %v693
          %vm776 = vcmp.lt.s32.totalorder %v546, %v694
          %vm777 = vcmp.lt.s32.totalorder %v547, %v694
          %vm778 = vcmp.lt.s32.totalorder %v548, %v694
          %vm779 = vcmp.lt.s32.totalorder %v549, %v694
          %vm780 = vcmp.lt.s32.totalorder %v546, %v695
          %vm781 = vcmp.lt.s32.totalorder %v547, %v695
          %vm782 = vcmp.lt.s32.totalorder %v548, %v695
          %vm783 = vcmp.lt.s32.totalorder %v549, %v695
          %vm784 = vcmp.lt.s32.totalorder %v546, %v696
          %vm785 = vcmp.lt.s32.totalorder %v547, %v696
          %vm786 = vcmp.lt.s32.totalorder %v548, %v696
          %vm787 = vcmp.lt.s32.totalorder %v549, %v696
          %vm788 = vcmp.lt.s32.totalorder %v546, %v697
          %vm789 = vcmp.lt.s32.totalorder %v547, %v697
          %vm790 = vcmp.lt.s32.totalorder %v548, %v697
          %vm791 = vcmp.lt.s32.totalorder %v549, %v697
          %vm792 = vcmp.lt.s32.totalorder %v546, %v698
          %vm793 = vcmp.lt.s32.totalorder %v547, %v698
          %vm794 = vcmp.lt.s32.totalorder %v548, %v698
          %vm795 = vcmp.lt.s32.totalorder %v549, %v698
          %vm796 = vcmp.lt.s32.totalorder %v546, %v699
          %vm797 = vcmp.lt.s32.totalorder %v547, %v699
          %vm798 = vcmp.lt.s32.totalorder %v548, %v699
          %vm799 = vcmp.lt.s32.totalorder %v549, %v699
          %vm800 = vmand %vm575, %vm700
          %vm801 = vmand %vm576, %vm701
          %vm802 = vmand %vm577, %vm702
          %vm803 = vmand %vm578, %vm703
          %vm804 = vmand %vm579, %vm704
          %vm805 = vmand %vm580, %vm705
          %vm806 = vmand %vm581, %vm706
          %vm807 = vmand %vm582, %vm707
          %vm808 = vmand %vm583, %vm708
          %vm809 = vmand %vm584, %vm709
          %vm810 = vmand %vm585, %vm710
          %vm811 = vmand %vm586, %vm711
          %vm812 = vmand %vm587, %vm712
          %vm813 = vmand %vm588, %vm713
          %vm814 = vmand %vm589, %vm714
          %vm815 = vmand %vm590, %vm715
          %vm816 = vmand %vm591, %vm716
          %vm817 = vmand %vm592, %vm717
          %vm818 = vmand %vm593, %vm718
          %vm819 = vmand %vm594, %vm719
          %vm820 = vmand %vm595, %vm720
          %vm821 = vmand %vm596, %vm721
          %vm822 = vmand %vm597, %vm722
          %vm823 = vmand %vm598, %vm723
          %vm824 = vmand %vm599, %vm724
          %vm825 = vmand %vm600, %vm725
          %vm826 = vmand %vm601, %vm726
          %vm827 = vmand %vm602, %vm727
          %vm828 = vmand %vm603, %vm728
          %vm829 = vmand %vm604, %vm729
          %vm830 = vmand %vm605, %vm730
          %vm831 = vmand %vm606, %vm731
          %vm832 = vmand %vm607, %vm732
          %vm833 = vmand %vm608, %vm733
          %vm834 = vmand %vm609, %vm734
          %vm835 = vmand %vm610, %vm735
          %vm836 = vmand %vm611, %vm736
          %vm837 = vmand %vm612, %vm737
          %vm838 = vmand %vm613, %vm738
          %vm839 = vmand %vm614, %vm739
          %vm840 = vmand %vm615, %vm740
          %vm841 = vmand %vm616, %vm741
          %vm842 = vmand %vm617, %vm742
          %vm843 = vmand %vm618, %vm743
          %vm844 = vmand %vm619, %vm744
          %vm845 = vmand %vm620, %vm745
          %vm846 = vmand %vm621, %vm746
          %vm847 = vmand %vm622, %vm747
          %vm848 = vmand %vm623, %vm748
          %vm849 = vmand %vm624, %vm749
          %vm850 = vmand %vm625, %vm750
          %vm851 = vmand %vm626, %vm751
          %vm852 = vmand %vm627, %vm752
          %vm853 = vmand %vm628, %vm753
          %vm854 = vmand %vm629, %vm754
          %vm855 = vmand %vm630, %vm755
          %vm856 = vmand %vm631, %vm756
          %vm857 = vmand %vm632, %vm757
          %vm858 = vmand %vm633, %vm758
          %vm859 = vmand %vm634, %vm759
          %vm860 = vmand %vm635, %vm760
          %vm861 = vmand %vm636, %vm761
          %vm862 = vmand %vm637, %vm762
          %vm863 = vmand %vm638, %vm763
          %vm864 = vmand %vm639, %vm764
          %vm865 = vmand %vm640, %vm765
          %vm866 = vmand %vm641, %vm766
          %vm867 = vmand %vm642, %vm767
          %vm868 = vmand %vm643, %vm768
          %vm869 = vmand %vm644, %vm769
          %vm870 = vmand %vm645, %vm770
          %vm871 = vmand %vm646, %vm771
          %vm872 = vmand %vm647, %vm772
          %vm873 = vmand %vm648, %vm773
          %vm874 = vmand %vm649, %vm774
          %vm875 = vmand %vm650, %vm775
          %vm876 = vmand %vm651, %vm776
          %vm877 = vmand %vm652, %vm777
          %vm878 = vmand %vm653, %vm778
          %vm879 = vmand %vm654, %vm779
          %vm880 = vmand %vm655, %vm780
          %vm881 = vmand %vm656, %vm781
          %vm882 = vmand %vm657, %vm782
          %vm883 = vmand %vm658, %vm783
          %vm884 = vmand %vm659, %vm784
          %vm885 = vmand %vm660, %vm785
          %vm886 = vmand %vm661, %vm786
          %vm887 = vmand %vm662, %vm787
          %vm888 = vmand %vm663, %vm788
          %vm889 = vmand %vm664, %vm789
          %vm890 = vmand %vm665, %vm790
          %vm891 = vmand %vm666, %vm791
          %vm892 = vmand %vm667, %vm792
          %vm893 = vmand %vm668, %vm793
          %vm894 = vmand %vm669, %vm794
          %vm895 = vmand %vm670, %vm795
          %vm896 = vmand %vm671, %vm796
          %vm897 = vmand %vm672, %vm797
          %vm898 = vmand %vm673, %vm798
          %vm899 = vmand %vm674, %vm799
          %v900 = vsel %vm800, 1.0, 0.0
          %v901 = vsel %vm801, 1.0, 0.0
          %v902 = vsel %vm802, 1.0, 0.0
          %v903 = vsel %vm803, 1.0, 0.0
          %v904 = vsel %vm804, 1.0, 0.0
          %v905 = vsel %vm805, 1.0, 0.0
          %v906 = vsel %vm806, 1.0, 0.0
          %v907 = vsel %vm807, 1.0, 0.0
          %v908 = vsel %vm808, 1.0, 0.0
          %v909 = vsel %vm809, 1.0, 0.0
          %v910 = vsel %vm810, 1.0, 0.0
          %v911 = vsel %vm811, 1.0, 0.0
          %v912 = vsel %vm812, 1.0, 0.0
          %v913 = vsel %vm813, 1.0, 0.0
          %v914 = vsel %vm814, 1.0, 0.0
          %v915 = vsel %vm815, 1.0, 0.0
          %v916 = vsel %vm816, 1.0, 0.0
          %v917 = vsel %vm817, 1.0, 0.0
          %v918 = vsel %vm818, 1.0, 0.0
          %v919 = vsel %vm819, 1.0, 0.0
          %v920 = vsel %vm820, 1.0, 0.0
          %v921 = vsel %vm821, 1.0, 0.0
          %v922 = vsel %vm822, 1.0, 0.0
          %v923 = vsel %vm823, 1.0, 0.0
          %v924 = vsel %vm824, 1.0, 0.0
          %v925 = vsel %vm825, 1.0, 0.0
          %v926 = vsel %vm826, 1.0, 0.0
          %v927 = vsel %vm827, 1.0, 0.0
          %v928 = vsel %vm828, 1.0, 0.0
          %v929 = vsel %vm829, 1.0, 0.0
          %v930 = vsel %vm830, 1.0, 0.0
          %v931 = vsel %vm831, 1.0, 0.0
          %v932 = vsel %vm832, 1.0, 0.0
          %v933 = vsel %vm833, 1.0, 0.0
          %v934 = vsel %vm834, 1.0, 0.0
          %v935 = vsel %vm835, 1.0, 0.0
          %v936 = vsel %vm836, 1.0, 0.0
          %v937 = vsel %vm837, 1.0, 0.0
          %v938 = vsel %vm838, 1.0, 0.0
          %v939 = vsel %vm839, 1.0, 0.0
          %v940 = vsel %vm840, 1.0, 0.0
          %v941 = vsel %vm841, 1.0, 0.0
          %v942 = vsel %vm842, 1.0, 0.0
          %v943 = vsel %vm843, 1.0, 0.0
          %v944 = vsel %vm844, 1.0, 0.0
          %v945 = vsel %vm845, 1.0, 0.0
          %v946 = vsel %vm846, 1.0, 0.0
          %v947 = vsel %vm847, 1.0, 0.0
          %v948 = vsel %vm848, 1.0, 0.0
          %v949 = vsel %vm849, 1.0, 0.0
          %v950 = vsel %vm850, 1.0, 0.0
          %v951 = vsel %vm851, 1.0, 0.0
          %v952 = vsel %vm852, 1.0, 0.0
          %v953 = vsel %vm853, 1.0, 0.0
          %v954 = vsel %vm854, 1.0, 0.0
          %v955 = vsel %vm855, 1.0, 0.0
          %v956 = vsel %vm856, 1.0, 0.0
          %v957 = vsel %vm857, 1.0, 0.0
          %v958 = vsel %vm858, 1.0, 0.0
          %v959 = vsel %vm859, 1.0, 0.0
          %v960 = vsel %vm860, 1.0, 0.0
          %v961 = vsel %vm861, 1.0, 0.0
          %v962 = vsel %vm862, 1.0, 0.0
          %v963 = vsel %vm863, 1.0, 0.0
          %v964 = vsel %vm864, 1.0, 0.0
          %v965 = vsel %vm865, 1.0, 0.0
          %v966 = vsel %vm866, 1.0, 0.0
          %v967 = vsel %vm867, 1.0, 0.0
          %v968 = vsel %vm868, 1.0, 0.0
          %v969 = vsel %vm869, 1.0, 0.0
          %v970 = vsel %vm870, 1.0, 0.0
          %v971 = vsel %vm871, 1.0, 0.0
          %v972 = vsel %vm872, 1.0, 0.0
          %v973 = vsel %vm873, 1.0, 0.0
          %v974 = vsel %vm874, 1.0, 0.0
          %v975 = vsel %vm875, 1.0, 0.0
          %v976 = vsel %vm876, 1.0, 0.0
          %v977 = vsel %vm877, 1.0, 0.0
          %v978 = vsel %vm878, 1.0, 0.0
          %v979 = vsel %vm879, 1.0, 0.0
          %v980 = vsel %vm880, 1.0, 0.0
          %v981 = vsel %vm881, 1.0, 0.0
          %v982 = vsel %vm882, 1.0, 0.0
          %v983 = vsel %vm883, 1.0, 0.0
          %v984 = vsel %vm884, 1.0, 0.0
          %v985 = vsel %vm885, 1.0, 0.0
          %v986 = vsel %vm886, 1.0, 0.0
          %v987 = vsel %vm887, 1.0, 0.0
          %v988 = vsel %vm888, 1.0, 0.0
          %v989 = vsel %vm889, 1.0, 0.0
          %v990 = vsel %vm890, 1.0, 0.0
          %v991 = vsel %vm891, 1.0, 0.0
          %v992 = vsel %vm892, 1.0, 0.0
          %v993 = vsel %vm893, 1.0, 0.0
          %v994 = vsel %vm894, 1.0, 0.0
          %v995 = vsel %vm895, 1.0, 0.0
          %v996 = vsel %vm896, 1.0, 0.0
          %v997 = vsel %vm897, 1.0, 0.0
          %v998 = vsel %vm898, 1.0, 0.0
          %v999 = vsel %vm899, 1.0, 0.0
          %1000 = vst [vmem:[#allocation4] sm:$0xff] %v900
          %1001 = vst [vmem:[#allocation4 + $0x8] sm:$0xff] %v901
          %1002 = vst [vmem:[#allocation4 + $0x10] sm:$0xff] %v902
          %vm1003 = vcmask 130048
          %1004 = vst.msk [vmem:[#allocation4 + $0x18] sm:$0xff] %vm1003, %v903
          %1005 = vst [vmem:[#allocation4 + $0x20] sm:$0xff] %v904
          %1006 = vst [vmem:[#allocation4 + $0x28] sm:$0xff] %v905
          %1007 = vst [vmem:[#allocation4 + $0x30] sm:$0xff] %v906
          %1008 = vst.msk [vmem:[#allocation4 + $0x38] sm:$0xff] %vm1003, %v907
          %1009 = vst [vmem:[#allocation4 + $0x40] sm:$0xff] %v908
          %1010 = vst [vmem:[#allocation4 + $0x48] sm:$0xff] %v909
          %1011 = vst [vmem:[#allocation4 + $0x50] sm:$0xff] %v910
          %1012 = vst.msk [vmem:[#allocation4 + $0x58] sm:$0xff] %vm1003, %v911
          %1013 = vst [vmem:[#allocation4 + $0x60] sm:$0xff] %v912
          %1014 = vst [vmem:[#allocation4 + $0x68] sm:$0xff] %v913
          %1015 = vst [vmem:[#allocation4 + $0x70] sm:$0xff] %v914
          %1016 = vst.msk [vmem:[#allocation4 + $0x78] sm:$0xff] %vm1003, %v915
          %1017 = vst [vmem:[#allocation4 + $0x80] sm:$0xff] %v916
          %1018 = vst [vmem:[#allocation4 + $0x88] sm:$0xff] %v917
          %1019 = vst [vmem:[#allocation4 + $0x90] sm:$0xff] %v918
          %1020 = vst.msk [vmem:[#allocation4 + $0x98] sm:$0xff] %vm1003, %v919
          %1021 = vst [vmem:[#allocation4 + $0xa0] sm:$0xff] %v920
          %1022 = vst [vmem:[#allocation4 + $0xa8] sm:$0xff] %v921
          %1023 = vst [vmem:[#allocation4 + $0xb0] sm:$0xff] %v922
          %1024 = vst.msk [vmem:[#allocation4 + $0xb8] sm:$0xff] %vm1003, %v923
          %1025 = vst [vmem:[#allocation4 + $0xc0] sm:$0xff] %v924
          %1026 = vst [vmem:[#allocation4 + $0xc8] sm:$0xff] %v925
          %1027 = vst [vmem:[#allocation4 + $0xd0] sm:$0xff] %v926
          %1028 = vst.msk [vmem:[#allocation4 + $0xd8] sm:$0xff] %vm1003, %v927
          %1029 = vst [vmem:[#allocation4 + $0xe0] sm:$0xff] %v928
          %1030 = vst [vmem:[#allocation4 + $0xe8] sm:$0xff] %v929
          %1031 = vst [vmem:[#allocation4 + $0xf0] sm:$0xff] %v930
          %1032 = vst.msk [vmem:[#allocation4 + $0xf8] sm:$0xff] %vm1003, %v931
          %1033 = vst [vmem:[#allocation4 + $0x100] sm:$0xff] %v932
          %1034 = vst [vmem:[#allocation4 + $0x108] sm:$0xff] %v933
          %1035 = vst [vmem:[#allocation4 + $0x110] sm:$0xff] %v934
          %1036 = vst.msk [vmem:[#allocation4 + $0x118] sm:$0xff] %vm1003, %v935
          %1037 = vst [vmem:[#allocation4 + $0x120] sm:$0xff] %v936
          %1038 = vst [vmem:[#allocation4 + $0x128] sm:$0xff] %v937
          %1039 = vst [vmem:[#allocation4 + $0x130] sm:$0xff] %v938
          %1040 = vst.msk [vmem:[#allocation4 + $0x138] sm:$0xff] %vm1003, %v939
          %1041 = vst [vmem:[#allocation4 + $0x140] sm:$0xff] %v940
          %1042 = vst [vmem:[#allocation4 + $0x148] sm:$0xff] %v941
          %1043 = vst [vmem:[#allocation4 + $0x150] sm:$0xff] %v942
          %1044 = vst.msk [vmem:[#allocation4 + $0x158] sm:$0xff] %vm1003, %v943
          %1045 = vst [vmem:[#allocation4 + $0x160] sm:$0xff] %v944
          %1046 = vst [vmem:[#allocation4 + $0x168] sm:$0xff] %v945
          %1047 = vst [vmem:[#allocation4 + $0x170] sm:$0xff] %v946
          %1048 = vst.msk [vmem:[#allocation4 + $0x178] sm:$0xff] %vm1003, %v947
          %1049 = vst [vmem:[#allocation4 + $0x180] sm:$0xff] %v948
          %1050 = vst [vmem:[#allocation4 + $0x188] sm:$0xff] %v949
          %1051 = vst [vmem:[#allocation4 + $0x190] sm:$0xff] %v950
          %1052 = vst.msk [vmem:[#allocation4 + $0x198] sm:$0xff] %vm1003, %v951
          %1053 = vst [vmem:[#allocation4 + $0x1a0] sm:$0xff] %v952
          %1054 = vst [vmem:[#allocation4 + $0x1a8] sm:$0xff] %v953
          %1055 = vst [vmem:[#allocation4 + $0x1b0] sm:$0xff] %v954
          %1056 = vst.msk [vmem:[#allocation4 + $0x1b8] sm:$0xff] %vm1003, %v955
          %1057 = vst [vmem:[#allocation4 + $0x1c0] sm:$0xff] %v956
          %1058 = vst [vmem:[#allocation4 + $0x1c8] sm:$0xff] %v957
          %1059 = vst [vmem:[#allocation4 + $0x1d0] sm:$0xff] %v958
          %1060 = vst.msk [vmem:[#allocation4 + $0x1d8] sm:$0xff] %vm1003, %v959
          %1061 = vst [vmem:[#allocation4 + $0x1e0] sm:$0xff] %v960
          %1062 = vst [vmem:[#allocation4 + $0x1e8] sm:$0xff] %v961
          %1063 = vst [vmem:[#allocation4 + $0x1f0] sm:$0xff] %v962
          %1064 = vst.msk [vmem:[#allocation4 + $0x1f8] sm:$0xff] %vm1003, %v963
          %1065 = vst [vmem:[#allocation4 + $0x200] sm:$0xff] %v964
          %1066 = vst [vmem:[#allocation4 + $0x208] sm:$0xff] %v965
          %1067 = vst [vmem:[#allocation4 + $0x210] sm:$0xff] %v966
          %1068 = vst.msk [vmem:[#allocation4 + $0x218] sm:$0xff] %vm1003, %v967
          %1069 = vst [vmem:[#allocation4 + $0x220] sm:$0xff] %v968
          %1070 = vst [vmem:[#allocation4 + $0x228] sm:$0xff] %v969
          %1071 = vst [vmem:[#allocation4 + $0x230] sm:$0xff] %v970
          %1072 = vst.msk [vmem:[#allocation4 + $0x238] sm:$0xff] %vm1003, %v971
          %1073 = vst [vmem:[#allocation4 + $0x240] sm:$0xff] %v972
          %1074 = vst [vmem:[#allocation4 + $0x248] sm:$0xff] %v973
          %1075 = vst [vmem:[#allocation4 + $0x250] sm:$0xff] %v974
          %1076 = vst.msk [vmem:[#allocation4 + $0x258] sm:$0xff] %vm1003, %v975
          %1077 = vst [vmem:[#allocation4 + $0x260] sm:$0xff] %v976
          %1078 = vst [vmem:[#allocation4 + $0x268] sm:$0xff] %v977
          %1079 = vst [vmem:[#allocation4 + $0x270] sm:$0xff] %v978
          %1080 = vst.msk [vmem:[#allocation4 + $0x278] sm:$0xff] %vm1003, %v979
          %1081 = vst [vmem:[#allocation4 + $0x280] sm:$0xff] %v980
          %1082 = vst [vmem:[#allocation4 + $0x288] sm:$0xff] %v981
          %1083 = vst [vmem:[#allocation4 + $0x290] sm:$0xff] %v982
          %1084 = vst.msk [vmem:[#allocation4 + $0x298] sm:$0xff] %vm1003, %v983
          %1085 = vst [vmem:[#allocation4 + $0x2a0] sm:$0xff] %v984
          %1086 = vst [vmem:[#allocation4 + $0x2a8] sm:$0xff] %v985
          %1087 = vst [vmem:[#allocation4 + $0x2b0] sm:$0xff] %v986
          %1088 = vst.msk [vmem:[#allocation4 + $0x2b8] sm:$0xff] %vm1003, %v987
          %1089 = vst [vmem:[#allocation4 + $0x2c0] sm:$0xff] %v988
          %1090 = vst [vmem:[#allocation4 + $0x2c8] sm:$0xff] %v989
          %1091 = vst [vmem:[#allocation4 + $0x2d0] sm:$0xff] %v990
          %1092 = vst.msk [vmem:[#allocation4 + $0x2d8] sm:$0xff] %vm1003, %v991
          %1093 = vst [vmem:[#allocation4 + $0x2e0] sm:$0xff] %v992
          %1094 = vst [vmem:[#allocation4 + $0x2e8] sm:$0xff] %v993
          %1095 = vst [vmem:[#allocation4 + $0x2f0] sm:$0xff] %v994
          %1096 = vst.msk [vmem:[#allocation4 + $0x2f8] sm:$0xff] %vm1003, %v995
          %1097 = vst [vmem:[#allocation4 + $0x300] sm:$0xff] %v996
          %1098 = vst [vmem:[#allocation4 + $0x308] sm:$0xff] %v997
          %1099 = vst [vmem:[#allocation4 + $0x310] sm:$0xff] %v998
          %1100 = vst.msk [vmem:[#allocation4 + $0x318] sm:$0xff] %vm1003, %v999
          %v1101 = vadd.s32 %v304, 200
          %v1102 = vadd.s32 %v304, 208
          %v1103 = vadd.s32 %v304, 216
          %v1104 = vadd.s32 %v304, 224
          %v1105 = vadd.s32 %v304, 232
          %v1106 = vadd.s32 %v304, 240
          %v1107 = vadd.s32 %v304, 248
          %v1108 = vadd.s32 %v304, 256
          %v1109 = vadd.s32 %v304, 264
          %v1110 = vadd.s32 %v304, 272
          %v1111 = vadd.s32 %v304, 280
          %v1112 = vadd.s32 %v304, 288
          %v1113 = vadd.s32 %v304, 296
          %v1114 = vadd.s32 %v304, 304
          %v1115 = vadd.s32 %v304, 312
          %v1116 = vadd.s32 %v304, 320
          %v1117 = vadd.s32 %v304, 328
          %v1118 = vadd.s32 %v304, 336
          %v1119 = vadd.s32 %v304, 344
          %v1120 = vadd.s32 %v304, 352
          %v1121 = vadd.s32 %v304, 360
          %v1122 = vadd.s32 %v304, 368
          %v1123 = vadd.s32 %v304, 376
          %v1124 = vadd.s32 %v304, 384
          %v1125 = vadd.s32 %v304, 392
          %v1126 = vadd.s32 %v312, 512
          %v1127 = vadd.s32 %v312, 640
          %v1128 = vadd.s32 %v312, 768
          %v1129 = vmul.u32 %v312, 400
          %v1130 = vmul.u32 %v371, 400
          %v1131 = vmul.u32 %v544, 400
          %v1132 = vmul.u32 %v545, 400
          %v1133 = vmul.u32 %v1126, 400
          %v1134 = vmul.u32 %v1127, 400
          %v1135 = vmul.u32 %v1128, 400
          %v1136 = vmul.u32 %v304, 778
          %v1137 = vmul.u32 %v305, 778
          %v1138 = vmul.u32 %v306, 778
          %v1139 = vmul.u32 %v307, 778
          %v1140 = vmul.u32 %v308, 778
          %v1141 = vmul.u32 %v309, 778
          %v1142 = vmul.u32 %v310, 778
          %v1143 = vmul.u32 %v365, 778
          %v1144 = vmul.u32 %v366, 778
          %v1145 = vmul.u32 %v367, 778
          %v1146 = vmul.u32 %v368, 778
          %v1147 = vmul.u32 %v369, 778
          %v1148 = vmul.u32 %v370, 778
          %v1149 = vmul.u32 %v532, 778
          %v1150 = vmul.u32 %v533, 778
          %v1151 = vmul.u32 %v534, 778
          %v1152 = vmul.u32 %v535, 778
          %v1153 = vmul.u32 %v536, 778
          %v1154 = vmul.u32 %v537, 778
          %v1155 = vmul.u32 %v538, 778
          %v1156 = vmul.u32 %v539, 778
          %v1157 = vmul.u32 %v540, 778
          %v1158 = vmul.u32 %v541, 778
          %v1159 = vmul.u32 %v542, 778
          %v1160 = vmul.u32 %v543, 778
          %v1161 = vmul.u32 %v1101, 778
          %v1162 = vmul.u32 %v1102, 778
          %v1163 = vmul.u32 %v1103, 778
          %v1164 = vmul.u32 %v1104, 778
          %v1165 = vmul.u32 %v1105, 778
          %v1166 = vmul.u32 %v1106, 778
          %v1167 = vmul.u32 %v1107, 778
          %v1168 = vmul.u32 %v1108, 778
          %v1169 = vmul.u32 %v1109, 778
          %v1170 = vmul.u32 %v1110, 778
          %v1171 = vmul.u32 %v1111, 778
          %v1172 = vmul.u32 %v1112, 778
          %v1173 = vmul.u32 %v1113, 778
          %v1174 = vmul.u32 %v1114, 778
          %v1175 = vmul.u32 %v1115, 778
          %v1176 = vmul.u32 %v1116, 778
          %v1177 = vmul.u32 %v1117, 778
          %v1178 = vmul.u32 %v1118, 778
          %v1179 = vmul.u32 %v1119, 778
          %v1180 = vmul.u32 %v1120, 778
          %v1181 = vmul.u32 %v1121, 778
          %v1182 = vmul.u32 %v1122, 778
          %v1183 = vmul.u32 %v1123, 778
          %v1184 = vmul.u32 %v1124, 778
          %v1185 = vmul.u32 %v1125, 778
          %vm1186 = vcmp.ge.s32.totalorder %v1129, %v1136
          %vm1187 = vcmp.ge.s32.totalorder %v1130, %v1136
          %vm1188 = vcmp.ge.s32.totalorder %v1131, %v1136
          %vm1189 = vcmp.ge.s32.totalorder %v1132, %v1136
          %vm1190 = vcmp.ge.s32.totalorder %v1133, %v1136
          %vm1191 = vcmp.ge.s32.totalorder %v1134, %v1136
          %vm1192 = vcmp.ge.s32.totalorder %v1135, %v1136
          %vm1193 = vcmp.ge.s32.totalorder %v1129, %v1137
          %vm1194 = vcmp.ge.s32.totalorder %v1130, %v1137
          %vm1195 = vcmp.ge.s32.totalorder %v1131, %v1137
          %vm1196 = vcmp.ge.s32.totalorder %v1132, %v1137
          %vm1197 = vcmp.ge.s32.totalorder %v1133, %v1137
          %vm1198 = vcmp.ge.s32.totalorder %v1134, %v1137
          %vm1199 = vcmp.ge.s32.totalorder %v1135, %v1137
          %vm1200 = vcmp.ge.s32.totalorder %v1129, %v1138
          %vm1201 = vcmp.ge.s32.totalorder %v1130, %v1138
          %vm1202 = vcmp.ge.s32.totalorder %v1131, %v1138
          %vm1203 = vcmp.ge.s32.totalorder %v1132, %v1138
          %vm1204 = vcmp.ge.s32.totalorder %v1133, %v1138
          %vm1205 = vcmp.ge.s32.totalorder %v1134, %v1138
          %vm1206 = vcmp.ge.s32.totalorder %v1135, %v1138
          %vm1207 = vcmp.ge.s32.totalorder %v1129, %v1139
          %vm1208 = vcmp.ge.s32.totalorder %v1130, %v1139
          %vm1209 = vcmp.ge.s32.totalorder %v1131, %v1139
          %vm1210 = vcmp.ge.s32.totalorder %v1132, %v1139
          %vm1211 = vcmp.ge.s32.totalorder %v1133, %v1139
          %vm1212 = vcmp.ge.s32.totalorder %v1134, %v1139
          %vm1213 = vcmp.ge.s32.totalorder %v1135, %v1139
          %vm1214 = vcmp.ge.s32.totalorder %v1129, %v1140
          %vm1215 = vcmp.ge.s32.totalorder %v1130, %v1140
          %vm1216 = vcmp.ge.s32.totalorder %v1131, %v1140
          %vm1217 = vcmp.ge.s32.totalorder %v1132, %v1140
          %vm1218 = vcmp.ge.s32.totalorder %v1133, %v1140
          %vm1219 = vcmp.ge.s32.totalorder %v1134, %v1140
          %vm1220 = vcmp.ge.s32.totalorder %v1135, %v1140
          %vm1221 = vcmp.ge.s32.totalorder %v1129, %v1141
          %vm1222 = vcmp.ge.s32.totalorder %v1130, %v1141
          %vm1223 = vcmp.ge.s32.totalorder %v1131, %v1141
          %vm1224 = vcmp.ge.s32.totalorder %v1132, %v1141
          %vm1225 = vcmp.ge.s32.totalorder %v1133, %v1141
          %vm1226 = vcmp.ge.s32.totalorder %v1134, %v1141
          %vm1227 = vcmp.ge.s32.totalorder %v1135, %v1141
          %vm1228 = vcmp.ge.s32.totalorder %v1129, %v1142
          %vm1229 = vcmp.ge.s32.totalorder %v1130, %v1142
          %vm1230 = vcmp.ge.s32.totalorder %v1131, %v1142
          %vm1231 = vcmp.ge.s32.totalorder %v1132, %v1142
          %vm1232 = vcmp.ge.s32.totalorder %v1133, %v1142
          %vm1233 = vcmp.ge.s32.totalorder %v1134, %v1142
          %vm1234 = vcmp.ge.s32.totalorder %v1135, %v1142
          %vm1235 = vcmp.ge.s32.totalorder %v1129, %v1143
          %vm1236 = vcmp.ge.s32.totalorder %v1130, %v1143
          %vm1237 = vcmp.ge.s32.totalorder %v1131, %v1143
          %vm1238 = vcmp.ge.s32.totalorder %v1132, %v1143
          %vm1239 = vcmp.ge.s32.totalorder %v1133, %v1143
          %vm1240 = vcmp.ge.s32.totalorder %v1134, %v1143
          %vm1241 = vcmp.ge.s32.totalorder %v1135, %v1143
          %vm1242 = vcmp.ge.s32.totalorder %v1129, %v1144
          %vm1243 = vcmp.ge.s32.totalorder %v1130, %v1144
          %vm1244 = vcmp.ge.s32.totalorder %v1131, %v1144
          %vm1245 = vcmp.ge.s32.totalorder %v1132, %v1144
          %vm1246 = vcmp.ge.s32.totalorder %v1133, %v1144
          %vm1247 = vcmp.ge.s32.totalorder %v1134, %v1144
          %vm1248 = vcmp.ge.s32.totalorder %v1135, %v1144
          %vm1249 = vcmp.ge.s32.totalorder %v1129, %v1145
          %vm1250 = vcmp.ge.s32.totalorder %v1130, %v1145
          %vm1251 = vcmp.ge.s32.totalorder %v1131, %v1145
          %vm1252 = vcmp.ge.s32.totalorder %v1132, %v1145
          %vm1253 = vcmp.ge.s32.totalorder %v1133, %v1145
          %vm1254 = vcmp.ge.s32.totalorder %v1134, %v1145
          %vm1255 = vcmp.ge.s32.totalorder %v1135, %v1145
          %vm1256 = vcmp.ge.s32.totalorder %v1129, %v1146
          %vm1257 = vcmp.ge.s32.totalorder %v1130, %v1146
          %vm1258 = vcmp.ge.s32.totalorder %v1131, %v1146
          %vm1259 = vcmp.ge.s32.totalorder %v1132, %v1146
          %vm1260 = vcmp.ge.s32.totalorder %v1133, %v1146
          %vm1261 = vcmp.ge.s32.totalorder %v1134, %v1146
          %vm1262 = vcmp.ge.s32.totalorder %v1135, %v1146
          %vm1263 = vcmp.ge.s32.totalorder %v1129, %v1147
          %vm1264 = vcmp.ge.s32.totalorder %v1130, %v1147
          %vm1265 = vcmp.ge.s32.totalorder %v1131, %v1147
          %vm1266 = vcmp.ge.s32.totalorder %v1132, %v1147
          %vm1267 = vcmp.ge.s32.totalorder %v1133, %v1147
          %vm1268 = vcmp.ge.s32.totalorder %v1134, %v1147
          %vm1269 = vcmp.ge.s32.totalorder %v1135, %v1147
          %vm1270 = vcmp.ge.s32.totalorder %v1129, %v1148
          %vm1271 = vcmp.ge.s32.totalorder %v1130, %v1148
          %vm1272 = vcmp.ge.s32.totalorder %v1131, %v1148
          %vm1273 = vcmp.ge.s32.totalorder %v1132, %v1148
          %vm1274 = vcmp.ge.s32.totalorder %v1133, %v1148
          %vm1275 = vcmp.ge.s32.totalorder %v1134, %v1148
          %vm1276 = vcmp.ge.s32.totalorder %v1135, %v1148
          %vm1277 = vcmp.ge.s32.totalorder %v1129, %v1149
          %vm1278 = vcmp.ge.s32.totalorder %v1130, %v1149
          %vm1279 = vcmp.ge.s32.totalorder %v1131, %v1149
          %vm1280 = vcmp.ge.s32.totalorder %v1132, %v1149
          %vm1281 = vcmp.ge.s32.totalorder %v1133, %v1149
          %vm1282 = vcmp.ge.s32.totalorder %v1134, %v1149
          %vm1283 = vcmp.ge.s32.totalorder %v1135, %v1149
          %vm1284 = vcmp.ge.s32.totalorder %v1129, %v1150
          %vm1285 = vcmp.ge.s32.totalorder %v1130, %v1150
          %vm1286 = vcmp.ge.s32.totalorder %v1131, %v1150
          %vm1287 = vcmp.ge.s32.totalorder %v1132, %v1150
          %vm1288 = vcmp.ge.s32.totalorder %v1133, %v1150
          %vm1289 = vcmp.ge.s32.totalorder %v1134, %v1150
          %vm1290 = vcmp.ge.s32.totalorder %v1135, %v1150
          %vm1291 = vcmp.ge.s32.totalorder %v1129, %v1151
          %vm1292 = vcmp.ge.s32.totalorder %v1130, %v1151
          %vm1293 = vcmp.ge.s32.totalorder %v1131, %v1151
          %vm1294 = vcmp.ge.s32.totalorder %v1132, %v1151
          %vm1295 = vcmp.ge.s32.totalorder %v1133, %v1151
          %vm1296 = vcmp.ge.s32.totalorder %v1134, %v1151
          %vm1297 = vcmp.ge.s32.totalorder %v1135, %v1151
          %vm1298 = vcmp.ge.s32.totalorder %v1129, %v1152
          %vm1299 = vcmp.ge.s32.totalorder %v1130, %v1152
          %vm1300 = vcmp.ge.s32.totalorder %v1131, %v1152
          %vm1301 = vcmp.ge.s32.totalorder %v1132, %v1152
          %vm1302 = vcmp.ge.s32.totalorder %v1133, %v1152
          %vm1303 = vcmp.ge.s32.totalorder %v1134, %v1152
          %vm1304 = vcmp.ge.s32.totalorder %v1135, %v1152
          %vm1305 = vcmp.ge.s32.totalorder %v1129, %v1153
          %vm1306 = vcmp.ge.s32.totalorder %v1130, %v1153
          %vm1307 = vcmp.ge.s32.totalorder %v1131, %v1153
          %vm1308 = vcmp.ge.s32.totalorder %v1132, %v1153
          %vm1309 = vcmp.ge.s32.totalorder %v1133, %v1153
          %vm1310 = vcmp.ge.s32.totalorder %v1134, %v1153
          %vm1311 = vcmp.ge.s32.totalorder %v1135, %v1153
          %vm1312 = vcmp.ge.s32.totalorder %v1129, %v1154
          %vm1313 = vcmp.ge.s32.totalorder %v1130, %v1154
          %vm1314 = vcmp.ge.s32.totalorder %v1131, %v1154
          %vm1315 = vcmp.ge.s32.totalorder %v1132, %v1154
          %vm1316 = vcmp.ge.s32.totalorder %v1133, %v1154
          %vm1317 = vcmp.ge.s32.totalorder %v1134, %v1154
          %vm1318 = vcmp.ge.s32.totalorder %v1135, %v1154
          %vm1319 = vcmp.ge.s32.totalorder %v1129, %v1155
          %vm1320 = vcmp.ge.s32.totalorder %v1130, %v1155
          %vm1321 = vcmp.ge.s32.totalorder %v1131, %v1155
          %vm1322 = vcmp.ge.s32.totalorder %v1132, %v1155
          %vm1323 = vcmp.ge.s32.totalorder %v1133, %v1155
          %vm1324 = vcmp.ge.s32.totalorder %v1134, %v1155
          %vm1325 = vcmp.ge.s32.totalorder %v1135, %v1155
          %vm1326 = vcmp.ge.s32.totalorder %v1129, %v1156
          %vm1327 = vcmp.ge.s32.totalorder %v1130, %v1156
          %vm1328 = vcmp.ge.s32.totalorder %v1131, %v1156
          %vm1329 = vcmp.ge.s32.totalorder %v1132, %v1156
          %vm1330 = vcmp.ge.s32.totalorder %v1133, %v1156
          %vm1331 = vcmp.ge.s32.totalorder %v1134, %v1156
          %vm1332 = vcmp.ge.s32.totalorder %v1135, %v1156
          %vm1333 = vcmp.ge.s32.totalorder %v1129, %v1157
          %vm1334 = vcmp.ge.s32.totalorder %v1130, %v1157
          %vm1335 = vcmp.ge.s32.totalorder %v1131, %v1157
          %vm1336 = vcmp.ge.s32.totalorder %v1132, %v1157
          %vm1337 = vcmp.ge.s32.totalorder %v1133, %v1157
          %vm1338 = vcmp.ge.s32.totalorder %v1134, %v1157
          %vm1339 = vcmp.ge.s32.totalorder %v1135, %v1157
          %vm1340 = vcmp.ge.s32.totalorder %v1129, %v1158
          %vm1341 = vcmp.ge.s32.totalorder %v1130, %v1158
          %vm1342 = vcmp.ge.s32.totalorder %v1131, %v1158
          %vm1343 = vcmp.ge.s32.totalorder %v1132, %v1158
          %vm1344 = vcmp.ge.s32.totalorder %v1133, %v1158
          %vm1345 = vcmp.ge.s32.totalorder %v1134, %v1158
          %vm1346 = vcmp.ge.s32.totalorder %v1135, %v1158
          %vm1347 = vcmp.ge.s32.totalorder %v1129, %v1159
          %vm1348 = vcmp.ge.s32.totalorder %v1130, %v1159
          %vm1349 = vcmp.ge.s32.totalorder %v1131, %v1159
          %vm1350 = vcmp.ge.s32.totalorder %v1132, %v1159
          %vm1351 = vcmp.ge.s32.totalorder %v1133, %v1159
          %vm1352 = vcmp.ge.s32.totalorder %v1134, %v1159
          %vm1353 = vcmp.ge.s32.totalorder %v1135, %v1159
          %vm1354 = vcmp.ge.s32.totalorder %v1129, %v1160
          %vm1355 = vcmp.ge.s32.totalorder %v1130, %v1160
          %vm1356 = vcmp.ge.s32.totalorder %v1131, %v1160
          %vm1357 = vcmp.ge.s32.totalorder %v1132, %v1160
          %vm1358 = vcmp.ge.s32.totalorder %v1133, %v1160
          %vm1359 = vcmp.ge.s32.totalorder %v1134, %v1160
          %vm1360 = vcmp.ge.s32.totalorder %v1135, %v1160
          %vm1361 = vcmp.ge.s32.totalorder %v1129, %v1161
          %vm1362 = vcmp.ge.s32.totalorder %v1130, %v1161
          %vm1363 = vcmp.ge.s32.totalorder %v1131, %v1161
          %vm1364 = vcmp.ge.s32.totalorder %v1132, %v1161
          %vm1365 = vcmp.ge.s32.totalorder %v1133, %v1161
          %vm1366 = vcmp.ge.s32.totalorder %v1134, %v1161
          %vm1367 = vcmp.ge.s32.totalorder %v1135, %v1161
          %vm1368 = vcmp.ge.s32.totalorder %v1129, %v1162
          %vm1369 = vcmp.ge.s32.totalorder %v1130, %v1162
          %vm1370 = vcmp.ge.s32.totalorder %v1131, %v1162
          %vm1371 = vcmp.ge.s32.totalorder %v1132, %v1162
          %vm1372 = vcmp.ge.s32.totalorder %v1133, %v1162
          %vm1373 = vcmp.ge.s32.totalorder %v1134, %v1162
          %vm1374 = vcmp.ge.s32.totalorder %v1135, %v1162
          %vm1375 = vcmp.ge.s32.totalorder %v1129, %v1163
          %vm1376 = vcmp.ge.s32.totalorder %v1130, %v1163
          %vm1377 = vcmp.ge.s32.totalorder %v1131, %v1163
          %vm1378 = vcmp.ge.s32.totalorder %v1132, %v1163
          %vm1379 = vcmp.ge.s32.totalorder %v1133, %v1163
          %vm1380 = vcmp.ge.s32.totalorder %v1134, %v1163
          %vm1381 = vcmp.ge.s32.totalorder %v1135, %v1163
          %vm1382 = vcmp.ge.s32.totalorder %v1129, %v1164
          %vm1383 = vcmp.ge.s32.totalorder %v1130, %v1164
          %vm1384 = vcmp.ge.s32.totalorder %v1131, %v1164
          %vm1385 = vcmp.ge.s32.totalorder %v1132, %v1164
          %vm1386 = vcmp.ge.s32.totalorder %v1133, %v1164
          %vm1387 = vcmp.ge.s32.totalorder %v1134, %v1164
          %vm1388 = vcmp.ge.s32.totalorder %v1135, %v1164
          %vm1389 = vcmp.ge.s32.totalorder %v1129, %v1165
          %vm1390 = vcmp.ge.s32.totalorder %v1130, %v1165
          %vm1391 = vcmp.ge.s32.totalorder %v1131, %v1165
          %vm1392 = vcmp.ge.s32.totalorder %v1132, %v1165
          %vm1393 = vcmp.ge.s32.totalorder %v1133, %v1165
          %vm1394 = vcmp.ge.s32.totalorder %v1134, %v1165
          %vm1395 = vcmp.ge.s32.totalorder %v1135, %v1165
          %vm1396 = vcmp.ge.s32.totalorder %v1129, %v1166
          %vm1397 = vcmp.ge.s32.totalorder %v1130, %v1166
          %vm1398 = vcmp.ge.s32.totalorder %v1131, %v1166
          %vm1399 = vcmp.ge.s32.totalorder %v1132, %v1166
          %vm1400 = vcmp.ge.s32.totalorder %v1133, %v1166
          %vm1401 = vcmp.ge.s32.totalorder %v1134, %v1166
          %vm1402 = vcmp.ge.s32.totalorder %v1135, %v1166
          %vm1403 = vcmp.ge.s32.totalorder %v1129, %v1167
          %vm1404 = vcmp.ge.s32.totalorder %v1130, %v1167
          %vm1405 = vcmp.ge.s32.totalorder %v1131, %v1167
          %vm1406 = vcmp.ge.s32.totalorder %v1132, %v1167
          %vm1407 = vcmp.ge.s32.totalorder %v1133, %v1167
          %vm1408 = vcmp.ge.s32.totalorder %v1134, %v1167
          %vm1409 = vcmp.ge.s32.totalorder %v1135, %v1167
          %vm1410 = vcmp.ge.s32.totalorder %v1129, %v1168
          %vm1411 = vcmp.ge.s32.totalorder %v1130, %v1168
          %vm1412 = vcmp.ge.s32.totalorder %v1131, %v1168
          %vm1413 = vcmp.ge.s32.totalorder %v1132, %v1168
          %vm1414 = vcmp.ge.s32.totalorder %v1133, %v1168
          %vm1415 = vcmp.ge.s32.totalorder %v1134, %v1168
          %vm1416 = vcmp.ge.s32.totalorder %v1135, %v1168
          %vm1417 = vcmp.ge.s32.totalorder %v1129, %v1169
          %vm1418 = vcmp.ge.s32.totalorder %v1130, %v1169
          %vm1419 = vcmp.ge.s32.totalorder %v1131, %v1169
          %vm1420 = vcmp.ge.s32.totalorder %v1132, %v1169
          %vm1421 = vcmp.ge.s32.totalorder %v1133, %v1169
          %vm1422 = vcmp.ge.s32.totalorder %v1134, %v1169
          %vm1423 = vcmp.ge.s32.totalorder %v1135, %v1169
          %vm1424 = vcmp.ge.s32.totalorder %v1129, %v1170
          %vm1425 = vcmp.ge.s32.totalorder %v1130, %v1170
          %vm1426 = vcmp.ge.s32.totalorder %v1131, %v1170
          %vm1427 = vcmp.ge.s32.totalorder %v1132, %v1170
          %vm1428 = vcmp.ge.s32.totalorder %v1133, %v1170
          %vm1429 = vcmp.ge.s32.totalorder %v1134, %v1170
          %vm1430 = vcmp.ge.s32.totalorder %v1135, %v1170
          %vm1431 = vcmp.ge.s32.totalorder %v1129, %v1171
          %vm1432 = vcmp.ge.s32.totalorder %v1130, %v1171
          %vm1433 = vcmp.ge.s32.totalorder %v1131, %v1171
          %vm1434 = vcmp.ge.s32.totalorder %v1132, %v1171
          %vm1435 = vcmp.ge.s32.totalorder %v1133, %v1171
          %vm1436 = vcmp.ge.s32.totalorder %v1134, %v1171
          %vm1437 = vcmp.ge.s32.totalorder %v1135, %v1171
          %vm1438 = vcmp.ge.s32.totalorder %v1129, %v1172
          %vm1439 = vcmp.ge.s32.totalorder %v1130, %v1172
          %vm1440 = vcmp.ge.s32.totalorder %v1131, %v1172
          %vm1441 = vcmp.ge.s32.totalorder %v1132, %v1172
          %vm1442 = vcmp.ge.s32.totalorder %v1133, %v1172
          %vm1443 = vcmp.ge.s32.totalorder %v1134, %v1172
          %vm1444 = vcmp.ge.s32.totalorder %v1135, %v1172
          %vm1445 = vcmp.ge.s32.totalorder %v1129, %v1173
          %vm1446 = vcmp.ge.s32.totalorder %v1130, %v1173
          %vm1447 = vcmp.ge.s32.totalorder %v1131, %v1173
          %vm1448 = vcmp.ge.s32.totalorder %v1132, %v1173
          %vm1449 = vcmp.ge.s32.totalorder %v1133, %v1173
          %vm1450 = vcmp.ge.s32.totalorder %v1134, %v1173
          %vm1451 = vcmp.ge.s32.totalorder %v1135, %v1173
          %vm1452 = vcmp.ge.s32.totalorder %v1129, %v1174
          %vm1453 = vcmp.ge.s32.totalorder %v1130, %v1174
          %vm1454 = vcmp.ge.s32.totalorder %v1131, %v1174
          %vm1455 = vcmp.ge.s32.totalorder %v1132, %v1174
          %vm1456 = vcmp.ge.s32.totalorder %v1133, %v1174
          %vm1457 = vcmp.ge.s32.totalorder %v1134, %v1174
          %vm1458 = vcmp.ge.s32.totalorder %v1135, %v1174
          %vm1459 = vcmp.ge.s32.totalorder %v1129, %v1175
          %vm1460 = vcmp.ge.s32.totalorder %v1130, %v1175
          %vm1461 = vcmp.ge.s32.totalorder %v1131, %v1175
          %vm1462 = vcmp.ge.s32.totalorder %v1132, %v1175
          %vm1463 = vcmp.ge.s32.totalorder %v1133, %v1175
          %vm1464 = vcmp.ge.s32.totalorder %v1134, %v1175
          %vm1465 = vcmp.ge.s32.totalorder %v1135, %v1175
          %vm1466 = vcmp.ge.s32.totalorder %v1129, %v1176
          %vm1467 = vcmp.ge.s32.totalorder %v1130, %v1176
          %vm1468 = vcmp.ge.s32.totalorder %v1131, %v1176
          %vm1469 = vcmp.ge.s32.totalorder %v1132, %v1176
          %vm1470 = vcmp.ge.s32.totalorder %v1133, %v1176
          %vm1471 = vcmp.ge.s32.totalorder %v1134, %v1176
          %vm1472 = vcmp.ge.s32.totalorder %v1135, %v1176
          %vm1473 = vcmp.ge.s32.totalorder %v1129, %v1177
          %vm1474 = vcmp.ge.s32.totalorder %v1130, %v1177
          %vm1475 = vcmp.ge.s32.totalorder %v1131, %v1177
          %vm1476 = vcmp.ge.s32.totalorder %v1132, %v1177
          %vm1477 = vcmp.ge.s32.totalorder %v1133, %v1177
          %vm1478 = vcmp.ge.s32.totalorder %v1134, %v1177
          %vm1479 = vcmp.ge.s32.totalorder %v1135, %v1177
          %vm1480 = vcmp.ge.s32.totalorder %v1129, %v1178
          %vm1481 = vcmp.ge.s32.totalorder %v1130, %v1178
          %vm1482 = vcmp.ge.s32.totalorder %v1131, %v1178
          %vm1483 = vcmp.ge.s32.totalorder %v1132, %v1178
          %vm1484 = vcmp.ge.s32.totalorder %v1133, %v1178
          %vm1485 = vcmp.ge.s32.totalorder %v1134, %v1178
          %vm1486 = vcmp.ge.s32.totalorder %v1135, %v1178
          %vm1487 = vcmp.ge.s32.totalorder %v1129, %v1179
          %vm1488 = vcmp.ge.s32.totalorder %v1130, %v1179
          %vm1489 = vcmp.ge.s32.totalorder %v1131, %v1179
          %vm1490 = vcmp.ge.s32.totalorder %v1132, %v1179
          %vm1491 = vcmp.ge.s32.totalorder %v1133, %v1179
          %vm1492 = vcmp.ge.s32.totalorder %v1134, %v1179
          %vm1493 = vcmp.ge.s32.totalorder %v1135, %v1179
          %vm1494 = vcmp.ge.s32.totalorder %v1129, %v1180
          %vm1495 = vcmp.ge.s32.totalorder %v1130, %v1180
          %vm1496 = vcmp.ge.s32.totalorder %v1131, %v1180
          %vm1497 = vcmp.ge.s32.totalorder %v1132, %v1180
          %vm1498 = vcmp.ge.s32.totalorder %v1133, %v1180
          %vm1499 = vcmp.ge.s32.totalorder %v1134, %v1180
          %vm1500 = vcmp.ge.s32.totalorder %v1135, %v1180
          %vm1501 = vcmp.ge.s32.totalorder %v1129, %v1181
          %vm1502 = vcmp.ge.s32.totalorder %v1130, %v1181
          %vm1503 = vcmp.ge.s32.totalorder %v1131, %v1181
          %vm1504 = vcmp.ge.s32.totalorder %v1132, %v1181
          %vm1505 = vcmp.ge.s32.totalorder %v1133, %v1181
          %vm1506 = vcmp.ge.s32.totalorder %v1134, %v1181
          %vm1507 = vcmp.ge.s32.totalorder %v1135, %v1181
          %vm1508 = vcmp.ge.s32.totalorder %v1129, %v1182
          %vm1509 = vcmp.ge.s32.totalorder %v1130, %v1182
          %vm1510 = vcmp.ge.s32.totalorder %v1131, %v1182
          %vm1511 = vcmp.ge.s32.totalorder %v1132, %v1182
          %vm1512 = vcmp.ge.s32.totalorder %v1133, %v1182
          %vm1513 = vcmp.ge.s32.totalorder %v1134, %v1182
          %vm1514 = vcmp.ge.s32.totalorder %v1135, %v1182
          %vm1515 = vcmp.ge.s32.totalorder %v1129, %v1183
          %vm1516 = vcmp.ge.s32.totalorder %v1130, %v1183
          %vm1517 = vcmp.ge.s32.totalorder %v1131, %v1183
          %vm1518 = vcmp.ge.s32.totalorder %v1132, %v1183
          %vm1519 = vcmp.ge.s32.totalorder %v1133, %v1183
          %vm1520 = vcmp.ge.s32.totalorder %v1134, %v1183
          %vm1521 = vcmp.ge.s32.totalorder %v1135, %v1183
          %vm1522 = vcmp.ge.s32.totalorder %v1129, %v1184
          %vm1523 = vcmp.ge.s32.totalorder %v1130, %v1184
          %vm1524 = vcmp.ge.s32.totalorder %v1131, %v1184
          %vm1525 = vcmp.ge.s32.totalorder %v1132, %v1184
          %vm1526 = vcmp.ge.s32.totalorder %v1133, %v1184
          %vm1527 = vcmp.ge.s32.totalorder %v1134, %v1184
          %vm1528 = vcmp.ge.s32.totalorder %v1135, %v1184
          %vm1529 = vcmp.ge.s32.totalorder %v1129, %v1185
          %vm1530 = vcmp.ge.s32.totalorder %v1130, %v1185
          %vm1531 = vcmp.ge.s32.totalorder %v1131, %v1185
          %vm1532 = vcmp.ge.s32.totalorder %v1132, %v1185
          %vm1533 = vcmp.ge.s32.totalorder %v1133, %v1185
          %vm1534 = vcmp.ge.s32.totalorder %v1134, %v1185
          %vm1535 = vcmp.ge.s32.totalorder %v1135, %v1185
          %v1536 = vadd.s32 %v1136, 778
          %v1537 = vadd.s32 %v1137, 778
          %v1538 = vadd.s32 %v1138, 778
          %v1539 = vadd.s32 %v1139, 778
          %v1540 = vadd.s32 %v1140, 778
          %v1541 = vadd.s32 %v1141, 778
          %v1542 = vadd.s32 %v1142, 778
          %v1543 = vadd.s32 %v1143, 778
          %v1544 = vadd.s32 %v1144, 778
          %v1545 = vadd.s32 %v1145, 778
          %v1546 = vadd.s32 %v1146, 778
          %v1547 = vadd.s32 %v1147, 778
          %v1548 = vadd.s32 %v1148, 778
          %v1549 = vadd.s32 %v1149, 778
          %v1550 = vadd.s32 %v1150, 778
          %v1551 = vadd.s32 %v1151, 778
          %v1552 = vadd.s32 %v1152, 778
          %v1553 = vadd.s32 %v1153, 778
          %v1554 = vadd.s32 %v1154, 778
          %v1555 = vadd.s32 %v1155, 778
          %v1556 = vadd.s32 %v1156, 778
          %v1557 = vadd.s32 %v1157, 778
          %v1558 = vadd.s32 %v1158, 778
          %v1559 = vadd.s32 %v1159, 778
          %v1560 = vadd.s32 %v1160, 778
          %v1561 = vadd.s32 %v1161, 778
          %v1562 = vadd.s32 %v1162, 778
          %v1563 = vadd.s32 %v1163, 778
          %v1564 = vadd.s32 %v1164, 778
          %v1565 = vadd.s32 %v1165, 778
          %v1566 = vadd.s32 %v1166, 778
          %v1567 = vadd.s32 %v1167, 778
          %v1568 = vadd.s32 %v1168, 778
          %v1569 = vadd.s32 %v1169, 778
          %v1570 = vadd.s32 %v1170, 778
          %v1571 = vadd.s32 %v1171, 778
          %v1572 = vadd.s32 %v1172, 778
          %v1573 = vadd.s32 %v1173, 778
          %v1574 = vadd.s32 %v1174, 778
          %v1575 = vadd.s32 %v1175, 778
          %v1576 = vadd.s32 %v1176, 778
          %v1577 = vadd.s32 %v1177, 778
          %v1578 = vadd.s32 %v1178, 778
          %v1579 = vadd.s32 %v1179, 778
          %v1580 = vadd.s32 %v1180, 778
          %v1581 = vadd.s32 %v1181, 778
          %v1582 = vadd.s32 %v1182, 778
          %v1583 = vadd.s32 %v1183, 778
          %v1584 = vadd.s32 %v1184, 778
          %v1585 = vadd.s32 %v1185, 778
          %vm1586 = vcmp.lt.s32.totalorder %v1129, %v1536
          %vm1587 = vcmp.lt.s32.totalorder %v1130, %v1536
          %vm1588 = vcmp.lt.s32.totalorder %v1131, %v1536
          %vm1589 = vcmp.lt.s32.totalorder %v1132, %v1536
          %vm1590 = vcmp.lt.s32.totalorder %v1133, %v1536
          %vm1591 = vcmp.lt.s32.totalorder %v1134, %v1536
          %vm1592 = vcmp.lt.s32.totalorder %v1135, %v1536
          %vm1593 = vcmp.lt.s32.totalorder %v1129, %v1537
          %vm1594 = vcmp.lt.s32.totalorder %v1130, %v1537
          %vm1595 = vcmp.lt.s32.totalorder %v1131, %v1537
          %vm1596 = vcmp.lt.s32.totalorder %v1132, %v1537
          %vm1597 = vcmp.lt.s32.totalorder %v1133, %v1537
          %vm1598 = vcmp.lt.s32.totalorder %v1134, %v1537
          %vm1599 = vcmp.lt.s32.totalorder %v1135, %v1537
          %vm1600 = vcmp.lt.s32.totalorder %v1129, %v1538
          %vm1601 = vcmp.lt.s32.totalorder %v1130, %v1538
          %vm1602 = vcmp.lt.s32.totalorder %v1131, %v1538
          %vm1603 = vcmp.lt.s32.totalorder %v1132, %v1538
          %vm1604 = vcmp.lt.s32.totalorder %v1133, %v1538
          %vm1605 = vcmp.lt.s32.totalorder %v1134, %v1538
          %vm1606 = vcmp.lt.s32.totalorder %v1135, %v1538
          %vm1607 = vcmp.lt.s32.totalorder %v1129, %v1539
          %vm1608 = vcmp.lt.s32.totalorder %v1130, %v1539
          %vm1609 = vcmp.lt.s32.totalorder %v1131, %v1539
          %vm1610 = vcmp.lt.s32.totalorder %v1132, %v1539
          %vm1611 = vcmp.lt.s32.totalorder %v1133, %v1539
          %vm1612 = vcmp.lt.s32.totalorder %v1134, %v1539
          %vm1613 = vcmp.lt.s32.totalorder %v1135, %v1539
          %vm1614 = vcmp.lt.s32.totalorder %v1129, %v1540
          %vm1615 = vcmp.lt.s32.totalorder %v1130, %v1540
          %vm1616 = vcmp.lt.s32.totalorder %v1131, %v1540
          %vm1617 = vcmp.lt.s32.totalorder %v1132, %v1540
          %vm1618 = vcmp.lt.s32.totalorder %v1133, %v1540
          %vm1619 = vcmp.lt.s32.totalorder %v1134, %v1540
          %vm1620 = vcmp.lt.s32.totalorder %v1135, %v1540
          %vm1621 = vcmp.lt.s32.totalorder %v1129, %v1541
          %vm1622 = vcmp.lt.s32.totalorder %v1130, %v1541
          %vm1623 = vcmp.lt.s32.totalorder %v1131, %v1541
          %vm1624 = vcmp.lt.s32.totalorder %v1132, %v1541
          %vm1625 = vcmp.lt.s32.totalorder %v1133, %v1541
          %vm1626 = vcmp.lt.s32.totalorder %v1134, %v1541
          %vm1627 = vcmp.lt.s32.totalorder %v1135, %v1541
          %vm1628 = vcmp.lt.s32.totalorder %v1129, %v1542
          %vm1629 = vcmp.lt.s32.totalorder %v1130, %v1542
          %vm1630 = vcmp.lt.s32.totalorder %v1131, %v1542
          %vm1631 = vcmp.lt.s32.totalorder %v1132, %v1542
          %vm1632 = vcmp.lt.s32.totalorder %v1133, %v1542
          %vm1633 = vcmp.lt.s32.totalorder %v1134, %v1542
          %vm1634 = vcmp.lt.s32.totalorder %v1135, %v1542
          %vm1635 = vcmp.lt.s32.totalorder %v1129, %v1543
          %vm1636 = vcmp.lt.s32.totalorder %v1130, %v1543
          %vm1637 = vcmp.lt.s32.totalorder %v1131, %v1543
          %vm1638 = vcmp.lt.s32.totalorder %v1132, %v1543
          %vm1639 = vcmp.lt.s32.totalorder %v1133, %v1543
          %vm1640 = vcmp.lt.s32.totalorder %v1134, %v1543
          %vm1641 = vcmp.lt.s32.totalorder %v1135, %v1543
          %vm1642 = vcmp.lt.s32.totalorder %v1129, %v1544
          %vm1643 = vcmp.lt.s32.totalorder %v1130, %v1544
          %vm1644 = vcmp.lt.s32.totalorder %v1131, %v1544
          %vm1645 = vcmp.lt.s32.totalorder %v1132, %v1544
          %vm1646 = vcmp.lt.s32.totalorder %v1133, %v1544
          %vm1647 = vcmp.lt.s32.totalorder %v1134, %v1544
          %vm1648 = vcmp.lt.s32.totalorder %v1135, %v1544
          %vm1649 = vcmp.lt.s32.totalorder %v1129, %v1545
          %vm1650 = vcmp.lt.s32.totalorder %v1130, %v1545
          %vm1651 = vcmp.lt.s32.totalorder %v1131, %v1545
          %vm1652 = vcmp.lt.s32.totalorder %v1132, %v1545
          %vm1653 = vcmp.lt.s32.totalorder %v1133, %v1545
          %vm1654 = vcmp.lt.s32.totalorder %v1134, %v1545
          %vm1655 = vcmp.lt.s32.totalorder %v1135, %v1545
          %vm1656 = vcmp.lt.s32.totalorder %v1129, %v1546
          %vm1657 = vcmp.lt.s32.totalorder %v1130, %v1546
          %vm1658 = vcmp.lt.s32.totalorder %v1131, %v1546
          %vm1659 = vcmp.lt.s32.totalorder %v1132, %v1546
          %vm1660 = vcmp.lt.s32.totalorder %v1133, %v1546
          %vm1661 = vcmp.lt.s32.totalorder %v1134, %v1546
          %vm1662 = vcmp.lt.s32.totalorder %v1135, %v1546
          %vm1663 = vcmp.lt.s32.totalorder %v1129, %v1547
          %vm1664 = vcmp.lt.s32.totalorder %v1130, %v1547
          %vm1665 = vcmp.lt.s32.totalorder %v1131, %v1547
          %vm1666 = vcmp.lt.s32.totalorder %v1132, %v1547
          %vm1667 = vcmp.lt.s32.totalorder %v1133, %v1547
          %vm1668 = vcmp.lt.s32.totalorder %v1134, %v1547
          %vm1669 = vcmp.lt.s32.totalorder %v1135, %v1547
          %vm1670 = vcmp.lt.s32.totalorder %v1129, %v1548
          %vm1671 = vcmp.lt.s32.totalorder %v1130, %v1548
          %vm1672 = vcmp.lt.s32.totalorder %v1131, %v1548
          %vm1673 = vcmp.lt.s32.totalorder %v1132, %v1548
          %vm1674 = vcmp.lt.s32.totalorder %v1133, %v1548
          %vm1675 = vcmp.lt.s32.totalorder %v1134, %v1548
          %vm1676 = vcmp.lt.s32.totalorder %v1135, %v1548
          %vm1677 = vcmp.lt.s32.totalorder %v1129, %v1549
          %vm1678 = vcmp.lt.s32.totalorder %v1130, %v1549
          %vm1679 = vcmp.lt.s32.totalorder %v1131, %v1549
          %vm1680 = vcmp.lt.s32.totalorder %v1132, %v1549
          %vm1681 = vcmp.lt.s32.totalorder %v1133, %v1549
          %vm1682 = vcmp.lt.s32.totalorder %v1134, %v1549
          %vm1683 = vcmp.lt.s32.totalorder %v1135, %v1549
          %vm1684 = vcmp.lt.s32.totalorder %v1129, %v1550
          %vm1685 = vcmp.lt.s32.totalorder %v1130, %v1550
          %vm1686 = vcmp.lt.s32.totalorder %v1131, %v1550
          %vm1687 = vcmp.lt.s32.totalorder %v1132, %v1550
          %vm1688 = vcmp.lt.s32.totalorder %v1133, %v1550
          %vm1689 = vcmp.lt.s32.totalorder %v1134, %v1550
          %vm1690 = vcmp.lt.s32.totalorder %v1135, %v1550
          %vm1691 = vcmp.lt.s32.totalorder %v1129, %v1551
          %vm1692 = vcmp.lt.s32.totalorder %v1130, %v1551
          %vm1693 = vcmp.lt.s32.totalorder %v1131, %v1551
          %vm1694 = vcmp.lt.s32.totalorder %v1132, %v1551
          %vm1695 = vcmp.lt.s32.totalorder %v1133, %v1551
          %vm1696 = vcmp.lt.s32.totalorder %v1134, %v1551
          %vm1697 = vcmp.lt.s32.totalorder %v1135, %v1551
          %vm1698 = vcmp.lt.s32.totalorder %v1129, %v1552
          %vm1699 = vcmp.lt.s32.totalorder %v1130, %v1552
          %vm1700 = vcmp.lt.s32.totalorder %v1131, %v1552
          %vm1701 = vcmp.lt.s32.totalorder %v1132, %v1552
          %vm1702 = vcmp.lt.s32.totalorder %v1133, %v1552
          %vm1703 = vcmp.lt.s32.totalorder %v1134, %v1552
          %vm1704 = vcmp.lt.s32.totalorder %v1135, %v1552
          %vm1705 = vcmp.lt.s32.totalorder %v1129, %v1553
          %vm1706 = vcmp.lt.s32.totalorder %v1130, %v1553
          %vm1707 = vcmp.lt.s32.totalorder %v1131, %v1553
          %vm1708 = vcmp.lt.s32.totalorder %v1132, %v1553
          %vm1709 = vcmp.lt.s32.totalorder %v1133, %v1553
          %vm1710 = vcmp.lt.s32.totalorder %v1134, %v1553
          %vm1711 = vcmp.lt.s32.totalorder %v1135, %v1553
          %vm1712 = vcmp.lt.s32.totalorder %v1129, %v1554
          %vm1713 = vcmp.lt.s32.totalorder %v1130, %v1554
          %vm1714 = vcmp.lt.s32.totalorder %v1131, %v1554
          %vm1715 = vcmp.lt.s32.totalorder %v1132, %v1554
          %vm1716 = vcmp.lt.s32.totalorder %v1133, %v1554
          %vm1717 = vcmp.lt.s32.totalorder %v1134, %v1554
          %vm1718 = vcmp.lt.s32.totalorder %v1135, %v1554
          %vm1719 = vcmp.lt.s32.totalorder %v1129, %v1555
          %vm1720 = vcmp.lt.s32.totalorder %v1130, %v1555
          %vm1721 = vcmp.lt.s32.totalorder %v1131, %v1555
          %vm1722 = vcmp.lt.s32.totalorder %v1132, %v1555
          %vm1723 = vcmp.lt.s32.totalorder %v1133, %v1555
          %vm1724 = vcmp.lt.s32.totalorder %v1134, %v1555
          %vm1725 = vcmp.lt.s32.totalorder %v1135, %v1555
          %vm1726 = vcmp.lt.s32.totalorder %v1129, %v1556
          %vm1727 = vcmp.lt.s32.totalorder %v1130, %v1556
          %vm1728 = vcmp.lt.s32.totalorder %v1131, %v1556
          %vm1729 = vcmp.lt.s32.totalorder %v1132, %v1556
          %vm1730 = vcmp.lt.s32.totalorder %v1133, %v1556
          %vm1731 = vcmp.lt.s32.totalorder %v1134, %v1556
          %vm1732 = vcmp.lt.s32.totalorder %v1135, %v1556
          %vm1733 = vcmp.lt.s32.totalorder %v1129, %v1557
          %vm1734 = vcmp.lt.s32.totalorder %v1130, %v1557
          %vm1735 = vcmp.lt.s32.totalorder %v1131, %v1557
          %vm1736 = vcmp.lt.s32.totalorder %v1132, %v1557
          %vm1737 = vcmp.lt.s32.totalorder %v1133, %v1557
          %vm1738 = vcmp.lt.s32.totalorder %v1134, %v1557
          %vm1739 = vcmp.lt.s32.totalorder %v1135, %v1557
          %vm1740 = vcmp.lt.s32.totalorder %v1129, %v1558
          %vm1741 = vcmp.lt.s32.totalorder %v1130, %v1558
          %vm1742 = vcmp.lt.s32.totalorder %v1131, %v1558
          %vm1743 = vcmp.lt.s32.totalorder %v1132, %v1558
          %vm1744 = vcmp.lt.s32.totalorder %v1133, %v1558
          %vm1745 = vcmp.lt.s32.totalorder %v1134, %v1558
          %vm1746 = vcmp.lt.s32.totalorder %v1135, %v1558
          %vm1747 = vcmp.lt.s32.totalorder %v1129, %v1559
          %vm1748 = vcmp.lt.s32.totalorder %v1130, %v1559
          %vm1749 = vcmp.lt.s32.totalorder %v1131, %v1559
          %vm1750 = vcmp.lt.s32.totalorder %v1132, %v1559
          %vm1751 = vcmp.lt.s32.totalorder %v1133, %v1559
          %vm1752 = vcmp.lt.s32.totalorder %v1134, %v1559
          %vm1753 = vcmp.lt.s32.totalorder %v1135, %v1559
          %vm1754 = vcmp.lt.s32.totalorder %v1129, %v1560
          %vm1755 = vcmp.lt.s32.totalorder %v1130, %v1560
          %vm1756 = vcmp.lt.s32.totalorder %v1131, %v1560
          %vm1757 = vcmp.lt.s32.totalorder %v1132, %v1560
          %vm1758 = vcmp.lt.s32.totalorder %v1133, %v1560
          %vm1759 = vcmp.lt.s32.totalorder %v1134, %v1560
          %vm1760 = vcmp.lt.s32.totalorder %v1135, %v1560
          %vm1761 = vcmp.lt.s32.totalorder %v1129, %v1561
          %vm1762 = vcmp.lt.s32.totalorder %v1130, %v1561
          %vm1763 = vcmp.lt.s32.totalorder %v1131, %v1561
          %vm1764 = vcmp.lt.s32.totalorder %v1132, %v1561
          %vm1765 = vcmp.lt.s32.totalorder %v1133, %v1561
          %vm1766 = vcmp.lt.s32.totalorder %v1134, %v1561
          %vm1767 = vcmp.lt.s32.totalorder %v1135, %v1561
          %vm1768 = vcmp.lt.s32.totalorder %v1129, %v1562
          %vm1769 = vcmp.lt.s32.totalorder %v1130, %v1562
          %vm1770 = vcmp.lt.s32.totalorder %v1131, %v1562
          %vm1771 = vcmp.lt.s32.totalorder %v1132, %v1562
          %vm1772 = vcmp.lt.s32.totalorder %v1133, %v1562
          %vm1773 = vcmp.lt.s32.totalorder %v1134, %v1562
          %vm1774 = vcmp.lt.s32.totalorder %v1135, %v1562
          %vm1775 = vcmp.lt.s32.totalorder %v1129, %v1563
          %vm1776 = vcmp.lt.s32.totalorder %v1130, %v1563
          %vm1777 = vcmp.lt.s32.totalorder %v1131, %v1563
          %vm1778 = vcmp.lt.s32.totalorder %v1132, %v1563
          %vm1779 = vcmp.lt.s32.totalorder %v1133, %v1563
          %vm1780 = vcmp.lt.s32.totalorder %v1134, %v1563
          %vm1781 = vcmp.lt.s32.totalorder %v1135, %v1563
          %vm1782 = vcmp.lt.s32.totalorder %v1129, %v1564
          %vm1783 = vcmp.lt.s32.totalorder %v1130, %v1564
          %vm1784 = vcmp.lt.s32.totalorder %v1131, %v1564
          %vm1785 = vcmp.lt.s32.totalorder %v1132, %v1564
          %vm1786 = vcmp.lt.s32.totalorder %v1133, %v1564
          %vm1787 = vcmp.lt.s32.totalorder %v1134, %v1564
          %vm1788 = vcmp.lt.s32.totalorder %v1135, %v1564
          %vm1789 = vcmp.lt.s32.totalorder %v1129, %v1565
          %vm1790 = vcmp.lt.s32.totalorder %v1130, %v1565
          %vm1791 = vcmp.lt.s32.totalorder %v1131, %v1565
          %vm1792 = vcmp.lt.s32.totalorder %v1132, %v1565
          %vm1793 = vcmp.lt.s32.totalorder %v1133, %v1565
          %vm1794 = vcmp.lt.s32.totalorder %v1134, %v1565
          %vm1795 = vcmp.lt.s32.totalorder %v1135, %v1565
          %vm1796 = vcmp.lt.s32.totalorder %v1129, %v1566
          %vm1797 = vcmp.lt.s32.totalorder %v1130, %v1566
          %vm1798 = vcmp.lt.s32.totalorder %v1131, %v1566
          %vm1799 = vcmp.lt.s32.totalorder %v1132, %v1566
          %vm1800 = vcmp.lt.s32.totalorder %v1133, %v1566
          %vm1801 = vcmp.lt.s32.totalorder %v1134, %v1566
          %vm1802 = vcmp.lt.s32.totalorder %v1135, %v1566
          %vm1803 = vcmp.lt.s32.totalorder %v1129, %v1567
          %vm1804 = vcmp.lt.s32.totalorder %v1130, %v1567
          %vm1805 = vcmp.lt.s32.totalorder %v1131, %v1567
          %vm1806 = vcmp.lt.s32.totalorder %v1132, %v1567
          %vm1807 = vcmp.lt.s32.totalorder %v1133, %v1567
          %vm1808 = vcmp.lt.s32.totalorder %v1134, %v1567
          %vm1809 = vcmp.lt.s32.totalorder %v1135, %v1567
          %vm1810 = vcmp.lt.s32.totalorder %v1129, %v1568
          %vm1811 = vcmp.lt.s32.totalorder %v1130, %v1568
          %vm1812 = vcmp.lt.s32.totalorder %v1131, %v1568
          %vm1813 = vcmp.lt.s32.totalorder %v1132, %v1568
          %vm1814 = vcmp.lt.s32.totalorder %v1133, %v1568
          %vm1815 = vcmp.lt.s32.totalorder %v1134, %v1568
          %vm1816 = vcmp.lt.s32.totalorder %v1135, %v1568
          %vm1817 = vcmp.lt.s32.totalorder %v1129, %v1569
          %vm1818 = vcmp.lt.s32.totalorder %v1130, %v1569
          %vm1819 = vcmp.lt.s32.totalorder %v1131, %v1569
          %vm1820 = vcmp.lt.s32.totalorder %v1132, %v1569
          %vm1821 = vcmp.lt.s32.totalorder %v1133, %v1569
          %vm1822 = vcmp.lt.s32.totalorder %v1134, %v1569
          %vm1823 = vcmp.lt.s32.totalorder %v1135, %v1569
          %vm1824 = vcmp.lt.s32.totalorder %v1129, %v1570
          %vm1825 = vcmp.lt.s32.totalorder %v1130, %v1570
          %vm1826 = vcmp.lt.s32.totalorder %v1131, %v1570
          %vm1827 = vcmp.lt.s32.totalorder %v1132, %v1570
          %vm1828 = vcmp.lt.s32.totalorder %v1133, %v1570
          %vm1829 = vcmp.lt.s32.totalorder %v1134, %v1570
          %vm1830 = vcmp.lt.s32.totalorder %v1135, %v1570
          %vm1831 = vcmp.lt.s32.totalorder %v1129, %v1571
          %vm1832 = vcmp.lt.s32.totalorder %v1130, %v1571
          %vm1833 = vcmp.lt.s32.totalorder %v1131, %v1571
          %vm1834 = vcmp.lt.s32.totalorder %v1132, %v1571
          %vm1835 = vcmp.lt.s32.totalorder %v1133, %v1571
          %vm1836 = vcmp.lt.s32.totalorder %v1134, %v1571
          %vm1837 = vcmp.lt.s32.totalorder %v1135, %v1571
          %vm1838 = vcmp.lt.s32.totalorder %v1129, %v1572
          %vm1839 = vcmp.lt.s32.totalorder %v1130, %v1572
          %vm1840 = vcmp.lt.s32.totalorder %v1131, %v1572
          %vm1841 = vcmp.lt.s32.totalorder %v1132, %v1572
          %vm1842 = vcmp.lt.s32.totalorder %v1133, %v1572
          %vm1843 = vcmp.lt.s32.totalorder %v1134, %v1572
          %vm1844 = vcmp.lt.s32.totalorder %v1135, %v1572
          %vm1845 = vcmp.lt.s32.totalorder %v1129, %v1573
          %vm1846 = vcmp.lt.s32.totalorder %v1130, %v1573
          %vm1847 = vcmp.lt.s32.totalorder %v1131, %v1573
          %vm1848 = vcmp.lt.s32.totalorder %v1132, %v1573
          %vm1849 = vcmp.lt.s32.totalorder %v1133, %v1573
          %vm1850 = vcmp.lt.s32.totalorder %v1134, %v1573
          %vm1851 = vcmp.lt.s32.totalorder %v1135, %v1573
          %vm1852 = vcmp.lt.s32.totalorder %v1129, %v1574
          %vm1853 = vcmp.lt.s32.totalorder %v1130, %v1574
          %vm1854 = vcmp.lt.s32.totalorder %v1131, %v1574
          %vm1855 = vcmp.lt.s32.totalorder %v1132, %v1574
          %vm1856 = vcmp.lt.s32.totalorder %v1133, %v1574
          %vm1857 = vcmp.lt.s32.totalorder %v1134, %v1574
          %vm1858 = vcmp.lt.s32.totalorder %v1135, %v1574
          %vm1859 = vcmp.lt.s32.totalorder %v1129, %v1575
          %vm1860 = vcmp.lt.s32.totalorder %v1130, %v1575
          %vm1861 = vcmp.lt.s32.totalorder %v1131, %v1575
          %vm1862 = vcmp.lt.s32.totalorder %v1132, %v1575
          %vm1863 = vcmp.lt.s32.totalorder %v1133, %v1575
          %vm1864 = vcmp.lt.s32.totalorder %v1134, %v1575
          %vm1865 = vcmp.lt.s32.totalorder %v1135, %v1575
          %vm1866 = vcmp.lt.s32.totalorder %v1129, %v1576
          %vm1867 = vcmp.lt.s32.totalorder %v1130, %v1576
          %vm1868 = vcmp.lt.s32.totalorder %v1131, %v1576
          %vm1869 = vcmp.lt.s32.totalorder %v1132, %v1576
          %vm1870 = vcmp.lt.s32.totalorder %v1133, %v1576
          %vm1871 = vcmp.lt.s32.totalorder %v1134, %v1576
          %vm1872 = vcmp.lt.s32.totalorder %v1135, %v1576
          %vm1873 = vcmp.lt.s32.totalorder %v1129, %v1577
          %vm1874 = vcmp.lt.s32.totalorder %v1130, %v1577
          %vm1875 = vcmp.lt.s32.totalorder %v1131, %v1577
          %vm1876 = vcmp.lt.s32.totalorder %v1132, %v1577
          %vm1877 = vcmp.lt.s32.totalorder %v1133, %v1577
          %vm1878 = vcmp.lt.s32.totalorder %v1134, %v1577
          %vm1879 = vcmp.lt.s32.totalorder %v1135, %v1577
          %vm1880 = vcmp.lt.s32.totalorder %v1129, %v1578
          %vm1881 = vcmp.lt.s32.totalorder %v1130, %v1578
          %vm1882 = vcmp.lt.s32.totalorder %v1131, %v1578
          %vm1883 = vcmp.lt.s32.totalorder %v1132, %v1578
          %vm1884 = vcmp.lt.s32.totalorder %v1133, %v1578
          %vm1885 = vcmp.lt.s32.totalorder %v1134, %v1578
          %vm1886 = vcmp.lt.s32.totalorder %v1135, %v1578
          %vm1887 = vcmp.lt.s32.totalorder %v1129, %v1579
          %vm1888 = vcmp.lt.s32.totalorder %v1130, %v1579
          %vm1889 = vcmp.lt.s32.totalorder %v1131, %v1579
          %vm1890 = vcmp.lt.s32.totalorder %v1132, %v1579
          %vm1891 = vcmp.lt.s32.totalorder %v1133, %v1579
          %vm1892 = vcmp.lt.s32.totalorder %v1134, %v1579
          %vm1893 = vcmp.lt.s32.totalorder %v1135, %v1579
          %vm1894 = vcmp.lt.s32.totalorder %v1129, %v1580
          %vm1895 = vcmp.lt.s32.totalorder %v1130, %v1580
          %vm1896 = vcmp.lt.s32.totalorder %v1131, %v1580
          %vm1897 = vcmp.lt.s32.totalorder %v1132, %v1580
          %vm1898 = vcmp.lt.s32.totalorder %v1133, %v1580
          %vm1899 = vcmp.lt.s32.totalorder %v1134, %v1580
          %vm1900 = vcmp.lt.s32.totalorder %v1135, %v1580
          %vm1901 = vcmp.lt.s32.totalorder %v1129, %v1581
          %vm1902 = vcmp.lt.s32.totalorder %v1130, %v1581
          %vm1903 = vcmp.lt.s32.totalorder %v1131, %v1581
          %vm1904 = vcmp.lt.s32.totalorder %v1132, %v1581
          %vm1905 = vcmp.lt.s32.totalorder %v1133, %v1581
          %vm1906 = vcmp.lt.s32.totalorder %v1134, %v1581
          %vm1907 = vcmp.lt.s32.totalorder %v1135, %v1581
          %vm1908 = vcmp.lt.s32.totalorder %v1129, %v1582
          %vm1909 = vcmp.lt.s32.totalorder %v1130, %v1582
          %vm1910 = vcmp.lt.s32.totalorder %v1131, %v1582
          %vm1911 = vcmp.lt.s32.totalorder %v1132, %v1582
          %vm1912 = vcmp.lt.s32.totalorder %v1133, %v1582
          %vm1913 = vcmp.lt.s32.totalorder %v1134, %v1582
          %vm1914 = vcmp.lt.s32.totalorder %v1135, %v1582
          %vm1915 = vcmp.lt.s32.totalorder %v1129, %v1583
          %vm1916 = vcmp.lt.s32.totalorder %v1130, %v1583
          %vm1917 = vcmp.lt.s32.totalorder %v1131, %v1583
          %vm1918 = vcmp.lt.s32.totalorder %v1132, %v1583
          %vm1919 = vcmp.lt.s32.totalorder %v1133, %v1583
          %vm1920 = vcmp.lt.s32.totalorder %v1134, %v1583
          %vm1921 = vcmp.lt.s32.totalorder %v1135, %v1583
          %vm1922 = vcmp.lt.s32.totalorder %v1129, %v1584
          %vm1923 = vcmp.lt.s32.totalorder %v1130, %v1584
          %vm1924 = vcmp.lt.s32.totalorder %v1131, %v1584
          %vm1925 = vcmp.lt.s32.totalorder %v1132, %v1584
          %vm1926 = vcmp.lt.s32.totalorder %v1133, %v1584
          %vm1927 = vcmp.lt.s32.totalorder %v1134, %v1584
          %vm1928 = vcmp.lt.s32.totalorder %v1135, %v1584
          %vm1929 = vcmp.lt.s32.totalorder %v1129, %v1585
          %vm1930 = vcmp.lt.s32.totalorder %v1130, %v1585
          %vm1931 = vcmp.lt.s32.totalorder %v1131, %v1585
          %vm1932 = vcmp.lt.s32.totalorder %v1132, %v1585
          %vm1933 = vcmp.lt.s32.totalorder %v1133, %v1585
          %vm1934 = vcmp.lt.s32.totalorder %v1134, %v1585
          %vm1935 = vcmp.lt.s32.totalorder %v1135, %v1585
          %vm1936 = vmand %vm1186, %vm1586
          %vm1937 = vmand %vm1187, %vm1587
          %vm1938 = vmand %vm1188, %vm1588
          %vm1939 = vmand %vm1189, %vm1589
          %vm1940 = vmand %vm1190, %vm1590
          %vm1941 = vmand %vm1191, %vm1591
          %vm1942 = vmand %vm1192, %vm1592
          %vm1943 = vmand %vm1193, %vm1593
          %vm1944 = vmand %vm1194, %vm1594
          %vm1945 = vmand %vm1195, %vm1595
          %vm1946 = vmand %vm1196, %vm1596
          %vm1947 = vmand %vm1197, %vm1597
          %vm1948 = vmand %vm1198, %vm1598
          %vm1949 = vmand %vm1199, %vm1599
          %vm1950 = vmand %vm1200, %vm1600
          %vm1951 = vmand %vm1201, %vm1601
          %vm1952 = vmand %vm1202, %vm1602
          %vm1953 = vmand %vm1203, %vm1603
          %vm1954 = vmand %vm1204, %vm1604
          %vm1955 = vmand %vm1205, %vm1605
          %vm1956 = vmand %vm1206, %vm1606
          %vm1957 = vmand %vm1207, %vm1607
          %vm1958 = vmand %vm1208, %vm1608
          %vm1959 = vmand %vm1209, %vm1609
          %vm1960 = vmand %vm1210, %vm1610
          %vm1961 = vmand %vm1211, %vm1611
          %vm1962 = vmand %vm1212, %vm1612
          %vm1963 = vmand %vm1213, %vm1613
          %vm1964 = vmand %vm1214, %vm1614
          %vm1965 = vmand %vm1215, %vm1615
          %vm1966 = vmand %vm1216, %vm1616
          %vm1967 = vmand %vm1217, %vm1617
          %vm1968 = vmand %vm1218, %vm1618
          %vm1969 = vmand %vm1219, %vm1619
          %vm1970 = vmand %vm1220, %vm1620
          %vm1971 = vmand %vm1221, %vm1621
          %vm1972 = vmand %vm1222, %vm1622
          %vm1973 = vmand %vm1223, %vm1623
          %vm1974 = vmand %vm1224, %vm1624
          %vm1975 = vmand %vm1225, %vm1625
          %vm1976 = vmand %vm1226, %vm1626
          %vm1977 = vmand %vm1227, %vm1627
          %vm1978 = vmand %vm1228, %vm1628
          %vm1979 = vmand %vm1229, %vm1629
          %vm1980 = vmand %vm1230, %vm1630
          %vm1981 = vmand %vm1231, %vm1631
          %vm1982 = vmand %vm1232, %vm1632
          %vm1983 = vmand %vm1233, %vm1633
          %vm1984 = vmand %vm1234, %vm1634
          %vm1985 = vmand %vm1235, %vm1635
          %vm1986 = vmand %vm1236, %vm1636
          %vm1987 = vmand %vm1237, %vm1637
          %vm1988 = vmand %vm1238, %vm1638
          %vm1989 = vmand %vm1239, %vm1639
          %vm1990 = vmand %vm1240, %vm1640
          %vm1991 = vmand %vm1241, %vm1641
          %vm1992 = vmand %vm1242, %vm1642
          %vm1993 = vmand %vm1243, %vm1643
          %vm1994 = vmand %vm1244, %vm1644
          %vm1995 = vmand %vm1245, %vm1645
          %vm1996 = vmand %vm1246, %vm1646
          %vm1997 = vmand %vm1247, %vm1647
          %vm1998 = vmand %vm1248, %vm1648
          %vm1999 = vmand %vm1249, %vm1649
          %vm2000 = vmand %vm1250, %vm1650
          %vm2001 = vmand %vm1251, %vm1651
          %vm2002 = vmand %vm1252, %vm1652
          %vm2003 = vmand %vm1253, %vm1653
          %vm2004 = vmand %vm1254, %vm1654
          %vm2005 = vmand %vm1255, %vm1655
          %vm2006 = vmand %vm1256, %vm1656
          %vm2007 = vmand %vm1257, %vm1657
          %vm2008 = vmand %vm1258, %vm1658
          %vm2009 = vmand %vm1259, %vm1659
          %vm2010 = vmand %vm1260, %vm1660
          %vm2011 = vmand %vm1261, %vm1661
          %vm2012 = vmand %vm1262, %vm1662
          %vm2013 = vmand %vm1263, %vm1663
          %vm2014 = vmand %vm1264, %vm1664
          %vm2015 = vmand %vm1265, %vm1665
          %vm2016 = vmand %vm1266, %vm1666
          %vm2017 = vmand %vm1267, %vm1667
          %vm2018 = vmand %vm1268, %vm1668
          %vm2019 = vmand %vm1269, %vm1669
          %vm2020 = vmand %vm1270, %vm1670
          %vm2021 = vmand %vm1271, %vm1671
          %vm2022 = vmand %vm1272, %vm1672
          %vm2023 = vmand %vm1273, %vm1673
          %vm2024 = vmand %vm1274, %vm1674
          %vm2025 = vmand %vm1275, %vm1675
          %vm2026 = vmand %vm1276, %vm1676
          %vm2027 = vmand %vm1277, %vm1677
          %vm2028 = vmand %vm1278, %vm1678
          %vm2029 = vmand %vm1279, %vm1679
          %vm2030 = vmand %vm1280, %vm1680
          %vm2031 = vmand %vm1281, %vm1681
          %vm2032 = vmand %vm1282, %vm1682
          %vm2033 = vmand %vm1283, %vm1683
          %vm2034 = vmand %vm1284, %vm1684
          %vm2035 = vmand %vm1285, %vm1685
          %vm2036 = vmand %vm1286, %vm1686
          %vm2037 = vmand %vm1287, %vm1687
          %vm2038 = vmand %vm1288, %vm1688
          %vm2039 = vmand %vm1289, %vm1689
          %vm2040 = vmand %vm1290, %vm1690
          %vm2041 = vmand %vm1291, %vm1691
          %vm2042 = vmand %vm1292, %vm1692
          %vm2043 = vmand %vm1293, %vm1693
          %vm2044 = vmand %vm1294, %vm1694
          %vm2045 = vmand %vm1295, %vm1695
          %vm2046 = vmand %vm1296, %vm1696
          %vm2047 = vmand %vm1297, %vm1697
          %vm2048 = vmand %vm1298, %vm1698
          %vm2049 = vmand %vm1299, %vm1699
          %vm2050 = vmand %vm1300, %vm1700
          %vm2051 = vmand %vm1301, %vm1701
          %vm2052 = vmand %vm1302, %vm1702
          %vm2053 = vmand %vm1303, %vm1703
          %vm2054 = vmand %vm1304, %vm1704
          %vm2055 = vmand %vm1305, %vm1705
          %vm2056 = vmand %vm1306, %vm1706
          %vm2057 = vmand %vm1307, %vm1707
          %vm2058 = vmand %vm1308, %vm1708
          %vm2059 = vmand %vm1309, %vm1709
          %vm2060 = vmand %vm1310, %vm1710
          %vm2061 = vmand %vm1311, %vm1711
          %vm2062 = vmand %vm1312, %vm1712
          %vm2063 = vmand %vm1313, %vm1713
          %vm2064 = vmand %vm1314, %vm1714
          %vm2065 = vmand %vm1315, %vm1715
          %vm2066 = vmand %vm1316, %vm1716
          %vm2067 = vmand %vm1317, %vm1717
          %vm2068 = vmand %vm1318, %vm1718
          %vm2069 = vmand %vm1319, %vm1719
          %vm2070 = vmand %vm1320, %vm1720
          %vm2071 = vmand %vm1321, %vm1721
          %vm2072 = vmand %vm1322, %vm1722
          %vm2073 = vmand %vm1323, %vm1723
          %vm2074 = vmand %vm1324, %vm1724
          %vm2075 = vmand %vm1325, %vm1725
          %vm2076 = vmand %vm1326, %vm1726
          %vm2077 = vmand %vm1327, %vm1727
          %vm2078 = vmand %vm1328, %vm1728
          %vm2079 = vmand %vm1329, %vm1729
          %vm2080 = vmand %vm1330, %vm1730
          %vm2081 = vmand %vm1331, %vm1731
          %vm2082 = vmand %vm1332, %vm1732
          %vm2083 = vmand %vm1333, %vm1733
          %vm2084 = vmand %vm1334, %vm1734
          %vm2085 = vmand %vm1335, %vm1735
          %vm2086 = vmand %vm1336, %vm1736
          %vm2087 = vmand %vm1337, %vm1737
          %vm2088 = vmand %vm1338, %vm1738
          %vm2089 = vmand %vm1339, %vm1739
          %vm2090 = vmand %vm1340, %vm1740
          %vm2091 = vmand %vm1341, %vm1741
          %vm2092 = vmand %vm1342, %vm1742
          %vm2093 = vmand %vm1343, %vm1743
          %vm2094 = vmand %vm1344, %vm1744
          %vm2095 = vmand %vm1345, %vm1745
          %vm2096 = vmand %vm1346, %vm1746
          %vm2097 = vmand %vm1347, %vm1747
          %vm2098 = vmand %vm1348, %vm1748
          %vm2099 = vmand %vm1349, %vm1749
          %vm2100 = vmand %vm1350, %vm1750
          %vm2101 = vmand %vm1351, %vm1751
          %vm2102 = vmand %vm1352, %vm1752
          %vm2103 = vmand %vm1353, %vm1753
          %vm2104 = vmand %vm1354, %vm1754
          %vm2105 = vmand %vm1355, %vm1755
          %vm2106 = vmand %vm1356, %vm1756
          %vm2107 = vmand %vm1357, %vm1757
          %vm2108 = vmand %vm1358, %vm1758
          %vm2109 = vmand %vm1359, %vm1759
          %vm2110 = vmand %vm1360, %vm1760
          %vm2111 = vmand %vm1361, %vm1761
          %vm2112 = vmand %vm1362, %vm1762
          %vm2113 = vmand %vm1363, %vm1763
          %vm2114 = vmand %vm1364, %vm1764
          %vm2115 = vmand %vm1365, %vm1765
          %vm2116 = vmand %vm1366, %vm1766
          %vm2117 = vmand %vm1367, %vm1767
          %vm2118 = vmand %vm1368, %vm1768
          %vm2119 = vmand %vm1369, %vm1769
          %vm2120 = vmand %vm1370, %vm1770
          %vm2121 = vmand %vm1371, %vm1771
          %vm2122 = vmand %vm1372, %vm1772
          %vm2123 = vmand %vm1373, %vm1773
          %vm2124 = vmand %vm1374, %vm1774
          %vm2125 = vmand %vm1375, %vm1775
          %vm2126 = vmand %vm1376, %vm1776
          %vm2127 = vmand %vm1377, %vm1777
          %vm2128 = vmand %vm1378, %vm1778
          %vm2129 = vmand %vm1379, %vm1779
          %vm2130 = vmand %vm1380, %vm1780
          %vm2131 = vmand %vm1381, %vm1781
          %vm2132 = vmand %vm1382, %vm1782
          %vm2133 = vmand %vm1383, %vm1783
          %vm2134 = vmand %vm1384, %vm1784
          %vm2135 = vmand %vm1385, %vm1785
          %vm2136 = vmand %vm1386, %vm1786
          %vm2137 = vmand %vm1387, %vm1787
          %vm2138 = vmand %vm1388, %vm1788
          %vm2139 = vmand %vm1389, %vm1789
          %vm2140 = vmand %vm1390, %vm1790
          %vm2141 = vmand %vm1391, %vm1791
          %vm2142 = vmand %vm1392, %vm1792
          %vm2143 = vmand %vm1393, %vm1793
          %vm2144 = vmand %vm1394, %vm1794
          %vm2145 = vmand %vm1395, %vm1795
          %vm2146 = vmand %vm1396, %vm1796
          %vm2147 = vmand %vm1397, %vm1797
          %vm2148 = vmand %vm1398, %vm1798
          %vm2149 = vmand %vm1399, %vm1799
          %vm2150 = vmand %vm1400, %vm1800
          %vm2151 = vmand %vm1401, %vm1801
          %vm2152 = vmand %vm1402, %vm1802
          %vm2153 = vmand %vm1403, %vm1803
          %vm2154 = vmand %vm1404, %vm1804
          %vm2155 = vmand %vm1405, %vm1805
          %vm2156 = vmand %vm1406, %vm1806
          %vm2157 = vmand %vm1407, %vm1807
          %vm2158 = vmand %vm1408, %vm1808
          %vm2159 = vmand %vm1409, %vm1809
          %vm2160 = vmand %vm1410, %vm1810
          %vm2161 = vmand %vm1411, %vm1811
          %vm2162 = vmand %vm1412, %vm1812
          %vm2163 = vmand %vm1413, %vm1813
          %vm2164 = vmand %vm1414, %vm1814
          %vm2165 = vmand %vm1415, %vm1815
          %vm2166 = vmand %vm1416, %vm1816
          %vm2167 = vmand %vm1417, %vm1817
          %vm2168 = vmand %vm1418, %vm1818
          %vm2169 = vmand %vm1419, %vm1819
          %vm2170 = vmand %vm1420, %vm1820
          %vm2171 = vmand %vm1421, %vm1821
          %vm2172 = vmand %vm1422, %vm1822
          %vm2173 = vmand %vm1423, %vm1823
          %vm2174 = vmand %vm1424, %vm1824
          %vm2175 = vmand %vm1425, %vm1825
          %vm2176 = vmand %vm1426, %vm1826
          %vm2177 = vmand %vm1427, %vm1827
          %vm2178 = vmand %vm1428, %vm1828
          %vm2179 = vmand %vm1429, %vm1829
          %vm2180 = vmand %vm1430, %vm1830
          %vm2181 = vmand %vm1431, %vm1831
          %vm2182 = vmand %vm1432, %vm1832
          %vm2183 = vmand %vm1433, %vm1833
          %vm2184 = vmand %vm1434, %vm1834
          %vm2185 = vmand %vm1435, %vm1835
          %vm2186 = vmand %vm1436, %vm1836
          %vm2187 = vmand %vm1437, %vm1837
          %vm2188 = vmand %vm1438, %vm1838
          %vm2189 = vmand %vm1439, %vm1839
          %vm2190 = vmand %vm1440, %vm1840
          %vm2191 = vmand %vm1441, %vm1841
          %vm2192 = vmand %vm1442, %vm1842
          %vm2193 = vmand %vm1443, %vm1843
          %vm2194 = vmand %vm1444, %vm1844
          %vm2195 = vmand %vm1445, %vm1845
          %vm2196 = vmand %vm1446, %vm1846
          %vm2197 = vmand %vm1447, %vm1847
          %vm2198 = vmand %vm1448, %vm1848
          %vm2199 = vmand %vm1449, %vm1849
          %vm2200 = vmand %vm1450, %vm1850
          %vm2201 = vmand %vm1451, %vm1851
          %vm2202 = vmand %vm1452, %vm1852
          %vm2203 = vmand %vm1453, %vm1853
          %vm2204 = vmand %vm1454, %vm1854
          %vm2205 = vmand %vm1455, %vm1855
          %vm2206 = vmand %vm1456, %vm1856
          %vm2207 = vmand %vm1457, %vm1857
          %vm2208 = vmand %vm1458, %vm1858
          %vm2209 = vmand %vm1459, %vm1859
          %vm2210 = vmand %vm1460, %vm1860
          %vm2211 = vmand %vm1461, %vm1861
          %vm2212 = vmand %vm1462, %vm1862
          %vm2213 = vmand %vm1463, %vm1863
          %vm2214 = vmand %vm1464, %vm1864
          %vm2215 = vmand %vm1465, %vm1865
          %vm2216 = vmand %vm1466, %vm1866
          %vm2217 = vmand %vm1467, %vm1867
          %vm2218 = vmand %vm1468, %vm1868
          %vm2219 = vmand %vm1469, %vm1869
          %vm2220 = vmand %vm1470, %vm1870
          %vm2221 = vmand %vm1471, %vm1871
          %vm2222 = vmand %vm1472, %vm1872
          %vm2223 = vmand %vm1473, %vm1873
          %vm2224 = vmand %vm1474, %vm1874
          %vm2225 = vmand %vm1475, %vm1875
          %vm2226 = vmand %vm1476, %vm1876
          %vm2227 = vmand %vm1477, %vm1877
          %vm2228 = vmand %vm1478, %vm1878
          %vm2229 = vmand %vm1479, %vm1879
          %vm2230 = vmand %vm1480, %vm1880
          %vm2231 = vmand %vm1481, %vm1881
          %vm2232 = vmand %vm1482, %vm1882
          %vm2233 = vmand %vm1483, %vm1883
          %vm2234 = vmand %vm1484, %vm1884
          %vm2235 = vmand %vm1485, %vm1885
          %vm2236 = vmand %vm1486, %vm1886
          %vm2237 = vmand %vm1487, %vm1887
          %vm2238 = vmand %vm1488, %vm1888
          %vm2239 = vmand %vm1489, %vm1889
          %vm2240 = vmand %vm1490, %vm1890
          %vm2241 = vmand %vm1491, %vm1891
          %vm2242 = vmand %vm1492, %vm1892
          %vm2243 = vmand %vm1493, %vm1893
          %vm2244 = vmand %vm1494, %vm1894
          %vm2245 = vmand %vm1495, %vm1895
          %vm2246 = vmand %vm1496, %vm1896
          %vm2247 = vmand %vm1497, %vm1897
          %vm2248 = vmand %vm1498, %vm1898
          %vm2249 = vmand %vm1499, %vm1899
          %vm2250 = vmand %vm1500, %vm1900
          %vm2251 = vmand %vm1501, %vm1901
          %vm2252 = vmand %vm1502, %vm1902
          %vm2253 = vmand %vm1503, %vm1903
          %vm2254 = vmand %vm1504, %vm1904
          %vm2255 = vmand %vm1505, %vm1905
          %vm2256 = vmand %vm1506, %vm1906
          %vm2257 = vmand %vm1507, %vm1907
          %vm2258 = vmand %vm1508, %vm1908
          %vm2259 = vmand %vm1509, %vm1909
          %vm2260 = vmand %vm1510, %vm1910
          %vm2261 = vmand %vm1511, %vm1911
          %vm2262 = vmand %vm1512, %vm1912
          %vm2263 = vmand %vm1513, %vm1913
          %vm2264 = vmand %vm1514, %vm1914
          %vm2265 = vmand %vm1515, %vm1915
          %vm2266 = vmand %vm1516, %vm1916
          %vm2267 = vmand %vm1517, %vm1917
          %vm2268 = vmand %vm1518, %vm1918
          %vm2269 = vmand %vm1519, %vm1919
          %vm2270 = vmand %vm1520, %vm1920
          %vm2271 = vmand %vm1521, %vm1921
          %vm2272 = vmand %vm1522, %vm1922
          %vm2273 = vmand %vm1523, %vm1923
          %vm2274 = vmand %vm1524, %vm1924
          %vm2275 = vmand %vm1525, %vm1925
          %vm2276 = vmand %vm1526, %vm1926
          %vm2277 = vmand %vm1527, %vm1927
          %vm2278 = vmand %vm1528, %vm1928
          %vm2279 = vmand %vm1529, %vm1929
          %vm2280 = vmand %vm1530, %vm1930
          %vm2281 = vmand %vm1531, %vm1931
          %vm2282 = vmand %vm1532, %vm1932
          %vm2283 = vmand %vm1533, %vm1933
          %vm2284 = vmand %vm1534, %vm1934
          %vm2285 = vmand %vm1535, %vm1935
          %v2286 = vsel %vm1936, 1.0, 0.0
          %v2287 = vsel %vm1937, 1.0, 0.0
          %v2288 = vsel %vm1938, 1.0, 0.0
          %v2289 = vsel %vm1939, 1.0, 0.0
          %v2290 = vsel %vm1940, 1.0, 0.0
          %v2291 = vsel %vm1941, 1.0, 0.0
          %v2292 = vsel %vm1942, 1.0, 0.0
          %v2293 = vsel %vm1943, 1.0, 0.0
          %v2294 = vsel %vm1944, 1.0, 0.0
          %v2295 = vsel %vm1945, 1.0, 0.0
          %v2296 = vsel %vm1946, 1.0, 0.0
          %v2297 = vsel %vm1947, 1.0, 0.0
          %v2298 = vsel %vm1948, 1.0, 0.0
          %v2299 = vsel %vm1949, 1.0, 0.0
          %v2300 = vsel %vm1950, 1.0, 0.0
          %v2301 = vsel %vm1951, 1.0, 0.0
          %v2302 = vsel %vm1952, 1.0, 0.0
          %v2303 = vsel %vm1953, 1.0, 0.0
          %v2304 = vsel %vm1954, 1.0, 0.0
          %v2305 = vsel %vm1955, 1.0, 0.0
          %v2306 = vsel %vm1956, 1.0, 0.0
          %v2307 = vsel %vm1957, 1.0, 0.0
          %v2308 = vsel %vm1958, 1.0, 0.0
          %v2309 = vsel %vm1959, 1.0, 0.0
          %v2310 = vsel %vm1960, 1.0, 0.0
          %v2311 = vsel %vm1961, 1.0, 0.0
          %v2312 = vsel %vm1962, 1.0, 0.0
          %v2313 = vsel %vm1963, 1.0, 0.0
          %v2314 = vsel %vm1964, 1.0, 0.0
          %v2315 = vsel %vm1965, 1.0, 0.0
          %v2316 = vsel %vm1966, 1.0, 0.0
          %v2317 = vsel %vm1967, 1.0, 0.0
          %v2318 = vsel %vm1968, 1.0, 0.0
          %v2319 = vsel %vm1969, 1.0, 0.0
          %v2320 = vsel %vm1970, 1.0, 0.0
          %v2321 = vsel %vm1971, 1.0, 0.0
          %v2322 = vsel %vm1972, 1.0, 0.0
          %v2323 = vsel %vm1973, 1.0, 0.0
          %v2324 = vsel %vm1974, 1.0, 0.0
          %v2325 = vsel %vm1975, 1.0, 0.0
          %v2326 = vsel %vm1976, 1.0, 0.0
          %v2327 = vsel %vm1977, 1.0, 0.0
          %v2328 = vsel %vm1978, 1.0, 0.0
          %v2329 = vsel %vm1979, 1.0, 0.0
          %v2330 = vsel %vm1980, 1.0, 0.0
          %v2331 = vsel %vm1981, 1.0, 0.0
          %v2332 = vsel %vm1982, 1.0, 0.0
          %v2333 = vsel %vm1983, 1.0, 0.0
          %v2334 = vsel %vm1984, 1.0, 0.0
          %v2335 = vsel %vm1985, 1.0, 0.0
          %v2336 = vsel %vm1986, 1.0, 0.0
          %v2337 = vsel %vm1987, 1.0, 0.0
          %v2338 = vsel %vm1988, 1.0, 0.0
          %v2339 = vsel %vm1989, 1.0, 0.0
          %v2340 = vsel %vm1990, 1.0, 0.0
          %v2341 = vsel %vm1991, 1.0, 0.0
          %v2342 = vsel %vm1992, 1.0, 0.0
          %v2343 = vsel %vm1993, 1.0, 0.0
          %v2344 = vsel %vm1994, 1.0, 0.0
          %v2345 = vsel %vm1995, 1.0, 0.0
          %v2346 = vsel %vm1996, 1.0, 0.0
          %v2347 = vsel %vm1997, 1.0, 0.0
          %v2348 = vsel %vm1998, 1.0, 0.0
          %v2349 = vsel %vm1999, 1.0, 0.0
          %v2350 = vsel %vm2000, 1.0, 0.0
          %v2351 = vsel %vm2001, 1.0, 0.0
          %v2352 = vsel %vm2002, 1.0, 0.0
          %v2353 = vsel %vm2003, 1.0, 0.0
          %v2354 = vsel %vm2004, 1.0, 0.0
          %v2355 = vsel %vm2005, 1.0, 0.0
          %v2356 = vsel %vm2006, 1.0, 0.0
          %v2357 = vsel %vm2007, 1.0, 0.0
          %v2358 = vsel %vm2008, 1.0, 0.0
          %v2359 = vsel %vm2009, 1.0, 0.0
          %v2360 = vsel %vm2010, 1.0, 0.0
          %v2361 = vsel %vm2011, 1.0, 0.0
          %v2362 = vsel %vm2012, 1.0, 0.0
          %v2363 = vsel %vm2013, 1.0, 0.0
          %v2364 = vsel %vm2014, 1.0, 0.0
          %v2365 = vsel %vm2015, 1.0, 0.0
          %v2366 = vsel %vm2016, 1.0, 0.0
          %v2367 = vsel %vm2017, 1.0, 0.0
          %v2368 = vsel %vm2018, 1.0, 0.0
          %v2369 = vsel %vm2019, 1.0, 0.0
          %v2370 = vsel %vm2020, 1.0, 0.0
          %v2371 = vsel %vm2021, 1.0, 0.0
          %v2372 = vsel %vm2022, 1.0, 0.0
          %v2373 = vsel %vm2023, 1.0, 0.0
          %v2374 = vsel %vm2024, 1.0, 0.0
          %v2375 = vsel %vm2025, 1.0, 0.0
          %v2376 = vsel %vm2026, 1.0, 0.0
          %v2377 = vsel %vm2027, 1.0, 0.0
          %v2378 = vsel %vm2028, 1.0, 0.0
          %v2379 = vsel %vm2029, 1.0, 0.0
          %v2380 = vsel %vm2030, 1.0, 0.0
          %v2381 = vsel %vm2031, 1.0, 0.0
          %v2382 = vsel %vm2032, 1.0, 0.0
          %v2383 = vsel %vm2033, 1.0, 0.0
          %v2384 = vsel %vm2034, 1.0, 0.0
          %v2385 = vsel %vm2035, 1.0, 0.0
          %v2386 = vsel %vm2036, 1.0, 0.0
          %v2387 = vsel %vm2037, 1.0, 0.0
          %v2388 = vsel %vm2038, 1.0, 0.0
          %v2389 = vsel %vm2039, 1.0, 0.0
          %v2390 = vsel %vm2040, 1.0, 0.0
          %v2391 = vsel %vm2041, 1.0, 0.0
          %v2392 = vsel %vm2042, 1.0, 0.0
          %v2393 = vsel %vm2043, 1.0, 0.0
          %v2394 = vsel %vm2044, 1.0, 0.0
          %v2395 = vsel %vm2045, 1.0, 0.0
          %v2396 = vsel %vm2046, 1.0, 0.0
          %v2397 = vsel %vm2047, 1.0, 0.0
          %v2398 = vsel %vm2048, 1.0, 0.0
          %v2399 = vsel %vm2049, 1.0, 0.0
          %v2400 = vsel %vm2050, 1.0, 0.0
          %v2401 = vsel %vm2051, 1.0, 0.0
          %v2402 = vsel %vm2052, 1.0, 0.0
          %v2403 = vsel %vm2053, 1.0, 0.0
          %v2404 = vsel %vm2054, 1.0, 0.0
          %v2405 = vsel %vm2055, 1.0, 0.0
          %v2406 = vsel %vm2056, 1.0, 0.0
          %v2407 = vsel %vm2057, 1.0, 0.0
          %v2408 = vsel %vm2058, 1.0, 0.0
          %v2409 = vsel %vm2059, 1.0, 0.0
          %v2410 = vsel %vm2060, 1.0, 0.0
          %v2411 = vsel %vm2061, 1.0, 0.0
          %v2412 = vsel %vm2062, 1.0, 0.0
          %v2413 = vsel %vm2063, 1.0, 0.0
          %v2414 = vsel %vm2064, 1.0, 0.0
          %v2415 = vsel %vm2065, 1.0, 0.0
          %v2416 = vsel %vm2066, 1.0, 0.0
          %v2417 = vsel %vm2067, 1.0, 0.0
          %v2418 = vsel %vm2068, 1.0, 0.0
          %v2419 = vsel %vm2069, 1.0, 0.0
          %v2420 = vsel %vm2070, 1.0, 0.0
          %v2421 = vsel %vm2071, 1.0, 0.0
          %v2422 = vsel %vm2072, 1.0, 0.0
          %v2423 = vsel %vm2073, 1.0, 0.0
          %v2424 = vsel %vm2074, 1.0, 0.0
          %v2425 = vsel %vm2075, 1.0, 0.0
          %v2426 = vsel %vm2076, 1.0, 0.0
          %v2427 = vsel %vm2077, 1.0, 0.0
          %v2428 = vsel %vm2078, 1.0, 0.0
          %v2429 = vsel %vm2079, 1.0, 0.0
          %v2430 = vsel %vm2080, 1.0, 0.0
          %v2431 = vsel %vm2081, 1.0, 0.0
          %v2432 = vsel %vm2082, 1.0, 0.0
          %v2433 = vsel %vm2083, 1.0, 0.0
          %v2434 = vsel %vm2084, 1.0, 0.0
          %v2435 = vsel %vm2085, 1.0, 0.0
          %v2436 = vsel %vm2086, 1.0, 0.0
          %v2437 = vsel %vm2087, 1.0, 0.0
          %v2438 = vsel %vm2088, 1.0, 0.0
          %v2439 = vsel %vm2089, 1.0, 0.0
          %v2440 = vsel %vm2090, 1.0, 0.0
          %v2441 = vsel %vm2091, 1.0, 0.0
          %v2442 = vsel %vm2092, 1.0, 0.0
          %v2443 = vsel %vm2093, 1.0, 0.0
          %v2444 = vsel %vm2094, 1.0, 0.0
          %v2445 = vsel %vm2095, 1.0, 0.0
          %v2446 = vsel %vm2096, 1.0, 0.0
          %v2447 = vsel %vm2097, 1.0, 0.0
          %v2448 = vsel %vm2098, 1.0, 0.0
          %v2449 = vsel %vm2099, 1.0, 0.0
          %v2450 = vsel %vm2100, 1.0, 0.0
          %v2451 = vsel %vm2101, 1.0, 0.0
          %v2452 = vsel %vm2102, 1.0, 0.0
          %v2453 = vsel %vm2103, 1.0, 0.0
          %v2454 = vsel %vm2104, 1.0, 0.0
          %v2455 = vsel %vm2105, 1.0, 0.0
          %v2456 = vsel %vm2106, 1.0, 0.0
          %v2457 = vsel %vm2107, 1.0, 0.0
          %v2458 = vsel %vm2108, 1.0, 0.0
          %v2459 = vsel %vm2109, 1.0, 0.0
          %v2460 = vsel %vm2110, 1.0, 0.0
          %v2461 = vsel %vm2111, 1.0, 0.0
          %v2462 = vsel %vm2112, 1.0, 0.0
          %v2463 = vsel %vm2113, 1.0, 0.0
          %v2464 = vsel %vm2114, 1.0, 0.0
          %v2465 = vsel %vm2115, 1.0, 0.0
          %v2466 = vsel %vm2116, 1.0, 0.0
          %v2467 = vsel %vm2117, 1.0, 0.0
          %v2468 = vsel %vm2118, 1.0, 0.0
          %v2469 = vsel %vm2119, 1.0, 0.0
          %v2470 = vsel %vm2120, 1.0, 0.0
          %v2471 = vsel %vm2121, 1.0, 0.0
          %v2472 = vsel %vm2122, 1.0, 0.0
          %v2473 = vsel %vm2123, 1.0, 0.0
          %v2474 = vsel %vm2124, 1.0, 0.0
          %v2475 = vsel %vm2125, 1.0, 0.0
          %v2476 = vsel %vm2126, 1.0, 0.0
          %v2477 = vsel %vm2127, 1.0, 0.0
          %v2478 = vsel %vm2128, 1.0, 0.0
          %v2479 = vsel %vm2129, 1.0, 0.0
          %v2480 = vsel %vm2130, 1.0, 0.0
          %v2481 = vsel %vm2131, 1.0, 0.0
          %v2482 = vsel %vm2132, 1.0, 0.0
          %v2483 = vsel %vm2133, 1.0, 0.0
          %v2484 = vsel %vm2134, 1.0, 0.0
          %v2485 = vsel %vm2135, 1.0, 0.0
          %v2486 = vsel %vm2136, 1.0, 0.0
          %v2487 = vsel %vm2137, 1.0, 0.0
          %v2488 = vsel %vm2138, 1.0, 0.0
          %v2489 = vsel %vm2139, 1.0, 0.0
          %v2490 = vsel %vm2140, 1.0, 0.0
          %v2491 = vsel %vm2141, 1.0, 0.0
          %v2492 = vsel %vm2142, 1.0, 0.0
          %v2493 = vsel %vm2143, 1.0, 0.0
          %v2494 = vsel %vm2144, 1.0, 0.0
          %v2495 = vsel %vm2145, 1.0, 0.0
          %v2496 = vsel %vm2146, 1.0, 0.0
          %v2497 = vsel %vm2147, 1.0, 0.0
          %v2498 = vsel %vm2148, 1.0, 0.0
          %v2499 = vsel %vm2149, 1.0, 0.0
          %v2500 = vsel %vm2150, 1.0, 0.0
          %v2501 = vsel %vm2151, 1.0, 0.0
          %v2502 = vsel %vm2152, 1.0, 0.0
          %v2503 = vsel %vm2153, 1.0, 0.0
          %v2504 = vsel %vm2154, 1.0, 0.0
          %v2505 = vsel %vm2155, 1.0, 0.0
          %v2506 = vsel %vm2156, 1.0, 0.0
          %v2507 = vsel %vm2157, 1.0, 0.0
          %v2508 = vsel %vm2158, 1.0, 0.0
          %v2509 = vsel %vm2159, 1.0, 0.0
          %v2510 = vsel %vm2160, 1.0, 0.0
          %v2511 = vsel %vm2161, 1.0, 0.0
          %v2512 = vsel %vm2162, 1.0, 0.0
          %v2513 = vsel %vm2163, 1.0, 0.0
          %v2514 = vsel %vm2164, 1.0, 0.0
          %v2515 = vsel %vm2165, 1.0, 0.0
          %v2516 = vsel %vm2166, 1.0, 0.0
          %v2517 = vsel %vm2167, 1.0, 0.0
          %v2518 = vsel %vm2168, 1.0, 0.0
          %v2519 = vsel %vm2169, 1.0, 0.0
          %v2520 = vsel %vm2170, 1.0, 0.0
          %v2521 = vsel %vm2171, 1.0, 0.0
          %v2522 = vsel %vm2172, 1.0, 0.0
          %v2523 = vsel %vm2173, 1.0, 0.0
          %v2524 = vsel %vm2174, 1.0, 0.0
          %v2525 = vsel %vm2175, 1.0, 0.0
          %v2526 = vsel %vm2176, 1.0, 0.0
          %v2527 = vsel %vm2177, 1.0, 0.0
          %v2528 = vsel %vm2178, 1.0, 0.0
          %v2529 = vsel %vm2179, 1.0, 0.0
          %v2530 = vsel %vm2180, 1.0, 0.0
          %v2531 = vsel %vm2181, 1.0, 0.0
          %v2532 = vsel %vm2182, 1.0, 0.0
          %v2533 = vsel %vm2183, 1.0, 0.0
          %v2534 = vsel %vm2184, 1.0, 0.0
          %v2535 = vsel %vm2185, 1.0, 0.0
          %v2536 = vsel %vm2186, 1.0, 0.0
          %v2537 = vsel %vm2187, 1.0, 0.0
          %v2538 = vsel %vm2188, 1.0, 0.0
          %v2539 = vsel %vm2189, 1.0, 0.0
          %v2540 = vsel %vm2190, 1.0, 0.0
          %v2541 = vsel %vm2191, 1.0, 0.0
          %v2542 = vsel %vm2192, 1.0, 0.0
          %v2543 = vsel %vm2193, 1.0, 0.0
          %v2544 = vsel %vm2194, 1.0, 0.0
          %v2545 = vsel %vm2195, 1.0, 0.0
          %v2546 = vsel %vm2196, 1.0, 0.0
          %v2547 = vsel %vm2197, 1.0, 0.0
          %v2548 = vsel %vm2198, 1.0, 0.0
          %v2549 = vsel %vm2199, 1.0, 0.0
          %v2550 = vsel %vm2200, 1.0, 0.0
          %v2551 = vsel %vm2201, 1.0, 0.0
          %v2552 = vsel %vm2202, 1.0, 0.0
          %v2553 = vsel %vm2203, 1.0, 0.0
          %v2554 = vsel %vm2204, 1.0, 0.0
          %v2555 = vsel %vm2205, 1.0, 0.0
          %v2556 = vsel %vm2206, 1.0, 0.0
          %v2557 = vsel %vm2207, 1.0, 0.0
          %v2558 = vsel %vm2208, 1.0, 0.0
          %v2559 = vsel %vm2209, 1.0, 0.0
          %v2560 = vsel %vm2210, 1.0, 0.0
          %v2561 = vsel %vm2211, 1.0, 0.0
          %v2562 = vsel %vm2212, 1.0, 0.0
          %v2563 = vsel %vm2213, 1.0, 0.0
          %v2564 = vsel %vm2214, 1.0, 0.0
          %v2565 = vsel %vm2215, 1.0, 0.0
          %v2566 = vsel %vm2216, 1.0, 0.0
          %v2567 = vsel %vm2217, 1.0, 0.0
          %v2568 = vsel %vm2218, 1.0, 0.0
          %v2569 = vsel %vm2219, 1.0, 0.0
          %v2570 = vsel %vm2220, 1.0, 0.0
          %v2571 = vsel %vm2221, 1.0, 0.0
          %v2572 = vsel %vm2222, 1.0, 0.0
          %v2573 = vsel %vm2223, 1.0, 0.0
          %v2574 = vsel %vm2224, 1.0, 0.0
          %v2575 = vsel %vm2225, 1.0, 0.0
          %v2576 = vsel %vm2226, 1.0, 0.0
          %v2577 = vsel %vm2227, 1.0, 0.0
          %v2578 = vsel %vm2228, 1.0, 0.0
          %v2579 = vsel %vm2229, 1.0, 0.0
          %v2580 = vsel %vm2230, 1.0, 0.0
          %v2581 = vsel %vm2231, 1.0, 0.0
          %v2582 = vsel %vm2232, 1.0, 0.0
          %v2583 = vsel %vm2233, 1.0, 0.0
          %v2584 = vsel %vm2234, 1.0, 0.0
          %v2585 = vsel %vm2235, 1.0, 0.0
          %v2586 = vsel %vm2236, 1.0, 0.0
          %v2587 = vsel %vm2237, 1.0, 0.0
          %v2588 = vsel %vm2238, 1.0, 0.0
          %v2589 = vsel %vm2239, 1.0, 0.0
          %v2590 = vsel %vm2240, 1.0, 0.0
          %v2591 = vsel %vm2241, 1.0, 0.0
          %v2592 = vsel %vm2242, 1.0, 0.0
          %v2593 = vsel %vm2243, 1.0, 0.0
          %v2594 = vsel %vm2244, 1.0, 0.0
          %v2595 = vsel %vm2245, 1.0, 0.0
          %v2596 = vsel %vm2246, 1.0, 0.0
          %v2597 = vsel %vm2247, 1.0, 0.0
          %v2598 = vsel %vm2248, 1.0, 0.0
          %v2599 = vsel %vm2249, 1.0, 0.0
          %v2600 = vsel %vm2250, 1.0, 0.0
          %v2601 = vsel %vm2251, 1.0, 0.0
          %v2602 = vsel %vm2252, 1.0, 0.0
          %v2603 = vsel %vm2253, 1.0, 0.0
          %v2604 = vsel %vm2254, 1.0, 0.0
          %v2605 = vsel %vm2255, 1.0, 0.0
          %v2606 = vsel %vm2256, 1.0, 0.0
          %v2607 = vsel %vm2257, 1.0, 0.0
          %v2608 = vsel %vm2258, 1.0, 0.0
          %v2609 = vsel %vm2259, 1.0, 0.0
          %v2610 = vsel %vm2260, 1.0, 0.0
          %v2611 = vsel %vm2261, 1.0, 0.0
          %v2612 = vsel %vm2262, 1.0, 0.0
          %v2613 = vsel %vm2263, 1.0, 0.0
          %v2614 = vsel %vm2264, 1.0, 0.0
          %v2615 = vsel %vm2265, 1.0, 0.0
          %v2616 = vsel %vm2266, 1.0, 0.0
          %v2617 = vsel %vm2267, 1.0, 0.0
          %v2618 = vsel %vm2268, 1.0, 0.0
          %v2619 = vsel %vm2269, 1.0, 0.0
          %v2620 = vsel %vm2270, 1.0, 0.0
          %v2621 = vsel %vm2271, 1.0, 0.0
          %v2622 = vsel %vm2272, 1.0, 0.0
          %v2623 = vsel %vm2273, 1.0, 0.0
          %v2624 = vsel %vm2274, 1.0, 0.0
          %v2625 = vsel %vm2275, 1.0, 0.0
          %v2626 = vsel %vm2276, 1.0, 0.0
          %v2627 = vsel %vm2277, 1.0, 0.0
          %v2628 = vsel %vm2278, 1.0, 0.0
          %v2629 = vsel %vm2279, 1.0, 0.0
          %v2630 = vsel %vm2280, 1.0, 0.0
          %v2631 = vsel %vm2281, 1.0, 0.0
          %v2632 = vsel %vm2282, 1.0, 0.0
          %v2633 = vsel %vm2283, 1.0, 0.0
          %v2634 = vsel %vm2284, 1.0, 0.0
          %v2635 = vsel %vm2285, 1.0, 0.0
          %2636 = vst [vmem:[#allocation5] sm:$0xff] %v2286
          %2637 = vst [vmem:[#allocation5 + $0x8] sm:$0xff] %v2287
          %2638 = vst [vmem:[#allocation5 + $0x10] sm:$0xff] %v2288
          %2639 = vst [vmem:[#allocation5 + $0x18] sm:$0xff] %v2289
          %2640 = vst [vmem:[#allocation5 + $0x20] sm:$0xff] %v2290
          %2641 = vst [vmem:[#allocation5 + $0x28] sm:$0xff] %v2291
          %vm2642 = vcmask 80896
          %2643 = vst.msk [vmem:[#allocation5 + $0x30] sm:$0xff] %vm2642, %v2292
          %2644 = vst [vmem:[#allocation5 + $0x38] sm:$0xff] %v2293
          %2645 = vst [vmem:[#allocation5 + $0x40] sm:$0xff] %v2294
          %2646 = vst [vmem:[#allocation5 + $0x48] sm:$0xff] %v2295
          %2647 = vst [vmem:[#allocation5 + $0x50] sm:$0xff] %v2296
          %2648 = vst [vmem:[#allocation5 + $0x58] sm:$0xff] %v2297
          %2649 = vst [vmem:[#allocation5 + $0x60] sm:$0xff] %v2298
          %2650 = vst.msk [vmem:[#allocation5 + $0x68] sm:$0xff] %vm2642, %v2299
          %2651 = vst [vmem:[#allocation5 + $0x70] sm:$0xff] %v2300
          %2652 = vst [vmem:[#allocation5 + $0x78] sm:$0xff] %v2301
          %2653 = vst [vmem:[#allocation5 + $0x80] sm:$0xff] %v2302
          %2654 = vst [vmem:[#allocation5 + $0x88] sm:$0xff] %v2303
          %2655 = vst [vmem:[#allocation5 + $0x90] sm:$0xff] %v2304
          %2656 = vst [vmem:[#allocation5 + $0x98] sm:$0xff] %v2305
          %2657 = vst.msk [vmem:[#allocation5 + $0xa0] sm:$0xff] %vm2642, %v2306
          %2658 = vst [vmem:[#allocation5 + $0xa8] sm:$0xff] %v2307
          %2659 = vst [vmem:[#allocation5 + $0xb0] sm:$0xff] %v2308
          %2660 = vst [vmem:[#allocation5 + $0xb8] sm:$0xff] %v2309
          %2661 = vst [vmem:[#allocation5 + $0xc0] sm:$0xff] %v2310
          %2662 = vst [vmem:[#allocation5 + $0xc8] sm:$0xff] %v2311
          %2663 = vst [vmem:[#allocation5 + $0xd0] sm:$0xff] %v2312
          %2664 = vst.msk [vmem:[#allocation5 + $0xd8] sm:$0xff] %vm2642, %v2313
          %2665 = vst [vmem:[#allocation5 + $0xe0] sm:$0xff] %v2314
          %2666 = vst [vmem:[#allocation5 + $0xe8] sm:$0xff] %v2315
          %2667 = vst [vmem:[#allocation5 + $0xf0] sm:$0xff] %v2316
          %2668 = vst [vmem:[#allocation5 + $0xf8] sm:$0xff] %v2317
          %2669 = vst [vmem:[#allocation5 + $0x100] sm:$0xff] %v2318
          %2670 = vst [vmem:[#allocation5 + $0x108] sm:$0xff] %v2319
          %2671 = vst.msk [vmem:[#allocation5 + $0x110] sm:$0xff] %vm2642, %v2320
          %2672 = vst [vmem:[#allocation5 + $0x118] sm:$0xff] %v2321
          %2673 = vst [vmem:[#allocation5 + $0x120] sm:$0xff] %v2322
          %2674 = vst [vmem:[#allocation5 + $0x128] sm:$0xff] %v2323
          %2675 = vst [vmem:[#allocation5 + $0x130] sm:$0xff] %v2324
          %2676 = vst [vmem:[#allocation5 + $0x138] sm:$0xff] %v2325
          %2677 = vst [vmem:[#allocation5 + $0x140] sm:$0xff] %v2326
          %2678 = vst.msk [vmem:[#allocation5 + $0x148] sm:$0xff] %vm2642, %v2327
          %2679 = vst [vmem:[#allocation5 + $0x150] sm:$0xff] %v2328
          %2680 = vst [vmem:[#allocation5 + $0x158] sm:$0xff] %v2329
          %2681 = vst [vmem:[#allocation5 + $0x160] sm:$0xff] %v2330
          %2682 = vst [vmem:[#allocation5 + $0x168] sm:$0xff] %v2331
          %2683 = vst [vmem:[#allocation5 + $0x170] sm:$0xff] %v2332
          %2684 = vst [vmem:[#allocation5 + $0x178] sm:$0xff] %v2333
          %2685 = vst.msk [vmem:[#allocation5 + $0x180] sm:$0xff] %vm2642, %v2334
          %2686 = vst [vmem:[#allocation5 + $0x188] sm:$0xff] %v2335
          %2687 = vst [vmem:[#allocation5 + $0x190] sm:$0xff] %v2336
          %2688 = vst [vmem:[#allocation5 + $0x198] sm:$0xff] %v2337
          %2689 = vst [vmem:[#allocation5 + $0x1a0] sm:$0xff] %v2338
          %2690 = vst [vmem:[#allocation5 + $0x1a8] sm:$0xff] %v2339
          %2691 = vst [vmem:[#allocation5 + $0x1b0] sm:$0xff] %v2340
          %2692 = vst.msk [vmem:[#allocation5 + $0x1b8] sm:$0xff] %vm2642, %v2341
          %2693 = vst [vmem:[#allocation5 + $0x1c0] sm:$0xff] %v2342
          %2694 = vst [vmem:[#allocation5 + $0x1c8] sm:$0xff] %v2343
          %2695 = vst [vmem:[#allocation5 + $0x1d0] sm:$0xff] %v2344
          %2696 = vst [vmem:[#allocation5 + $0x1d8] sm:$0xff] %v2345
          %2697 = vst [vmem:[#allocation5 + $0x1e0] sm:$0xff] %v2346
          %2698 = vst [vmem:[#allocation5 + $0x1e8] sm:$0xff] %v2347
          %2699 = vst.msk [vmem:[#allocation5 + $0x1f0] sm:$0xff] %vm2642, %v2348
          %2700 = vst [vmem:[#allocation5 + $0x1f8] sm:$0xff] %v2349
          %2701 = vst [vmem:[#allocation5 + $0x200] sm:$0xff] %v2350
          %2702 = vst [vmem:[#allocation5 + $0x208] sm:$0xff] %v2351
          %2703 = vst [vmem:[#allocation5 + $0x210] sm:$0xff] %v2352
          %2704 = vst [vmem:[#allocation5 + $0x218] sm:$0xff] %v2353
          %2705 = vst [vmem:[#allocation5 + $0x220] sm:$0xff] %v2354
          %2706 = vst.msk [vmem:[#allocation5 + $0x228] sm:$0xff] %vm2642, %v2355
          %2707 = vst [vmem:[#allocation5 + $0x230] sm:$0xff] %v2356
          %2708 = vst [vmem:[#allocation5 + $0x238] sm:$0xff] %v2357
          %2709 = vst [vmem:[#allocation5 + $0x240] sm:$0xff] %v2358
          %2710 = vst [vmem:[#allocation5 + $0x248] sm:$0xff] %v2359
          %2711 = vst [vmem:[#allocation5 + $0x250] sm:$0xff] %v2360
          %2712 = vst [vmem:[#allocation5 + $0x258] sm:$0xff] %v2361
          %2713 = vst.msk [vmem:[#allocation5 + $0x260] sm:$0xff] %vm2642, %v2362
          %2714 = vst [vmem:[#allocation5 + $0x268] sm:$0xff] %v2363
          %2715 = vst [vmem:[#allocation5 + $0x270] sm:$0xff] %v2364
          %2716 = vst [vmem:[#allocation5 + $0x278] sm:$0xff] %v2365
          %2717 = vst [vmem:[#allocation5 + $0x280] sm:$0xff] %v2366
          %2718 = vst [vmem:[#allocation5 + $0x288] sm:$0xff] %v2367
          %2719 = vst [vmem:[#allocation5 + $0x290] sm:$0xff] %v2368
          %2720 = vst.msk [vmem:[#allocation5 + $0x298] sm:$0xff] %vm2642, %v2369
          %2721 = vst [vmem:[#allocation5 + $0x2a0] sm:$0xff] %v2370
          %2722 = vst [vmem:[#allocation5 + $0x2a8] sm:$0xff] %v2371
          %2723 = vst [vmem:[#allocation5 + $0x2b0] sm:$0xff] %v2372
          %2724 = vst [vmem:[#allocation5 + $0x2b8] sm:$0xff] %v2373
          %2725 = vst [vmem:[#allocation5 + $0x2c0] sm:$0xff] %v2374
          %2726 = vst [vmem:[#allocation5 + $0x2c8] sm:$0xff] %v2375
          %2727 = vst.msk [vmem:[#allocation5 + $0x2d0] sm:$0xff] %vm2642, %v2376
          %2728 = vst [vmem:[#allocation5 + $0x2d8] sm:$0xff] %v2377
          %2729 = vst [vmem:[#allocation5 + $0x2e0] sm:$0xff] %v2378
          %2730 = vst [vmem:[#allocation5 + $0x2e8] sm:$0xff] %v2379
          %2731 = vst [vmem:[#allocation5 + $0x2f0] sm:$0xff] %v2380
          %2732 = vst [vmem:[#allocation5 + $0x2f8] sm:$0xff] %v2381
          %2733 = vst [vmem:[#allocation5 + $0x300] sm:$0xff] %v2382
          %2734 = vst.msk [vmem:[#allocation5 + $0x308] sm:$0xff] %vm2642, %v2383
          %2735 = vst [vmem:[#allocation5 + $0x310] sm:$0xff] %v2384
          %2736 = vst [vmem:[#allocation5 + $0x318] sm:$0xff] %v2385
          %2737 = vst [vmem:[#allocation5 + $0x320] sm:$0xff] %v2386
          %2738 = vst [vmem:[#allocation5 + $0x328] sm:$0xff] %v2387
          %2739 = vst [vmem:[#allocation5 + $0x330] sm:$0xff] %v2388
          %2740 = vst [vmem:[#allocation5 + $0x338] sm:$0xff] %v2389
          %2741 = vst.msk [vmem:[#allocation5 + $0x340] sm:$0xff] %vm2642, %v2390
          %2742 = vst [vmem:[#allocation5 + $0x348] sm:$0xff] %v2391
          %2743 = vst [vmem:[#allocation5 + $0x350] sm:$0xff] %v2392
          %2744 = vst [vmem:[#allocation5 + $0x358] sm:$0xff] %v2393
          %2745 = vst [vmem:[#allocation5 + $0x360] sm:$0xff] %v2394
          %2746 = vst [vmem:[#allocation5 + $0x368] sm:$0xff] %v2395
          %2747 = vst [vmem:[#allocation5 + $0x370] sm:$0xff] %v2396
          %2748 = vst.msk [vmem:[#allocation5 + $0x378] sm:$0xff] %vm2642, %v2397
          %2749 = vst [vmem:[#allocation5 + $0x380] sm:$0xff] %v2398
          %2750 = vst [vmem:[#allocation5 + $0x388] sm:$0xff] %v2399
          %2751 = vst [vmem:[#allocation5 + $0x390] sm:$0xff] %v2400
          %2752 = vst [vmem:[#allocation5 + $0x398] sm:$0xff] %v2401
          %2753 = vst [vmem:[#allocation5 + $0x3a0] sm:$0xff] %v2402
          %2754 = vst [vmem:[#allocation5 + $0x3a8] sm:$0xff] %v2403
          %2755 = vst.msk [vmem:[#allocation5 + $0x3b0] sm:$0xff] %vm2642, %v2404
          %2756 = vst [vmem:[#allocation5 + $0x3b8] sm:$0xff] %v2405
          %2757 = vst [vmem:[#allocation5 + $0x3c0] sm:$0xff] %v2406
          %2758 = vst [vmem:[#allocation5 + $0x3c8] sm:$0xff] %v2407
          %2759 = vst [vmem:[#allocation5 + $0x3d0] sm:$0xff] %v2408
          %2760 = vst [vmem:[#allocation5 + $0x3d8] sm:$0xff] %v2409
          %2761 = vst [vmem:[#allocation5 + $0x3e0] sm:$0xff] %v2410
          %2762 = vst.msk [vmem:[#allocation5 + $0x3e8] sm:$0xff] %vm2642, %v2411
          %2763 = vst [vmem:[#allocation5 + $0x3f0] sm:$0xff] %v2412
          %2764 = vst [vmem:[#allocation5 + $0x3f8] sm:$0xff] %v2413
          %2765 = vst [vmem:[#allocation5 + $0x400] sm:$0xff] %v2414
          %2766 = vst [vmem:[#allocation5 + $0x408] sm:$0xff] %v2415
          %2767 = vst [vmem:[#allocation5 + $0x410] sm:$0xff] %v2416
          %2768 = vst [vmem:[#allocation5 + $0x418] sm:$0xff] %v2417
          %2769 = vst.msk [vmem:[#allocation5 + $0x420] sm:$0xff] %vm2642, %v2418
          %2770 = vst [vmem:[#allocation5 + $0x428] sm:$0xff] %v2419
          %2771 = vst [vmem:[#allocation5 + $0x430] sm:$0xff] %v2420
          %2772 = vst [vmem:[#allocation5 + $0x438] sm:$0xff] %v2421
          %2773 = vst [vmem:[#allocation5 + $0x440] sm:$0xff] %v2422
          %2774 = vst [vmem:[#allocation5 + $0x448] sm:$0xff] %v2423
          %2775 = vst [vmem:[#allocation5 + $0x450] sm:$0xff] %v2424
          %2776 = vst.msk [vmem:[#allocation5 + $0x458] sm:$0xff] %vm2642, %v2425
          %2777 = vst [vmem:[#allocation5 + $0x460] sm:$0xff] %v2426
          %2778 = vst [vmem:[#allocation5 + $0x468] sm:$0xff] %v2427
          %2779 = vst [vmem:[#allocation5 + $0x470] sm:$0xff] %v2428
          %2780 = vst [vmem:[#allocation5 + $0x478] sm:$0xff] %v2429
          %2781 = vst [vmem:[#allocation5 + $0x480] sm:$0xff] %v2430
          %2782 = vst [vmem:[#allocation5 + $0x488] sm:$0xff] %v2431
          %2783 = vst.msk [vmem:[#allocation5 + $0x490] sm:$0xff] %vm2642, %v2432
          %2784 = vst [vmem:[#allocation5 + $0x498] sm:$0xff] %v2433
          %2785 = vst [vmem:[#allocation5 + $0x4a0] sm:$0xff] %v2434
          %2786 = vst [vmem:[#allocation5 + $0x4a8] sm:$0xff] %v2435
          %2787 = vst [vmem:[#allocation5 + $0x4b0] sm:$0xff] %v2436
          %2788 = vst [vmem:[#allocation5 + $0x4b8] sm:$0xff] %v2437
          %2789 = vst [vmem:[#allocation5 + $0x4c0] sm:$0xff] %v2438
          %2790 = vst.msk [vmem:[#allocation5 + $0x4c8] sm:$0xff] %vm2642, %v2439
          %2791 = vst [vmem:[#allocation5 + $0x4d0] sm:$0xff] %v2440
          %2792 = vst [vmem:[#allocation5 + $0x4d8] sm:$0xff] %v2441
          %2793 = vst [vmem:[#allocation5 + $0x4e0] sm:$0xff] %v2442
          %2794 = vst [vmem:[#allocation5 + $0x4e8] sm:$0xff] %v2443
          %2795 = vst [vmem:[#allocation5 + $0x4f0] sm:$0xff] %v2444
          %2796 = vst [vmem:[#allocation5 + $0x4f8] sm:$0xff] %v2445
          %2797 = vst.msk [vmem:[#allocation5 + $0x500] sm:$0xff] %vm2642, %v2446
          %2798 = vst [vmem:[#allocation5 + $0x508] sm:$0xff] %v2447
          %2799 = vst [vmem:[#allocation5 + $0x510] sm:$0xff] %v2448
          %2800 = vst [vmem:[#allocation5 + $0x518] sm:$0xff] %v2449
          %2801 = vst [vmem:[#allocation5 + $0x520] sm:$0xff] %v2450
          %2802 = vst [vmem:[#allocation5 + $0x528] sm:$0xff] %v2451
          %2803 = vst [vmem:[#allocation5 + $0x530] sm:$0xff] %v2452
          %2804 = vst.msk [vmem:[#allocation5 + $0x538] sm:$0xff] %vm2642, %v2453
          %2805 = vst [vmem:[#allocation5 + $0x540] sm:$0xff] %v2454
          %2806 = vst [vmem:[#allocation5 + $0x548] sm:$0xff] %v2455
          %2807 = vst [vmem:[#allocation5 + $0x550] sm:$0xff] %v2456
          %2808 = vst [vmem:[#allocation5 + $0x558] sm:$0xff] %v2457
          %2809 = vst [vmem:[#allocation5 + $0x560] sm:$0xff] %v2458
          %2810 = vst [vmem:[#allocation5 + $0x568] sm:$0xff] %v2459
          %2811 = vst.msk [vmem:[#allocation5 + $0x570] sm:$0xff] %vm2642, %v2460
          %2812 = vst [vmem:[#allocation5 + $0x578] sm:$0xff] %v2461
          %2813 = vst [vmem:[#allocation5 + $0x580] sm:$0xff] %v2462
          %2814 = vst [vmem:[#allocation5 + $0x588] sm:$0xff] %v2463
          %2815 = vst [vmem:[#allocation5 + $0x590] sm:$0xff] %v2464
          %2816 = vst [vmem:[#allocation5 + $0x598] sm:$0xff] %v2465
          %2817 = vst [vmem:[#allocation5 + $0x5a0] sm:$0xff] %v2466
          %2818 = vst.msk [vmem:[#allocation5 + $0x5a8] sm:$0xff] %vm2642, %v2467
          %2819 = vst [vmem:[#allocation5 + $0x5b0] sm:$0xff] %v2468
          %2820 = vst [vmem:[#allocation5 + $0x5b8] sm:$0xff] %v2469
          %2821 = vst [vmem:[#allocation5 + $0x5c0] sm:$0xff] %v2470
          %2822 = vst [vmem:[#allocation5 + $0x5c8] sm:$0xff] %v2471
          %2823 = vst [vmem:[#allocation5 + $0x5d0] sm:$0xff] %v2472
          %2824 = vst [vmem:[#allocation5 + $0x5d8] sm:$0xff] %v2473
          %2825 = vst.msk [vmem:[#allocation5 + $0x5e0] sm:$0xff] %vm2642, %v2474
          %2826 = vst [vmem:[#allocation5 + $0x5e8] sm:$0xff] %v2475
          %2827 = vst [vmem:[#allocation5 + $0x5f0] sm:$0xff] %v2476
          %2828 = vst [vmem:[#allocation5 + $0x5f8] sm:$0xff] %v2477
          %2829 = vst [vmem:[#allocation5 + $0x600] sm:$0xff] %v2478
          %2830 = vst [vmem:[#allocation5 + $0x608] sm:$0xff] %v2479
          %2831 = vst [vmem:[#allocation5 + $0x610] sm:$0xff] %v2480
          %2832 = vst.msk [vmem:[#allocation5 + $0x618] sm:$0xff] %vm2642, %v2481
          %2833 = vst [vmem:[#allocation5 + $0x620] sm:$0xff] %v2482
          %2834 = vst [vmem:[#allocation5 + $0x628] sm:$0xff] %v2483
          %2835 = vst [vmem:[#allocation5 + $0x630] sm:$0xff] %v2484
          %2836 = vst [vmem:[#allocation5 + $0x638] sm:$0xff] %v2485
          %2837 = vst [vmem:[#allocation5 + $0x640] sm:$0xff] %v2486
          %2838 = vst [vmem:[#allocation5 + $0x648] sm:$0xff] %v2487
          %2839 = vst.msk [vmem:[#allocation5 + $0x650] sm:$0xff] %vm2642, %v2488
          %2840 = vst [vmem:[#allocation5 + $0x658] sm:$0xff] %v2489
          %2841 = vst [vmem:[#allocation5 + $0x660] sm:$0xff] %v2490
          %2842 = vst [vmem:[#allocation5 + $0x668] sm:$0xff] %v2491
          %2843 = vst [vmem:[#allocation5 + $0x670] sm:$0xff] %v2492
          %2844 = vst [vmem:[#allocation5 + $0x678] sm:$0xff] %v2493
          %2845 = vst [vmem:[#allocation5 + $0x680] sm:$0xff] %v2494
          %2846 = vst.msk [vmem:[#allocation5 + $0x688] sm:$0xff] %vm2642, %v2495
          %2847 = vst [vmem:[#allocation5 + $0x690] sm:$0xff] %v2496
          %2848 = vst [vmem:[#allocation5 + $0x698] sm:$0xff] %v2497
          %2849 = vst [vmem:[#allocation5 + $0x6a0] sm:$0xff] %v2498
          %2850 = vst [vmem:[#allocation5 + $0x6a8] sm:$0xff] %v2499
          %2851 = vst [vmem:[#allocation5 + $0x6b0] sm:$0xff] %v2500
          %2852 = vst [vmem:[#allocation5 + $0x6b8] sm:$0xff] %v2501
          %2853 = vst.msk [vmem:[#allocation5 + $0x6c0] sm:$0xff] %vm2642, %v2502
          %2854 = vst [vmem:[#allocation5 + $0x6c8] sm:$0xff] %v2503
          %2855 = vst [vmem:[#allocation5 + $0x6d0] sm:$0xff] %v2504
          %2856 = vst [vmem:[#allocation5 + $0x6d8] sm:$0xff] %v2505
          %2857 = vst [vmem:[#allocation5 + $0x6e0] sm:$0xff] %v2506
          %2858 = vst [vmem:[#allocation5 + $0x6e8] sm:$0xff] %v2507
          %2859 = vst [vmem:[#allocation5 + $0x6f0] sm:$0xff] %v2508
          %2860 = vst.msk [vmem:[#allocation5 + $0x6f8] sm:$0xff] %vm2642, %v2509
          %2861 = vst [vmem:[#allocation5 + $0x700] sm:$0xff] %v2510
          %2862 = vst [vmem:[#allocation5 + $0x708] sm:$0xff] %v2511
          %2863 = vst [vmem:[#allocation5 + $0x710] sm:$0xff] %v2512
          %2864 = vst [vmem:[#allocation5 + $0x718] sm:$0xff] %v2513
          %2865 = vst [vmem:[#allocation5 + $0x720] sm:$0xff] %v2514
          %2866 = vst [vmem:[#allocation5 + $0x728] sm:$0xff] %v2515
          %2867 = vst.msk [vmem:[#allocation5 + $0x730] sm:$0xff] %vm2642, %v2516
          %2868 = vst [vmem:[#allocation5 + $0x738] sm:$0xff] %v2517
          %2869 = vst [vmem:[#allocation5 + $0x740] sm:$0xff] %v2518
          %2870 = vst [vmem:[#allocation5 + $0x748] sm:$0xff] %v2519
          %2871 = vst [vmem:[#allocation5 + $0x750] sm:$0xff] %v2520
          %2872 = vst [vmem:[#allocation5 + $0x758] sm:$0xff] %v2521
          %2873 = vst [vmem:[#allocation5 + $0x760] sm:$0xff] %v2522
          %2874 = vst.msk [vmem:[#allocation5 + $0x768] sm:$0xff] %vm2642, %v2523
          %2875 = vst [vmem:[#allocation5 + $0x770] sm:$0xff] %v2524
          %2876 = vst [vmem:[#allocation5 + $0x778] sm:$0xff] %v2525
          %2877 = vst [vmem:[#allocation5 + $0x780] sm:$0xff] %v2526
          %2878 = vst [vmem:[#allocation5 + $0x788] sm:$0xff] %v2527
          %2879 = vst [vmem:[#allocation5 + $0x790] sm:$0xff] %v2528
          %2880 = vst [vmem:[#allocation5 + $0x798] sm:$0xff] %v2529
          %2881 = vst.msk [vmem:[#allocation5 + $0x7a0] sm:$0xff] %vm2642, %v2530
          %2882 = vst [vmem:[#allocation5 + $0x7a8] sm:$0xff] %v2531
          %2883 = vst [vmem:[#allocation5 + $0x7b0] sm:$0xff] %v2532
          %2884 = vst [vmem:[#allocation5 + $0x7b8] sm:$0xff] %v2533
          %2885 = vst [vmem:[#allocation5 + $0x7c0] sm:$0xff] %v2534
          %2886 = vst [vmem:[#allocation5 + $0x7c8] sm:$0xff] %v2535
          %2887 = vst [vmem:[#allocation5 + $0x7d0] sm:$0xff] %v2536
          %2888 = vst.msk [vmem:[#allocation5 + $0x7d8] sm:$0xff] %vm2642, %v2537
          %2889 = vst [vmem:[#allocation5 + $0x7e0] sm:$0xff] %v2538
          %2890 = vst [vmem:[#allocation5 + $0x7e8] sm:$0xff] %v2539
          %2891 = vst [vmem:[#allocation5 + $0x7f0] sm:$0xff] %v2540
          %2892 = vst [vmem:[#allocation5 + $0x7f8] sm:$0xff] %v2541
          %2893 = vst [vmem:[#allocation5 + $0x800] sm:$0xff] %v2542
          %2894 = vst [vmem:[#allocation5 + $0x808] sm:$0xff] %v2543
          %2895 = vst.msk [vmem:[#allocation5 + $0x810] sm:$0xff] %vm2642, %v2544
          %2896 = vst [vmem:[#allocation5 + $0x818] sm:$0xff] %v2545
          %2897 = vst [vmem:[#allocation5 + $0x820] sm:$0xff] %v2546
          %2898 = vst [vmem:[#allocation5 + $0x828] sm:$0xff] %v2547
          %2899 = vst [vmem:[#allocation5 + $0x830] sm:$0xff] %v2548
          %2900 = vst [vmem:[#allocation5 + $0x838] sm:$0xff] %v2549
          %2901 = vst [vmem:[#allocation5 + $0x840] sm:$0xff] %v2550
          %2902 = vst.msk [vmem:[#allocation5 + $0x848] sm:$0xff] %vm2642, %v2551
          %2903 = vst [vmem:[#allocation5 + $0x850] sm:$0xff] %v2552
          %2904 = vst [vmem:[#allocation5 + $0x858] sm:$0xff] %v2553
          %2905 = vst [vmem:[#allocation5 + $0x860] sm:$0xff] %v2554
          %2906 = vst [vmem:[#allocation5 + $0x868] sm:$0xff] %v2555
          %2907 = vst [vmem:[#allocation5 + $0x870] sm:$0xff] %v2556
          %2908 = vst [vmem:[#allocation5 + $0x878] sm:$0xff] %v2557
          %2909 = vst.msk [vmem:[#allocation5 + $0x880] sm:$0xff] %vm2642, %v2558
          %2910 = vst [vmem:[#allocation5 + $0x888] sm:$0xff] %v2559
          %2911 = vst [vmem:[#allocation5 + $0x890] sm:$0xff] %v2560
          %2912 = vst [vmem:[#allocation5 + $0x898] sm:$0xff] %v2561
          %2913 = vst [vmem:[#allocation5 + $0x8a0] sm:$0xff] %v2562
          %2914 = vst [vmem:[#allocation5 + $0x8a8] sm:$0xff] %v2563
          %2915 = vst [vmem:[#allocation5 + $0x8b0] sm:$0xff] %v2564
          %2916 = vst.msk [vmem:[#allocation5 + $0x8b8] sm:$0xff] %vm2642, %v2565
          %2917 = vst [vmem:[#allocation5 + $0x8c0] sm:$0xff] %v2566
          %2918 = vst [vmem:[#allocation5 + $0x8c8] sm:$0xff] %v2567
          %2919 = vst [vmem:[#allocation5 + $0x8d0] sm:$0xff] %v2568
          %2920 = vst [vmem:[#allocation5 + $0x8d8] sm:$0xff] %v2569
          %2921 = vst [vmem:[#allocation5 + $0x8e0] sm:$0xff] %v2570
          %2922 = vst [vmem:[#allocation5 + $0x8e8] sm:$0xff] %v2571
          %2923 = vst.msk [vmem:[#allocation5 + $0x8f0] sm:$0xff] %vm2642, %v2572
          %2924 = vst [vmem:[#allocation5 + $0x8f8] sm:$0xff] %v2573
          %2925 = vst [vmem:[#allocation5 + $0x900] sm:$0xff] %v2574
          %2926 = vst [vmem:[#allocation5 + $0x908] sm:$0xff] %v2575
          %2927 = vst [vmem:[#allocation5 + $0x910] sm:$0xff] %v2576
          %2928 = vst [vmem:[#allocation5 + $0x918] sm:$0xff] %v2577
          %2929 = vst [vmem:[#allocation5 + $0x920] sm:$0xff] %v2578
          %2930 = vst.msk [vmem:[#allocation5 + $0x928] sm:$0xff] %vm2642, %v2579
          %2931 = vst [vmem:[#allocation5 + $0x930] sm:$0xff] %v2580
          %2932 = vst [vmem:[#allocation5 + $0x938] sm:$0xff] %v2581
          %2933 = vst [vmem:[#allocation5 + $0x940] sm:$0xff] %v2582
          %2934 = vst [vmem:[#allocation5 + $0x948] sm:$0xff] %v2583
          %2935 = vst [vmem:[#allocation5 + $0x950] sm:$0xff] %v2584
          %2936 = vst [vmem:[#allocation5 + $0x958] sm:$0xff] %v2585
          %2937 = vst.msk [vmem:[#allocation5 + $0x960] sm:$0xff] %vm2642, %v2586
          %2938 = vst [vmem:[#allocation5 + $0x968] sm:$0xff] %v2587
          %2939 = vst [vmem:[#allocation5 + $0x970] sm:$0xff] %v2588
          %2940 = vst [vmem:[#allocation5 + $0x978] sm:$0xff] %v2589
          %2941 = vst [vmem:[#allocation5 + $0x980] sm:$0xff] %v2590
          %2942 = vst [vmem:[#allocation5 + $0x988] sm:$0xff] %v2591
          %2943 = vst [vmem:[#allocation5 + $0x990] sm:$0xff] %v2592
          %2944 = vst.msk [vmem:[#allocation5 + $0x998] sm:$0xff] %vm2642, %v2593
          %2945 = vst [vmem:[#allocation5 + $0x9a0] sm:$0xff] %v2594
          %2946 = vst [vmem:[#allocation5 + $0x9a8] sm:$0xff] %v2595
          %2947 = vst [vmem:[#allocation5 + $0x9b0] sm:$0xff] %v2596
          %2948 = vst [vmem:[#allocation5 + $0x9b8] sm:$0xff] %v2597
          %2949 = vst [vmem:[#allocation5 + $0x9c0] sm:$0xff] %v2598
          %2950 = vst [vmem:[#allocation5 + $0x9c8] sm:$0xff] %v2599
          %2951 = vst.msk [vmem:[#allocation5 + $0x9d0] sm:$0xff] %vm2642, %v2600
          %2952 = vst [vmem:[#allocation5 + $0x9d8] sm:$0xff] %v2601
          %2953 = vst [vmem:[#allocation5 + $0x9e0] sm:$0xff] %v2602
          %2954 = vst [vmem:[#allocation5 + $0x9e8] sm:$0xff] %v2603
          %2955 = vst [vmem:[#allocation5 + $0x9f0] sm:$0xff] %v2604
          %2956 = vst [vmem:[#allocation5 + $0x9f8] sm:$0xff] %v2605
          %2957 = vst [vmem:[#allocation5 + $0xa00] sm:$0xff] %v2606
          %2958 = vst.msk [vmem:[#allocation5 + $0xa08] sm:$0xff] %vm2642, %v2607
          %2959 = vst [vmem:[#allocation5 + $0xa10] sm:$0xff] %v2608
          %2960 = vst [vmem:[#allocation5 + $0xa18] sm:$0xff] %v2609
          %2961 = vst [vmem:[#allocation5 + $0xa20] sm:$0xff] %v2610
          %2962 = vst [vmem:[#allocation5 + $0xa28] sm:$0xff] %v2611
          %2963 = vst [vmem:[#allocation5 + $0xa30] sm:$0xff] %v2612
          %2964 = vst [vmem:[#allocation5 + $0xa38] sm:$0xff] %v2613
          %2965 = vst.msk [vmem:[#allocation5 + $0xa40] sm:$0xff] %vm2642, %v2614
          %2966 = vst [vmem:[#allocation5 + $0xa48] sm:$0xff] %v2615
          %2967 = vst [vmem:[#allocation5 + $0xa50] sm:$0xff] %v2616
          %2968 = vst [vmem:[#allocation5 + $0xa58] sm:$0xff] %v2617
          %2969 = vst [vmem:[#allocation5 + $0xa60] sm:$0xff] %v2618
          %2970 = vst [vmem:[#allocation5 + $0xa68] sm:$0xff] %v2619
          %2971 = vst [vmem:[#allocation5 + $0xa70] sm:$0xff] %v2620
          %2972 = vst.msk [vmem:[#allocation5 + $0xa78] sm:$0xff] %vm2642, %v2621
          %2973 = vst [vmem:[#allocation5 + $0xa80] sm:$0xff] %v2622
          %2974 = vst [vmem:[#allocation5 + $0xa88] sm:$0xff] %v2623
          %2975 = vst [vmem:[#allocation5 + $0xa90] sm:$0xff] %v2624
          %2976 = vst [vmem:[#allocation5 + $0xa98] sm:$0xff] %v2625
          %2977 = vst [vmem:[#allocation5 + $0xaa0] sm:$0xff] %v2626
          %2978 = vst [vmem:[#allocation5 + $0xaa8] sm:$0xff] %v2627
          %2979 = vst.msk [vmem:[#allocation5 + $0xab0] sm:$0xff] %vm2642, %v2628
          %2980 = vst [vmem:[#allocation5 + $0xab8] sm:$0xff] %v2629
          %2981 = vst [vmem:[#allocation5 + $0xac0] sm:$0xff] %v2630
          %2982 = vst [vmem:[#allocation5 + $0xac8] sm:$0xff] %v2631
          %2983 = vst [vmem:[#allocation5 + $0xad0] sm:$0xff] %v2632
          %2984 = vst [vmem:[#allocation5 + $0xad8] sm:$0xff] %v2633
          %2985 = vst [vmem:[#allocation5 + $0xae0] sm:$0xff] %v2634
          %2986 = vst.msk [vmem:[#allocation5 + $0xae8] sm:$0xff] %vm2642, %v2635
        $region60: #{decoder_forward.1} parent=51 // pred_fallthru
          _
        %v2987 = vld [vmem:[%s2] sm:$0xff]
        %v2988 = vld [vmem:[%s2 + $0x8] sm:$0xff]
        %v2989 = vld [vmem:[%s2 + $0x10] sm:$0xff]
        %v2990 = vld [vmem:[%s2 + $0x18] sm:$0xff]
        %v2991 = vld [vmem:[%s2 + $0x20] sm:$0xff]
        %v2992 = vld [vmem:[%s2 + $0x28] sm:$0xff]
        %v2993 = vld [vmem:[%s2 + $0x30] sm:$0xff]
        %v2994 = vld [vmem:[%s2 + $0x38] sm:$0xff]
        %v2995 = vld [vmem:[%s2 + $0x40] sm:$0xff]
        %v2996 = vld [vmem:[%s2 + $0x48] sm:$0xff]
        %v2997 = vld [vmem:[%s2 + $0x50] sm:$0xff]
        %v2998 = vld [vmem:[%s2 + $0x58] sm:$0xff]
        %v2999 = vld [vmem:[%s2 + $0x60] sm:$0xff]
        %v3000 = vld [vmem:[%s2 + $0x68] sm:$0xff]
        %v3001 = vld [vmem:[%s2 + $0x70] sm:$0xff]
        %v3002 = vld [vmem:[%s2 + $0x78] sm:$0xff]
        %s3003 = smul.u32 %s23, 128
        %s3004 = sld [smem:[#allocation6 + %s3003]]
        %v3005 = vld [vmem:[%s1] sm:$0xf]
        %v3006 = vld [vmem:[%s1 + $0x4] sm:$0xf]
        %v3007 = vld [vmem:[%s1 + $0x8] sm:$0xf]
        %v3008 = vld [vmem:[%s1 + $0xc] sm:$0xf]
        %v3009 = vld [vmem:[%s1 + $0x10] sm:$0xf]
        %v3010 = vld [vmem:[%s1 + $0x14] sm:$0xf]
        %v3011 = vld [vmem:[%s1 + $0x18] sm:$0xf]
        %v3012 = vld [vmem:[%s1 + $0x1c] sm:$0xf]
        %v3013 = vld [vmem:[%s1 + $0x20] sm:$0xf]
        %v3014 = vld [vmem:[%s1 + $0x24] sm:$0xf]
        %v3015 = vld [vmem:[%s1 + $0x28] sm:$0xf]
        %v3016 = vld [vmem:[%s1 + $0x2c] sm:$0xf]
        %v3017 = vld [vmem:[%s1 + $0x30] sm:$0xf]
        %v3018 = vld [vmem:[%s1 + $0x34] sm:$0xf]
        %v3019 = vld [vmem:[%s1 + $0x38] sm:$0xf]
        %v3020 = vld [vmem:[%s1 + $0x3c] sm:$0xf]
        %v3021 = vunpack.c.l.bf16 %v3005
        %v3022 = vunpack.c.l.bf16 %v3006
        %v3023 = vunpack.c.l.bf16 %v3007
        %v3024 = vunpack.c.l.bf16 %v3008
        %v3025 = vunpack.c.l.bf16 %v3009
        %v3026 = vunpack.c.l.bf16 %v3010
        %v3027 = vunpack.c.l.bf16 %v3011
        %v3028 = vunpack.c.l.bf16 %v3012
        %v3029 = vunpack.c.l.bf16 %v3013
        %v3030 = vunpack.c.l.bf16 %v3014
        %v3031 = vunpack.c.l.bf16 %v3015
        %v3032 = vunpack.c.l.bf16 %v3016
        %v3033 = vunpack.c.l.bf16 %v3017
        %v3034 = vunpack.c.l.bf16 %v3018
        %v3035 = vunpack.c.l.bf16 %v3019
        %v3036 = vunpack.c.l.bf16 %v3020
        %v3037 = vstv %s3004
        %v3038 = vmul.f32 %v3037, %v3021
        %v3039 = vmul.f32 %v3037, %v3022
        %v3040 = vmul.f32 %v3037, %v3023
        %v3041 = vmul.f32 %v3037, %v3024
        %v3042 = vmul.f32 %v3037, %v3025
        %v3043 = vmul.f32 %v3037, %v3026
        %v3044 = vmul.f32 %v3037, %v3027
        %v3045 = vmul.f32 %v3037, %v3028
        %v3046 = vmul.f32 %v3037, %v3029
        %v3047 = vmul.f32 %v3037, %v3030
        %v3048 = vmul.f32 %v3037, %v3031
        %v3049 = vmul.f32 %v3037, %v3032
        %v3050 = vmul.f32 %v3037, %v3033
        %v3051 = vmul.f32 %v3037, %v3034
        %v3052 = vmul.f32 %v3037, %v3035
        %v3053 = vmul.f32 %v3037, %v3036
        %v3054 = vadd.f32 %v2987, %v3038
        %v3055 = vadd.f32 %v2988, %v3039
        %v3056 = vadd.f32 %v2989, %v3040
        %v3057 = vadd.f32 %v2990, %v3041
        %v3058 = vadd.f32 %v2991, %v3042
        %v3059 = vadd.f32 %v2992, %v3043
        %v3060 = vadd.f32 %v2993, %v3044
        %v3061 = vadd.f32 %v2994, %v3045
        %v3062 = vadd.f32 %v2995, %v3046
        %v3063 = vadd.f32 %v2996, %v3047
        %v3064 = vadd.f32 %v2997, %v3048
        %v3065 = vadd.f32 %v2998, %v3049
        %v3066 = vadd.f32 %v2999, %v3050
        %v3067 = vadd.f32 %v3000, %v3051
        %v3068 = vadd.f32 %v3001, %v3052
        %v3069 = vadd.f32 %v3002, %v3053
        %s3070 = sadd.s32 %s3003, 1
        %s3071 = sld [smem:[#allocation6 + %s3070]]
        %s3072 = scalar_lea.vmem %s1, 64
        %v3073 = vld [vmem:[%s3072] sm:$0xf]
        %v3074 = vld [vmem:[%s3072 + $0x4] sm:$0xf]
        %v3075 = vld [vmem:[%s3072 + $0x8] sm:$0xf]
        %v3076 = vld [vmem:[%s3072 + $0xc] sm:$0xf]
        %v3077 = vld [vmem:[%s3072 + $0x10] sm:$0xf]
        %v3078 = vld [vmem:[%s3072 + $0x14] sm:$0xf]
        %v3079 = vld [vmem:[%s3072 + $0x18] sm:$0xf]
        %v3080 = vld [vmem:[%s3072 + $0x1c] sm:$0xf]
        %v3081 = vld [vmem:[%s3072 + $0x20] sm:$0xf]
        %v3082 = vld [vmem:[%s3072 + $0x24] sm:$0xf]
        %v3083 = vld [vmem:[%s3072 + $0x28] sm:$0xf]
        %v3084 = vld [vmem:[%s3072 + $0x2c] sm:$0xf]
        %v3085 = vld [vmem:[%s3072 + $0x30] sm:$0xf]
        %v3086 = vld [vmem:[%s3072 + $0x34] sm:$0xf]
        %v3087 = vld [vmem:[%s3072 + $0x38] sm:$0xf]
        %v3088 = vld [vmem:[%s3072 + $0x3c] sm:$0xf]
        %v3089 = vunpack.c.l.bf16 %v3073
        %v3090 = vunpack.c.l.bf16 %v3074
        %v3091 = vunpack.c.l.bf16 %v3075
        %v3092 = vunpack.c.l.bf16 %v3076
        %v3093 = vunpack.c.l.bf16 %v3077
        %v3094 = vunpack.c.l.bf16 %v3078
        %v3095 = vunpack.c.l.bf16 %v3079
        %v3096 = vunpack.c.l.bf16 %v3080
        %v3097 = vunpack.c.l.bf16 %v3081
        %v3098 = vunpack.c.l.bf16 %v3082
        %v3099 = vunpack.c.l.bf16 %v3083
        %v3100 = vunpack.c.l.bf16 %v3084
        %v3101 = vunpack.c.l.bf16 %v3085
        %v3102 = vunpack.c.l.bf16 %v3086
        %v3103 = vunpack.c.l.bf16 %v3087
        %v3104 = vunpack.c.l.bf16 %v3088
        %v3105 = vstv %s3071
        %v3106 = vmul.f32 %v3105, %v3089
        %v3107 = vmul.f32 %v3105, %v3090
        %v3108 = vmul.f32 %v3105, %v3091
        %v3109 = vmul.f32 %v3105, %v3092
        %v3110 = vmul.f32 %v3105, %v3093
        %v3111 = vmul.f32 %v3105, %v3094
        %v3112 = vmul.f32 %v3105, %v3095
        %v3113 = vmul.f32 %v3105, %v3096
        %v3114 = vmul.f32 %v3105, %v3097
        %v3115 = vmul.f32 %v3105, %v3098
        %v3116 = vmul.f32 %v3105, %v3099
        %v3117 = vmul.f32 %v3105, %v3100
        %v3118 = vmul.f32 %v3105, %v3101
        %v3119 = vmul.f32 %v3105, %v3102
        %v3120 = vmul.f32 %v3105, %v3103
        %v3121 = vmul.f32 %v3105, %v3104
        %v3122 = vadd.f32 %v3054, %v3106
        %v3123 = vadd.f32 %v3055, %v3107
        %v3124 = vadd.f32 %v3056, %v3108
        %v3125 = vadd.f32 %v3057, %v3109
        %v3126 = vadd.f32 %v3058, %v3110
        %v3127 = vadd.f32 %v3059, %v3111
        %v3128 = vadd.f32 %v3060, %v3112
        %v3129 = vadd.f32 %v3061, %v3113
        %v3130 = vadd.f32 %v3062, %v3114
        %v3131 = vadd.f32 %v3063, %v3115
        %v3132 = vadd.f32 %v3064, %v3116
        %v3133 = vadd.f32 %v3065, %v3117
        %v3134 = vadd.f32 %v3066, %v3118
        %v3135 = vadd.f32 %v3067, %v3119
        %v3136 = vadd.f32 %v3068, %v3120
        %v3137 = vadd.f32 %v3069, %v3121
        %s3138 = sadd.s32 %s3003, 2
        %s3139 = sld [smem:[#allocation6 + %s3138]]
        %s3140 = scalar_lea.vmem %s1, 128
        %v3141 = vld [vmem:[%s3140] sm:$0xf]
        %v3142 = vld [vmem:[%s3140 + $0x4] sm:$0xf]
        %v3143 = vld [vmem:[%s3140 + $0x8] sm:$0xf]
        %v3144 = vld [vmem:[%s3140 + $0xc] sm:$0xf]
        %v3145 = vld [vmem:[%s3140 + $0x10] sm:$0xf]
        %v3146 = vld [vmem:[%s3140 + $0x14] sm:$0xf]
        %v3147 = vld [vmem:[%s3140 + $0x18] sm:$0xf]
        %v3148 = vld [vmem:[%s3140 + $0x1c] sm:$0xf]
        %v3149 = vld [vmem:[%s3140 + $0x20] sm:$0xf]
        %v3150 = vld [vmem:[%s3140 + $0x24] sm:$0xf]
        %v3151 = vld [vmem:[%s3140 + $0x28] sm:$0xf]
        %v3152 = vld [vmem:[%s3140 + $0x2c] sm:$0xf]
        %v3153 = vld [vmem:[%s3140 + $0x30] sm:$0xf]
        %v3154 = vld [vmem:[%s3140 + $0x34] sm:$0xf]
        %v3155 = vld [vmem:[%s3140 + $0x38] sm:$0xf]
        %v3156 = vld [vmem:[%s3140 + $0x3c] sm:$0xf]
        %v3157 = vunpack.c.l.bf16 %v3141
        %v3158 = vunpack.c.l.bf16 %v3142
        %v3159 = vunpack.c.l.bf16 %v3143
        %v3160 = vunpack.c.l.bf16 %v3144
        %v3161 = vunpack.c.l.bf16 %v3145
        %v3162 = vunpack.c.l.bf16 %v3146
        %v3163 = vunpack.c.l.bf16 %v3147
        %v3164 = vunpack.c.l.bf16 %v3148
        %v3165 = vunpack.c.l.bf16 %v3149
        %v3166 = vunpack.c.l.bf16 %v3150
        %v3167 = vunpack.c.l.bf16 %v3151
        %v3168 = vunpack.c.l.bf16 %v3152
        %v3169 = vunpack.c.l.bf16 %v3153
        %v3170 = vunpack.c.l.bf16 %v3154
        %v3171 = vunpack.c.l.bf16 %v3155
        %v3172 = vunpack.c.l.bf16 %v3156
        %v3173 = vstv %s3139
        %v3174 = vmul.f32 %v3173, %v3157
        %v3175 = vmul.f32 %v3173, %v3158
        %v3176 = vmul.f32 %v3173, %v3159
        %v3177 = vmul.f32 %v3173, %v3160
        %v3178 = vmul.f32 %v3173, %v3161
        %v3179 = vmul.f32 %v3173, %v3162
        %v3180 = vmul.f32 %v3173, %v3163
        %v3181 = vmul.f32 %v3173, %v3164
        %v3182 = vmul.f32 %v3173, %v3165
        %v3183 = vmul.f32 %v3173, %v3166
        %v3184 = vmul.f32 %v3173, %v3167
        %v3185 = vmul.f32 %v3173, %v3168
        %v3186 = vmul.f32 %v3173, %v3169
        %v3187 = vmul.f32 %v3173, %v3170
        %v3188 = vmul.f32 %v3173, %v3171
        %v3189 = vmul.f32 %v3173, %v3172
        %v3190 = vadd.f32 %v3122, %v3174
        %v3191 = vadd.f32 %v3123, %v3175
        %v3192 = vadd.f32 %v3124, %v3176
        %v3193 = vadd.f32 %v3125, %v3177
        %v3194 = vadd.f32 %v3126, %v3178
        %v3195 = vadd.f32 %v3127, %v3179
        %v3196 = vadd.f32 %v3128, %v3180
        %v3197 = vadd.f32 %v3129, %v3181
        %v3198 = vadd.f32 %v3130, %v3182
        %v3199 = vadd.f32 %v3131, %v3183
        %v3200 = vadd.f32 %v3132, %v3184
        %v3201 = vadd.f32 %v3133, %v3185
        %v3202 = vadd.f32 %v3134, %v3186
        %v3203 = vadd.f32 %v3135, %v3187
        %v3204 = vadd.f32 %v3136, %v3188
        %v3205 = vadd.f32 %v3137, %v3189
        %s3206 = sadd.s32 %s3003, 3
        %s3207 = sld [smem:[#allocation6 + %s3206]]
        %s3208 = scalar_lea.vmem %s1, 192
        %v3209 = vld [vmem:[%s3208] sm:$0xf]
        %v3210 = vld [vmem:[%s3208 + $0x4] sm:$0xf]
        %v3211 = vld [vmem:[%s3208 + $0x8] sm:$0xf]
        %v3212 = vld [vmem:[%s3208 + $0xc] sm:$0xf]
        %v3213 = vld [vmem:[%s3208 + $0x10] sm:$0xf]
        %v3214 = vld [vmem:[%s3208 + $0x14] sm:$0xf]
        %v3215 = vld [vmem:[%s3208 + $0x18] sm:$0xf]
        %v3216 = vld [vmem:[%s3208 + $0x1c] sm:$0xf]
        %v3217 = vld [vmem:[%s3208 + $0x20] sm:$0xf]
        %v3218 = vld [vmem:[%s3208 + $0x24] sm:$0xf]
        %v3219 = vld [vmem:[%s3208 + $0x28] sm:$0xf]
        %v3220 = vld [vmem:[%s3208 + $0x2c] sm:$0xf]
        %v3221 = vld [vmem:[%s3208 + $0x30] sm:$0xf]
        %v3222 = vld [vmem:[%s3208 + $0x34] sm:$0xf]
        %v3223 = vld [vmem:[%s3208 + $0x38] sm:$0xf]
        %v3224 = vld [vmem:[%s3208 + $0x3c] sm:$0xf]
        %v3225 = vunpack.c.l.bf16 %v3209
        %v3226 = vunpack.c.l.bf16 %v3210
        %v3227 = vunpack.c.l.bf16 %v3211
        %v3228 = vunpack.c.l.bf16 %v3212
        %v3229 = vunpack.c.l.bf16 %v3213
        %v3230 = vunpack.c.l.bf16 %v3214
        %v3231 = vunpack.c.l.bf16 %v3215
        %v3232 = vunpack.c.l.bf16 %v3216
        %v3233 = vunpack.c.l.bf16 %v3217
        %v3234 = vunpack.c.l.bf16 %v3218
        %v3235 = vunpack.c.l.bf16 %v3219
        %v3236 = vunpack.c.l.bf16 %v3220
        %v3237 = vunpack.c.l.bf16 %v3221
        %v3238 = vunpack.c.l.bf16 %v3222
        %v3239 = vunpack.c.l.bf16 %v3223
        %v3240 = vunpack.c.l.bf16 %v3224
        %v3241 = vstv %s3207
        %v3242 = vmul.f32 %v3241, %v3225
        %v3243 = vmul.f32 %v3241, %v3226
        %v3244 = vmul.f32 %v3241, %v3227
        %v3245 = vmul.f32 %v3241, %v3228
        %v3246 = vmul.f32 %v3241, %v3229
        %v3247 = vmul.f32 %v3241, %v3230
        %v3248 = vmul.f32 %v3241, %v3231
        %v3249 = vmul.f32 %v3241, %v3232
        %v3250 = vmul.f32 %v3241, %v3233
        %v3251 = vmul.f32 %v3241, %v3234
        %v3252 = vmul.f32 %v3241, %v3235
        %v3253 = vmul.f32 %v3241, %v3236
        %v3254 = vmul.f32 %v3241, %v3237
        %v3255 = vmul.f32 %v3241, %v3238
        %v3256 = vmul.f32 %v3241, %v3239
        %v3257 = vmul.f32 %v3241, %v3240
        %v3258 = vadd.f32 %v3190, %v3242
        %v3259 = vadd.f32 %v3191, %v3243
        %v3260 = vadd.f32 %v3192, %v3244
        %v3261 = vadd.f32 %v3193, %v3245
        %v3262 = vadd.f32 %v3194, %v3246
        %v3263 = vadd.f32 %v3195, %v3247
        %v3264 = vadd.f32 %v3196, %v3248
        %v3265 = vadd.f32 %v3197, %v3249
        %v3266 = vadd.f32 %v3198, %v3250
        %v3267 = vadd.f32 %v3199, %v3251
        %v3268 = vadd.f32 %v3200, %v3252
        %v3269 = vadd.f32 %v3201, %v3253
        %v3270 = vadd.f32 %v3202, %v3254
        %v3271 = vadd.f32 %v3203, %v3255
        %v3272 = vadd.f32 %v3204, %v3256
        %v3273 = vadd.f32 %v3205, %v3257
        %s3274 = sadd.s32 %s3003, 4
        %s3275 = sld [smem:[#allocation6 + %s3274]]
        %s3276 = scalar_lea.vmem %s1, 256
        %v3277 = vld [vmem:[%s3276] sm:$0xf]
        %v3278 = vld [vmem:[%s3276 + $0x4] sm:$0xf]
        %v3279 = vld [vmem:[%s3276 + $0x8] sm:$0xf]
        %v3280 = vld [vmem:[%s3276 + $0xc] sm:$0xf]
        %v3281 = vld [vmem:[%s3276 + $0x10] sm:$0xf]
        %v3282 = vld [vmem:[%s3276 + $0x14] sm:$0xf]
        %v3283 = vld [vmem:[%s3276 + $0x18] sm:$0xf]
        %v3284 = vld [vmem:[%s3276 + $0x1c] sm:$0xf]
        %v3285 = vld [vmem:[%s3276 + $0x20] sm:$0xf]
        %v3286 = vld [vmem:[%s3276 + $0x24] sm:$0xf]
        %v3287 = vld [vmem:[%s3276 + $0x28] sm:$0xf]
        %v3288 = vld [vmem:[%s3276 + $0x2c] sm:$0xf]
        %v3289 = vld [vmem:[%s3276 + $0x30] sm:$0xf]
        %v3290 = vld [vmem:[%s3276 + $0x34] sm:$0xf]
        %v3291 = vld [vmem:[%s3276 + $0x38] sm:$0xf]
        %v3292 = vld [vmem:[%s3276 + $0x3c] sm:$0xf]
        %v3293 = vunpack.c.l.bf16 %v3277
        %v3294 = vunpack.c.l.bf16 %v3278
        %v3295 = vunpack.c.l.bf16 %v3279
        %v3296 = vunpack.c.l.bf16 %v3280
        %v3297 = vunpack.c.l.bf16 %v3281
        %v3298 = vunpack.c.l.bf16 %v3282
        %v3299 = vunpack.c.l.bf16 %v3283
        %v3300 = vunpack.c.l.bf16 %v3284
        %v3301 = vunpack.c.l.bf16 %v3285
        %v3302 = vunpack.c.l.bf16 %v3286
        %v3303 = vunpack.c.l.bf16 %v3287
        %v3304 = vunpack.c.l.bf16 %v3288
        %v3305 = vunpack.c.l.bf16 %v3289
        %v3306 = vunpack.c.l.bf16 %v3290
        %v3307 = vunpack.c.l.bf16 %v3291
        %v3308 = vunpack.c.l.bf16 %v3292
        %v3309 = vstv %s3275
        %v3310 = vmul.f32 %v3309, %v3293
        %v3311 = vmul.f32 %v3309, %v3294
        %v3312 = vmul.f32 %v3309, %v3295
        %v3313 = vmul.f32 %v3309, %v3296
        %v3314 = vmul.f32 %v3309, %v3297
        %v3315 = vmul.f32 %v3309, %v3298
        %v3316 = vmul.f32 %v3309, %v3299
        %v3317 = vmul.f32 %v3309, %v3300
        %v3318 = vmul.f32 %v3309, %v3301
        %v3319 = vmul.f32 %v3309, %v3302
        %v3320 = vmul.f32 %v3309, %v3303
        %v3321 = vmul.f32 %v3309, %v3304
        %v3322 = vmul.f32 %v3309, %v3305
        %v3323 = vmul.f32 %v3309, %v3306
        %v3324 = vmul.f32 %v3309, %v3307
        %v3325 = vmul.f32 %v3309, %v3308
        %v3326 = vadd.f32 %v3258, %v3310
        %v3327 = vadd.f32 %v3259, %v3311
        %v3328 = vadd.f32 %v3260, %v3312
        %v3329 = vadd.f32 %v3261, %v3313
        %v3330 = vadd.f32 %v3262, %v3314
        %v3331 = vadd.f32 %v3263, %v3315
        %v3332 = vadd.f32 %v3264, %v3316
        %v3333 = vadd.f32 %v3265, %v3317
        %v3334 = vadd.f32 %v3266, %v3318
        %v3335 = vadd.f32 %v3267, %v3319
        %v3336 = vadd.f32 %v3268, %v3320
        %v3337 = vadd.f32 %v3269, %v3321
        %v3338 = vadd.f32 %v3270, %v3322
        %v3339 = vadd.f32 %v3271, %v3323
        %v3340 = vadd.f32 %v3272, %v3324
        %v3341 = vadd.f32 %v3273, %v3325
        %s3342 = sadd.s32 %s3003, 5
        %s3343 = sld [smem:[#allocation6 + %s3342]]
        %s3344 = scalar_lea.vmem %s1, 320
        %v3345 = vld [vmem:[%s3344] sm:$0xf]
        %v3346 = vld [vmem:[%s3344 + $0x4] sm:$0xf]
        %v3347 = vld [vmem:[%s3344 + $0x8] sm:$0xf]
        %v3348 = vld [vmem:[%s3344 + $0xc] sm:$0xf]
        %v3349 = vld [vmem:[%s3344 + $0x10] sm:$0xf]
        %v3350 = vld [vmem:[%s3344 + $0x14] sm:$0xf]
        %v3351 = vld [vmem:[%s3344 + $0x18] sm:$0xf]
        %v3352 = vld [vmem:[%s3344 + $0x1c] sm:$0xf]
        %v3353 = vld [vmem:[%s3344 + $0x20] sm:$0xf]
        %v3354 = vld [vmem:[%s3344 + $0x24] sm:$0xf]
        %v3355 = vld [vmem:[%s3344 + $0x28] sm:$0xf]
        %v3356 = vld [vmem:[%s3344 + $0x2c] sm:$0xf]
        %v3357 = vld [vmem:[%s3344 + $0x30] sm:$0xf]
        %v3358 = vld [vmem:[%s3344 + $0x34] sm:$0xf]
        %v3359 = vld [vmem:[%s3344 + $0x38] sm:$0xf]
        %v3360 = vld [vmem:[%s3344 + $0x3c] sm:$0xf]
        %v3361 = vunpack.c.l.bf16 %v3345
        %v3362 = vunpack.c.l.bf16 %v3346
        %v3363 = vunpack.c.l.bf16 %v3347
        %v3364 = vunpack.c.l.bf16 %v3348
        %v3365 = vunpack.c.l.bf16 %v3349
        %v3366 = vunpack.c.l.bf16 %v3350
        %v3367 = vunpack.c.l.bf16 %v3351
        %v3368 = vunpack.c.l.bf16 %v3352
        %v3369 = vunpack.c.l.bf16 %v3353
        %v3370 = vunpack.c.l.bf16 %v3354
        %v3371 = vunpack.c.l.bf16 %v3355
        %v3372 = vunpack.c.l.bf16 %v3356
        %v3373 = vunpack.c.l.bf16 %v3357
        %v3374 = vunpack.c.l.bf16 %v3358
        %v3375 = vunpack.c.l.bf16 %v3359
        %v3376 = vunpack.c.l.bf16 %v3360
        %v3377 = vstv %s3343
        %v3378 = vmul.f32 %v3377, %v3361
        %v3379 = vmul.f32 %v3377, %v3362
        %v3380 = vmul.f32 %v3377, %v3363
        %v3381 = vmul.f32 %v3377, %v3364
        %v3382 = vmul.f32 %v3377, %v3365
        %v3383 = vmul.f32 %v3377, %v3366
        %v3384 = vmul.f32 %v3377, %v3367
        %v3385 = vmul.f32 %v3377, %v3368
        %v3386 = vmul.f32 %v3377, %v3369
        %v3387 = vmul.f32 %v3377, %v3370
        %v3388 = vmul.f32 %v3377, %v3371
        %v3389 = vmul.f32 %v3377, %v3372
        %v3390 = vmul.f32 %v3377, %v3373
        %v3391 = vmul.f32 %v3377, %v3374
        %v3392 = vmul.f32 %v3377, %v3375
        %v3393 = vmul.f32 %v3377, %v3376
        %v3394 = vadd.f32 %v3326, %v3378
        %v3395 = vadd.f32 %v3327, %v3379
        %v3396 = vadd.f32 %v3328, %v3380
        %v3397 = vadd.f32 %v3329, %v3381
        %v3398 = vadd.f32 %v3330, %v3382
        %v3399 = vadd.f32 %v3331, %v3383
        %v3400 = vadd.f32 %v3332, %v3384
        %v3401 = vadd.f32 %v3333, %v3385
        %v3402 = vadd.f32 %v3334, %v3386
        %v3403 = vadd.f32 %v3335, %v3387
        %v3404 = vadd.f32 %v3336, %v3388
        %v3405 = vadd.f32 %v3337, %v3389
        %v3406 = vadd.f32 %v3338, %v3390
        %v3407 = vadd.f32 %v3339, %v3391
        %v3408 = vadd.f32 %v3340, %v3392
        %v3409 = vadd.f32 %v3341, %v3393
        %s3410 = sadd.s32 %s3003, 6
        %s3411 = sld [smem:[#allocation6 + %s3410]]
        %s3412 = scalar_lea.vmem %s1, 384
        %v3413 = vld [vmem:[%s3412] sm:$0xf]
        %v3414 = vld [vmem:[%s3412 + $0x4] sm:$0xf]
        %v3415 = vld [vmem:[%s3412 + $0x8] sm:$0xf]
        %v3416 = vld [vmem:[%s3412 + $0xc] sm:$0xf]
        %v3417 = vld [vmem:[%s3412 + $0x10] sm:$0xf]
        %v3418 = vld [vmem:[%s3412 + $0x14] sm:$0xf]
        %v3419 = vld [vmem:[%s3412 + $0x18] sm:$0xf]
        %v3420 = vld [vmem:[%s3412 + $0x1c] sm:$0xf]
        %v3421 = vld [vmem:[%s3412 + $0x20] sm:$0xf]
        %v3422 = vld [vmem:[%s3412 + $0x24] sm:$0xf]
        %v3423 = vld [vmem:[%s3412 + $0x28] sm:$0xf]
        %v3424 = vld [vmem:[%s3412 + $0x2c] sm:$0xf]
        %v3425 = vld [vmem:[%s3412 + $0x30] sm:$0xf]
        %v3426 = vld [vmem:[%s3412 + $0x34] sm:$0xf]
        %v3427 = vld [vmem:[%s3412 + $0x38] sm:$0xf]
        %v3428 = vld [vmem:[%s3412 + $0x3c] sm:$0xf]
        %v3429 = vunpack.c.l.bf16 %v3413
        %v3430 = vunpack.c.l.bf16 %v3414
        %v3431 = vunpack.c.l.bf16 %v3415
        %v3432 = vunpack.c.l.bf16 %v3416
        %v3433 = vunpack.c.l.bf16 %v3417
        %v3434 = vunpack.c.l.bf16 %v3418
        %v3435 = vunpack.c.l.bf16 %v3419
        %v3436 = vunpack.c.l.bf16 %v3420
        %v3437 = vunpack.c.l.bf16 %v3421
        %v3438 = vunpack.c.l.bf16 %v3422
        %v3439 = vunpack.c.l.bf16 %v3423
        %v3440 = vunpack.c.l.bf16 %v3424
        %v3441 = vunpack.c.l.bf16 %v3425
        %v3442 = vunpack.c.l.bf16 %v3426
        %v3443 = vunpack.c.l.bf16 %v3427
        %v3444 = vunpack.c.l.bf16 %v3428
        %v3445 = vstv %s3411
        %v3446 = vmul.f32 %v3445, %v3429
        %v3447 = vmul.f32 %v3445, %v3430
        %v3448 = vmul.f32 %v3445, %v3431
        %v3449 = vmul.f32 %v3445, %v3432
        %v3450 = vmul.f32 %v3445, %v3433
        %v3451 = vmul.f32 %v3445, %v3434
        %v3452 = vmul.f32 %v3445, %v3435
        %v3453 = vmul.f32 %v3445, %v3436
        %v3454 = vmul.f32 %v3445, %v3437
        %v3455 = vmul.f32 %v3445, %v3438
        %v3456 = vmul.f32 %v3445, %v3439
        %v3457 = vmul.f32 %v3445, %v3440
        %v3458 = vmul.f32 %v3445, %v3441
        %v3459 = vmul.f32 %v3445, %v3442
        %v3460 = vmul.f32 %v3445, %v3443
        %v3461 = vmul.f32 %v3445, %v3444
        %v3462 = vadd.f32 %v3394, %v3446
        %v3463 = vadd.f32 %v3395, %v3447
        %v3464 = vadd.f32 %v3396, %v3448
        %v3465 = vadd.f32 %v3397, %v3449
        %v3466 = vadd.f32 %v3398, %v3450
        %v3467 = vadd.f32 %v3399, %v3451
        %v3468 = vadd.f32 %v3400, %v3452
        %v3469 = vadd.f32 %v3401, %v3453
        %v3470 = vadd.f32 %v3402, %v3454
        %v3471 = vadd.f32 %v3403, %v3455
        %v3472 = vadd.f32 %v3404, %v3456
        %v3473 = vadd.f32 %v3405, %v3457
        %v3474 = vadd.f32 %v3406, %v3458
        %v3475 = vadd.f32 %v3407, %v3459
        %v3476 = vadd.f32 %v3408, %v3460
        %v3477 = vadd.f32 %v3409, %v3461
        %s3478 = sadd.s32 %s3003, 7
        %s3479 = sld [smem:[#allocation6 + %s3478]]
        %s3480 = scalar_lea.vmem %s1, 448
        %v3481 = vld [vmem:[%s3480] sm:$0xf]
        %v3482 = vld [vmem:[%s3480 + $0x4] sm:$0xf]
        %v3483 = vld [vmem:[%s3480 + $0x8] sm:$0xf]
        %v3484 = vld [vmem:[%s3480 + $0xc] sm:$0xf]
        %v3485 = vld [vmem:[%s3480 + $0x10] sm:$0xf]
        %v3486 = vld [vmem:[%s3480 + $0x14] sm:$0xf]
        %v3487 = vld [vmem:[%s3480 + $0x18] sm:$0xf]
        %v3488 = vld [vmem:[%s3480 + $0x1c] sm:$0xf]
        %v3489 = vld [vmem:[%s3480 + $0x20] sm:$0xf]
        %v3490 = vld [vmem:[%s3480 + $0x24] sm:$0xf]
        %v3491 = vld [vmem:[%s3480 + $0x28] sm:$0xf]
        %v3492 = vld [vmem:[%s3480 + $0x2c] sm:$0xf]
        %v3493 = vld [vmem:[%s3480 + $0x30] sm:$0xf]
        %v3494 = vld [vmem:[%s3480 + $0x34] sm:$0xf]
        %v3495 = vld [vmem:[%s3480 + $0x38] sm:$0xf]
        %v3496 = vld [vmem:[%s3480 + $0x3c] sm:$0xf]
        %v3497 = vunpack.c.l.bf16 %v3481
        %v3498 = vunpack.c.l.bf16 %v3482
        %v3499 = vunpack.c.l.bf16 %v3483
        %v3500 = vunpack.c.l.bf16 %v3484
        %v3501 = vunpack.c.l.bf16 %v3485
        %v3502 = vunpack.c.l.bf16 %v3486
        %v3503 = vunpack.c.l.bf16 %v3487
        %v3504 = vunpack.c.l.bf16 %v3488
        %v3505 = vunpack.c.l.bf16 %v3489
        %v3506 = vunpack.c.l.bf16 %v3490
        %v3507 = vunpack.c.l.bf16 %v3491
        %v3508 = vunpack.c.l.bf16 %v3492
        %v3509 = vunpack.c.l.bf16 %v3493
        %v3510 = vunpack.c.l.bf16 %v3494
        %v3511 = vunpack.c.l.bf16 %v3495
        %v3512 = vunpack.c.l.bf16 %v3496
        %v3513 = vstv %s3479
        %v3514 = vmul.f32 %v3513, %v3497
        %v3515 = vmul.f32 %v3513, %v3498
        %v3516 = vmul.f32 %v3513, %v3499
        %v3517 = vmul.f32 %v3513, %v3500
        %v3518 = vmul.f32 %v3513, %v3501
        %v3519 = vmul.f32 %v3513, %v3502
        %v3520 = vmul.f32 %v3513, %v3503
        %v3521 = vmul.f32 %v3513, %v3504
        %v3522 = vmul.f32 %v3513, %v3505
        %v3523 = vmul.f32 %v3513, %v3506
        %v3524 = vmul.f32 %v3513, %v3507
        %v3525 = vmul.f32 %v3513, %v3508
        %v3526 = vmul.f32 %v3513, %v3509
        %v3527 = vmul.f32 %v3513, %v3510
        %v3528 = vmul.f32 %v3513, %v3511
        %v3529 = vmul.f32 %v3513, %v3512
        %v3530 = vadd.f32 %v3462, %v3514
        %v3531 = vadd.f32 %v3463, %v3515
        %v3532 = vadd.f32 %v3464, %v3516
        %v3533 = vadd.f32 %v3465, %v3517
        %v3534 = vadd.f32 %v3466, %v3518
        %v3535 = vadd.f32 %v3467, %v3519
        %v3536 = vadd.f32 %v3468, %v3520
        %v3537 = vadd.f32 %v3469, %v3521
        %v3538 = vadd.f32 %v3470, %v3522
        %v3539 = vadd.f32 %v3471, %v3523
        %v3540 = vadd.f32 %v3472, %v3524
        %v3541 = vadd.f32 %v3473, %v3525
        %v3542 = vadd.f32 %v3474, %v3526
        %v3543 = vadd.f32 %v3475, %v3527
        %v3544 = vadd.f32 %v3476, %v3528
        %v3545 = vadd.f32 %v3477, %v3529
        %s3546 = sadd.s32 %s3003, 8
        %s3547 = sld [smem:[#allocation6 + %s3546]]
        %s3548 = scalar_lea.vmem %s1, 512
        %v3549 = vld [vmem:[%s3548] sm:$0xf]
        %v3550 = vld [vmem:[%s3548 + $0x4] sm:$0xf]
        %v3551 = vld [vmem:[%s3548 + $0x8] sm:$0xf]
        %v3552 = vld [vmem:[%s3548 + $0xc] sm:$0xf]
        %v3553 = vld [vmem:[%s3548 + $0x10] sm:$0xf]
        %v3554 = vld [vmem:[%s3548 + $0x14] sm:$0xf]
        %v3555 = vld [vmem:[%s3548 + $0x18] sm:$0xf]
        %v3556 = vld [vmem:[%s3548 + $0x1c] sm:$0xf]
        %v3557 = vld [vmem:[%s3548 + $0x20] sm:$0xf]
        %v3558 = vld [vmem:[%s3548 + $0x24] sm:$0xf]
        %v3559 = vld [vmem:[%s3548 + $0x28] sm:$0xf]
        %v3560 = vld [vmem:[%s3548 + $0x2c] sm:$0xf]
        %v3561 = vld [vmem:[%s3548 + $0x30] sm:$0xf]
        %v3562 = vld [vmem:[%s3548 + $0x34] sm:$0xf]
        %v3563 = vld [vmem:[%s3548 + $0x38] sm:$0xf]
        %v3564 = vld [vmem:[%s3548 + $0x3c] sm:$0xf]
        %v3565 = vunpack.c.l.bf16 %v3549
        %v3566 = vunpack.c.l.bf16 %v3550
        %v3567 = vunpack.c.l.bf16 %v3551
        %v3568 = vunpack.c.l.bf16 %v3552
        %v3569 = vunpack.c.l.bf16 %v3553
        %v3570 = vunpack.c.l.bf16 %v3554
        %v3571 = vunpack.c.l.bf16 %v3555
        %v3572 = vunpack.c.l.bf16 %v3556
        %v3573 = vunpack.c.l.bf16 %v3557
        %v3574 = vunpack.c.l.bf16 %v3558
        %v3575 = vunpack.c.l.bf16 %v3559
        %v3576 = vunpack.c.l.bf16 %v3560
        %v3577 = vunpack.c.l.bf16 %v3561
        %v3578 = vunpack.c.l.bf16 %v3562
        %v3579 = vunpack.c.l.bf16 %v3563
        %v3580 = vunpack.c.l.bf16 %v3564
        %v3581 = vstv %s3547
        %v3582 = vmul.f32 %v3581, %v3565
        %v3583 = vmul.f32 %v3581, %v3566
        %v3584 = vmul.f32 %v3581, %v3567
        %v3585 = vmul.f32 %v3581, %v3568
        %v3586 = vmul.f32 %v3581, %v3569
        %v3587 = vmul.f32 %v3581, %v3570
        %v3588 = vmul.f32 %v3581, %v3571
        %v3589 = vmul.f32 %v3581, %v3572
        %v3590 = vmul.f32 %v3581, %v3573
        %v3591 = vmul.f32 %v3581, %v3574
        %v3592 = vmul.f32 %v3581, %v3575
        %v3593 = vmul.f32 %v3581, %v3576
        %v3594 = vmul.f32 %v3581, %v3577
        %v3595 = vmul.f32 %v3581, %v3578
        %v3596 = vmul.f32 %v3581, %v3579
        %v3597 = vmul.f32 %v3581, %v3580
        %v3598 = vadd.f32 %v3530, %v3582
        %v3599 = vadd.f32 %v3531, %v3583
        %v3600 = vadd.f32 %v3532, %v3584
        %v3601 = vadd.f32 %v3533, %v3585
        %v3602 = vadd.f32 %v3534, %v3586
        %v3603 = vadd.f32 %v3535, %v3587
        %v3604 = vadd.f32 %v3536, %v3588
        %v3605 = vadd.f32 %v3537, %v3589
        %v3606 = vadd.f32 %v3538, %v3590
        %v3607 = vadd.f32 %v3539, %v3591
        %v3608 = vadd.f32 %v3540, %v3592
        %v3609 = vadd.f32 %v3541, %v3593
        %v3610 = vadd.f32 %v3542, %v3594
        %v3611 = vadd.f32 %v3543, %v3595
        %v3612 = vadd.f32 %v3544, %v3596
        %v3613 = vadd.f32 %v3545, %v3597
        %s3614 = sadd.s32 %s3003, 9
        %s3615 = sld [smem:[#allocation6 + %s3614]]
        %s3616 = scalar_lea.vmem %s1, 576
        %v3617 = vld [vmem:[%s3616] sm:$0xf]
        %v3618 = vld [vmem:[%s3616 + $0x4] sm:$0xf]
        %v3619 = vld [vmem:[%s3616 + $0x8] sm:$0xf]
        %v3620 = vld [vmem:[%s3616 + $0xc] sm:$0xf]
        %v3621 = vld [vmem:[%s3616 + $0x10] sm:$0xf]
        %v3622 = vld [vmem:[%s3616 + $0x14] sm:$0xf]
        %v3623 = vld [vmem:[%s3616 + $0x18] sm:$0xf]
        %v3624 = vld [vmem:[%s3616 + $0x1c] sm:$0xf]
        %v3625 = vld [vmem:[%s3616 + $0x20] sm:$0xf]
        %v3626 = vld [vmem:[%s3616 + $0x24] sm:$0xf]
        %v3627 = vld [vmem:[%s3616 + $0x28] sm:$0xf]
        %v3628 = vld [vmem:[%s3616 + $0x2c] sm:$0xf]
        %v3629 = vld [vmem:[%s3616 + $0x30] sm:$0xf]
        %v3630 = vld [vmem:[%s3616 + $0x34] sm:$0xf]
        %v3631 = vld [vmem:[%s3616 + $0x38] sm:$0xf]
        %v3632 = vld [vmem:[%s3616 + $0x3c] sm:$0xf]
        %v3633 = vunpack.c.l.bf16 %v3617
        %v3634 = vunpack.c.l.bf16 %v3618
        %v3635 = vunpack.c.l.bf16 %v3619
        %v3636 = vunpack.c.l.bf16 %v3620
        %v3637 = vunpack.c.l.bf16 %v3621
        %v3638 = vunpack.c.l.bf16 %v3622
        %v3639 = vunpack.c.l.bf16 %v3623
        %v3640 = vunpack.c.l.bf16 %v3624
        %v3641 = vunpack.c.l.bf16 %v3625
        %v3642 = vunpack.c.l.bf16 %v3626
        %v3643 = vunpack.c.l.bf16 %v3627
        %v3644 = vunpack.c.l.bf16 %v3628
        %v3645 = vunpack.c.l.bf16 %v3629
        %v3646 = vunpack.c.l.bf16 %v3630
        %v3647 = vunpack.c.l.bf16 %v3631
        %v3648 = vunpack.c.l.bf16 %v3632
        %v3649 = vstv %s3615
        %v3650 = vmul.f32 %v3649, %v3633
        %v3651 = vmul.f32 %v3649, %v3634
        %v3652 = vmul.f32 %v3649, %v3635
        %v3653 = vmul.f32 %v3649, %v3636
        %v3654 = vmul.f32 %v3649, %v3637
        %v3655 = vmul.f32 %v3649, %v3638
        %v3656 = vmul.f32 %v3649, %v3639
        %v3657 = vmul.f32 %v3649, %v3640
        %v3658 = vmul.f32 %v3649, %v3641
        %v3659 = vmul.f32 %v3649, %v3642
        %v3660 = vmul.f32 %v3649, %v3643
        %v3661 = vmul.f32 %v3649, %v3644
        %v3662 = vmul.f32 %v3649, %v3645
        %v3663 = vmul.f32 %v3649, %v3646
        %v3664 = vmul.f32 %v3649, %v3647
        %v3665 = vmul.f32 %v3649, %v3648
        %v3666 = vadd.f32 %v3598, %v3650
        %v3667 = vadd.f32 %v3599, %v3651
        %v3668 = vadd.f32 %v3600, %v3652
        %v3669 = vadd.f32 %v3601, %v3653
        %v3670 = vadd.f32 %v3602, %v3654
        %v3671 = vadd.f32 %v3603, %v3655
        %v3672 = vadd.f32 %v3604, %v3656
        %v3673 = vadd.f32 %v3605, %v3657
        %v3674 = vadd.f32 %v3606, %v3658
        %v3675 = vadd.f32 %v3607, %v3659
        %v3676 = vadd.f32 %v3608, %v3660
        %v3677 = vadd.f32 %v3609, %v3661
        %v3678 = vadd.f32 %v3610, %v3662
        %v3679 = vadd.f32 %v3611, %v3663
        %v3680 = vadd.f32 %v3612, %v3664
        %v3681 = vadd.f32 %v3613, %v3665
        %s3682 = sadd.s32 %s3003, 10
        %s3683 = sld [smem:[#allocation6 + %s3682]]
        %s3684 = scalar_lea.vmem %s1, 640
        %v3685 = vld [vmem:[%s3684] sm:$0xf]
        %v3686 = vld [vmem:[%s3684 + $0x4] sm:$0xf]
        %v3687 = vld [vmem:[%s3684 + $0x8] sm:$0xf]
        %v3688 = vld [vmem:[%s3684 + $0xc] sm:$0xf]
        %v3689 = vld [vmem:[%s3684 + $0x10] sm:$0xf]
        %v3690 = vld [vmem:[%s3684 + $0x14] sm:$0xf]
        %v3691 = vld [vmem:[%s3684 + $0x18] sm:$0xf]
        %v3692 = vld [vmem:[%s3684 + $0x1c] sm:$0xf]
        %v3693 = vld [vmem:[%s3684 + $0x20] sm:$0xf]
        %v3694 = vld [vmem:[%s3684 + $0x24] sm:$0xf]
        %v3695 = vld [vmem:[%s3684 + $0x28] sm:$0xf]
        %v3696 = vld [vmem:[%s3684 + $0x2c] sm:$0xf]
        %v3697 = vld [vmem:[%s3684 + $0x30] sm:$0xf]
        %v3698 = vld [vmem:[%s3684 + $0x34] sm:$0xf]
        %v3699 = vld [vmem:[%s3684 + $0x38] sm:$0xf]
        %v3700 = vld [vmem:[%s3684 + $0x3c] sm:$0xf]
        %v3701 = vunpack.c.l.bf16 %v3685
        %v3702 = vunpack.c.l.bf16 %v3686
        %v3703 = vunpack.c.l.bf16 %v3687
        %v3704 = vunpack.c.l.bf16 %v3688
        %v3705 = vunpack.c.l.bf16 %v3689
        %v3706 = vunpack.c.l.bf16 %v3690
        %v3707 = vunpack.c.l.bf16 %v3691
        %v3708 = vunpack.c.l.bf16 %v3692
        %v3709 = vunpack.c.l.bf16 %v3693
        %v3710 = vunpack.c.l.bf16 %v3694
        %v3711 = vunpack.c.l.bf16 %v3695
        %v3712 = vunpack.c.l.bf16 %v3696
        %v3713 = vunpack.c.l.bf16 %v3697
        %v3714 = vunpack.c.l.bf16 %v3698
        %v3715 = vunpack.c.l.bf16 %v3699
        %v3716 = vunpack.c.l.bf16 %v3700
        %v3717 = vstv %s3683
        %v3718 = vmul.f32 %v3717, %v3701
        %v3719 = vmul.f32 %v3717, %v3702
        %v3720 = vmul.f32 %v3717, %v3703
        %v3721 = vmul.f32 %v3717, %v3704
        %v3722 = vmul.f32 %v3717, %v3705
        %v3723 = vmul.f32 %v3717, %v3706
        %v3724 = vmul.f32 %v3717, %v3707
        %v3725 = vmul.f32 %v3717, %v3708
        %v3726 = vmul.f32 %v3717, %v3709
        %v3727 = vmul.f32 %v3717, %v3710
        %v3728 = vmul.f32 %v3717, %v3711
        %v3729 = vmul.f32 %v3717, %v3712
        %v3730 = vmul.f32 %v3717, %v3713
        %v3731 = vmul.f32 %v3717, %v3714
        %v3732 = vmul.f32 %v3717, %v3715
        %v3733 = vmul.f32 %v3717, %v3716
        %v3734 = vadd.f32 %v3666, %v3718
        %v3735 = vadd.f32 %v3667, %v3719
        %v3736 = vadd.f32 %v3668, %v3720
        %v3737 = vadd.f32 %v3669, %v3721
        %v3738 = vadd.f32 %v3670, %v3722
        %v3739 = vadd.f32 %v3671, %v3723
        %v3740 = vadd.f32 %v3672, %v3724
        %v3741 = vadd.f32 %v3673, %v3725
        %v3742 = vadd.f32 %v3674, %v3726
        %v3743 = vadd.f32 %v3675, %v3727
        %v3744 = vadd.f32 %v3676, %v3728
        %v3745 = vadd.f32 %v3677, %v3729
        %v3746 = vadd.f32 %v3678, %v3730
        %v3747 = vadd.f32 %v3679, %v3731
        %v3748 = vadd.f32 %v3680, %v3732
        %v3749 = vadd.f32 %v3681, %v3733
        %s3750 = sadd.s32 %s3003, 11
        %s3751 = sld [smem:[#allocation6 + %s3750]]
        %s3752 = scalar_lea.vmem %s1, 704
        %v3753 = vld [vmem:[%s3752] sm:$0xf]
        %v3754 = vld [vmem:[%s3752 + $0x4] sm:$0xf]
        %v3755 = vld [vmem:[%s3752 + $0x8] sm:$0xf]
        %v3756 = vld [vmem:[%s3752 + $0xc] sm:$0xf]
        %v3757 = vld [vmem:[%s3752 + $0x10] sm:$0xf]
        %v3758 = vld [vmem:[%s3752 + $0x14] sm:$0xf]
        %v3759 = vld [vmem:[%s3752 + $0x18] sm:$0xf]
        %v3760 = vld [vmem:[%s3752 + $0x1c] sm:$0xf]
        %v3761 = vld [vmem:[%s3752 + $0x20] sm:$0xf]
        %v3762 = vld [vmem:[%s3752 + $0x24] sm:$0xf]
        %v3763 = vld [vmem:[%s3752 + $0x28] sm:$0xf]
        %v3764 = vld [vmem:[%s3752 + $0x2c] sm:$0xf]
        %v3765 = vld [vmem:[%s3752 + $0x30] sm:$0xf]
        %v3766 = vld [vmem:[%s3752 + $0x34] sm:$0xf]
        %v3767 = vld [vmem:[%s3752 + $0x38] sm:$0xf]
        %v3768 = vld [vmem:[%s3752 + $0x3c] sm:$0xf]
        %v3769 = vunpack.c.l.bf16 %v3753
        %v3770 = vunpack.c.l.bf16 %v3754
        %v3771 = vunpack.c.l.bf16 %v3755
        %v3772 = vunpack.c.l.bf16 %v3756
        %v3773 = vunpack.c.l.bf16 %v3757
        %v3774 = vunpack.c.l.bf16 %v3758
        %v3775 = vunpack.c.l.bf16 %v3759
        %v3776 = vunpack.c.l.bf16 %v3760
        %v3777 = vunpack.c.l.bf16 %v3761
        %v3778 = vunpack.c.l.bf16 %v3762
        %v3779 = vunpack.c.l.bf16 %v3763
        %v3780 = vunpack.c.l.bf16 %v3764
        %v3781 = vunpack.c.l.bf16 %v3765
        %v3782 = vunpack.c.l.bf16 %v3766
        %v3783 = vunpack.c.l.bf16 %v3767
        %v3784 = vunpack.c.l.bf16 %v3768
        %v3785 = vstv %s3751
        %v3786 = vmul.f32 %v3785, %v3769
        %v3787 = vmul.f32 %v3785, %v3770
        %v3788 = vmul.f32 %v3785, %v3771
        %v3789 = vmul.f32 %v3785, %v3772
        %v3790 = vmul.f32 %v3785, %v3773
        %v3791 = vmul.f32 %v3785, %v3774
        %v3792 = vmul.f32 %v3785, %v3775
        %v3793 = vmul.f32 %v3785, %v3776
        %v3794 = vmul.f32 %v3785, %v3777
        %v3795 = vmul.f32 %v3785, %v3778
        %v3796 = vmul.f32 %v3785, %v3779
        %v3797 = vmul.f32 %v3785, %v3780
        %v3798 = vmul.f32 %v3785, %v3781
        %v3799 = vmul.f32 %v3785, %v3782
        %v3800 = vmul.f32 %v3785, %v3783
        %v3801 = vmul.f32 %v3785, %v3784
        %v3802 = vadd.f32 %v3734, %v3786
        %v3803 = vadd.f32 %v3735, %v3787
        %v3804 = vadd.f32 %v3736, %v3788
        %v3805 = vadd.f32 %v3737, %v3789
        %v3806 = vadd.f32 %v3738, %v3790
        %v3807 = vadd.f32 %v3739, %v3791
        %v3808 = vadd.f32 %v3740, %v3792
        %v3809 = vadd.f32 %v3741, %v3793
        %v3810 = vadd.f32 %v3742, %v3794
        %v3811 = vadd.f32 %v3743, %v3795
        %v3812 = vadd.f32 %v3744, %v3796
        %v3813 = vadd.f32 %v3745, %v3797
        %v3814 = vadd.f32 %v3746, %v3798
        %v3815 = vadd.f32 %v3747, %v3799
        %v3816 = vadd.f32 %v3748, %v3800
        %v3817 = vadd.f32 %v3749, %v3801
        %s3818 = sadd.s32 %s3003, 12
        %s3819 = sld [smem:[#allocation6 + %s3818]]
        %s3820 = scalar_lea.vmem %s1, 768
        %v3821 = vld [vmem:[%s3820] sm:$0xf]
        %v3822 = vld [vmem:[%s3820 + $0x4] sm:$0xf]
        %v3823 = vld [vmem:[%s3820 + $0x8] sm:$0xf]
        %v3824 = vld [vmem:[%s3820 + $0xc] sm:$0xf]
        %v3825 = vld [vmem:[%s3820 + $0x10] sm:$0xf]
        %v3826 = vld [vmem:[%s3820 + $0x14] sm:$0xf]
        %v3827 = vld [vmem:[%s3820 + $0x18] sm:$0xf]
        %v3828 = vld [vmem:[%s3820 + $0x1c] sm:$0xf]
        %v3829 = vld [vmem:[%s3820 + $0x20] sm:$0xf]
        %v3830 = vld [vmem:[%s3820 + $0x24] sm:$0xf]
        %v3831 = vld [vmem:[%s3820 + $0x28] sm:$0xf]
        %v3832 = vld [vmem:[%s3820 + $0x2c] sm:$0xf]
        %v3833 = vld [vmem:[%s3820 + $0x30] sm:$0xf]
        %v3834 = vld [vmem:[%s3820 + $0x34] sm:$0xf]
        %v3835 = vld [vmem:[%s3820 + $0x38] sm:$0xf]
        %v3836 = vld [vmem:[%s3820 + $0x3c] sm:$0xf]
        %v3837 = vunpack.c.l.bf16 %v3821
        %v3838 = vunpack.c.l.bf16 %v3822
        %v3839 = vunpack.c.l.bf16 %v3823
        %v3840 = vunpack.c.l.bf16 %v3824
        %v3841 = vunpack.c.l.bf16 %v3825
        %v3842 = vunpack.c.l.bf16 %v3826
        %v3843 = vunpack.c.l.bf16 %v3827
        %v3844 = vunpack.c.l.bf16 %v3828
        %v3845 = vunpack.c.l.bf16 %v3829
        %v3846 = vunpack.c.l.bf16 %v3830
        %v3847 = vunpack.c.l.bf16 %v3831
        %v3848 = vunpack.c.l.bf16 %v3832
        %v3849 = vunpack.c.l.bf16 %v3833
        %v3850 = vunpack.c.l.bf16 %v3834
        %v3851 = vunpack.c.l.bf16 %v3835
        %v3852 = vunpack.c.l.bf16 %v3836
        %v3853 = vstv %s3819
        %v3854 = vmul.f32 %v3853, %v3837
        %v3855 = vmul.f32 %v3853, %v3838
        %v3856 = vmul.f32 %v3853, %v3839
        %v3857 = vmul.f32 %v3853, %v3840
        %v3858 = vmul.f32 %v3853, %v3841
        %v3859 = vmul.f32 %v3853, %v3842
        %v3860 = vmul.f32 %v3853, %v3843
        %v3861 = vmul.f32 %v3853, %v3844
        %v3862 = vmul.f32 %v3853, %v3845
        %v3863 = vmul.f32 %v3853, %v3846
        %v3864 = vmul.f32 %v3853, %v3847
        %v3865 = vmul.f32 %v3853, %v3848
        %v3866 = vmul.f32 %v3853, %v3849
        %v3867 = vmul.f32 %v3853, %v3850
        %v3868 = vmul.f32 %v3853, %v3851
        %v3869 = vmul.f32 %v3853, %v3852
        %v3870 = vadd.f32 %v3802, %v3854
        %v3871 = vadd.f32 %v3803, %v3855
        %v3872 = vadd.f32 %v3804, %v3856
        %v3873 = vadd.f32 %v3805, %v3857
        %v3874 = vadd.f32 %v3806, %v3858
        %v3875 = vadd.f32 %v3807, %v3859
        %v3876 = vadd.f32 %v3808, %v3860
        %v3877 = vadd.f32 %v3809, %v3861
        %v3878 = vadd.f32 %v3810, %v3862
        %v3879 = vadd.f32 %v3811, %v3863
        %v3880 = vadd.f32 %v3812, %v3864
        %v3881 = vadd.f32 %v3813, %v3865
        %v3882 = vadd.f32 %v3814, %v3866
        %v3883 = vadd.f32 %v3815, %v3867
        %v3884 = vadd.f32 %v3816, %v3868
        %v3885 = vadd.f32 %v3817, %v3869
        %s3886 = sadd.s32 %s3003, 13
        %s3887 = sld [smem:[#allocation6 + %s3886]]
        %s3888 = scalar_lea.vmem %s1, 832
        %v3889 = vld [vmem:[%s3888] sm:$0xf]
        %v3890 = vld [vmem:[%s3888 + $0x4] sm:$0xf]
        %v3891 = vld [vmem:[%s3888 + $0x8] sm:$0xf]
        %v3892 = vld [vmem:[%s3888 + $0xc] sm:$0xf]
        %v3893 = vld [vmem:[%s3888 + $0x10] sm:$0xf]
        %v3894 = vld [vmem:[%s3888 + $0x14] sm:$0xf]
        %v3895 = vld [vmem:[%s3888 + $0x18] sm:$0xf]
        %v3896 = vld [vmem:[%s3888 + $0x1c] sm:$0xf]
        %v3897 = vld [vmem:[%s3888 + $0x20] sm:$0xf]
        %v3898 = vld [vmem:[%s3888 + $0x24] sm:$0xf]
        %v3899 = vld [vmem:[%s3888 + $0x28] sm:$0xf]
        %v3900 = vld [vmem:[%s3888 + $0x2c] sm:$0xf]
        %v3901 = vld [vmem:[%s3888 + $0x30] sm:$0xf]
        %v3902 = vld [vmem:[%s3888 + $0x34] sm:$0xf]
        %v3903 = vld [vmem:[%s3888 + $0x38] sm:$0xf]
        %v3904 = vld [vmem:[%s3888 + $0x3c] sm:$0xf]
        %v3905 = vunpack.c.l.bf16 %v3889
        %v3906 = vunpack.c.l.bf16 %v3890
        %v3907 = vunpack.c.l.bf16 %v3891
        %v3908 = vunpack.c.l.bf16 %v3892
        %v3909 = vunpack.c.l.bf16 %v3893
        %v3910 = vunpack.c.l.bf16 %v3894
        %v3911 = vunpack.c.l.bf16 %v3895
        %v3912 = vunpack.c.l.bf16 %v3896
        %v3913 = vunpack.c.l.bf16 %v3897
        %v3914 = vunpack.c.l.bf16 %v3898
        %v3915 = vunpack.c.l.bf16 %v3899
        %v3916 = vunpack.c.l.bf16 %v3900
        %v3917 = vunpack.c.l.bf16 %v3901
        %v3918 = vunpack.c.l.bf16 %v3902
        %v3919 = vunpack.c.l.bf16 %v3903
        %v3920 = vunpack.c.l.bf16 %v3904
        %v3921 = vstv %s3887
        %v3922 = vmul.f32 %v3921, %v3905
        %v3923 = vmul.f32 %v3921, %v3906
        %v3924 = vmul.f32 %v3921, %v3907
        %v3925 = vmul.f32 %v3921, %v3908
        %v3926 = vmul.f32 %v3921, %v3909
        %v3927 = vmul.f32 %v3921, %v3910
        %v3928 = vmul.f32 %v3921, %v3911
        %v3929 = vmul.f32 %v3921, %v3912
        %v3930 = vmul.f32 %v3921, %v3913
        %v3931 = vmul.f32 %v3921, %v3914
        %v3932 = vmul.f32 %v3921, %v3915
        %v3933 = vmul.f32 %v3921, %v3916
        %v3934 = vmul.f32 %v3921, %v3917
        %v3935 = vmul.f32 %v3921, %v3918
        %v3936 = vmul.f32 %v3921, %v3919
        %v3937 = vmul.f32 %v3921, %v3920
        %v3938 = vadd.f32 %v3870, %v3922
        %v3939 = vadd.f32 %v3871, %v3923
        %v3940 = vadd.f32 %v3872, %v3924
        %v3941 = vadd.f32 %v3873, %v3925
        %v3942 = vadd.f32 %v3874, %v3926
        %v3943 = vadd.f32 %v3875, %v3927
        %v3944 = vadd.f32 %v3876, %v3928
        %v3945 = vadd.f32 %v3877, %v3929
        %v3946 = vadd.f32 %v3878, %v3930
        %v3947 = vadd.f32 %v3879, %v3931
        %v3948 = vadd.f32 %v3880, %v3932
        %v3949 = vadd.f32 %v3881, %v3933
        %v3950 = vadd.f32 %v3882, %v3934
        %v3951 = vadd.f32 %v3883, %v3935
        %v3952 = vadd.f32 %v3884, %v3936
        %v3953 = vadd.f32 %v3885, %v3937
        %s3954 = sadd.s32 %s3003, 14
        %s3955 = sld [smem:[#allocation6 + %s3954]]
        %s3956 = scalar_lea.vmem %s1, 896
        %v3957 = vld [vmem:[%s3956] sm:$0xf]
        %v3958 = vld [vmem:[%s3956 + $0x4] sm:$0xf]
        %v3959 = vld [vmem:[%s3956 + $0x8] sm:$0xf]
        %v3960 = vld [vmem:[%s3956 + $0xc] sm:$0xf]
        %v3961 = vld [vmem:[%s3956 + $0x10] sm:$0xf]
        %v3962 = vld [vmem:[%s3956 + $0x14] sm:$0xf]
        %v3963 = vld [vmem:[%s3956 + $0x18] sm:$0xf]
        %v3964 = vld [vmem:[%s3956 + $0x1c] sm:$0xf]
        %v3965 = vld [vmem:[%s3956 + $0x20] sm:$0xf]
        %v3966 = vld [vmem:[%s3956 + $0x24] sm:$0xf]
        %v3967 = vld [vmem:[%s3956 + $0x28] sm:$0xf]
        %v3968 = vld [vmem:[%s3956 + $0x2c] sm:$0xf]
        %v3969 = vld [vmem:[%s3956 + $0x30] sm:$0xf]
        %v3970 = vld [vmem:[%s3956 + $0x34] sm:$0xf]
        %v3971 = vld [vmem:[%s3956 + $0x38] sm:$0xf]
        %v3972 = vld [vmem:[%s3956 + $0x3c] sm:$0xf]
        %v3973 = vunpack.c.l.bf16 %v3957
        %v3974 = vunpack.c.l.bf16 %v3958
        %v3975 = vunpack.c.l.bf16 %v3959
        %v3976 = vunpack.c.l.bf16 %v3960
        %v3977 = vunpack.c.l.bf16 %v3961
        %v3978 = vunpack.c.l.bf16 %v3962
        %v3979 = vunpack.c.l.bf16 %v3963
        %v3980 = vunpack.c.l.bf16 %v3964
        %v3981 = vunpack.c.l.bf16 %v3965
        %v3982 = vunpack.c.l.bf16 %v3966
        %v3983 = vunpack.c.l.bf16 %v3967
        %v3984 = vunpack.c.l.bf16 %v3968
        %v3985 = vunpack.c.l.bf16 %v3969
        %v3986 = vunpack.c.l.bf16 %v3970
        %v3987 = vunpack.c.l.bf16 %v3971
        %v3988 = vunpack.c.l.bf16 %v3972
        %v3989 = vstv %s3955
        %v3990 = vmul.f32 %v3989, %v3973
        %v3991 = vmul.f32 %v3989, %v3974
        %v3992 = vmul.f32 %v3989, %v3975
        %v3993 = vmul.f32 %v3989, %v3976
        %v3994 = vmul.f32 %v3989, %v3977
        %v3995 = vmul.f32 %v3989, %v3978
        %v3996 = vmul.f32 %v3989, %v3979
        %v3997 = vmul.f32 %v3989, %v3980
        %v3998 = vmul.f32 %v3989, %v3981
        %v3999 = vmul.f32 %v3989, %v3982
        %v4000 = vmul.f32 %v3989, %v3983
        %v4001 = vmul.f32 %v3989, %v3984
        %v4002 = vmul.f32 %v3989, %v3985
        %v4003 = vmul.f32 %v3989, %v3986
        %v4004 = vmul.f32 %v3989, %v3987
        %v4005 = vmul.f32 %v3989, %v3988
        %v4006 = vadd.f32 %v3938, %v3990
        %v4007 = vadd.f32 %v3939, %v3991
        %v4008 = vadd.f32 %v3940, %v3992
        %v4009 = vadd.f32 %v3941, %v3993
        %v4010 = vadd.f32 %v3942, %v3994
        %v4011 = vadd.f32 %v3943, %v3995
        %v4012 = vadd.f32 %v3944, %v3996
        %v4013 = vadd.f32 %v3945, %v3997
        %v4014 = vadd.f32 %v3946, %v3998
        %v4015 = vadd.f32 %v3947, %v3999
        %v4016 = vadd.f32 %v3948, %v4000
        %v4017 = vadd.f32 %v3949, %v4001
        %v4018 = vadd.f32 %v3950, %v4002
        %v4019 = vadd.f32 %v3951, %v4003
        %v4020 = vadd.f32 %v3952, %v4004
        %v4021 = vadd.f32 %v3953, %v4005
        %s4022 = sadd.s32 %s3003, 15
        %s4023 = sld [smem:[#allocation6 + %s4022]]
        %s4024 = scalar_lea.vmem %s1, 960
        %v4025 = vld [vmem:[%s4024] sm:$0xf]
        %v4026 = vld [vmem:[%s4024 + $0x4] sm:$0xf]
        %v4027 = vld [vmem:[%s4024 + $0x8] sm:$0xf]
        %v4028 = vld [vmem:[%s4024 + $0xc] sm:$0xf]
        %v4029 = vld [vmem:[%s4024 + $0x10] sm:$0xf]
        %v4030 = vld [vmem:[%s4024 + $0x14] sm:$0xf]
        %v4031 = vld [vmem:[%s4024 + $0x18] sm:$0xf]
        %v4032 = vld [vmem:[%s4024 + $0x1c] sm:$0xf]
        %v4033 = vld [vmem:[%s4024 + $0x20] sm:$0xf]
        %v4034 = vld [vmem:[%s4024 + $0x24] sm:$0xf]
        %v4035 = vld [vmem:[%s4024 + $0x28] sm:$0xf]
        %v4036 = vld [vmem:[%s4024 + $0x2c] sm:$0xf]
        %v4037 = vld [vmem:[%s4024 + $0x30] sm:$0xf]
        %v4038 = vld [vmem:[%s4024 + $0x34] sm:$0xf]
        %v4039 = vld [vmem:[%s4024 + $0x38] sm:$0xf]
        %v4040 = vld [vmem:[%s4024 + $0x3c] sm:$0xf]
        %v4041 = vunpack.c.l.bf16 %v4025
        %v4042 = vunpack.c.l.bf16 %v4026
        %v4043 = vunpack.c.l.bf16 %v4027
        %v4044 = vunpack.c.l.bf16 %v4028
        %v4045 = vunpack.c.l.bf16 %v4029
        %v4046 = vunpack.c.l.bf16 %v4030
        %v4047 = vunpack.c.l.bf16 %v4031
        %v4048 = vunpack.c.l.bf16 %v4032
        %v4049 = vunpack.c.l.bf16 %v4033
        %v4050 = vunpack.c.l.bf16 %v4034
        %v4051 = vunpack.c.l.bf16 %v4035
        %v4052 = vunpack.c.l.bf16 %v4036
        %v4053 = vunpack.c.l.bf16 %v4037
        %v4054 = vunpack.c.l.bf16 %v4038
        %v4055 = vunpack.c.l.bf16 %v4039
        %v4056 = vunpack.c.l.bf16 %v4040
        %v4057 = vstv %s4023
        %v4058 = vmul.f32 %v4057, %v4041
        %v4059 = vmul.f32 %v4057, %v4042
        %v4060 = vmul.f32 %v4057, %v4043
        %v4061 = vmul.f32 %v4057, %v4044
        %v4062 = vmul.f32 %v4057, %v4045
        %v4063 = vmul.f32 %v4057, %v4046
        %v4064 = vmul.f32 %v4057, %v4047
        %v4065 = vmul.f32 %v4057, %v4048
        %v4066 = vmul.f32 %v4057, %v4049
        %v4067 = vmul.f32 %v4057, %v4050
        %v4068 = vmul.f32 %v4057, %v4051
        %v4069 = vmul.f32 %v4057, %v4052
        %v4070 = vmul.f32 %v4057, %v4053
        %v4071 = vmul.f32 %v4057, %v4054
        %v4072 = vmul.f32 %v4057, %v4055
        %v4073 = vmul.f32 %v4057, %v4056
        %v4074 = vadd.f32 %v4006, %v4058
        %v4075 = vadd.f32 %v4007, %v4059
        %v4076 = vadd.f32 %v4008, %v4060
        %v4077 = vadd.f32 %v4009, %v4061
        %v4078 = vadd.f32 %v4010, %v4062
        %v4079 = vadd.f32 %v4011, %v4063
        %v4080 = vadd.f32 %v4012, %v4064
        %v4081 = vadd.f32 %v4013, %v4065
        %v4082 = vadd.f32 %v4014, %v4066
        %v4083 = vadd.f32 %v4015, %v4067
        %v4084 = vadd.f32 %v4016, %v4068
        %v4085 = vadd.f32 %v4017, %v4069
        %v4086 = vadd.f32 %v4018, %v4070
        %v4087 = vadd.f32 %v4019, %v4071
        %v4088 = vadd.f32 %v4020, %v4072
        %v4089 = vadd.f32 %v4021, %v4073
        %v4090 = vmax.f32 %v4074, 0.0
        %v4091 = vmax.f32 %v4075, 0.0
        %v4092 = vmax.f32 %v4076, 0.0
        %v4093 = vmax.f32 %v4077, 0.0
        %v4094 = vmax.f32 %v4078, 0.0
        %v4095 = vmax.f32 %v4079, 0.0
        %v4096 = vmax.f32 %v4080, 0.0
        %v4097 = vmax.f32 %v4081, 0.0
        %v4098 = vmax.f32 %v4082, 0.0
        %v4099 = vmax.f32 %v4083, 0.0
        %v4100 = vmax.f32 %v4084, 0.0
        %v4101 = vmax.f32 %v4085, 0.0
        %v4102 = vmax.f32 %v4086, 0.0
        %v4103 = vmax.f32 %v4087, 0.0
        %v4104 = vmax.f32 %v4088, 0.0
        %v4105 = vmax.f32 %v4089, 0.0
        %v4106 = vld [vmem:[#allocation2] sm:$0xff]
        %v4107 = vld [vmem:[#allocation2 + $0x8] sm:$0xff]
        %v4108 = vld [vmem:[#allocation2 + $0x10] sm:$0xff]
        %v4109 = vld [vmem:[#allocation2 + $0x18] sm:$0xff]
        %v4110 = vld [vmem:[#allocation2 + $0x20] sm:$0xff]
        %v4111 = vld [vmem:[#allocation2 + $0x28] sm:$0xff]
        %v4112 = vld [vmem:[#allocation2 + $0x30] sm:$0x3]
        %vm4113 = vcmask 408576
        %v4115 = vsel %vm4113, %v4090, 0
        %v4118 = vsel %vm4113, %v4091, 0
        %v4121 = vsel %vm4113, %v4092, 0
        %v4124 = vsel %vm4113, %v4093, 0
        %v4127 = vsel %vm4113, %v4094, 0
        %v4130 = vsel %vm4113, %v4095, 0
        %v4133 = vsel %vm4113, %v4096, 0
        %v4136 = vsel %vm4113, %v4097, 0
        %v4139 = vsel %vm4113, %v4098, 0
        %v4142 = vsel %vm4113, %v4099, 0
        %v4145 = vsel %vm4113, %v4100, 0
        %v4148 = vsel %vm4113, %v4101, 0
        %v4151 = vsel %vm4113, %v4102, 0
        %v4154 = vsel %vm4113, %v4103, 0
        %v4157 = vsel %vm4113, %v4104, 0
        %v4160 = vsel %vm4113, %v4105, 0
        %vm4162 = vcmask 1041408
        %v4164 = vsel %vm4162, %v4112, 0
        %4166 = vmatprep.subr.mxu0 0.0
        %4167 = vmatpush1.msra.mxu0 0.0
        %4168 = vmatprep.subr.mxu0 0.0
        %4169 = vmatpush1.msra.mxu0 0.0
        %4170 = vmatprep.subr.mxu0 0.0
        %4171 = vmatpush1.msra.mxu0 0.0
        %4172 = vmatprep.subr.mxu0 0.0
        %4173 = vmatpush1.msra.mxu0 0.0
        %4174 = vmatprep.subr.mxu0 0.0
        %4175 = vmatpush1.msra.mxu0 0.0
        %4176 = vmatprep.subr.mxu0 0.0
        %4177 = vmatpush1.msra.mxu0 0.0
        %4178 = vmatprep.subr.mxu0 0.0
        %4179 = vmatpush1.msra.mxu0 0.0
        %4180 = vmatprep.subr.mxu0 0.0
        %4181 = vmatpush1.msra.mxu0 0.0
        %4182 = vmatprep.subr.mxu0 0.0
        %4183 = vmatpush1.msra.mxu0 0.0
        %4184 = vmatprep.subr.mxu0 0.0
        %4185 = vmatpush1.msra.mxu0 %v4164
        %4186 = vmatprep.subr.mxu0 0.0
        %4187 = vmatpush1.msra.mxu0 %v4111
        %4188 = vmatprep.subr.mxu0 0.0
        %4189 = vmatpush1.msra.mxu0 %v4110
        %4190 = vmatprep.subr.mxu0 0.0
        %4191 = vmatpush1.msra.mxu0 %v4109
        %4192 = vmatprep.subr.mxu0 0.0
        %4193 = vmatpush1.msra.mxu0 %v4108
        %4194 = vmatprep.subr.mxu0 0.0
        %4195 = vmatpush1.msra.mxu0 %v4107
        %4196 = vmatprep.subr.mxu0 0.0
        %4197 = vmatpush1.msra.mxu0 %v4106
        %4198 = vmatprep.subr.mxu0 0.0
        %4199 = vmatpush2.msra.mxu0 0.0
        %4200 = vmatprep.subr.mxu0 0.0
        %4201 = vmatpush2.msra.mxu0 0.0
        %4202 = vmatprep.subr.mxu0 0.0
        %4203 = vmatpush2.msra.mxu0 0.0
        %4204 = vmatprep.subr.mxu0 0.0
        %4205 = vmatpush2.msra.mxu0 0.0
        %4206 = vmatprep.subr.mxu0 0.0
        %4207 = vmatpush2.msra.mxu0 0.0
        %4208 = vmatprep.subr.mxu0 0.0
        %4209 = vmatpush2.msra.mxu0 0.0
        %4210 = vmatprep.subr.mxu0 0.0
        %4211 = vmatpush2.msra.mxu0 0.0
        %4212 = vmatprep.subr.mxu0 0.0
        %4213 = vmatpush2.msra.mxu0 0.0
        %4214 = vmatprep.subr.mxu0 0.0
        %4215 = vmatpush2.msra.mxu0 0.0
        %4216 = vmatprep.subr.mxu0 0.0
        %4217 = vmatpush2.msra.mxu0 0.0
        %4218 = vmatprep.subr.mxu0 0.0
        %4219 = vmatpush2.msra.mxu0 0.0
        %4220 = vmatprep.subr.mxu0 0.0
        %4221 = vmatpush2.msra.mxu0 0.0
        %4222 = vmatprep.subr.mxu0 0.0
        %4223 = vmatpush2.msra.mxu0 0.0
        %4224 = vmatprep.subr.mxu0 0.0
        %4225 = vmatpush2.msra.mxu0 0.0
        %4226 = vmatprep.subr.mxu0 0.0
        %4227 = vmatpush2.msra.mxu0 0.0
        %4228 = vmatprep.subr.mxu0 0.0
        %4229 = vmatpush2.msra.mxu0 0.0
        %4230 = vmatprep.mubr.f32.mxu0 0.0
        %4231 = vmatmul.mubr.f32.gmra.mxu0 %v4115
        %v4232 = vpop.f32.mrf.mxu0
        %v4233 = vadd.f32 0.0, %v4232
        %v4234 = vpop.f32.mrf.mxu0
        %4235 = vmatprep.mubr.f32.mxu0 0.0
        %4236 = vmatmul.mubr.f32.gmra.mxu0 %v4118
        %v4237 = vpop.f32.mrf.mxu0
        %v4238 = vadd.f32 0.0, %v4237
        %v4239 = vpop.f32.mrf.mxu0
        %4240 = vmatprep.mubr.f32.mxu0 0.0
        %4241 = vmatmul.mubr.f32.gmra.mxu0 %v4121
        %v4242 = vpop.f32.mrf.mxu0
        %v4243 = vadd.f32 0.0, %v4242
        %v4244 = vpop.f32.mrf.mxu0
        %4245 = vmatprep.mubr.f32.mxu0 0.0
        %4246 = vmatmul.mubr.f32.gmra.mxu0 %v4124
        %v4247 = vpop.f32.mrf.mxu0
        %v4248 = vadd.f32 0.0, %v4247
        %v4249 = vpop.f32.mrf.mxu0
        %4250 = vmatprep.mubr.f32.mxu0 0.0
        %4251 = vmatmul.mubr.f32.gmra.mxu0 %v4127
        %v4252 = vpop.f32.mrf.mxu0
        %v4253 = vadd.f32 0.0, %v4252
        %v4254 = vpop.f32.mrf.mxu0
        %4255 = vmatprep.mubr.f32.mxu0 0.0
        %4256 = vmatmul.mubr.f32.gmra.mxu0 %v4130
        %v4257 = vpop.f32.mrf.mxu0
        %v4258 = vadd.f32 0.0, %v4257
        %v4259 = vpop.f32.mrf.mxu0
        %4260 = vmatprep.mubr.f32.mxu0 0.0
        %4261 = vmatmul.mubr.f32.gmra.mxu0 %v4133
        %v4262 = vpop.f32.mrf.mxu0
        %v4263 = vadd.f32 0.0, %v4262
        %v4264 = vpop.f32.mrf.mxu0
        %4265 = vmatprep.mubr.f32.mxu0 0.0
        %4266 = vmatmul.mubr.f32.gmra.mxu0 %v4136
        %v4267 = vpop.f32.mrf.mxu0
        %v4268 = vadd.f32 0.0, %v4267
        %v4269 = vpop.f32.mrf.mxu0
        %4270 = vmatprep.mubr.f32.mxu0 0.0
        %4271 = vmatmul.mubr.f32.gmra.mxu0 %v4139
        %v4272 = vpop.f32.mrf.mxu0
        %v4273 = vadd.f32 0.0, %v4272
        %v4274 = vpop.f32.mrf.mxu0
        %4275 = vmatprep.mubr.f32.mxu0 0.0
        %4276 = vmatmul.mubr.f32.gmra.mxu0 %v4142
        %v4277 = vpop.f32.mrf.mxu0
        %v4278 = vadd.f32 0.0, %v4277
        %v4279 = vpop.f32.mrf.mxu0
        %4280 = vmatprep.mubr.f32.mxu0 0.0
        %4281 = vmatmul.mubr.f32.gmra.mxu0 %v4145
        %v4282 = vpop.f32.mrf.mxu0
        %v4283 = vadd.f32 0.0, %v4282
        %v4284 = vpop.f32.mrf.mxu0
        %4285 = vmatprep.mubr.f32.mxu0 0.0
        %4286 = vmatmul.mubr.f32.gmra.mxu0 %v4148
        %v4287 = vpop.f32.mrf.mxu0
        %v4288 = vadd.f32 0.0, %v4287
        %v4289 = vpop.f32.mrf.mxu0
        %4290 = vmatprep.mubr.f32.mxu0 0.0
        %4291 = vmatmul.mubr.f32.gmra.mxu0 %v4151
        %v4292 = vpop.f32.mrf.mxu0
        %v4293 = vadd.f32 0.0, %v4292
        %v4294 = vpop.f32.mrf.mxu0
        %4295 = vmatprep.mubr.f32.mxu0 0.0
        %4296 = vmatmul.mubr.f32.gmra.mxu0 %v4154
        %v4297 = vpop.f32.mrf.mxu0
        %v4298 = vadd.f32 0.0, %v4297
        %v4299 = vpop.f32.mrf.mxu0
        %4300 = vmatprep.mubr.f32.mxu0 0.0
        %4301 = vmatmul.mubr.f32.gmra.mxu0 %v4157
        %v4302 = vpop.f32.mrf.mxu0
        %v4303 = vadd.f32 0.0, %v4302
        %v4304 = vpop.f32.mrf.mxu0
        %4305 = vmatprep.mubr.f32.mxu0 0.0
        %4306 = vmatmul.mubr.f32.gmra.mxu0 %v4160
        %v4307 = vpop.f32.mrf.mxu0
        %v4308 = vadd.f32 0.0, %v4307
        %v4309 = vpop.f32.mrf.mxu0
        %4310 = vdwg.mxu0
        %4327 = vrot.lane.b32.xlu0 %v4233, 1
        %v4328 = vpop.permute.xlu0 %4327
        %4329 = vrot.lane.b32.xlu0 %v4238, 1
        %v4330 = vpop.permute.xlu0 %4329
        %4331 = vrot.lane.b32.xlu0 %v4243, 1
        %v4332 = vpop.permute.xlu0 %4331
        %4333 = vrot.lane.b32.xlu0 %v4248, 1
        %v4334 = vpop.permute.xlu0 %4333
        %4335 = vrot.lane.b32.xlu0 %v4253, 1
        %v4336 = vpop.permute.xlu0 %4335
        %4337 = vrot.lane.b32.xlu0 %v4258, 1
        %v4338 = vpop.permute.xlu0 %4337
        %4339 = vrot.lane.b32.xlu0 %v4263, 1
        %v4340 = vpop.permute.xlu0 %4339
        %4341 = vrot.lane.b32.xlu0 %v4268, 1
        %v4342 = vpop.permute.xlu0 %4341
        %4343 = vrot.lane.b32.xlu0 %v4273, 1
        %v4344 = vpop.permute.xlu0 %4343
        %4345 = vrot.lane.b32.xlu0 %v4278, 1
        %v4346 = vpop.permute.xlu0 %4345
        %4347 = vrot.lane.b32.xlu0 %v4283, 1
        %v4348 = vpop.permute.xlu0 %4347
        %4349 = vrot.lane.b32.xlu0 %v4288, 1
        %v4350 = vpop.permute.xlu0 %4349
        %4351 = vrot.lane.b32.xlu0 %v4293, 1
        %v4352 = vpop.permute.xlu0 %4351
        %4353 = vrot.lane.b32.xlu0 %v4298, 1
        %v4354 = vpop.permute.xlu0 %4353
        %4355 = vrot.lane.b32.xlu0 %v4303, 1
        %v4356 = vpop.permute.xlu0 %4355
        %4357 = vrot.lane.b32.xlu0 %v4308, 1
        %v4358 = vpop.permute.xlu0 %4357
        %vm4375 = vcmask 7168
        %v4376 = vsel %vm4375, 0.0, %v4328
        %v4377 = vsel %vm4375, 0.0, %v4330
        %v4378 = vsel %vm4375, 0.0, %v4332
        %v4379 = vsel %vm4375, 0.0, %v4334
        %v4380 = vsel %vm4375, 0.0, %v4336
        %v4381 = vsel %vm4375, 0.0, %v4338
        %v4382 = vsel %vm4375, 0.0, %v4340
        %v4383 = vsel %vm4375, 0.0, %v4342
        %v4384 = vsel %vm4375, 0.0, %v4344
        %v4385 = vsel %vm4375, 0.0, %v4346
        %v4386 = vsel %vm4375, 0.0, %v4348
        %v4387 = vsel %vm4375, 0.0, %v4350
        %v4388 = vsel %vm4375, 0.0, %v4352
        %v4389 = vsel %vm4375, 0.0, %v4354
        %v4390 = vsel %vm4375, 0.0, %v4356
        %v4391 = vsel %vm4375, 0.0, %v4358
        %vm4392 = vcmask 826368
        %v4393 = vsel %vm4392, %v4376, 0.0
        %v4394 = vsel %vm4392, %v4377, 0.0
        %v4395 = vsel %vm4392, %v4378, 0.0
        %v4396 = vsel %vm4392, %v4379, 0.0
        %v4397 = vsel %vm4392, %v4380, 0.0
        %v4398 = vsel %vm4392, %v4381, 0.0
        %v4399 = vsel %vm4392, %v4382, 0.0
        %v4400 = vsel %vm4392, %v4383, 0.0
        %v4401 = vsel %vm4392, %v4384, 0.0
        %v4402 = vsel %vm4392, %v4385, 0.0
        %v4403 = vsel %vm4392, %v4386, 0.0
        %v4404 = vsel %vm4392, %v4387, 0.0
        %v4405 = vsel %vm4392, %v4388, 0.0
        %v4406 = vsel %vm4392, %v4389, 0.0
        %v4407 = vsel %vm4392, %v4390, 0.0
        %v4408 = vsel %vm4392, %v4391, 0.0
        %4425 = vrot.lane.b32.xlu0 %v4393, 127
        %v4426 = vpop.permute.xlu0 %4425
        %4427 = vrot.lane.b32.xlu0 %v4394, 127
        %v4428 = vpop.permute.xlu0 %4427
        %4429 = vrot.lane.b32.xlu0 %v4395, 127
        %v4430 = vpop.permute.xlu0 %4429
        %4431 = vrot.lane.b32.xlu0 %v4396, 127
        %v4432 = vpop.permute.xlu0 %4431
        %4433 = vrot.lane.b32.xlu0 %v4397, 127
        %v4434 = vpop.permute.xlu0 %4433
        %4435 = vrot.lane.b32.xlu0 %v4398, 127
        %v4436 = vpop.permute.xlu0 %4435
        %4437 = vrot.lane.b32.xlu0 %v4399, 127
        %v4438 = vpop.permute.xlu0 %4437
        %4439 = vrot.lane.b32.xlu0 %v4400, 127
        %v4440 = vpop.permute.xlu0 %4439
        %4441 = vrot.lane.b32.xlu0 %v4401, 127
        %v4442 = vpop.permute.xlu0 %4441
        %4443 = vrot.lane.b32.xlu0 %v4402, 127
        %v4444 = vpop.permute.xlu0 %4443
        %4445 = vrot.lane.b32.xlu0 %v4403, 127
        %v4446 = vpop.permute.xlu0 %4445
        %4447 = vrot.lane.b32.xlu0 %v4404, 127
        %v4448 = vpop.permute.xlu0 %4447
        %4449 = vrot.lane.b32.xlu0 %v4405, 127
        %v4450 = vpop.permute.xlu0 %4449
        %4451 = vrot.lane.b32.xlu0 %v4406, 127
        %v4452 = vpop.permute.xlu0 %4451
        %4453 = vrot.lane.b32.xlu0 %v4407, 127
        %v4454 = vpop.permute.xlu0 %4453
        %4455 = vrot.lane.b32.xlu0 %v4408, 127
        %v4456 = vpop.permute.xlu0 %4455
        %4473 = vrot.lane.b32.xlu0 %v4393, 126
        %v4474 = vpop.permute.xlu0 %4473
        %4475 = vrot.lane.b32.xlu0 %v4394, 126
        %v4476 = vpop.permute.xlu0 %4475
        %4477 = vrot.lane.b32.xlu0 %v4395, 126
        %v4478 = vpop.permute.xlu0 %4477
        %4479 = vrot.lane.b32.xlu0 %v4396, 126
        %v4480 = vpop.permute.xlu0 %4479
        %4481 = vrot.lane.b32.xlu0 %v4397, 126
        %v4482 = vpop.permute.xlu0 %4481
        %4483 = vrot.lane.b32.xlu0 %v4398, 126
        %v4484 = vpop.permute.xlu0 %4483
        %4485 = vrot.lane.b32.xlu0 %v4399, 126
        %v4486 = vpop.permute.xlu0 %4485
        %4487 = vrot.lane.b32.xlu0 %v4400, 126
        %v4488 = vpop.permute.xlu0 %4487
        %4489 = vrot.lane.b32.xlu0 %v4401, 126
        %v4490 = vpop.permute.xlu0 %4489
        %4491 = vrot.lane.b32.xlu0 %v4402, 126
        %v4492 = vpop.permute.xlu0 %4491
        %4493 = vrot.lane.b32.xlu0 %v4403, 126
        %v4494 = vpop.permute.xlu0 %4493
        %4495 = vrot.lane.b32.xlu0 %v4404, 126
        %v4496 = vpop.permute.xlu0 %4495
        %4497 = vrot.lane.b32.xlu0 %v4405, 126
        %v4498 = vpop.permute.xlu0 %4497
        %4499 = vrot.lane.b32.xlu0 %v4406, 126
        %v4500 = vpop.permute.xlu0 %4499
        %4501 = vrot.lane.b32.xlu0 %v4407, 126
        %v4502 = vpop.permute.xlu0 %4501
        %4503 = vrot.lane.b32.xlu0 %v4408, 126
        %v4504 = vpop.permute.xlu0 %4503
        %v4521 = vld [vmem:[%s3] sm:$0xff]
        %v4522 = vld [vmem:[%s3 + $0x8] sm:$0xff]
        %v4523 = vld [vmem:[%s3 + $0x10] sm:$0xff]
        %v4524 = vld [vmem:[%s3 + $0x18] sm:$0xff]
        %v4525 = vld [vmem:[%s3 + $0x20] sm:$0xff]
        %v4526 = vld [vmem:[%s3 + $0x28] sm:$0xff]
        %v4527 = vld [vmem:[%s3 + $0x30] sm:$0xff]
        %v4528 = vld [vmem:[%s3 + $0x38] sm:$0xff]
        %v4529 = vld [vmem:[%s3 + $0x40] sm:$0xff]
        %v4530 = vld [vmem:[%s3 + $0x48] sm:$0xff]
        %v4531 = vld [vmem:[%s3 + $0x50] sm:$0xff]
        %v4532 = vld [vmem:[%s3 + $0x58] sm:$0xff]
        %v4533 = vld [vmem:[%s3 + $0x60] sm:$0xff]
        %v4534 = vld [vmem:[%s3 + $0x68] sm:$0xff]
        %v4535 = vld [vmem:[%s3 + $0x70] sm:$0xff]
        %v4536 = vld [vmem:[%s3 + $0x78] sm:$0xff]
        %v4537 = vpack.c.bf16 %v4394, %v4393
        %v4538 = vpack.c.bf16 %v4396, %v4395
        %v4539 = vpack.c.bf16 %v4398, %v4397
        %v4540 = vpack.c.bf16 %v4400, %v4399
        %v4541 = vpack.c.bf16 %v4402, %v4401
        %v4542 = vpack.c.bf16 %v4404, %v4403
        %v4543 = vpack.c.bf16 %v4406, %v4405
        %v4544 = vpack.c.bf16 %v4408, %v4407
        %v4545 = vpack.c.bf16 %v4428, %v4426
        %v4546 = vpack.c.bf16 %v4432, %v4430
        %v4547 = vpack.c.bf16 %v4436, %v4434
        %v4548 = vpack.c.bf16 %v4440, %v4438
        %v4549 = vpack.c.bf16 %v4444, %v4442
        %v4550 = vpack.c.bf16 %v4448, %v4446
        %v4551 = vpack.c.bf16 %v4452, %v4450
        %v4552 = vpack.c.bf16 %v4456, %v4454
        %v4553 = vpack.c.bf16 %v4476, %v4474
        %v4554 = vpack.c.bf16 %v4480, %v4478
        %v4555 = vpack.c.bf16 %v4484, %v4482
        %v4556 = vpack.c.bf16 %v4488, %v4486
        %v4557 = vpack.c.bf16 %v4492, %v4490
        %v4558 = vpack.c.bf16 %v4496, %v4494
        %v4559 = vpack.c.bf16 %v4500, %v4498
        %v4560 = vpack.c.bf16 %v4504, %v4502
        %v4561 = vpack.c.bf16 1.0, 1.0
        %v4578 = vunpack.c.l.b16 %v4521
        %v4579 = vunpack.c.h.b16 %v4521
        %v4580 = vunpack.c.l.b16 %v4522
        %v4581 = vunpack.c.h.b16 %v4522
        %v4582 = vunpack.c.l.b16 %v4523
        %v4583 = vunpack.c.h.b16 %v4523
        %v4584 = vunpack.c.l.b16 %v4524
        %v4585 = vunpack.c.h.b16 %v4524
        %v4586 = vunpack.c.l.b16 %v4525
        %v4587 = vunpack.c.h.b16 %v4525
        %v4588 = vunpack.c.l.b16 %v4526
        %v4589 = vunpack.c.h.b16 %v4526
        %v4590 = vunpack.c.l.b16 %v4527
        %v4591 = vunpack.c.h.b16 %v4527
        %v4592 = vunpack.c.l.b16 %v4528
        %v4593 = vunpack.c.h.b16 %v4528
        %v4594 = vunpack.c.l.b16 %v4529
        %v4595 = vunpack.c.h.b16 %v4529
        %v4596 = vunpack.c.l.b16 %v4530
        %v4597 = vunpack.c.h.b16 %v4530
        %v4598 = vunpack.c.l.b16 %v4531
        %v4599 = vunpack.c.h.b16 %v4531
        %v4600 = vunpack.c.l.b16 %v4532
        %v4601 = vunpack.c.h.b16 %v4532
        %v4602 = vunpack.c.l.b16 %v4533
        %v4603 = vunpack.c.h.b16 %v4533
        %v4604 = vunpack.c.l.b16 %v4534
        %v4605 = vunpack.c.h.b16 %v4534
        %v4606 = vunpack.c.l.b16 %v4535
        %v4607 = vunpack.c.h.b16 %v4535
        %v4608 = vunpack.c.l.b16 %v4536
        %v4609 = vunpack.c.h.b16 %v4536
        %v4610 = vpack.c.b16 %v4582, %v4578
        %v4611 = vpack.c.b16 %v4583, %v4579
        %v4612 = vpack.c.b16 %v4584, %v4580
        %v4613 = vpack.c.b16 %v4585, %v4581
        %v4614 = vpack.c.b16 %v4590, %v4586
        %v4615 = vpack.c.b16 %v4591, %v4587
        %v4616 = vpack.c.b16 %v4592, %v4588
        %v4617 = vpack.c.b16 %v4593, %v4589
        %v4618 = vpack.c.b16 %v4598, %v4594
        %v4619 = vpack.c.b16 %v4599, %v4595
        %v4620 = vpack.c.b16 %v4600, %v4596
        %v4621 = vpack.c.b16 %v4601, %v4597
        %v4622 = vpack.c.b16 %v4606, %v4602
        %v4623 = vpack.c.b16 %v4607, %v4603
        %v4624 = vpack.c.b16 %v4608, %v4604
        %v4625 = vpack.c.b16 %v4609, %v4605
        %v4639 = vsel %vm4375, %v4613, 0
        %v4642 = vsel %vm4375, %v4617, 0
        %v4645 = vsel %vm4375, %v4621, 0
        %v4648 = vsel %vm4375, %v4625, 0
        %vm4650 = vcmask 1040384
        %v4651 = vsel 0, 4294967295, 65535
        %v4652 = vsel %vm4650, %v4651, 0
        %v4654 = vand.u32 %v4561, %v4652
        %4656 = vmatprep.subr.bf16.mxu0 0
        %4657 = vmatpush1.bf16.msra.mxu0 %v4544
        %4658 = vmatprep.subr.bf16.mxu0 0
        %4659 = vmatpush1.bf16.msra.mxu0 %v4543
        %4660 = vmatprep.subr.bf16.mxu0 0
        %4661 = vmatpush1.bf16.msra.mxu0 %v4542
        %4662 = vmatprep.subr.bf16.mxu0 0
        %4663 = vmatpush1.bf16.msra.mxu0 %v4541
        %4664 = vmatprep.subr.bf16.mxu0 0
        %4665 = vmatpush1.bf16.msra.mxu0 %v4540
        %4666 = vmatprep.subr.bf16.mxu0 0
        %4667 = vmatpush1.bf16.msra.mxu0 %v4539
        %4668 = vmatprep.subr.bf16.mxu0 0
        %4669 = vmatpush1.bf16.msra.mxu0 %v4538
        %4670 = vmatprep.subr.bf16.mxu0 0
        %4671 = vmatpush1.bf16.msra.mxu0 %v4537
        %4672 = vmatprep.subr.bf16.mxu0 0
        %4673 = vmatpush2.bf16.msra.mxu0 %v4552
        %4674 = vmatprep.subr.bf16.mxu0 0
        %4675 = vmatpush2.bf16.msra.mxu0 %v4551
        %4676 = vmatprep.subr.bf16.mxu0 0
        %4677 = vmatpush2.bf16.msra.mxu0 %v4550
        %4678 = vmatprep.subr.bf16.mxu0 0
        %4679 = vmatpush2.bf16.msra.mxu0 %v4549
        %4680 = vmatprep.subr.bf16.mxu0 0
        %4681 = vmatpush2.bf16.msra.mxu0 %v4548
        %4682 = vmatprep.subr.bf16.mxu0 0
        %4683 = vmatpush2.bf16.msra.mxu0 %v4547
        %4684 = vmatprep.subr.bf16.mxu0 0
        %4685 = vmatpush2.bf16.msra.mxu0 %v4546
        %4686 = vmatprep.subr.bf16.mxu0 0
        %4687 = vmatpush2.bf16.msra.mxu0 %v4545
        %4688 = vmatprep.mubr.bf16.mxu0 %v4611
        %4689 = vmatmul.mubr.bf16.gmra.mxu0 %v4610
        %v4690 = vpop.f32.mrf.mxu0
        %v4691 = vadd.f32 0.0, %v4690
        %v4692 = vpop.f32.mrf.mxu0
        %v4693 = vpop.f32.mrf.mxu0
        %v4694 = vadd.f32 0.0, %v4693
        %v4695 = vpop.f32.mrf.mxu0
        %4696 = vmatprep.mubr.bf16.mxu0 %v4615
        %4697 = vmatmul.mubr.bf16.gmra.mxu0 %v4614
        %v4698 = vpop.f32.mrf.mxu0
        %v4699 = vadd.f32 0.0, %v4698
        %v4700 = vpop.f32.mrf.mxu0
        %v4701 = vpop.f32.mrf.mxu0
        %v4702 = vadd.f32 0.0, %v4701
        %v4703 = vpop.f32.mrf.mxu0
        %4704 = vmatprep.mubr.bf16.mxu0 %v4619
        %4705 = vmatmul.mubr.bf16.gmra.mxu0 %v4618
        %v4706 = vpop.f32.mrf.mxu0
        %v4707 = vadd.f32 0.0, %v4706
        %v4708 = vpop.f32.mrf.mxu0
        %v4709 = vpop.f32.mrf.mxu0
        %v4710 = vadd.f32 0.0, %v4709
        %v4711 = vpop.f32.mrf.mxu0
        %4712 = vmatprep.mubr.bf16.mxu0 %v4623
        %4713 = vmatmul.mubr.bf16.gmra.mxu0 %v4622
        %v4714 = vpop.f32.mrf.mxu0
        %v4715 = vadd.f32 0.0, %v4714
        %v4716 = vpop.f32.mrf.mxu0
        %v4717 = vpop.f32.mrf.mxu0
        %v4718 = vadd.f32 0.0, %v4717
        %v4719 = vpop.f32.mrf.mxu0
        %4720 = vdwg.mxu0
        %4721 = vmatprep.subr.bf16.mxu0 0
        %4722 = vmatpush1.bf16.msra.mxu0 %v4560
        %4723 = vmatprep.subr.bf16.mxu0 0
        %4724 = vmatpush1.bf16.msra.mxu0 %v4559
        %4725 = vmatprep.subr.bf16.mxu0 0
        %4726 = vmatpush1.bf16.msra.mxu0 %v4558
        %4727 = vmatprep.subr.bf16.mxu0 0
        %4728 = vmatpush1.bf16.msra.mxu0 %v4557
        %4729 = vmatprep.subr.bf16.mxu0 0
        %4730 = vmatpush1.bf16.msra.mxu0 %v4556
        %4731 = vmatprep.subr.bf16.mxu0 0
        %4732 = vmatpush1.bf16.msra.mxu0 %v4555
        %4733 = vmatprep.subr.bf16.mxu0 0
        %4734 = vmatpush1.bf16.msra.mxu0 %v4554
        %4735 = vmatprep.subr.bf16.mxu0 0
        %4736 = vmatpush1.bf16.msra.mxu0 %v4553
        %4737 = vmatprep.subr.bf16.mxu0 0
        %4738 = vmatpush2.bf16.msra.mxu0 0
        %4739 = vmatprep.subr.bf16.mxu0 0
        %4740 = vmatpush2.bf16.msra.mxu0 0
        %4741 = vmatprep.subr.bf16.mxu0 0
        %4742 = vmatpush2.bf16.msra.mxu0 0
        %4743 = vmatprep.subr.bf16.mxu0 0
        %4744 = vmatpush2.bf16.msra.mxu0 0
        %4745 = vmatprep.subr.bf16.mxu0 0
        %4746 = vmatpush2.bf16.msra.mxu0 0
        %4747 = vmatprep.subr.bf16.mxu0 0
        %4748 = vmatpush2.bf16.msra.mxu0 0
        %4749 = vmatprep.subr.bf16.mxu0 0
        %4750 = vmatpush2.bf16.msra.mxu0 0
        %4751 = vmatprep.subr.bf16.mxu0 0
        %4752 = vmatpush2.bf16.msra.mxu0 %v4654
        %4753 = vmatprep.mubr.bf16.mxu0 %v4639
        %4754 = vmatmul.mubr.bf16.gmra.mxu0 %v4612
        %v4755 = vpop.f32.mrf.mxu0
        %v4756 = vadd.f32 %v4691, %v4755
        %v4757 = vpop.f32.mrf.mxu0
        %v4758 = vpop.f32.mrf.mxu0
        %v4759 = vadd.f32 %v4694, %v4758
        %v4760 = vpop.f32.mrf.mxu0
        %4761 = vmatprep.mubr.bf16.mxu0 %v4642
        %4762 = vmatmul.mubr.bf16.gmra.mxu0 %v4616
        %v4763 = vpop.f32.mrf.mxu0
        %v4764 = vadd.f32 %v4699, %v4763
        %v4765 = vpop.f32.mrf.mxu0
        %v4766 = vpop.f32.mrf.mxu0
        %v4767 = vadd.f32 %v4702, %v4766
        %v4768 = vpop.f32.mrf.mxu0
        %4769 = vmatprep.mubr.bf16.mxu0 %v4645
        %4770 = vmatmul.mubr.bf16.gmra.mxu0 %v4620
        %v4771 = vpop.f32.mrf.mxu0
        %v4772 = vadd.f32 %v4707, %v4771
        %v4773 = vpop.f32.mrf.mxu0
        %v4774 = vpop.f32.mrf.mxu0
        %v4775 = vadd.f32 %v4710, %v4774
        %v4776 = vpop.f32.mrf.mxu0
        %4777 = vmatprep.mubr.bf16.mxu0 %v4648
        %4778 = vmatmul.mubr.bf16.gmra.mxu0 %v4624
        %v4779 = vpop.f32.mrf.mxu0
        %v4780 = vadd.f32 %v4715, %v4779
        %v4781 = vpop.f32.mrf.mxu0
        %v4782 = vpop.f32.mrf.mxu0
        %v4783 = vadd.f32 %v4718, %v4782
        %v4784 = vpop.f32.mrf.mxu0
        %4785 = vdwg.mxu0
        %v4786 = vmax.f32 %v4756, 0.0
        %v4787 = vmax.f32 %v4759, 0.0
        %v4788 = vmax.f32 %v4764, 0.0
        %v4789 = vmax.f32 %v4767, 0.0
        %v4790 = vmax.f32 %v4772, 0.0
        %v4791 = vmax.f32 %v4775, 0.0
        %v4792 = vmax.f32 %v4780, 0.0
        %v4793 = vmax.f32 %v4783, 0.0
        %v4794 = vld [vmem:[#allocation3] sm:$0xff]
        %v4795 = vld [vmem:[#allocation3 + $0x8] sm:$0xff]
        %v4796 = vld [vmem:[#allocation3 + $0x10] sm:$0xff]
        %v4797 = vld [vmem:[#allocation3 + $0x18] sm:$0xff]
        %v4798 = vld [vmem:[#allocation3 + $0x20] sm:$0xff]
        %v4799 = vld [vmem:[#allocation3 + $0x28] sm:$0xff]
        %v4800 = vld [vmem:[#allocation3 + $0x30] sm:$0xff]
        %v4801 = vld [vmem:[#allocation3 + $0x38] sm:$0xff]
        %v4802 = vld [vmem:[#allocation3 + $0x40] sm:$0xff]
        %v4803 = vld [vmem:[#allocation3 + $0x48] sm:$0xff]
        %v4804 = vld [vmem:[#allocation3 + $0x50] sm:$0xff]
        %v4805 = vld [vmem:[#allocation3 + $0x58] sm:$0xff]
        %v4806 = vld [vmem:[#allocation3 + $0x60] sm:$0xff]
        %v4807 = vld [vmem:[#allocation3 + $0x68] sm:$0xff]
        %v4808 = vld [vmem:[#allocation3 + $0x70] sm:$0xff]
        %v4809 = vld [vmem:[#allocation3 + $0x78] sm:$0xff]
        %v4810 = vld [vmem:[#allocation3 + $0x80] sm:$0xff]
        %v4811 = vld [vmem:[#allocation3 + $0x88] sm:$0xff]
        %v4812 = vld [vmem:[#allocation3 + $0x90] sm:$0xff]
        %v4813 = vld [vmem:[#allocation3 + $0x98] sm:$0xff]
        %v4814 = vld [vmem:[#allocation3 + $0xa0] sm:$0xff]
        %v4815 = vld [vmem:[#allocation3 + $0xa8] sm:$0xff]
        %v4816 = vld [vmem:[#allocation3 + $0xb0] sm:$0xff]
        %v4817 = vld [vmem:[#allocation3 + $0xb8] sm:$0xff]
        %v4818 = vld [vmem:[#allocation3 + $0xc0] sm:$0xf]
        %v4819 = vld [vmem:[#allocation3 + $0xc8] sm:$0xf]
        %vm4820 = vcmask 818176
        %v4822 = vsel %vm4820, %v4786, 0
        %v4825 = vsel %vm4820, %v4787, 0
        %v4828 = vsel %vm4820, %v4788, 0
        %v4831 = vsel %vm4820, %v4789, 0
        %v4834 = vsel %vm4820, %v4790, 0
        %v4837 = vsel %vm4820, %v4791, 0
        %v4840 = vsel %vm4820, %v4792, 0
        %v4843 = vsel %vm4820, %v4793, 0
        %vm4845 = vcmask 1043456
        %v4847 = vsel %vm4845, %v4818, 0
        %v4850 = vsel %vm4845, %v4819, 0
        %4852 = vmatprep.subr.mxu0 0.0
        %4853 = vmatpush1.msra.mxu0 0.0
        %4854 = vmatprep.subr.mxu0 0.0
        %4855 = vmatpush1.msra.mxu0 0.0
        %4856 = vmatprep.subr.mxu0 0.0
        %4857 = vmatpush1.msra.mxu0 0.0
        %4858 = vmatprep.subr.mxu0 %v4850
        %4859 = vmatpush1.msra.mxu0 %v4847
        %4860 = vmatprep.subr.mxu0 %v4817
        %4861 = vmatpush1.msra.mxu0 %v4816
        %4862 = vmatprep.subr.mxu0 %v4815
        %4863 = vmatpush1.msra.mxu0 %v4814
        %4864 = vmatprep.subr.mxu0 %v4813
        %4865 = vmatpush1.msra.mxu0 %v4812
        %4866 = vmatprep.subr.mxu0 %v4811
        %4867 = vmatpush1.msra.mxu0 %v4810
        %4868 = vmatprep.subr.mxu0 %v4809
        %4869 = vmatpush1.msra.mxu0 %v4808
        %4870 = vmatprep.subr.mxu0 %v4807
        %4871 = vmatpush1.msra.mxu0 %v4806
        %4872 = vmatprep.subr.mxu0 %v4805
        %4873 = vmatpush1.msra.mxu0 %v4804
        %4874 = vmatprep.subr.mxu0 %v4803
        %4875 = vmatpush1.msra.mxu0 %v4802
        %4876 = vmatprep.subr.mxu0 %v4801
        %4877 = vmatpush1.msra.mxu0 %v4800
        %4878 = vmatprep.subr.mxu0 %v4799
        %4879 = vmatpush1.msra.mxu0 %v4798
        %4880 = vmatprep.subr.mxu0 %v4797
        %4881 = vmatpush1.msra.mxu0 %v4796
        %4882 = vmatprep.subr.mxu0 %v4795
        %4883 = vmatpush1.msra.mxu0 %v4794
        %4884 = vmatprep.subr.mxu0 0.0
        %4885 = vmatpush2.msra.mxu0 0.0
        %4886 = vmatprep.subr.mxu0 0.0
        %4887 = vmatpush2.msra.mxu0 0.0
        %4888 = vmatprep.subr.mxu0 0.0
        %4889 = vmatpush2.msra.mxu0 0.0
        %4890 = vmatprep.subr.mxu0 0.0
        %4891 = vmatpush2.msra.mxu0 0.0
        %4892 = vmatprep.subr.mxu0 0.0
        %4893 = vmatpush2.msra.mxu0 0.0
        %4894 = vmatprep.subr.mxu0 0.0
        %4895 = vmatpush2.msra.mxu0 0.0
        %4896 = vmatprep.subr.mxu0 0.0
        %4897 = vmatpush2.msra.mxu0 0.0
        %4898 = vmatprep.subr.mxu0 0.0
        %4899 = vmatpush2.msra.mxu0 0.0
        %4900 = vmatprep.subr.mxu0 0.0
        %4901 = vmatpush2.msra.mxu0 0.0
        %4902 = vmatprep.subr.mxu0 0.0
        %4903 = vmatpush2.msra.mxu0 0.0
        %4904 = vmatprep.subr.mxu0 0.0
        %4905 = vmatpush2.msra.mxu0 0.0
        %4906 = vmatprep.subr.mxu0 0.0
        %4907 = vmatpush2.msra.mxu0 0.0
        %4908 = vmatprep.subr.mxu0 0.0
        %4909 = vmatpush2.msra.mxu0 0.0
        %4910 = vmatprep.subr.mxu0 0.0
        %4911 = vmatpush2.msra.mxu0 0.0
        %4912 = vmatprep.subr.mxu0 0.0
        %4913 = vmatpush2.msra.mxu0 0.0
        %4914 = vmatprep.subr.mxu0 0.0
        %4915 = vmatpush2.msra.mxu0 0.0
        %4916 = vmatprep.mubr.f32.mxu0 0.0
        %4917 = vmatmul.mubr.f32.gmra.mxu0 %v4822
        %v4918 = vpop.f32.mrf.mxu0
        %v4919 = vadd.f32 0.0, %v4918
        %v4920 = vpop.f32.mrf.mxu0
        %v4921 = vadd.f32 0.0, %v4920
        %4922 = vmatprep.mubr.f32.mxu0 0.0
        %4923 = vmatmul.mubr.f32.gmra.mxu0 %v4825
        %v4924 = vpop.f32.mrf.mxu0
        %v4925 = vadd.f32 0.0, %v4924
        %v4926 = vpop.f32.mrf.mxu0
        %v4927 = vadd.f32 0.0, %v4926
        %4928 = vmatprep.mubr.f32.mxu0 0.0
        %4929 = vmatmul.mubr.f32.gmra.mxu0 %v4828
        %v4930 = vpop.f32.mrf.mxu0
        %v4931 = vadd.f32 0.0, %v4930
        %v4932 = vpop.f32.mrf.mxu0
        %v4933 = vadd.f32 0.0, %v4932
        %4934 = vmatprep.mubr.f32.mxu0 0.0
        %4935 = vmatmul.mubr.f32.gmra.mxu0 %v4831
        %v4936 = vpop.f32.mrf.mxu0
        %v4937 = vadd.f32 0.0, %v4936
        %v4938 = vpop.f32.mrf.mxu0
        %v4939 = vadd.f32 0.0, %v4938
        %4940 = vmatprep.mubr.f32.mxu0 0.0
        %4941 = vmatmul.mubr.f32.gmra.mxu0 %v4834
        %v4942 = vpop.f32.mrf.mxu0
        %v4943 = vadd.f32 0.0, %v4942
        %v4944 = vpop.f32.mrf.mxu0
        %v4945 = vadd.f32 0.0, %v4944
        %4946 = vmatprep.mubr.f32.mxu0 0.0
        %4947 = vmatmul.mubr.f32.gmra.mxu0 %v4837
        %v4948 = vpop.f32.mrf.mxu0
        %v4949 = vadd.f32 0.0, %v4948
        %v4950 = vpop.f32.mrf.mxu0
        %v4951 = vadd.f32 0.0, %v4950
        %4952 = vmatprep.mubr.f32.mxu0 0.0
        %4953 = vmatmul.mubr.f32.gmra.mxu0 %v4840
        %v4954 = vpop.f32.mrf.mxu0
        %v4955 = vadd.f32 0.0, %v4954
        %v4956 = vpop.f32.mrf.mxu0
        %v4957 = vadd.f32 0.0, %v4956
        %4958 = vmatprep.mubr.f32.mxu0 0.0
        %4959 = vmatmul.mubr.f32.gmra.mxu0 %v4843
        %v4960 = vpop.f32.mrf.mxu0
        %v4961 = vadd.f32 0.0, %v4960
        %v4962 = vpop.f32.mrf.mxu0
        %v4963 = vadd.f32 0.0, %v4962
        %4964 = vdwg.mxu0
        %4981 = vrot.lane.b32.xlu0 %v4919, 1
        %v4982 = vpop.permute.xlu0 %4981
        %4983 = vrot.lane.b32.xlu0 %v4921, 1
        %v4984 = vpop.permute.xlu0 %4983
        %4985 = vrot.lane.b32.xlu0 %v4925, 1
        %v4986 = vpop.permute.xlu0 %4985
        %4987 = vrot.lane.b32.xlu0 %v4927, 1
        %v4988 = vpop.permute.xlu0 %4987
        %4989 = vrot.lane.b32.xlu0 %v4931, 1
        %v4990 = vpop.permute.xlu0 %4989
        %4991 = vrot.lane.b32.xlu0 %v4933, 1
        %v4992 = vpop.permute.xlu0 %4991
        %4993 = vrot.lane.b32.xlu0 %v4937, 1
        %v4994 = vpop.permute.xlu0 %4993
        %4995 = vrot.lane.b32.xlu0 %v4939, 1
        %v4996 = vpop.permute.xlu0 %4995
        %4997 = vrot.lane.b32.xlu0 %v4943, 1
        %v4998 = vpop.permute.xlu0 %4997
        %4999 = vrot.lane.b32.xlu0 %v4945, 1
        %v5000 = vpop.permute.xlu0 %4999
        %5001 = vrot.lane.b32.xlu0 %v4949, 1
        %v5002 = vpop.permute.xlu0 %5001
        %5003 = vrot.lane.b32.xlu0 %v4951, 1
        %v5004 = vpop.permute.xlu0 %5003
        %5005 = vrot.lane.b32.xlu0 %v4955, 1
        %v5006 = vpop.permute.xlu0 %5005
        %5007 = vrot.lane.b32.xlu0 %v4957, 1
        %v5008 = vpop.permute.xlu0 %5007
        %5009 = vrot.lane.b32.xlu0 %v4961, 1
        %v5010 = vpop.permute.xlu0 %5009
        %5011 = vrot.lane.b32.xlu0 %v4963, 1
        %v5012 = vpop.permute.xlu0 %5011
        %v5013 = vsel %vm4375, %v4982, %v4984
        %v5014 = vsel %vm4375, %v4986, %v4988
        %v5015 = vsel %vm4375, %v4990, %v4992
        %v5016 = vsel %vm4375, %v4994, %v4996
        %v5017 = vsel %vm4375, %v4998, %v5000
        %v5018 = vsel %vm4375, %v5002, %v5004
        %v5019 = vsel %vm4375, %v5006, %v5008
        %v5020 = vsel %vm4375, %v5010, %v5012
        %v5037 = vsel %vm4375, 0.0, %v4982
        %v5038 = vsel %vm4375, 0.0, %v4986
        %v5039 = vsel %vm4375, 0.0, %v4990
        %v5040 = vsel %vm4375, 0.0, %v4994
        %v5041 = vsel %vm4375, 0.0, %v4998
        %v5042 = vsel %vm4375, 0.0, %v5002
        %v5043 = vsel %vm4375, 0.0, %v5006
        %v5044 = vsel %vm4375, 0.0, %v5010
        %vm5045 = vcmask 596992
        %v5046 = vsel %vm5045, %v5013, 0.0
        %v5047 = vsel %vm5045, %v5014, 0.0
        %v5048 = vsel %vm5045, %v5015, 0.0
        %v5049 = vsel %vm5045, %v5016, 0.0
        %v5050 = vsel %vm5045, %v5017, 0.0
        %v5051 = vsel %vm5045, %v5018, 0.0
        %v5052 = vsel %vm5045, %v5019, 0.0
        %v5053 = vsel %vm5045, %v5020, 0.0
        %5070 = vrot.lane.b32.xlu0 %v5037, 127
        %v5071 = vpop.permute.xlu0 %5070
        %5072 = vrot.lane.b32.xlu0 %v5046, 127
        %v5073 = vpop.permute.xlu0 %5072
        %5074 = vrot.lane.b32.xlu0 %v5038, 127
        %v5075 = vpop.permute.xlu0 %5074
        %5076 = vrot.lane.b32.xlu0 %v5047, 127
        %v5077 = vpop.permute.xlu0 %5076
        %5078 = vrot.lane.b32.xlu0 %v5039, 127
        %v5079 = vpop.permute.xlu0 %5078
        %5080 = vrot.lane.b32.xlu0 %v5048, 127
        %v5081 = vpop.permute.xlu0 %5080
        %5082 = vrot.lane.b32.xlu0 %v5040, 127
        %v5083 = vpop.permute.xlu0 %5082
        %5084 = vrot.lane.b32.xlu0 %v5049, 127
        %v5085 = vpop.permute.xlu0 %5084
        %5086 = vrot.lane.b32.xlu0 %v5041, 127
        %v5087 = vpop.permute.xlu0 %5086
        %5088 = vrot.lane.b32.xlu0 %v5050, 127
        %v5089 = vpop.permute.xlu0 %5088
        %5090 = vrot.lane.b32.xlu0 %v5042, 127
        %v5091 = vpop.permute.xlu0 %5090
        %5092 = vrot.lane.b32.xlu0 %v5051, 127
        %v5093 = vpop.permute.xlu0 %5092
        %5094 = vrot.lane.b32.xlu0 %v5043, 127
        %v5095 = vpop.permute.xlu0 %5094
        %5096 = vrot.lane.b32.xlu0 %v5052, 127
        %v5097 = vpop.permute.xlu0 %5096
        %5098 = vrot.lane.b32.xlu0 %v5044, 127
        %v5099 = vpop.permute.xlu0 %5098
        %5100 = vrot.lane.b32.xlu0 %v5053, 127
        %v5101 = vpop.permute.xlu0 %5100
        %vm5102 = vcmask 1039360
        %v5103 = vsel %vm5102, %v5071, %v5073
        %v5104 = vsel %vm5102, %v5075, %v5077
        %v5105 = vsel %vm5102, %v5079, %v5081
        %v5106 = vsel %vm5102, %v5083, %v5085
        %v5107 = vsel %vm5102, %v5087, %v5089
        %v5108 = vsel %vm5102, %v5091, %v5093
        %v5109 = vsel %vm5102, %v5095, %v5097
        %v5110 = vsel %vm5102, %v5099, %v5101
        %5127 = vrot.lane.b32.xlu0 %v5037, 126
        %v5128 = vpop.permute.xlu0 %5127
        %5129 = vrot.lane.b32.xlu0 %v5046, 126
        %v5130 = vpop.permute.xlu0 %5129
        %5131 = vrot.lane.b32.xlu0 %v5038, 126
        %v5132 = vpop.permute.xlu0 %5131
        %5133 = vrot.lane.b32.xlu0 %v5047, 126
        %v5134 = vpop.permute.xlu0 %5133
        %5135 = vrot.lane.b32.xlu0 %v5039, 126
        %v5136 = vpop.permute.xlu0 %5135
        %5137 = vrot.lane.b32.xlu0 %v5048, 126
        %v5138 = vpop.permute.xlu0 %5137
        %5139 = vrot.lane.b32.xlu0 %v5040, 126
        %v5140 = vpop.permute.xlu0 %5139
        %5141 = vrot.lane.b32.xlu0 %v5049, 126
        %v5142 = vpop.permute.xlu0 %5141
        %5143 = vrot.lane.b32.xlu0 %v5041, 126
        %v5144 = vpop.permute.xlu0 %5143
        %5145 = vrot.lane.b32.xlu0 %v5050, 126
        %v5146 = vpop.permute.xlu0 %5145
        %5147 = vrot.lane.b32.xlu0 %v5042, 126
        %v5148 = vpop.permute.xlu0 %5147
        %5149 = vrot.lane.b32.xlu0 %v5051, 126
        %v5150 = vpop.permute.xlu0 %5149
        %5151 = vrot.lane.b32.xlu0 %v5043, 126
        %v5152 = vpop.permute.xlu0 %5151
        %5153 = vrot.lane.b32.xlu0 %v5052, 126
        %v5154 = vpop.permute.xlu0 %5153
        %5155 = vrot.lane.b32.xlu0 %v5044, 126
        %v5156 = vpop.permute.xlu0 %5155
        %5157 = vrot.lane.b32.xlu0 %v5053, 126
        %v5158 = vpop.permute.xlu0 %5157
        %vm5159 = vcmask 1031168
        %v5160 = vsel %vm5159, %v5128, %v5130
        %v5161 = vsel %vm5159, %v5132, %v5134
        %v5162 = vsel %vm5159, %v5136, %v5138
        %v5163 = vsel %vm5159, %v5140, %v5142
        %v5164 = vsel %vm5159, %v5144, %v5146
        %v5165 = vsel %vm5159, %v5148, %v5150
        %v5166 = vsel %vm5159, %v5152, %v5154
        %v5167 = vsel %vm5159, %v5156, %v5158
        %v5184 = vld [vmem:[%s4] sm:$0xff]
        %v5185 = vld [vmem:[%s4 + $0x8] sm:$0xff]
        %v5186 = vld [vmem:[%s4 + $0x10] sm:$0xff]
        %v5187 = vld [vmem:[%s4 + $0x18] sm:$0xff]
        %v5188 = vpack.c.bf16 %v5038, %v5037
        %v5189 = vpack.c.bf16 %v5047, %v5046
        %v5190 = vpack.c.bf16 %v5040, %v5039
        %v5191 = vpack.c.bf16 %v5049, %v5048
        %v5192 = vpack.c.bf16 %v5042, %v5041
        %v5193 = vpack.c.bf16 %v5051, %v5050
        %v5194 = vpack.c.bf16 %v5044, %v5043
        %v5195 = vpack.c.bf16 %v5053, %v5052
        %v5196 = vpack.c.bf16 %v5104, %v5103
        %v5197 = vpack.c.bf16 %v5077, %v5073
        %v5198 = vpack.c.bf16 %v5106, %v5105
        %v5199 = vpack.c.bf16 %v5085, %v5081
        %v5200 = vpack.c.bf16 %v5108, %v5107
        %v5201 = vpack.c.bf16 %v5093, %v5089
        %v5202 = vpack.c.bf16 %v5110, %v5109
        %v5203 = vpack.c.bf16 %v5101, %v5097
        %v5204 = vpack.c.bf16 %v5161, %v5160
        %v5205 = vpack.c.bf16 %v5134, %v5130
        %v5206 = vpack.c.bf16 %v5163, %v5162
        %v5207 = vpack.c.bf16 %v5142, %v5138
        %v5208 = vpack.c.bf16 %v5165, %v5164
        %v5209 = vpack.c.bf16 %v5150, %v5146
        %v5210 = vpack.c.bf16 %v5167, %v5166
        %v5211 = vpack.c.bf16 %v5158, %v5154
        %v5216 = vunpack.c.l.b16 %v5184
        %v5217 = vunpack.c.h.b16 %v5184
        %v5218 = vunpack.c.l.b16 %v5185
        %v5219 = vunpack.c.h.b16 %v5185
        %v5220 = vunpack.c.l.b16 %v5186
        %v5221 = vunpack.c.h.b16 %v5186
        %v5222 = vunpack.c.l.b16 %v5187
        %v5223 = vunpack.c.h.b16 %v5187
        %v5224 = vpack.c.b16 %v5218, %v5216
        %v5225 = vpack.c.b16 %v5219, %v5217
        %v5226 = vpack.c.b16 %v5222, %v5220
        %v5227 = vpack.c.b16 %v5223, %v5221
        %vm5230 = vcmask 531456
        %v5232 = vsel %vm5230, %v5225, 0
        %v5235 = vsel %vm5230, %v5227, 0
        %5237 = vmatprep.subr.bf16.mxu0 %v5203
        %5238 = vmatpush1.bf16.msra.mxu0 %v5202
        %5239 = vmatprep.subr.bf16.mxu0 %v5201
        %5240 = vmatpush1.bf16.msra.mxu0 %v5200
        %5241 = vmatprep.subr.bf16.mxu0 %v5199
        %5242 = vmatpush1.bf16.msra.mxu0 %v5198
        %5243 = vmatprep.subr.bf16.mxu0 %v5197
        %5244 = vmatpush1.bf16.msra.mxu0 %v5196
        %5245 = vmatprep.subr.bf16.mxu0 %v5195
        %5246 = vmatpush1.bf16.msra.mxu0 %v5194
        %5247 = vmatprep.subr.bf16.mxu0 %v5193
        %5248 = vmatpush1.bf16.msra.mxu0 %v5192
        %5249 = vmatprep.subr.bf16.mxu0 %v5191
        %5250 = vmatpush1.bf16.msra.mxu0 %v5190
        %5251 = vmatprep.subr.bf16.mxu0 %v5189
        %5252 = vmatpush1.bf16.msra.mxu0 %v5188
        %5253 = vmatprep.subr.bf16.mxu0 0
        %5254 = vmatpush2.bf16.msra.mxu0 0
        %5255 = vmatprep.subr.bf16.mxu0 0
        %5256 = vmatpush2.bf16.msra.mxu0 0
        %5257 = vmatprep.subr.bf16.mxu0 0
        %5258 = vmatpush2.bf16.msra.mxu0 0
        %5259 = vmatprep.subr.bf16.mxu0 %v4654
        %5260 = vmatpush2.bf16.msra.mxu0 %v4654
        %5261 = vmatprep.subr.bf16.mxu0 %v5211
        %5262 = vmatpush2.bf16.msra.mxu0 %v5210
        %5263 = vmatprep.subr.bf16.mxu0 %v5209
        %5264 = vmatpush2.bf16.msra.mxu0 %v5208
        %5265 = vmatprep.subr.bf16.mxu0 %v5207
        %5266 = vmatpush2.bf16.msra.mxu0 %v5206
        %5267 = vmatprep.subr.bf16.mxu0 %v5205
        %5268 = vmatpush2.bf16.msra.mxu0 %v5204
        %5269 = vmatprep.mubr.bf16.mxu0 %v5232
        %5270 = vmatmul.mubr.bf16.gmra.mxu0 %v5224
        %v5271 = vpop.f32.mrf.mxu0
        %v5272 = vadd.f32 0.0, %v5271
        %v5273 = vpop.f32.mrf.mxu0
        %v5274 = vadd.f32 0.0, %v5273
        %v5275 = vpop.f32.mrf.mxu0
        %v5276 = vadd.f32 0.0, %v5275
        %v5277 = vpop.f32.mrf.mxu0
        %v5278 = vadd.f32 0.0, %v5277
        %5279 = vmatprep.mubr.bf16.mxu0 %v5235
        %5280 = vmatmul.mubr.bf16.gmra.mxu0 %v5226
        %v5281 = vpop.f32.mrf.mxu0
        %v5282 = vadd.f32 0.0, %v5281
        %v5283 = vpop.f32.mrf.mxu0
        %v5284 = vadd.f32 0.0, %v5283
        %v5285 = vpop.f32.mrf.mxu0
        %v5286 = vadd.f32 0.0, %v5285
        %v5287 = vpop.f32.mrf.mxu0
        %v5288 = vadd.f32 0.0, %v5287
        %5289 = vdwg.mxu0
        %v5290 = vmax.f32 %v5272, 0.0
        %v5291 = vmax.f32 %v5274, 0.0
        %v5292 = vmax.f32 %v5276, 0.0
        %v5293 = vmax.f32 %v5278, 0.0
        %v5294 = vmax.f32 %v5282, 0.0
        %v5295 = vmax.f32 %v5284, 0.0
        %v5296 = vmax.f32 %v5286, 0.0
        %v5297 = vmax.f32 %v5288, 0.0
        %v5298 = vld [vmem:[#allocation4] sm:$0xff]
        %v5299 = vld [vmem:[#allocation4 + $0x8] sm:$0xff]
        %v5300 = vld [vmem:[#allocation4 + $0x10] sm:$0xff]
        %v5301 = vld [vmem:[#allocation4 + $0x18] sm:$0xff]
        %v5302 = vld [vmem:[#allocation4 + $0x20] sm:$0xff]
        %v5303 = vld [vmem:[#allocation4 + $0x28] sm:$0xff]
        %v5304 = vld [vmem:[#allocation4 + $0x30] sm:$0xff]
        %v5305 = vld [vmem:[#allocation4 + $0x38] sm:$0xff]
        %v5306 = vld [vmem:[#allocation4 + $0x40] sm:$0xff]
        %v5307 = vld [vmem:[#allocation4 + $0x48] sm:$0xff]
        %v5308 = vld [vmem:[#allocation4 + $0x50] sm:$0xff]
        %v5309 = vld [vmem:[#allocation4 + $0x58] sm:$0xff]
        %v5310 = vld [vmem:[#allocation4 + $0x60] sm:$0xff]
        %v5311 = vld [vmem:[#allocation4 + $0x68] sm:$0xff]
        %v5312 = vld [vmem:[#allocation4 + $0x70] sm:$0xff]
        %v5313 = vld [vmem:[#allocation4 + $0x78] sm:$0xff]
        %v5314 = vld [vmem:[#allocation4 + $0x80] sm:$0xff]
        %v5315 = vld [vmem:[#allocation4 + $0x88] sm:$0xff]
        %v5316 = vld [vmem:[#allocation4 + $0x90] sm:$0xff]
        %v5317 = vld [vmem:[#allocation4 + $0x98] sm:$0xff]
        %v5318 = vld [vmem:[#allocation4 + $0xa0] sm:$0xff]
        %v5319 = vld [vmem:[#allocation4 + $0xa8] sm:$0xff]
        %v5320 = vld [vmem:[#allocation4 + $0xb0] sm:$0xff]
        %v5321 = vld [vmem:[#allocation4 + $0xb8] sm:$0xff]
        %v5322 = vld [vmem:[#allocation4 + $0xc0] sm:$0xff]
        %v5323 = vld [vmem:[#allocation4 + $0xc8] sm:$0xff]
        %v5324 = vld [vmem:[#allocation4 + $0xd0] sm:$0xff]
        %v5325 = vld [vmem:[#allocation4 + $0xd8] sm:$0xff]
        %v5326 = vld [vmem:[#allocation4 + $0xe0] sm:$0xff]
        %v5327 = vld [vmem:[#allocation4 + $0xe8] sm:$0xff]
        %v5328 = vld [vmem:[#allocation4 + $0xf0] sm:$0xff]
        %v5329 = vld [vmem:[#allocation4 + $0xf8] sm:$0xff]
        %v5330 = vld [vmem:[#allocation4 + $0x100] sm:$0xff]
        %v5331 = vld [vmem:[#allocation4 + $0x108] sm:$0xff]
        %v5332 = vld [vmem:[#allocation4 + $0x110] sm:$0xff]
        %v5333 = vld [vmem:[#allocation4 + $0x118] sm:$0xff]
        %v5334 = vld [vmem:[#allocation4 + $0x120] sm:$0xff]
        %v5335 = vld [vmem:[#allocation4 + $0x128] sm:$0xff]
        %v5336 = vld [vmem:[#allocation4 + $0x130] sm:$0xff]
        %v5337 = vld [vmem:[#allocation4 + $0x138] sm:$0xff]
        %v5338 = vld [vmem:[#allocation4 + $0x140] sm:$0xff]
        %v5339 = vld [vmem:[#allocation4 + $0x148] sm:$0xff]
        %v5340 = vld [vmem:[#allocation4 + $0x150] sm:$0xff]
        %v5341 = vld [vmem:[#allocation4 + $0x158] sm:$0xff]
        %v5342 = vld [vmem:[#allocation4 + $0x160] sm:$0xff]
        %v5343 = vld [vmem:[#allocation4 + $0x168] sm:$0xff]
        %v5344 = vld [vmem:[#allocation4 + $0x170] sm:$0xff]
        %v5345 = vld [vmem:[#allocation4 + $0x178] sm:$0xff]
        %v5346 = vld [vmem:[#allocation4 + $0x180] sm:$0xff]
        %v5347 = vld [vmem:[#allocation4 + $0x188] sm:$0xff]
        %v5348 = vld [vmem:[#allocation4 + $0x190] sm:$0xff]
        %v5349 = vld [vmem:[#allocation4 + $0x198] sm:$0xff]
        %v5350 = vld [vmem:[#allocation4 + $0x1a0] sm:$0xff]
        %v5351 = vld [vmem:[#allocation4 + $0x1a8] sm:$0xff]
        %v5352 = vld [vmem:[#allocation4 + $0x1b0] sm:$0xff]
        %v5353 = vld [vmem:[#allocation4 + $0x1b8] sm:$0xff]
        %v5354 = vld [vmem:[#allocation4 + $0x1c0] sm:$0xff]
        %v5355 = vld [vmem:[#allocation4 + $0x1c8] sm:$0xff]
        %v5356 = vld [vmem:[#allocation4 + $0x1d0] sm:$0xff]
        %v5357 = vld [vmem:[#allocation4 + $0x1d8] sm:$0xff]
        %v5358 = vld [vmem:[#allocation4 + $0x1e0] sm:$0xff]
        %v5359 = vld [vmem:[#allocation4 + $0x1e8] sm:$0xff]
        %v5360 = vld [vmem:[#allocation4 + $0x1f0] sm:$0xff]
        %v5361 = vld [vmem:[#allocation4 + $0x1f8] sm:$0xff]
        %v5362 = vld [vmem:[#allocation4 + $0x200] sm:$0xff]
        %v5363 = vld [vmem:[#allocation4 + $0x208] sm:$0xff]
        %v5364 = vld [vmem:[#allocation4 + $0x210] sm:$0xff]
        %v5365 = vld [vmem:[#allocation4 + $0x218] sm:$0xff]
        %v5366 = vld [vmem:[#allocation4 + $0x220] sm:$0xff]
        %v5367 = vld [vmem:[#allocation4 + $0x228] sm:$0xff]
        %v5368 = vld [vmem:[#allocation4 + $0x230] sm:$0xff]
        %v5369 = vld [vmem:[#allocation4 + $0x238] sm:$0xff]
        %v5370 = vld [vmem:[#allocation4 + $0x240] sm:$0xff]
        %v5371 = vld [vmem:[#allocation4 + $0x248] sm:$0xff]
        %v5372 = vld [vmem:[#allocation4 + $0x250] sm:$0xff]
        %v5373 = vld [vmem:[#allocation4 + $0x258] sm:$0xff]
        %v5374 = vld [vmem:[#allocation4 + $0x260] sm:$0xff]
        %v5375 = vld [vmem:[#allocation4 + $0x268] sm:$0xff]
        %v5376 = vld [vmem:[#allocation4 + $0x270] sm:$0xff]
        %v5377 = vld [vmem:[#allocation4 + $0x278] sm:$0xff]
        %v5378 = vld [vmem:[#allocation4 + $0x280] sm:$0xff]
        %v5379 = vld [vmem:[#allocation4 + $0x288] sm:$0xff]
        %v5380 = vld [vmem:[#allocation4 + $0x290] sm:$0xff]
        %v5381 = vld [vmem:[#allocation4 + $0x298] sm:$0xff]
        %v5382 = vld [vmem:[#allocation4 + $0x2a0] sm:$0xff]
        %v5383 = vld [vmem:[#allocation4 + $0x2a8] sm:$0xff]
        %v5384 = vld [vmem:[#allocation4 + $0x2b0] sm:$0xff]
        %v5385 = vld [vmem:[#allocation4 + $0x2b8] sm:$0xff]
        %v5386 = vld [vmem:[#allocation4 + $0x2c0] sm:$0xff]
        %v5387 = vld [vmem:[#allocation4 + $0x2c8] sm:$0xff]
        %v5388 = vld [vmem:[#allocation4 + $0x2d0] sm:$0xff]
        %v5389 = vld [vmem:[#allocation4 + $0x2d8] sm:$0xff]
        %v5390 = vld [vmem:[#allocation4 + $0x2e0] sm:$0xff]
        %v5391 = vld [vmem:[#allocation4 + $0x2e8] sm:$0xff]
        %v5392 = vld [vmem:[#allocation4 + $0x2f0] sm:$0xff]
        %v5393 = vld [vmem:[#allocation4 + $0x2f8] sm:$0xff]
        %v5394 = vld [vmem:[#allocation4 + $0x300] sm:$0xff]
        %v5395 = vld [vmem:[#allocation4 + $0x308] sm:$0xff]
        %v5396 = vld [vmem:[#allocation4 + $0x310] sm:$0xff]
        %v5397 = vld [vmem:[#allocation4 + $0x318] sm:$0xff]
        %vm5398 = vcmask 588800
        %v5400 = vsel %vm5398, %v5291, 0
        %v5403 = vsel %vm5398, %v5293, 0
        %v5406 = vsel %vm5398, %v5295, 0
        %v5409 = vsel %vm5398, %v5297, 0
        %5411 = vmatprep.subr.mxu0 %v5359
        %5412 = vmatpush1.msra.mxu0 %v5358
        %5413 = vmatprep.subr.mxu0 %v5355
        %5414 = vmatpush1.msra.mxu0 %v5354
        %5415 = vmatprep.subr.mxu0 %v5351
        %5416 = vmatpush1.msra.mxu0 %v5350
        %5417 = vmatprep.subr.mxu0 %v5347
        %5418 = vmatpush1.msra.mxu0 %v5346
        %5419 = vmatprep.subr.mxu0 %v5343
        %5420 = vmatpush1.msra.mxu0 %v5342
        %5421 = vmatprep.subr.mxu0 %v5339
        %5422 = vmatpush1.msra.mxu0 %v5338
        %5423 = vmatprep.subr.mxu0 %v5335
        %5424 = vmatpush1.msra.mxu0 %v5334
        %5425 = vmatprep.subr.mxu0 %v5331
        %5426 = vmatpush1.msra.mxu0 %v5330
        %5427 = vmatprep.subr.mxu0 %v5327
        %5428 = vmatpush1.msra.mxu0 %v5326
        %5429 = vmatprep.subr.mxu0 %v5323
        %5430 = vmatpush1.msra.mxu0 %v5322
        %5431 = vmatprep.subr.mxu0 %v5319
        %5432 = vmatpush1.msra.mxu0 %v5318
        %5433 = vmatprep.subr.mxu0 %v5315
        %5434 = vmatpush1.msra.mxu0 %v5314
        %5435 = vmatprep.subr.mxu0 %v5311
        %5436 = vmatpush1.msra.mxu0 %v5310
        %5437 = vmatprep.subr.mxu0 %v5307
        %5438 = vmatpush1.msra.mxu0 %v5306
        %5439 = vmatprep.subr.mxu0 %v5303
        %5440 = vmatpush1.msra.mxu0 %v5302
        %5441 = vmatprep.subr.mxu0 %v5299
        %5442 = vmatpush1.msra.mxu0 %v5298
        %5443 = vmatprep.subr.mxu0 0.0
        %5444 = vmatpush2.msra.mxu0 0.0
        %5445 = vmatprep.subr.mxu0 0.0
        %5446 = vmatpush2.msra.mxu0 0.0
        %5447 = vmatprep.subr.mxu0 0.0
        %5448 = vmatpush2.msra.mxu0 0.0
        %5449 = vmatprep.subr.mxu0 0.0
        %5450 = vmatpush2.msra.mxu0 0.0
        %5451 = vmatprep.subr.mxu0 0.0
        %5452 = vmatpush2.msra.mxu0 0.0
        %5453 = vmatprep.subr.mxu0 0.0
        %5454 = vmatpush2.msra.mxu0 0.0
        %5455 = vmatprep.subr.mxu0 0.0
        %5456 = vmatpush2.msra.mxu0 0.0
        %5457 = vmatprep.subr.mxu0 %v5395
        %5458 = vmatpush2.msra.mxu0 %v5394
        %5459 = vmatprep.subr.mxu0 %v5391
        %5460 = vmatpush2.msra.mxu0 %v5390
        %5461 = vmatprep.subr.mxu0 %v5387
        %5462 = vmatpush2.msra.mxu0 %v5386
        %5463 = vmatprep.subr.mxu0 %v5383
        %5464 = vmatpush2.msra.mxu0 %v5382
        %5465 = vmatprep.subr.mxu0 %v5379
        %5466 = vmatpush2.msra.mxu0 %v5378
        %5467 = vmatprep.subr.mxu0 %v5375
        %5468 = vmatpush2.msra.mxu0 %v5374
        %5469 = vmatprep.subr.mxu0 %v5371
        %5470 = vmatpush2.msra.mxu0 %v5370
        %5471 = vmatprep.subr.mxu0 %v5367
        %5472 = vmatpush2.msra.mxu0 %v5366
        %5473 = vmatprep.subr.mxu0 %v5363
        %5474 = vmatpush2.msra.mxu0 %v5362
        %5475 = vmatprep.mubr.f32.mxu0 %v5400
        %5476 = vmatmul.mubr.f32.gmra.mxu0 %v5290
        %v5477 = vpop.f32.mrf.mxu0
        %v5478 = vadd.f32 0.0, %v5477
        %v5479 = vpop.f32.mrf.mxu0
        %v5480 = vadd.f32 0.0, %v5479
        %5481 = vmatprep.mubr.f32.mxu0 %v5403
        %5482 = vmatmul.mubr.f32.gmra.mxu0 %v5292
        %v5483 = vpop.f32.mrf.mxu0
        %v5484 = vadd.f32 0.0, %v5483
        %v5485 = vpop.f32.mrf.mxu0
        %v5486 = vadd.f32 0.0, %v5485
        %5487 = vmatprep.mubr.f32.mxu0 %v5406
        %5488 = vmatmul.mubr.f32.gmra.mxu0 %v5294
        %v5489 = vpop.f32.mrf.mxu0
        %v5490 = vadd.f32 0.0, %v5489
        %v5491 = vpop.f32.mrf.mxu0
        %v5492 = vadd.f32 0.0, %v5491
        %5493 = vmatprep.mubr.f32.mxu0 %v5409
        %5494 = vmatmul.mubr.f32.gmra.mxu0 %v5296
        %v5495 = vpop.f32.mrf.mxu0
        %v5496 = vadd.f32 0.0, %v5495
        %v5497 = vpop.f32.mrf.mxu0
        %v5498 = vadd.f32 0.0, %v5497
        %5499 = vdwg.mxu0
        %5500 = vmatprep.subr.mxu0 %v5361
        %5501 = vmatpush1.msra.mxu0 %v5360
        %5502 = vmatprep.subr.mxu0 %v5357
        %5503 = vmatpush1.msra.mxu0 %v5356
        %5504 = vmatprep.subr.mxu0 %v5353
        %5505 = vmatpush1.msra.mxu0 %v5352
        %5506 = vmatprep.subr.mxu0 %v5349
        %5507 = vmatpush1.msra.mxu0 %v5348
        %5508 = vmatprep.subr.mxu0 %v5345
        %5509 = vmatpush1.msra.mxu0 %v5344
        %5510 = vmatprep.subr.mxu0 %v5341
        %5511 = vmatpush1.msra.mxu0 %v5340
        %5512 = vmatprep.subr.mxu0 %v5337
        %5513 = vmatpush1.msra.mxu0 %v5336
        %5514 = vmatprep.subr.mxu0 %v5333
        %5515 = vmatpush1.msra.mxu0 %v5332
        %5516 = vmatprep.subr.mxu0 %v5329
        %5517 = vmatpush1.msra.mxu0 %v5328
        %5518 = vmatprep.subr.mxu0 %v5325
        %5519 = vmatpush1.msra.mxu0 %v5324
        %5520 = vmatprep.subr.mxu0 %v5321
        %5521 = vmatpush1.msra.mxu0 %v5320
        %5522 = vmatprep.subr.mxu0 %v5317
        %5523 = vmatpush1.msra.mxu0 %v5316
        %5524 = vmatprep.subr.mxu0 %v5313
        %5525 = vmatpush1.msra.mxu0 %v5312
        %5526 = vmatprep.subr.mxu0 %v5309
        %5527 = vmatpush1.msra.mxu0 %v5308
        %5528 = vmatprep.subr.mxu0 %v5305
        %5529 = vmatpush1.msra.mxu0 %v5304
        %5530 = vmatprep.subr.mxu0 %v5301
        %5531 = vmatpush1.msra.mxu0 %v5300
        %5532 = vmatprep.subr.mxu0 0.0
        %5533 = vmatpush2.msra.mxu0 0.0
        %5534 = vmatprep.subr.mxu0 0.0
        %5535 = vmatpush2.msra.mxu0 0.0
        %5536 = vmatprep.subr.mxu0 0.0
        %5537 = vmatpush2.msra.mxu0 0.0
        %5538 = vmatprep.subr.mxu0 0.0
        %5539 = vmatpush2.msra.mxu0 0.0
        %5540 = vmatprep.subr.mxu0 0.0
        %5541 = vmatpush2.msra.mxu0 0.0
        %5542 = vmatprep.subr.mxu0 0.0
        %5543 = vmatpush2.msra.mxu0 0.0
        %5544 = vmatprep.subr.mxu0 0.0
        %5545 = vmatpush2.msra.mxu0 0.0
        %5546 = vmatprep.subr.mxu0 %v5397
        %5547 = vmatpush2.msra.mxu0 %v5396
        %5548 = vmatprep.subr.mxu0 %v5393
        %5549 = vmatpush2.msra.mxu0 %v5392
        %5550 = vmatprep.subr.mxu0 %v5389
        %5551 = vmatpush2.msra.mxu0 %v5388
        %5552 = vmatprep.subr.mxu0 %v5385
        %5553 = vmatpush2.msra.mxu0 %v5384
        %5554 = vmatprep.subr.mxu0 %v5381
        %5555 = vmatpush2.msra.mxu0 %v5380
        %5556 = vmatprep.subr.mxu0 %v5377
        %5557 = vmatpush2.msra.mxu0 %v5376
        %5558 = vmatprep.subr.mxu0 %v5373
        %5559 = vmatpush2.msra.mxu0 %v5372
        %5560 = vmatprep.subr.mxu0 %v5369
        %5561 = vmatpush2.msra.mxu0 %v5368
        %5562 = vmatprep.subr.mxu0 %v5365
        %5563 = vmatpush2.msra.mxu0 %v5364
        %5564 = vmatprep.mubr.f32.mxu0 %v5400
        %5565 = vmatmul.mubr.f32.gmra.mxu0 %v5290
        %v5566 = vpop.f32.mrf.mxu0
        %v5567 = vadd.f32 0.0, %v5566
        %v5568 = vpop.f32.mrf.mxu0
        %v5569 = vadd.f32 0.0, %v5568
        %5570 = vmatprep.mubr.f32.mxu0 %v5403
        %5571 = vmatmul.mubr.f32.gmra.mxu0 %v5292
        %v5572 = vpop.f32.mrf.mxu0
        %v5573 = vadd.f32 0.0, %v5572
        %v5574 = vpop.f32.mrf.mxu0
        %v5575 = vadd.f32 0.0, %v5574
        %5576 = vmatprep.mubr.f32.mxu0 %v5406
        %5577 = vmatmul.mubr.f32.gmra.mxu0 %v5294
        %v5578 = vpop.f32.mrf.mxu0
        %v5579 = vadd.f32 0.0, %v5578
        %v5580 = vpop.f32.mrf.mxu0
        %v5581 = vadd.f32 0.0, %v5580
        %5582 = vmatprep.mubr.f32.mxu0 %v5409
        %5583 = vmatmul.mubr.f32.gmra.mxu0 %v5296
        %v5584 = vpop.f32.mrf.mxu0
        %v5585 = vadd.f32 0.0, %v5584
        %v5586 = vpop.f32.mrf.mxu0
        %v5587 = vadd.f32 0.0, %v5586
        %5588 = vdwg.mxu0
        %5605 = vrot.lane.b32.xlu0 %v5478, 1
        %v5606 = vpop.permute.xlu0 %5605
        %5607 = vrot.lane.b32.xlu0 %v5480, 1
        %v5608 = vpop.permute.xlu0 %5607
        %5609 = vrot.lane.b32.xlu0 %v5567, 1
        %v5610 = vpop.permute.xlu0 %5609
        %5611 = vrot.lane.b32.xlu0 %v5569, 1
        %v5612 = vpop.permute.xlu0 %5611
        %5613 = vrot.lane.b32.xlu0 %v5484, 1
        %v5614 = vpop.permute.xlu0 %5613
        %5615 = vrot.lane.b32.xlu0 %v5486, 1
        %v5616 = vpop.permute.xlu0 %5615
        %5617 = vrot.lane.b32.xlu0 %v5573, 1
        %v5618 = vpop.permute.xlu0 %5617
        %5619 = vrot.lane.b32.xlu0 %v5575, 1
        %v5620 = vpop.permute.xlu0 %5619
        %5621 = vrot.lane.b32.xlu0 %v5490, 1
        %v5622 = vpop.permute.xlu0 %5621
        %5623 = vrot.lane.b32.xlu0 %v5492, 1
        %v5624 = vpop.permute.xlu0 %5623
        %5625 = vrot.lane.b32.xlu0 %v5579, 1
        %v5626 = vpop.permute.xlu0 %5625
        %5627 = vrot.lane.b32.xlu0 %v5581, 1
        %v5628 = vpop.permute.xlu0 %5627
        %5629 = vrot.lane.b32.xlu0 %v5496, 1
        %v5630 = vpop.permute.xlu0 %5629
        %5631 = vrot.lane.b32.xlu0 %v5498, 1
        %v5632 = vpop.permute.xlu0 %5631
        %5633 = vrot.lane.b32.xlu0 %v5585, 1
        %v5634 = vpop.permute.xlu0 %5633
        %5635 = vrot.lane.b32.xlu0 %v5587, 1
        %v5636 = vpop.permute.xlu0 %5635
        %v5637 = vsel %vm4375, %v5606, %v5608
        %v5638 = vsel %vm4375, %v5608, %v5610
        %v5639 = vsel %vm4375, %v5610, %v5612
        %v5640 = vsel %vm4375, %v5614, %v5616
        %v5641 = vsel %vm4375, %v5616, %v5618
        %v5642 = vsel %vm4375, %v5618, %v5620
        %v5643 = vsel %vm4375, %v5622, %v5624
        %v5644 = vsel %vm4375, %v5624, %v5626
        %v5645 = vsel %vm4375, %v5626, %v5628
        %v5646 = vsel %vm4375, %v5630, %v5632
        %v5647 = vsel %vm4375, %v5632, %v5634
        %v5648 = vsel %vm4375, %v5634, %v5636
        %v5665 = vsel %vm4375, 0.0, %v5606
        %v5666 = vsel %vm4375, 0.0, %v5614
        %v5667 = vsel %vm4375, 0.0, %v5622
        %v5668 = vsel %vm4375, 0.0, %v5630
        %vm5669 = vcmask 138240
        %v5670 = vsel %vm5669, %v5639, 0.0
        %v5671 = vsel %vm5669, %v5642, 0.0
        %v5672 = vsel %vm5669, %v5645, 0.0
        %v5673 = vsel %vm5669, %v5648, 0.0
        %5682 = vrot.lane.b32.xlu0 %v5665, 127
        %v5683 = vpop.permute.xlu0 %5682
        %5684 = vrot.lane.b32.xlu0 %v5637, 127
        %v5685 = vpop.permute.xlu0 %5684
        %5686 = vrot.lane.b32.xlu0 %v5638, 127
        %v5687 = vpop.permute.xlu0 %5686
        %5688 = vrot.lane.b32.xlu0 %v5670, 127
        %v5689 = vpop.permute.xlu0 %5688
        %5690 = vrot.lane.b32.xlu0 %v5666, 127
        %v5691 = vpop.permute.xlu0 %5690
        %5692 = vrot.lane.b32.xlu0 %v5640, 127
        %v5693 = vpop.permute.xlu0 %5692
        %5694 = vrot.lane.b32.xlu0 %v5641, 127
        %v5695 = vpop.permute.xlu0 %5694
        %5696 = vrot.lane.b32.xlu0 %v5671, 127
        %v5697 = vpop.permute.xlu0 %5696
        %5698 = vrot.lane.b32.xlu0 %v5667, 127
        %v5699 = vpop.permute.xlu0 %5698
        %5700 = vrot.lane.b32.xlu0 %v5643, 127
        %v5701 = vpop.permute.xlu0 %5700
        %5702 = vrot.lane.b32.xlu0 %v5644, 127
        %v5703 = vpop.permute.xlu0 %5702
        %5704 = vrot.lane.b32.xlu0 %v5672, 127
        %v5705 = vpop.permute.xlu0 %5704
        %5706 = vrot.lane.b32.xlu0 %v5668, 127
        %v5707 = vpop.permute.xlu0 %5706
        %5708 = vrot.lane.b32.xlu0 %v5646, 127
        %v5709 = vpop.permute.xlu0 %5708
        %5710 = vrot.lane.b32.xlu0 %v5647, 127
        %v5711 = vpop.permute.xlu0 %5710
        %5712 = vrot.lane.b32.xlu0 %v5673, 127
        %v5713 = vpop.permute.xlu0 %5712
        %v5714 = vsel %vm5102, %v5683, %v5685
        %v5715 = vsel %vm5102, %v5685, %v5687
        %v5716 = vsel %vm5102, %v5687, %v5689
        %v5717 = vsel %vm5102, %v5691, %v5693
        %v5718 = vsel %vm5102, %v5693, %v5695
        %v5719 = vsel %vm5102, %v5695, %v5697
        %v5720 = vsel %vm5102, %v5699, %v5701
        %v5721 = vsel %vm5102, %v5701, %v5703
        %v5722 = vsel %vm5102, %v5703, %v5705
        %v5723 = vsel %vm5102, %v5707, %v5709
        %v5724 = vsel %vm5102, %v5709, %v5711
        %v5725 = vsel %vm5102, %v5711, %v5713
        %5742 = vrot.lane.b32.xlu0 %v5665, 126
        %v5743 = vpop.permute.xlu0 %5742
        %5744 = vrot.lane.b32.xlu0 %v5637, 126
        %v5745 = vpop.permute.xlu0 %5744
        %5746 = vrot.lane.b32.xlu0 %v5638, 126
        %v5747 = vpop.permute.xlu0 %5746
        %5748 = vrot.lane.b32.xlu0 %v5670, 126
        %v5749 = vpop.permute.xlu0 %5748
        %5750 = vrot.lane.b32.xlu0 %v5666, 126
        %v5751 = vpop.permute.xlu0 %5750
        %5752 = vrot.lane.b32.xlu0 %v5640, 126
        %v5753 = vpop.permute.xlu0 %5752
        %5754 = vrot.lane.b32.xlu0 %v5641, 126
        %v5755 = vpop.permute.xlu0 %5754
        %5756 = vrot.lane.b32.xlu0 %v5671, 126
        %v5757 = vpop.permute.xlu0 %5756
        %5758 = vrot.lane.b32.xlu0 %v5667, 126
        %v5759 = vpop.permute.xlu0 %5758
        %5760 = vrot.lane.b32.xlu0 %v5643, 126
        %v5761 = vpop.permute.xlu0 %5760
        %5762 = vrot.lane.b32.xlu0 %v5644, 126
        %v5763 = vpop.permute.xlu0 %5762
        %5764 = vrot.lane.b32.xlu0 %v5672, 126
        %v5765 = vpop.permute.xlu0 %5764
        %5766 = vrot.lane.b32.xlu0 %v5668, 126
        %v5767 = vpop.permute.xlu0 %5766
        %5768 = vrot.lane.b32.xlu0 %v5646, 126
        %v5769 = vpop.permute.xlu0 %5768
        %5770 = vrot.lane.b32.xlu0 %v5647, 126
        %v5771 = vpop.permute.xlu0 %5770
        %5772 = vrot.lane.b32.xlu0 %v5673, 126
        %v5773 = vpop.permute.xlu0 %5772
        %v5774 = vsel %vm5159, %v5743, %v5745
        %v5775 = vsel %vm5159, %v5745, %v5747
        %v5776 = vsel %vm5159, %v5747, %v5749
        %v5777 = vsel %vm5159, %v5751, %v5753
        %v5778 = vsel %vm5159, %v5753, %v5755
        %v5779 = vsel %vm5159, %v5755, %v5757
        %v5780 = vsel %vm5159, %v5759, %v5761
        %v5781 = vsel %vm5159, %v5761, %v5763
        %v5782 = vsel %vm5159, %v5763, %v5765
        %v5783 = vsel %vm5159, %v5767, %v5769
        %v5784 = vsel %vm5159, %v5769, %v5771
        %v5785 = vsel %vm5159, %v5771, %v5773
        %v5802 = vld [vmem:[%s5] sm:$0xf]
        %v5803 = vld [vmem:[%s5 + $0x4] sm:$0xf]
        %v5804 = vpack.c.bf16 %v5666, %v5665
        %v5805 = vpack.c.bf16 %v5640, %v5637
        %v5806 = vpack.c.bf16 %v5641, %v5638
        %v5807 = vpack.c.bf16 %v5671, %v5670
        %v5808 = vpack.c.bf16 %v5668, %v5667
        %v5809 = vpack.c.bf16 %v5646, %v5643
        %v5810 = vpack.c.bf16 %v5647, %v5644
        %v5811 = vpack.c.bf16 %v5673, %v5672
        %v5812 = vpack.c.bf16 %v5717, %v5714
        %v5813 = vpack.c.bf16 %v5718, %v5715
        %v5814 = vpack.c.bf16 %v5719, %v5716
        %v5815 = vpack.c.bf16 %v5697, %v5689
        %v5816 = vpack.c.bf16 %v5723, %v5720
        %v5817 = vpack.c.bf16 %v5724, %v5721
        %v5818 = vpack.c.bf16 %v5725, %v5722
        %v5819 = vpack.c.bf16 %v5713, %v5705
        %v5820 = vpack.c.bf16 %v5777, %v5774
        %v5821 = vpack.c.bf16 %v5778, %v5775
        %v5822 = vpack.c.bf16 %v5779, %v5776
        %v5823 = vpack.c.bf16 %v5757, %v5749
        %v5824 = vpack.c.bf16 %v5783, %v5780
        %v5825 = vpack.c.bf16 %v5784, %v5781
        %v5826 = vpack.c.bf16 %v5785, %v5782
        %v5827 = vpack.c.bf16 %v5773, %v5765
        %v5830 = vunpack.c.l.b16 %v5802
        %v5831 = vunpack.c.l.b16 %v5803
        %v5832 = vpack.c.b16 %v5831, %v5830
        %vm5833 = vcmask 793600
        %v5835 = vsel %vm5833, %v5832, 0
        %5837 = vmatprep.subr.bf16.mxu0 0
        %5838 = vmatpush1.bf16.msra.mxu0 0
        %5839 = vmatprep.subr.bf16.mxu0 %v4654
        %5840 = vmatpush1.bf16.msra.mxu0 %v4654
        %5841 = vmatprep.subr.bf16.mxu0 %v5825
        %5842 = vmatpush1.bf16.msra.mxu0 %v5824
        %5843 = vmatprep.subr.bf16.mxu0 %v5821
        %5844 = vmatpush1.bf16.msra.mxu0 %v5820
        %5845 = vmatprep.subr.bf16.mxu0 %v5817
        %5846 = vmatpush1.bf16.msra.mxu0 %v5816
        %5847 = vmatprep.subr.bf16.mxu0 %v5813
        %5848 = vmatpush1.bf16.msra.mxu0 %v5812
        %5849 = vmatprep.subr.bf16.mxu0 %v5809
        %5850 = vmatpush1.bf16.msra.mxu0 %v5808
        %5851 = vmatprep.subr.bf16.mxu0 %v5805
        %5852 = vmatpush1.bf16.msra.mxu0 %v5804
        %5853 = vmatprep.subr.bf16.mxu0 0
        %5854 = vmatpush2.bf16.msra.mxu0 0
        %5855 = vmatprep.subr.bf16.mxu0 0
        %5856 = vmatpush2.bf16.msra.mxu0 0
        %5857 = vmatprep.subr.bf16.mxu0 0
        %5858 = vmatpush2.bf16.msra.mxu0 0
        %5859 = vmatprep.subr.bf16.mxu0 0
        %5860 = vmatpush2.bf16.msra.mxu0 0
        %5861 = vmatprep.subr.bf16.mxu0 0
        %5862 = vmatpush2.bf16.msra.mxu0 0
        %5863 = vmatprep.subr.bf16.mxu0 0
        %5864 = vmatpush2.bf16.msra.mxu0 0
        %5865 = vmatprep.subr.bf16.mxu0 0
        %5866 = vmatpush2.bf16.msra.mxu0 0
        %5867 = vmatprep.subr.bf16.mxu0 0
        %5868 = vmatpush2.bf16.msra.mxu0 0
        %5869 = vmatprep.mubr.bf16.mxu0 0
        %5870 = vmatmul.mubr.bf16.gmra.mxu0 %v5835
        %v5871 = vpop.f32.mrf.mxu0
        %v5872 = vadd.f32 0.0, %v5871
        %v5873 = vpop.f32.mrf.mxu0
        %v5874 = vadd.f32 0.0, %v5873
        %v5875 = vpop.f32.mrf.mxu0
        %v5876 = vadd.f32 0.0, %v5875
        %v5877 = vpop.f32.mrf.mxu0
        %v5878 = vadd.f32 0.0, %v5877
        %5879 = vdwg.mxu0
        %5880 = vmatprep.subr.bf16.mxu0 0
        %5881 = vmatpush1.bf16.msra.mxu0 0
        %5882 = vmatprep.subr.bf16.mxu0 %v4654
        %5883 = vmatpush1.bf16.msra.mxu0 %v4654
        %5884 = vmatprep.subr.bf16.mxu0 %v5827
        %5885 = vmatpush1.bf16.msra.mxu0 %v5826
        %5886 = vmatprep.subr.bf16.mxu0 %v5823
        %5887 = vmatpush1.bf16.msra.mxu0 %v5822
        %5888 = vmatprep.subr.bf16.mxu0 %v5819
        %5889 = vmatpush1.bf16.msra.mxu0 %v5818
        %5890 = vmatprep.subr.bf16.mxu0 %v5815
        %5891 = vmatpush1.bf16.msra.mxu0 %v5814
        %5892 = vmatprep.subr.bf16.mxu0 %v5811
        %5893 = vmatpush1.bf16.msra.mxu0 %v5810
        %5894 = vmatprep.subr.bf16.mxu0 %v5807
        %5895 = vmatpush1.bf16.msra.mxu0 %v5806
        %5896 = vmatprep.subr.bf16.mxu0 0
        %5897 = vmatpush2.bf16.msra.mxu0 0
        %5898 = vmatprep.subr.bf16.mxu0 0
        %5899 = vmatpush2.bf16.msra.mxu0 0
        %5900 = vmatprep.subr.bf16.mxu0 0
        %5901 = vmatpush2.bf16.msra.mxu0 0
        %5902 = vmatprep.subr.bf16.mxu0 0
        %5903 = vmatpush2.bf16.msra.mxu0 0
        %5904 = vmatprep.subr.bf16.mxu0 0
        %5905 = vmatpush2.bf16.msra.mxu0 0
        %5906 = vmatprep.subr.bf16.mxu0 0
        %5907 = vmatpush2.bf16.msra.mxu0 0
        %5908 = vmatprep.subr.bf16.mxu0 0
        %5909 = vmatpush2.bf16.msra.mxu0 0
        %5910 = vmatprep.subr.bf16.mxu0 0
        %5911 = vmatpush2.bf16.msra.mxu0 0
        %5912 = vmatprep.mubr.bf16.mxu0 0
        %5913 = vmatmul.mubr.bf16.gmra.mxu0 %v5835
        %v5914 = vpop.f32.mrf.mxu0
        %v5915 = vadd.f32 0.0, %v5914
        %v5916 = vpop.f32.mrf.mxu0
        %v5917 = vadd.f32 0.0, %v5916
        %v5918 = vpop.f32.mrf.mxu0
        %v5919 = vadd.f32 0.0, %v5918
        %v5920 = vpop.f32.mrf.mxu0
        %v5921 = vadd.f32 0.0, %v5920
        %5922 = vdwg.mxu0
        %v5923 = vmax.f32 %v5872, 0.0
        %v5924 = vmax.f32 %v5874, 0.0
        %v5925 = vmax.f32 %v5915, 0.0
        %v5926 = vmax.f32 %v5917, 0.0
        %v5927 = vmax.f32 %v5876, 0.0
        %v5928 = vmax.f32 %v5878, 0.0
        %v5929 = vmax.f32 %v5919, 0.0
        %v5930 = vmax.f32 %v5921, 0.0
        %v5931 = vld [vmem:[#allocation5] sm:$0xff]
        %v5932 = vld [vmem:[#allocation5 + $0x8] sm:$0xff]
        %v5933 = vld [vmem:[#allocation5 + $0x10] sm:$0xff]
        %v5934 = vld [vmem:[#allocation5 + $0x18] sm:$0xff]
        %v5935 = vld [vmem:[#allocation5 + $0x20] sm:$0xff]
        %v5936 = vld [vmem:[#allocation5 + $0x28] sm:$0xff]
        %v5937 = vld [vmem:[#allocation5 + $0x30] sm:$0xff]
        %v5938 = vld [vmem:[#allocation5 + $0x38] sm:$0xff]
        %v5939 = vld [vmem:[#allocation5 + $0x40] sm:$0xff]
        %v5940 = vld [vmem:[#allocation5 + $0x48] sm:$0xff]
        %v5941 = vld [vmem:[#allocation5 + $0x50] sm:$0xff]
        %v5942 = vld [vmem:[#allocation5 + $0x58] sm:$0xff]
        %v5943 = vld [vmem:[#allocation5 + $0x60] sm:$0xff]
        %v5944 = vld [vmem:[#allocation5 + $0x68] sm:$0xff]
        %v5945 = vld [vmem:[#allocation5 + $0x70] sm:$0xff]
        %v5946 = vld [vmem:[#allocation5 + $0x78] sm:$0xff]
        %v5947 = vld [vmem:[#allocation5 + $0x80] sm:$0xff]
        %v5948 = vld [vmem:[#allocation5 + $0x88] sm:$0xff]
        %v5949 = vld [vmem:[#allocation5 + $0x90] sm:$0xff]
        %v5950 = vld [vmem:[#allocation5 + $0x98] sm:$0xff]
        %v5951 = vld [vmem:[#allocation5 + $0xa0] sm:$0xff]
        %v5952 = vld [vmem:[#allocation5 + $0xa8] sm:$0xff]
        %v5953 = vld [vmem:[#allocation5 + $0xb0] sm:$0xff]
        %v5954 = vld [vmem:[#allocation5 + $0xb8] sm:$0xff]
        %v5955 = vld [vmem:[#allocation5 + $0xc0] sm:$0xff]
        %v5956 = vld [vmem:[#allocation5 + $0xc8] sm:$0xff]
        %v5957 = vld [vmem:[#allocation5 + $0xd0] sm:$0xff]
        %v5958 = vld [vmem:[#allocation5 + $0xd8] sm:$0xff]
        %v5959 = vld [vmem:[#allocation5 + $0xe0] sm:$0xff]
        %v5960 = vld [vmem:[#allocation5 + $0xe8] sm:$0xff]
        %v5961 = vld [vmem:[#allocation5 + $0xf0] sm:$0xff]
        %v5962 = vld [vmem:[#allocation5 + $0xf8] sm:$0xff]
        %v5963 = vld [vmem:[#allocation5 + $0x100] sm:$0xff]
        %v5964 = vld [vmem:[#allocation5 + $0x108] sm:$0xff]
        %v5965 = vld [vmem:[#allocation5 + $0x110] sm:$0xff]
        %v5966 = vld [vmem:[#allocation5 + $0x118] sm:$0xff]
        %v5967 = vld [vmem:[#allocation5 + $0x120] sm:$0xff]
        %v5968 = vld [vmem:[#allocation5 + $0x128] sm:$0xff]
        %v5969 = vld [vmem:[#allocation5 + $0x130] sm:$0xff]
        %v5970 = vld [vmem:[#allocation5 + $0x138] sm:$0xff]
        %v5971 = vld [vmem:[#allocation5 + $0x140] sm:$0xff]
        %v5972 = vld [vmem:[#allocation5 + $0x148] sm:$0xff]
        %v5973 = vld [vmem:[#allocation5 + $0x150] sm:$0xff]
        %v5974 = vld [vmem:[#allocation5 + $0x158] sm:$0xff]
        %v5975 = vld [vmem:[#allocation5 + $0x160] sm:$0xff]
        %v5976 = vld [vmem:[#allocation5 + $0x168] sm:$0xff]
        %v5977 = vld [vmem:[#allocation5 + $0x170] sm:$0xff]
        %v5978 = vld [vmem:[#allocation5 + $0x178] sm:$0xff]
        %v5979 = vld [vmem:[#allocation5 + $0x180] sm:$0xff]
        %v5980 = vld [vmem:[#allocation5 + $0x188] sm:$0xff]
        %v5981 = vld [vmem:[#allocation5 + $0x190] sm:$0xff]
        %v5982 = vld [vmem:[#allocation5 + $0x198] sm:$0xff]
        %v5983 = vld [vmem:[#allocation5 + $0x1a0] sm:$0xff]
        %v5984 = vld [vmem:[#allocation5 + $0x1a8] sm:$0xff]
        %v5985 = vld [vmem:[#allocation5 + $0x1b0] sm:$0xff]
        %v5986 = vld [vmem:[#allocation5 + $0x1b8] sm:$0xff]
        %v5987 = vld [vmem:[#allocation5 + $0x1c0] sm:$0xff]
        %v5988 = vld [vmem:[#allocation5 + $0x1c8] sm:$0xff]
        %v5989 = vld [vmem:[#allocation5 + $0x1d0] sm:$0xff]
        %v5990 = vld [vmem:[#allocation5 + $0x1d8] sm:$0xff]
        %v5991 = vld [vmem:[#allocation5 + $0x1e0] sm:$0xff]
        %v5992 = vld [vmem:[#allocation5 + $0x1e8] sm:$0xff]
        %v5993 = vld [vmem:[#allocation5 + $0x1f0] sm:$0xff]
        %v5994 = vld [vmem:[#allocation5 + $0x1f8] sm:$0xff]
        %v5995 = vld [vmem:[#allocation5 + $0x200] sm:$0xff]
        %v5996 = vld [vmem:[#allocation5 + $0x208] sm:$0xff]
        %v5997 = vld [vmem:[#allocation5 + $0x210] sm:$0xff]
        %v5998 = vld [vmem:[#allocation5 + $0x218] sm:$0xff]
        %v5999 = vld [vmem:[#allocation5 + $0x220] sm:$0xff]
        %v6000 = vld [vmem:[#allocation5 + $0x228] sm:$0xff]
        %v6001 = vld [vmem:[#allocation5 + $0x230] sm:$0xff]
        %v6002 = vld [vmem:[#allocation5 + $0x238] sm:$0xff]
        %v6003 = vld [vmem:[#allocation5 + $0x240] sm:$0xff]
        %v6004 = vld [vmem:[#allocation5 + $0x248] sm:$0xff]
        %v6005 = vld [vmem:[#allocation5 + $0x250] sm:$0xff]
        %v6006 = vld [vmem:[#allocation5 + $0x258] sm:$0xff]
        %v6007 = vld [vmem:[#allocation5 + $0x260] sm:$0xff]
        %v6008 = vld [vmem:[#allocation5 + $0x268] sm:$0xff]
        %v6009 = vld [vmem:[#allocation5 + $0x270] sm:$0xff]
        %v6010 = vld [vmem:[#allocation5 + $0x278] sm:$0xff]
        %v6011 = vld [vmem:[#allocation5 + $0x280] sm:$0xff]
        %v6012 = vld [vmem:[#allocation5 + $0x288] sm:$0xff]
        %v6013 = vld [vmem:[#allocation5 + $0x290] sm:$0xff]
        %v6014 = vld [vmem:[#allocation5 + $0x298] sm:$0xff]
        %v6015 = vld [vmem:[#allocation5 + $0x2a0] sm:$0xff]
        %v6016 = vld [vmem:[#allocation5 + $0x2a8] sm:$0xff]
        %v6017 = vld [vmem:[#allocation5 + $0x2b0] sm:$0xff]
        %v6018 = vld [vmem:[#allocation5 + $0x2b8] sm:$0xff]
        %v6019 = vld [vmem:[#allocation5 + $0x2c0] sm:$0xff]
        %v6020 = vld [vmem:[#allocation5 + $0x2c8] sm:$0xff]
        %v6021 = vld [vmem:[#allocation5 + $0x2d0] sm:$0xff]
        %v6022 = vld [vmem:[#allocation5 + $0x2d8] sm:$0xff]
        %v6023 = vld [vmem:[#allocation5 + $0x2e0] sm:$0xff]
        %v6024 = vld [vmem:[#allocation5 + $0x2e8] sm:$0xff]
        %v6025 = vld [vmem:[#allocation5 + $0x2f0] sm:$0xff]
        %v6026 = vld [vmem:[#allocation5 + $0x2f8] sm:$0xff]
        %v6027 = vld [vmem:[#allocation5 + $0x300] sm:$0xff]
        %v6028 = vld [vmem:[#allocation5 + $0x308] sm:$0xff]
        %v6029 = vld [vmem:[#allocation5 + $0x310] sm:$0xff]
        %v6030 = vld [vmem:[#allocation5 + $0x318] sm:$0xff]
        %v6031 = vld [vmem:[#allocation5 + $0x320] sm:$0xff]
        %v6032 = vld [vmem:[#allocation5 + $0x328] sm:$0xff]
        %v6033 = vld [vmem:[#allocation5 + $0x330] sm:$0xff]
        %v6034 = vld [vmem:[#allocation5 + $0x338] sm:$0xff]
        %v6035 = vld [vmem:[#allocation5 + $0x340] sm:$0xff]
        %v6036 = vld [vmem:[#allocation5 + $0x348] sm:$0xff]
        %v6037 = vld [vmem:[#allocation5 + $0x350] sm:$0xff]
        %v6038 = vld [vmem:[#allocation5 + $0x358] sm:$0xff]
        %v6039 = vld [vmem:[#allocation5 + $0x360] sm:$0xff]
        %v6040 = vld [vmem:[#allocation5 + $0x368] sm:$0xff]
        %v6041 = vld [vmem:[#allocation5 + $0x370] sm:$0xff]
        %v6042 = vld [vmem:[#allocation5 + $0x378] sm:$0xff]
        %v6043 = vld [vmem:[#allocation5 + $0x380] sm:$0xff]
        %v6044 = vld [vmem:[#allocation5 + $0x388] sm:$0xff]
        %v6045 = vld [vmem:[#allocation5 + $0x390] sm:$0xff]
        %v6046 = vld [vmem:[#allocation5 + $0x398] sm:$0xff]
        %v6047 = vld [vmem:[#allocation5 + $0x3a0] sm:$0xff]
        %v6048 = vld [vmem:[#allocation5 + $0x3a8] sm:$0xff]
        %v6049 = vld [vmem:[#allocation5 + $0x3b0] sm:$0xff]
        %v6050 = vld [vmem:[#allocation5 + $0x3b8] sm:$0xff]
        %v6051 = vld [vmem:[#allocation5 + $0x3c0] sm:$0xff]
        %v6052 = vld [vmem:[#allocation5 + $0x3c8] sm:$0xff]
        %v6053 = vld [vmem:[#allocation5 + $0x3d0] sm:$0xff]
        %v6054 = vld [vmem:[#allocation5 + $0x3d8] sm:$0xff]
        %v6055 = vld [vmem:[#allocation5 + $0x3e0] sm:$0xff]
        %v6056 = vld [vmem:[#allocation5 + $0x3e8] sm:$0xff]
        %v6057 = vld [vmem:[#allocation5 + $0x3f0] sm:$0xff]
        %v6058 = vld [vmem:[#allocation5 + $0x3f8] sm:$0xff]
        %v6059 = vld [vmem:[#allocation5 + $0x400] sm:$0xff]
        %v6060 = vld [vmem:[#allocation5 + $0x408] sm:$0xff]
        %v6061 = vld [vmem:[#allocation5 + $0x410] sm:$0xff]
        %v6062 = vld [vmem:[#allocation5 + $0x418] sm:$0xff]
        %v6063 = vld [vmem:[#allocation5 + $0x420] sm:$0xff]
        %v6064 = vld [vmem:[#allocation5 + $0x428] sm:$0xff]
        %v6065 = vld [vmem:[#allocation5 + $0x430] sm:$0xff]
        %v6066 = vld [vmem:[#allocation5 + $0x438] sm:$0xff]
        %v6067 = vld [vmem:[#allocation5 + $0x440] sm:$0xff]
        %v6068 = vld [vmem:[#allocation5 + $0x448] sm:$0xff]
        %v6069 = vld [vmem:[#allocation5 + $0x450] sm:$0xff]
        %v6070 = vld [vmem:[#allocation5 + $0x458] sm:$0xff]
        %v6071 = vld [vmem:[#allocation5 + $0x460] sm:$0xff]
        %v6072 = vld [vmem:[#allocation5 + $0x468] sm:$0xff]
        %v6073 = vld [vmem:[#allocation5 + $0x470] sm:$0xff]
        %v6074 = vld [vmem:[#allocation5 + $0x478] sm:$0xff]
        %v6075 = vld [vmem:[#allocation5 + $0x480] sm:$0xff]
        %v6076 = vld [vmem:[#allocation5 + $0x488] sm:$0xff]
        %v6077 = vld [vmem:[#allocation5 + $0x490] sm:$0xff]
        %v6078 = vld [vmem:[#allocation5 + $0x498] sm:$0xff]
        %v6079 = vld [vmem:[#allocation5 + $0x4a0] sm:$0xff]
        %v6080 = vld [vmem:[#allocation5 + $0x4a8] sm:$0xff]
        %v6081 = vld [vmem:[#allocation5 + $0x4b0] sm:$0xff]
        %v6082 = vld [vmem:[#allocation5 + $0x4b8] sm:$0xff]
        %v6083 = vld [vmem:[#allocation5 + $0x4c0] sm:$0xff]
        %v6084 = vld [vmem:[#allocation5 + $0x4c8] sm:$0xff]
        %v6085 = vld [vmem:[#allocation5 + $0x4d0] sm:$0xff]
        %v6086 = vld [vmem:[#allocation5 + $0x4d8] sm:$0xff]
        %v6087 = vld [vmem:[#allocation5 + $0x4e0] sm:$0xff]
        %v6088 = vld [vmem:[#allocation5 + $0x4e8] sm:$0xff]
        %v6089 = vld [vmem:[#allocation5 + $0x4f0] sm:$0xff]
        %v6090 = vld [vmem:[#allocation5 + $0x4f8] sm:$0xff]
        %v6091 = vld [vmem:[#allocation5 + $0x500] sm:$0xff]
        %v6092 = vld [vmem:[#allocation5 + $0x508] sm:$0xff]
        %v6093 = vld [vmem:[#allocation5 + $0x510] sm:$0xff]
        %v6094 = vld [vmem:[#allocation5 + $0x518] sm:$0xff]
        %v6095 = vld [vmem:[#allocation5 + $0x520] sm:$0xff]
        %v6096 = vld [vmem:[#allocation5 + $0x528] sm:$0xff]
        %v6097 = vld [vmem:[#allocation5 + $0x530] sm:$0xff]
        %v6098 = vld [vmem:[#allocation5 + $0x538] sm:$0xff]
        %v6099 = vld [vmem:[#allocation5 + $0x540] sm:$0xff]
        %v6100 = vld [vmem:[#allocation5 + $0x548] sm:$0xff]
        %v6101 = vld [vmem:[#allocation5 + $0x550] sm:$0xff]
        %v6102 = vld [vmem:[#allocation5 + $0x558] sm:$0xff]
        %v6103 = vld [vmem:[#allocation5 + $0x560] sm:$0xff]
        %v6104 = vld [vmem:[#allocation5 + $0x568] sm:$0xff]
        %v6105 = vld [vmem:[#allocation5 + $0x570] sm:$0xff]
        %v6106 = vld [vmem:[#allocation5 + $0x578] sm:$0xff]
        %v6107 = vld [vmem:[#allocation5 + $0x580] sm:$0xff]
        %v6108 = vld [vmem:[#allocation5 + $0x588] sm:$0xff]
        %v6109 = vld [vmem:[#allocation5 + $0x590] sm:$0xff]
        %v6110 = vld [vmem:[#allocation5 + $0x598] sm:$0xff]
        %v6111 = vld [vmem:[#allocation5 + $0x5a0] sm:$0xff]
        %v6112 = vld [vmem:[#allocation5 + $0x5a8] sm:$0xff]
        %v6113 = vld [vmem:[#allocation5 + $0x5b0] sm:$0xff]
        %v6114 = vld [vmem:[#allocation5 + $0x5b8] sm:$0xff]
        %v6115 = vld [vmem:[#allocation5 + $0x5c0] sm:$0xff]
        %v6116 = vld [vmem:[#allocation5 + $0x5c8] sm:$0xff]
        %v6117 = vld [vmem:[#allocation5 + $0x5d0] sm:$0xff]
        %v6118 = vld [vmem:[#allocation5 + $0x5d8] sm:$0xff]
        %v6119 = vld [vmem:[#allocation5 + $0x5e0] sm:$0xff]
        %v6120 = vld [vmem:[#allocation5 + $0x5e8] sm:$0xff]
        %v6121 = vld [vmem:[#allocation5 + $0x5f0] sm:$0xff]
        %v6122 = vld [vmem:[#allocation5 + $0x5f8] sm:$0xff]
        %v6123 = vld [vmem:[#allocation5 + $0x600] sm:$0xff]
        %v6124 = vld [vmem:[#allocation5 + $0x608] sm:$0xff]
        %v6125 = vld [vmem:[#allocation5 + $0x610] sm:$0xff]
        %v6126 = vld [vmem:[#allocation5 + $0x618] sm:$0xff]
        %v6127 = vld [vmem:[#allocation5 + $0x620] sm:$0xff]
        %v6128 = vld [vmem:[#allocation5 + $0x628] sm:$0xff]
        %v6129 = vld [vmem:[#allocation5 + $0x630] sm:$0xff]
        %v6130 = vld [vmem:[#allocation5 + $0x638] sm:$0xff]
        %v6131 = vld [vmem:[#allocation5 + $0x640] sm:$0xff]
        %v6132 = vld [vmem:[#allocation5 + $0x648] sm:$0xff]
        %v6133 = vld [vmem:[#allocation5 + $0x650] sm:$0xff]
        %v6134 = vld [vmem:[#allocation5 + $0x658] sm:$0xff]
        %v6135 = vld [vmem:[#allocation5 + $0x660] sm:$0xff]
        %v6136 = vld [vmem:[#allocation5 + $0x668] sm:$0xff]
        %v6137 = vld [vmem:[#allocation5 + $0x670] sm:$0xff]
        %v6138 = vld [vmem:[#allocation5 + $0x678] sm:$0xff]
        %v6139 = vld [vmem:[#allocation5 + $0x680] sm:$0xff]
        %v6140 = vld [vmem:[#allocation5 + $0x688] sm:$0xff]
        %v6141 = vld [vmem:[#allocation5 + $0x690] sm:$0xff]
        %v6142 = vld [vmem:[#allocation5 + $0x698] sm:$0xff]
        %v6143 = vld [vmem:[#allocation5 + $0x6a0] sm:$0xff]
        %v6144 = vld [vmem:[#allocation5 + $0x6a8] sm:$0xff]
        %v6145 = vld [vmem:[#allocation5 + $0x6b0] sm:$0xff]
        %v6146 = vld [vmem:[#allocation5 + $0x6b8] sm:$0xff]
        %v6147 = vld [vmem:[#allocation5 + $0x6c0] sm:$0xff]
        %v6148 = vld [vmem:[#allocation5 + $0x6c8] sm:$0xff]
        %v6149 = vld [vmem:[#allocation5 + $0x6d0] sm:$0xff]
        %v6150 = vld [vmem:[#allocation5 + $0x6d8] sm:$0xff]
        %v6151 = vld [vmem:[#allocation5 + $0x6e0] sm:$0xff]
        %v6152 = vld [vmem:[#allocation5 + $0x6e8] sm:$0xff]
        %v6153 = vld [vmem:[#allocation5 + $0x6f0] sm:$0xff]
        %v6154 = vld [vmem:[#allocation5 + $0x6f8] sm:$0xff]
        %v6155 = vld [vmem:[#allocation5 + $0x700] sm:$0xff]
        %v6156 = vld [vmem:[#allocation5 + $0x708] sm:$0xff]
        %v6157 = vld [vmem:[#allocation5 + $0x710] sm:$0xff]
        %v6158 = vld [vmem:[#allocation5 + $0x718] sm:$0xff]
        %v6159 = vld [vmem:[#allocation5 + $0x720] sm:$0xff]
        %v6160 = vld [vmem:[#allocation5 + $0x728] sm:$0xff]
        %v6161 = vld [vmem:[#allocation5 + $0x730] sm:$0xff]
        %v6162 = vld [vmem:[#allocation5 + $0x738] sm:$0xff]
        %v6163 = vld [vmem:[#allocation5 + $0x740] sm:$0xff]
        %v6164 = vld [vmem:[#allocation5 + $0x748] sm:$0xff]
        %v6165 = vld [vmem:[#allocation5 + $0x750] sm:$0xff]
        %v6166 = vld [vmem:[#allocation5 + $0x758] sm:$0xff]
        %v6167 = vld [vmem:[#allocation5 + $0x760] sm:$0xff]
        %v6168 = vld [vmem:[#allocation5 + $0x768] sm:$0xff]
        %v6169 = vld [vmem:[#allocation5 + $0x770] sm:$0xff]
        %v6170 = vld [vmem:[#allocation5 + $0x778] sm:$0xff]
        %v6171 = vld [vmem:[#allocation5 + $0x780] sm:$0xff]
        %v6172 = vld [vmem:[#allocation5 + $0x788] sm:$0xff]
        %v6173 = vld [vmem:[#allocation5 + $0x790] sm:$0xff]
        %v6174 = vld [vmem:[#allocation5 + $0x798] sm:$0xff]
        %v6175 = vld [vmem:[#allocation5 + $0x7a0] sm:$0xff]
        %v6176 = vld [vmem:[#allocation5 + $0x7a8] sm:$0xff]
        %v6177 = vld [vmem:[#allocation5 + $0x7b0] sm:$0xff]
        %v6178 = vld [vmem:[#allocation5 + $0x7b8] sm:$0xff]
        %v6179 = vld [vmem:[#allocation5 + $0x7c0] sm:$0xff]
        %v6180 = vld [vmem:[#allocation5 + $0x7c8] sm:$0xff]
        %v6181 = vld [vmem:[#allocation5 + $0x7d0] sm:$0xff]
        %v6182 = vld [vmem:[#allocation5 + $0x7d8] sm:$0xff]
        %v6183 = vld [vmem:[#allocation5 + $0x7e0] sm:$0xff]
        %v6184 = vld [vmem:[#allocation5 + $0x7e8] sm:$0xff]
        %v6185 = vld [vmem:[#allocation5 + $0x7f0] sm:$0xff]
        %v6186 = vld [vmem:[#allocation5 + $0x7f8] sm:$0xff]
        %v6187 = vld [vmem:[#allocation5 + $0x800] sm:$0xff]
        %v6188 = vld [vmem:[#allocation5 + $0x808] sm:$0xff]
        %v6189 = vld [vmem:[#allocation5 + $0x810] sm:$0xff]
        %v6190 = vld [vmem:[#allocation5 + $0x818] sm:$0xff]
        %v6191 = vld [vmem:[#allocation5 + $0x820] sm:$0xff]
        %v6192 = vld [vmem:[#allocation5 + $0x828] sm:$0xff]
        %v6193 = vld [vmem:[#allocation5 + $0x830] sm:$0xff]
        %v6194 = vld [vmem:[#allocation5 + $0x838] sm:$0xff]
        %v6195 = vld [vmem:[#allocation5 + $0x840] sm:$0xff]
        %v6196 = vld [vmem:[#allocation5 + $0x848] sm:$0xff]
        %v6197 = vld [vmem:[#allocation5 + $0x850] sm:$0xff]
        %v6198 = vld [vmem:[#allocation5 + $0x858] sm:$0xff]
        %v6199 = vld [vmem:[#allocation5 + $0x860] sm:$0xff]
        %v6200 = vld [vmem:[#allocation5 + $0x868] sm:$0xff]
        %v6201 = vld [vmem:[#allocation5 + $0x870] sm:$0xff]
        %v6202 = vld [vmem:[#allocation5 + $0x878] sm:$0xff]
        %v6203 = vld [vmem:[#allocation5 + $0x880] sm:$0xff]
        %v6204 = vld [vmem:[#allocation5 + $0x888] sm:$0xff]
        %v6205 = vld [vmem:[#allocation5 + $0x890] sm:$0xff]
        %v6206 = vld [vmem:[#allocation5 + $0x898] sm:$0xff]
        %v6207 = vld [vmem:[#allocation5 + $0x8a0] sm:$0xff]
        %v6208 = vld [vmem:[#allocation5 + $0x8a8] sm:$0xff]
        %v6209 = vld [vmem:[#allocation5 + $0x8b0] sm:$0xff]
        %v6210 = vld [vmem:[#allocation5 + $0x8b8] sm:$0xff]
        %v6211 = vld [vmem:[#allocation5 + $0x8c0] sm:$0xff]
        %v6212 = vld [vmem:[#allocation5 + $0x8c8] sm:$0xff]
        %v6213 = vld [vmem:[#allocation5 + $0x8d0] sm:$0xff]
        %v6214 = vld [vmem:[#allocation5 + $0x8d8] sm:$0xff]
        %v6215 = vld [vmem:[#allocation5 + $0x8e0] sm:$0xff]
        %v6216 = vld [vmem:[#allocation5 + $0x8e8] sm:$0xff]
        %v6217 = vld [vmem:[#allocation5 + $0x8f0] sm:$0xff]
        %v6218 = vld [vmem:[#allocation5 + $0x8f8] sm:$0xff]
        %v6219 = vld [vmem:[#allocation5 + $0x900] sm:$0xff]
        %v6220 = vld [vmem:[#allocation5 + $0x908] sm:$0xff]
        %v6221 = vld [vmem:[#allocation5 + $0x910] sm:$0xff]
        %v6222 = vld [vmem:[#allocation5 + $0x918] sm:$0xff]
        %v6223 = vld [vmem:[#allocation5 + $0x920] sm:$0xff]
        %v6224 = vld [vmem:[#allocation5 + $0x928] sm:$0xff]
        %v6225 = vld [vmem:[#allocation5 + $0x930] sm:$0xff]
        %v6226 = vld [vmem:[#allocation5 + $0x938] sm:$0xff]
        %v6227 = vld [vmem:[#allocation5 + $0x940] sm:$0xff]
        %v6228 = vld [vmem:[#allocation5 + $0x948] sm:$0xff]
        %v6229 = vld [vmem:[#allocation5 + $0x950] sm:$0xff]
        %v6230 = vld [vmem:[#allocation5 + $0x958] sm:$0xff]
        %v6231 = vld [vmem:[#allocation5 + $0x960] sm:$0xff]
        %v6232 = vld [vmem:[#allocation5 + $0x968] sm:$0xff]
        %v6233 = vld [vmem:[#allocation5 + $0x970] sm:$0xff]
        %v6234 = vld [vmem:[#allocation5 + $0x978] sm:$0xff]
        %v6235 = vld [vmem:[#allocation5 + $0x980] sm:$0xff]
        %v6236 = vld [vmem:[#allocation5 + $0x988] sm:$0xff]
        %v6237 = vld [vmem:[#allocation5 + $0x990] sm:$0xff]
        %v6238 = vld [vmem:[#allocation5 + $0x998] sm:$0xff]
        %v6239 = vld [vmem:[#allocation5 + $0x9a0] sm:$0xff]
        %v6240 = vld [vmem:[#allocation5 + $0x9a8] sm:$0xff]
        %v6241 = vld [vmem:[#allocation5 + $0x9b0] sm:$0xff]
        %v6242 = vld [vmem:[#allocation5 + $0x9b8] sm:$0xff]
        %v6243 = vld [vmem:[#allocation5 + $0x9c0] sm:$0xff]
        %v6244 = vld [vmem:[#allocation5 + $0x9c8] sm:$0xff]
        %v6245 = vld [vmem:[#allocation5 + $0x9d0] sm:$0xff]
        %v6246 = vld [vmem:[#allocation5 + $0x9d8] sm:$0xff]
        %v6247 = vld [vmem:[#allocation5 + $0x9e0] sm:$0xff]
        %v6248 = vld [vmem:[#allocation5 + $0x9e8] sm:$0xff]
        %v6249 = vld [vmem:[#allocation5 + $0x9f0] sm:$0xff]
        %v6250 = vld [vmem:[#allocation5 + $0x9f8] sm:$0xff]
        %v6251 = vld [vmem:[#allocation5 + $0xa00] sm:$0xff]
        %v6252 = vld [vmem:[#allocation5 + $0xa08] sm:$0xff]
        %v6253 = vld [vmem:[#allocation5 + $0xa10] sm:$0xff]
        %v6254 = vld [vmem:[#allocation5 + $0xa18] sm:$0xff]
        %v6255 = vld [vmem:[#allocation5 + $0xa20] sm:$0xff]
        %v6256 = vld [vmem:[#allocation5 + $0xa28] sm:$0xff]
        %v6257 = vld [vmem:[#allocation5 + $0xa30] sm:$0xff]
        %v6258 = vld [vmem:[#allocation5 + $0xa38] sm:$0xff]
        %v6259 = vld [vmem:[#allocation5 + $0xa40] sm:$0xff]
        %v6260 = vld [vmem:[#allocation5 + $0xa48] sm:$0xff]
        %v6261 = vld [vmem:[#allocation5 + $0xa50] sm:$0xff]
        %v6262 = vld [vmem:[#allocation5 + $0xa58] sm:$0xff]
        %v6263 = vld [vmem:[#allocation5 + $0xa60] sm:$0xff]
        %v6264 = vld [vmem:[#allocation5 + $0xa68] sm:$0xff]
        %v6265 = vld [vmem:[#allocation5 + $0xa70] sm:$0xff]
        %v6266 = vld [vmem:[#allocation5 + $0xa78] sm:$0xff]
        %v6267 = vld [vmem:[#allocation5 + $0xa80] sm:$0xff]
        %v6268 = vld [vmem:[#allocation5 + $0xa88] sm:$0xff]
        %v6269 = vld [vmem:[#allocation5 + $0xa90] sm:$0xff]
        %v6270 = vld [vmem:[#allocation5 + $0xa98] sm:$0xff]
        %v6271 = vld [vmem:[#allocation5 + $0xaa0] sm:$0xff]
        %v6272 = vld [vmem:[#allocation5 + $0xaa8] sm:$0xff]
        %v6273 = vld [vmem:[#allocation5 + $0xab0] sm:$0xff]
        %v6274 = vld [vmem:[#allocation5 + $0xab8] sm:$0xff]
        %v6275 = vld [vmem:[#allocation5 + $0xac0] sm:$0xff]
        %v6276 = vld [vmem:[#allocation5 + $0xac8] sm:$0xff]
        %v6277 = vld [vmem:[#allocation5 + $0xad0] sm:$0xff]
        %v6278 = vld [vmem:[#allocation5 + $0xad8] sm:$0xff]
        %v6279 = vld [vmem:[#allocation5 + $0xae0] sm:$0xff]
        %v6280 = vld [vmem:[#allocation5 + $0xae8] sm:$0xff]
        %vm6281 = vcmask 130048
        %v6283 = vsel %vm6281, %v5926, 0
        %v6286 = vsel %vm6281, %v5930, 0
        %6288 = vmatprep.subr.mxu0 %v6037
        %6289 = vmatpush1.msra.mxu0 %v6036
        %6290 = vmatprep.subr.mxu0 %v6030
        %6291 = vmatpush1.msra.mxu0 %v6029
        %6292 = vmatprep.subr.mxu0 %v6023
        %6293 = vmatpush1.msra.mxu0 %v6022
        %6294 = vmatprep.subr.mxu0 %v6016
        %6295 = vmatpush1.msra.mxu0 %v6015
        %6296 = vmatprep.subr.mxu0 %v6009
        %6297 = vmatpush1.msra.mxu0 %v6008
        %6298 = vmatprep.subr.mxu0 %v6002
        %6299 = vmatpush1.msra.mxu0 %v6001
        %6300 = vmatprep.subr.mxu0 %v5995
        %6301 = vmatpush1.msra.mxu0 %v5994
        %6302 = vmatprep.subr.mxu0 %v5988
        %6303 = vmatpush1.msra.mxu0 %v5987
        %6304 = vmatprep.subr.mxu0 %v5981
        %6305 = vmatpush1.msra.mxu0 %v5980
        %6306 = vmatprep.subr.mxu0 %v5974
        %6307 = vmatpush1.msra.mxu0 %v5973
        %6308 = vmatprep.subr.mxu0 %v5967
        %6309 = vmatpush1.msra.mxu0 %v5966
        %6310 = vmatprep.subr.mxu0 %v5960
        %6311 = vmatpush1.msra.mxu0 %v5959
        %6312 = vmatprep.subr.mxu0 %v5953
        %6313 = vmatpush1.msra.mxu0 %v5952
        %6314 = vmatprep.subr.mxu0 %v5946
        %6315 = vmatpush1.msra.mxu0 %v5945
        %6316 = vmatprep.subr.mxu0 %v5939
        %6317 = vmatpush1.msra.mxu0 %v5938
        %6318 = vmatprep.subr.mxu0 %v5932
        %6319 = vmatpush1.msra.mxu0 %v5931
        %6320 = vmatprep.subr.mxu0 %v6149
        %6321 = vmatpush2.msra.mxu0 %v6148
        %6322 = vmatprep.subr.mxu0 %v6142
        %6323 = vmatpush2.msra.mxu0 %v6141
        %6324 = vmatprep.subr.mxu0 %v6135
        %6325 = vmatpush2.msra.mxu0 %v6134
        %6326 = vmatprep.subr.mxu0 %v6128
        %6327 = vmatpush2.msra.mxu0 %v6127
        %6328 = vmatprep.subr.mxu0 %v6121
        %6329 = vmatpush2.msra.mxu0 %v6120
        %6330 = vmatprep.subr.mxu0 %v6114
        %6331 = vmatpush2.msra.mxu0 %v6113
        %6332 = vmatprep.subr.mxu0 %v6107
        %6333 = vmatpush2.msra.mxu0 %v6106
        %6334 = vmatprep.subr.mxu0 %v6100
        %6335 = vmatpush2.msra.mxu0 %v6099
        %6336 = vmatprep.subr.mxu0 %v6093
        %6337 = vmatpush2.msra.mxu0 %v6092
        %6338 = vmatprep.subr.mxu0 %v6086
        %6339 = vmatpush2.msra.mxu0 %v6085
        %6340 = vmatprep.subr.mxu0 %v6079
        %6341 = vmatpush2.msra.mxu0 %v6078
        %6342 = vmatprep.subr.mxu0 %v6072
        %6343 = vmatpush2.msra.mxu0 %v6071
        %6344 = vmatprep.subr.mxu0 %v6065
        %6345 = vmatpush2.msra.mxu0 %v6064
        %6346 = vmatprep.subr.mxu0 %v6058
        %6347 = vmatpush2.msra.mxu0 %v6057
        %6348 = vmatprep.subr.mxu0 %v6051
        %6349 = vmatpush2.msra.mxu0 %v6050
        %6350 = vmatprep.subr.mxu0 %v6044
        %6351 = vmatpush2.msra.mxu0 %v6043
        %6352 = vmatprep.mubr.f32.mxu0 %v5924
        %6353 = vmatmul.mubr.f32.gmra.mxu0 %v5923
        %v6354 = vpop.f32.mrf.mxu0
        %v6355 = vadd.f32 0.0, %v6354
        %v6356 = vpop.f32.mrf.mxu0
        %v6357 = vadd.f32 0.0, %v6356
        %6358 = vmatprep.mubr.f32.mxu0 %v5928
        %6359 = vmatmul.mubr.f32.gmra.mxu0 %v5927
        %v6360 = vpop.f32.mrf.mxu0
        %v6361 = vadd.f32 0.0, %v6360
        %v6362 = vpop.f32.mrf.mxu0
        %v6363 = vadd.f32 0.0, %v6362
        %6364 = vdwg.mxu0
        %6365 = vmatprep.subr.mxu0 %v6261
        %6366 = vmatpush1.msra.mxu0 %v6260
        %6367 = vmatprep.subr.mxu0 %v6254
        %6368 = vmatpush1.msra.mxu0 %v6253
        %6369 = vmatprep.subr.mxu0 %v6247
        %6370 = vmatpush1.msra.mxu0 %v6246
        %6371 = vmatprep.subr.mxu0 %v6240
        %6372 = vmatpush1.msra.mxu0 %v6239
        %6373 = vmatprep.subr.mxu0 %v6233
        %6374 = vmatpush1.msra.mxu0 %v6232
        %6375 = vmatprep.subr.mxu0 %v6226
        %6376 = vmatpush1.msra.mxu0 %v6225
        %6377 = vmatprep.subr.mxu0 %v6219
        %6378 = vmatpush1.msra.mxu0 %v6218
        %6379 = vmatprep.subr.mxu0 %v6212
        %6380 = vmatpush1.msra.mxu0 %v6211
        %6381 = vmatprep.subr.mxu0 %v6205
        %6382 = vmatpush1.msra.mxu0 %v6204
        %6383 = vmatprep.subr.mxu0 %v6198
        %6384 = vmatpush1.msra.mxu0 %v6197
        %6385 = vmatprep.subr.mxu0 %v6191
        %6386 = vmatpush1.msra.mxu0 %v6190
        %6387 = vmatprep.subr.mxu0 %v6184
        %6388 = vmatpush1.msra.mxu0 %v6183
        %6389 = vmatprep.subr.mxu0 %v6177
        %6390 = vmatpush1.msra.mxu0 %v6176
        %6391 = vmatprep.subr.mxu0 %v6170
        %6392 = vmatpush1.msra.mxu0 %v6169
        %6393 = vmatprep.subr.mxu0 %v6163
        %6394 = vmatpush1.msra.mxu0 %v6162
        %6395 = vmatprep.subr.mxu0 %v6156
        %6396 = vmatpush1.msra.mxu0 %v6155
        %6397 = vmatprep.subr.mxu0 0.0
        %6398 = vmatpush2.msra.mxu0 0.0
        %6399 = vmatprep.subr.mxu0 0.0
        %6400 = vmatpush2.msra.mxu0 0.0
        %6401 = vmatprep.subr.mxu0 0.0
        %6402 = vmatpush2.msra.mxu0 0.0
        %6403 = vmatprep.subr.mxu0 0.0
        %6404 = vmatpush2.msra.mxu0 0.0
        %6405 = vmatprep.subr.mxu0 0.0
        %6406 = vmatpush2.msra.mxu0 0.0
        %6407 = vmatprep.subr.mxu0 0.0
        %6408 = vmatpush2.msra.mxu0 0.0
        %6409 = vmatprep.subr.mxu0 0.0
        %6410 = vmatpush2.msra.mxu0 0.0
        %6411 = vmatprep.subr.mxu0 0.0
        %6412 = vmatpush2.msra.mxu0 0.0
        %6413 = vmatprep.subr.mxu0 0.0
        %6414 = vmatpush2.msra.mxu0 0.0
        %6415 = vmatprep.subr.mxu0 0.0
        %6416 = vmatpush2.msra.mxu0 0.0
        %6417 = vmatprep.subr.mxu0 0.0
        %6418 = vmatpush2.msra.mxu0 0.0
        %6419 = vmatprep.subr.mxu0 0.0
        %6420 = vmatpush2.msra.mxu0 0.0
        %6421 = vmatprep.subr.mxu0 0.0
        %6422 = vmatpush2.msra.mxu0 0.0
        %6423 = vmatprep.subr.mxu0 0.0
        %6424 = vmatpush2.msra.mxu0 0.0
        %6425 = vmatprep.subr.mxu0 %v6275
        %6426 = vmatpush2.msra.mxu0 %v6274
        %6427 = vmatprep.subr.mxu0 %v6268
        %6428 = vmatpush2.msra.mxu0 %v6267
        %6429 = vmatprep.mubr.f32.mxu0 %v6283
        %6430 = vmatmul.mubr.f32.gmra.mxu0 %v5925
        %v6431 = vpop.f32.mrf.mxu0
        %v6432 = vadd.f32 %v6355, %v6431
        %v6433 = vpop.f32.mrf.mxu0
        %v6434 = vadd.f32 %v6357, %v6433
        %6435 = vmatprep.mubr.f32.mxu0 %v6286
        %6436 = vmatmul.mubr.f32.gmra.mxu0 %v5929
        %v6437 = vpop.f32.mrf.mxu0
        %v6438 = vadd.f32 %v6361, %v6437
        %v6439 = vpop.f32.mrf.mxu0
        %v6440 = vadd.f32 %v6363, %v6439
        %6441 = vdwg.mxu0
        %6442 = vmatprep.subr.mxu0 %v6039
        %6443 = vmatpush1.msra.mxu0 %v6038
        %6444 = vmatprep.subr.mxu0 %v6032
        %6445 = vmatpush1.msra.mxu0 %v6031
        %6446 = vmatprep.subr.mxu0 %v6025
        %6447 = vmatpush1.msra.mxu0 %v6024
        %6448 = vmatprep.subr.mxu0 %v6018
        %6449 = vmatpush1.msra.mxu0 %v6017
        %6450 = vmatprep.subr.mxu0 %v6011
        %6451 = vmatpush1.msra.mxu0 %v6010
        %6452 = vmatprep.subr.mxu0 %v6004
        %6453 = vmatpush1.msra.mxu0 %v6003
        %6454 = vmatprep.subr.mxu0 %v5997
        %6455 = vmatpush1.msra.mxu0 %v5996
        %6456 = vmatprep.subr.mxu0 %v5990
        %6457 = vmatpush1.msra.mxu0 %v5989
        %6458 = vmatprep.subr.mxu0 %v5983
        %6459 = vmatpush1.msra.mxu0 %v5982
        %6460 = vmatprep.subr.mxu0 %v5976
        %6461 = vmatpush1.msra.mxu0 %v5975
        %6462 = vmatprep.subr.mxu0 %v5969
        %6463 = vmatpush1.msra.mxu0 %v5968
        %6464 = vmatprep.subr.mxu0 %v5962
        %6465 = vmatpush1.msra.mxu0 %v5961
        %6466 = vmatprep.subr.mxu0 %v5955
        %6467 = vmatpush1.msra.mxu0 %v5954
        %6468 = vmatprep.subr.mxu0 %v5948
        %6469 = vmatpush1.msra.mxu0 %v5947
        %6470 = vmatprep.subr.mxu0 %v5941
        %6471 = vmatpush1.msra.mxu0 %v5940
        %6472 = vmatprep.subr.mxu0 %v5934
        %6473 = vmatpush1.msra.mxu0 %v5933
        %6474 = vmatprep.subr.mxu0 %v6151
        %6475 = vmatpush2.msra.mxu0 %v6150
        %6476 = vmatprep.subr.mxu0 %v6144
        %6477 = vmatpush2.msra.mxu0 %v6143
        %6478 = vmatprep.subr.mxu0 %v6137
        %6479 = vmatpush2.msra.mxu0 %v6136
        %6480 = vmatprep.subr.mxu0 %v6130
        %6481 = vmatpush2.msra.mxu0 %v6129
        %6482 = vmatprep.subr.mxu0 %v6123
        %6483 = vmatpush2.msra.mxu0 %v6122
        %6484 = vmatprep.subr.mxu0 %v6116
        %6485 = vmatpush2.msra.mxu0 %v6115
        %6486 = vmatprep.subr.mxu0 %v6109
        %6487 = vmatpush2.msra.mxu0 %v6108
        %6488 = vmatprep.subr.mxu0 %v6102
        %6489 = vmatpush2.msra.mxu0 %v6101
        %6490 = vmatprep.subr.mxu0 %v6095
        %6491 = vmatpush2.msra.mxu0 %v6094
        %6492 = vmatprep.subr.mxu0 %v6088
        %6493 = vmatpush2.msra.mxu0 %v6087
        %6494 = vmatprep.subr.mxu0 %v6081
        %6495 = vmatpush2.msra.mxu0 %v6080
        %6496 = vmatprep.subr.mxu0 %v6074
        %6497 = vmatpush2.msra.mxu0 %v6073
        %6498 = vmatprep.subr.mxu0 %v6067
        %6499 = vmatpush2.msra.mxu0 %v6066
        %6500 = vmatprep.subr.mxu0 %v6060
        %6501 = vmatpush2.msra.mxu0 %v6059
        %6502 = vmatprep.subr.mxu0 %v6053
        %6503 = vmatpush2.msra.mxu0 %v6052
        %6504 = vmatprep.subr.mxu0 %v6046
        %6505 = vmatpush2.msra.mxu0 %v6045
        %6506 = vmatprep.mubr.f32.mxu0 %v5924
        %6507 = vmatmul.mubr.f32.gmra.mxu0 %v5923
        %v6508 = vpop.f32.mrf.mxu0
        %v6509 = vadd.f32 0.0, %v6508
        %v6510 = vpop.f32.mrf.mxu0
        %v6511 = vadd.f32 0.0, %v6510
        %6512 = vmatprep.mubr.f32.mxu0 %v5928
        %6513 = vmatmul.mubr.f32.gmra.mxu0 %v5927
        %v6514 = vpop.f32.mrf.mxu0
        %v6515 = vadd.f32 0.0, %v6514
        %v6516 = vpop.f32.mrf.mxu0
        %v6517 = vadd.f32 0.0, %v6516
        %6518 = vdwg.mxu0
        %6519 = vmatprep.subr.mxu0 %v6263
        %6520 = vmatpush1.msra.mxu0 %v6262
        %6521 = vmatprep.subr.mxu0 %v6256
        %6522 = vmatpush1.msra.mxu0 %v6255
        %6523 = vmatprep.subr.mxu0 %v6249
        %6524 = vmatpush1.msra.mxu0 %v6248
        %6525 = vmatprep.subr.mxu0 %v6242
        %6526 = vmatpush1.msra.mxu0 %v6241
        %6527 = vmatprep.subr.mxu0 %v6235
        %6528 = vmatpush1.msra.mxu0 %v6234
        %6529 = vmatprep.subr.mxu0 %v6228
        %6530 = vmatpush1.msra.mxu0 %v6227
        %6531 = vmatprep.subr.mxu0 %v6221
        %6532 = vmatpush1.msra.mxu0 %v6220
        %6533 = vmatprep.subr.mxu0 %v6214
        %6534 = vmatpush1.msra.mxu0 %v6213
        %6535 = vmatprep.subr.mxu0 %v6207
        %6536 = vmatpush1.msra.mxu0 %v6206
        %6537 = vmatprep.subr.mxu0 %v6200
        %6538 = vmatpush1.msra.mxu0 %v6199
        %6539 = vmatprep.subr.mxu0 %v6193
        %6540 = vmatpush1.msra.mxu0 %v6192
        %6541 = vmatprep.subr.mxu0 %v6186
        %6542 = vmatpush1.msra.mxu0 %v6185
        %6543 = vmatprep.subr.mxu0 %v6179
        %6544 = vmatpush1.msra.mxu0 %v6178
        %6545 = vmatprep.subr.mxu0 %v6172
        %6546 = vmatpush1.msra.mxu0 %v6171
        %6547 = vmatprep.subr.mxu0 %v6165
        %6548 = vmatpush1.msra.mxu0 %v6164
        %6549 = vmatprep.subr.mxu0 %v6158
        %6550 = vmatpush1.msra.mxu0 %v6157
        %6551 = vmatprep.subr.mxu0 0.0
        %6552 = vmatpush2.msra.mxu0 0.0
        %6553 = vmatprep.subr.mxu0 0.0
        %6554 = vmatpush2.msra.mxu0 0.0
        %6555 = vmatprep.subr.mxu0 0.0
        %6556 = vmatpush2.msra.mxu0 0.0
        %6557 = vmatprep.subr.mxu0 0.0
        %6558 = vmatpush2.msra.mxu0 0.0
        %6559 = vmatprep.subr.mxu0 0.0
        %6560 = vmatpush2.msra.mxu0 0.0
        %6561 = vmatprep.subr.mxu0 0.0
        %6562 = vmatpush2.msra.mxu0 0.0
        %6563 = vmatprep.subr.mxu0 0.0
        %6564 = vmatpush2.msra.mxu0 0.0
        %6565 = vmatprep.subr.mxu0 0.0
        %6566 = vmatpush2.msra.mxu0 0.0
        %6567 = vmatprep.subr.mxu0 0.0
        %6568 = vmatpush2.msra.mxu0 0.0
        %6569 = vmatprep.subr.mxu0 0.0
        %6570 = vmatpush2.msra.mxu0 0.0
        %6571 = vmatprep.subr.mxu0 0.0
        %6572 = vmatpush2.msra.mxu0 0.0
        %6573 = vmatprep.subr.mxu0 0.0
        %6574 = vmatpush2.msra.mxu0 0.0
        %6575 = vmatprep.subr.mxu0 0.0
        %6576 = vmatpush2.msra.mxu0 0.0
        %6577 = vmatprep.subr.mxu0 0.0
        %6578 = vmatpush2.msra.mxu0 0.0
        %6579 = vmatprep.subr.mxu0 %v6277
        %6580 = vmatpush2.msra.mxu0 %v6276
        %6581 = vmatprep.subr.mxu0 %v6270
        %6582 = vmatpush2.msra.mxu0 %v6269
        %6583 = vmatprep.mubr.f32.mxu0 %v6283
        %6584 = vmatmul.mubr.f32.gmra.mxu0 %v5925
        %v6585 = vpop.f32.mrf.mxu0
        %v6586 = vadd.f32 %v6509, %v6585
        %v6587 = vpop.f32.mrf.mxu0
        %v6588 = vadd.f32 %v6511, %v6587
        %6589 = vmatprep.mubr.f32.mxu0 %v6286
        %6590 = vmatmul.mubr.f32.gmra.mxu0 %v5929
        %v6591 = vpop.f32.mrf.mxu0
        %v6592 = vadd.f32 %v6515, %v6591
        %v6593 = vpop.f32.mrf.mxu0
        %v6594 = vadd.f32 %v6517, %v6593
        %6595 = vdwg.mxu0
        %6596 = vmatprep.subr.mxu0 %v6041
        %6597 = vmatpush1.msra.mxu0 %v6040
        %6598 = vmatprep.subr.mxu0 %v6034
        %6599 = vmatpush1.msra.mxu0 %v6033
        %6600 = vmatprep.subr.mxu0 %v6027
        %6601 = vmatpush1.msra.mxu0 %v6026
        %6602 = vmatprep.subr.mxu0 %v6020
        %6603 = vmatpush1.msra.mxu0 %v6019
        %6604 = vmatprep.subr.mxu0 %v6013
        %6605 = vmatpush1.msra.mxu0 %v6012
        %6606 = vmatprep.subr.mxu0 %v6006
        %6607 = vmatpush1.msra.mxu0 %v6005
        %6608 = vmatprep.subr.mxu0 %v5999
        %6609 = vmatpush1.msra.mxu0 %v5998
        %6610 = vmatprep.subr.mxu0 %v5992
        %6611 = vmatpush1.msra.mxu0 %v5991
        %6612 = vmatprep.subr.mxu0 %v5985
        %6613 = vmatpush1.msra.mxu0 %v5984
        %6614 = vmatprep.subr.mxu0 %v5978
        %6615 = vmatpush1.msra.mxu0 %v5977
        %6616 = vmatprep.subr.mxu0 %v5971
        %6617 = vmatpush1.msra.mxu0 %v5970
        %6618 = vmatprep.subr.mxu0 %v5964
        %6619 = vmatpush1.msra.mxu0 %v5963
        %6620 = vmatprep.subr.mxu0 %v5957
        %6621 = vmatpush1.msra.mxu0 %v5956
        %6622 = vmatprep.subr.mxu0 %v5950
        %6623 = vmatpush1.msra.mxu0 %v5949
        %6624 = vmatprep.subr.mxu0 %v5943
        %6625 = vmatpush1.msra.mxu0 %v5942
        %6626 = vmatprep.subr.mxu0 %v5936
        %6627 = vmatpush1.msra.mxu0 %v5935
        %6628 = vmatprep.subr.mxu0 %v6153
        %6629 = vmatpush2.msra.mxu0 %v6152
        %6630 = vmatprep.subr.mxu0 %v6146
        %6631 = vmatpush2.msra.mxu0 %v6145
        %6632 = vmatprep.subr.mxu0 %v6139
        %6633 = vmatpush2.msra.mxu0 %v6138
        %6634 = vmatprep.subr.mxu0 %v6132
        %6635 = vmatpush2.msra.mxu0 %v6131
        %6636 = vmatprep.subr.mxu0 %v6125
        %6637 = vmatpush2.msra.mxu0 %v6124
        %6638 = vmatprep.subr.mxu0 %v6118
        %6639 = vmatpush2.msra.mxu0 %v6117
        %6640 = vmatprep.subr.mxu0 %v6111
        %6641 = vmatpush2.msra.mxu0 %v6110
        %6642 = vmatprep.subr.mxu0 %v6104
        %6643 = vmatpush2.msra.mxu0 %v6103
        %6644 = vmatprep.subr.mxu0 %v6097
        %6645 = vmatpush2.msra.mxu0 %v6096
        %6646 = vmatprep.subr.mxu0 %v6090
        %6647 = vmatpush2.msra.mxu0 %v6089
        %6648 = vmatprep.subr.mxu0 %v6083
        %6649 = vmatpush2.msra.mxu0 %v6082
        %6650 = vmatprep.subr.mxu0 %v6076
        %6651 = vmatpush2.msra.mxu0 %v6075
        %6652 = vmatprep.subr.mxu0 %v6069
        %6653 = vmatpush2.msra.mxu0 %v6068
        %6654 = vmatprep.subr.mxu0 %v6062
        %6655 = vmatpush2.msra.mxu0 %v6061
        %6656 = vmatprep.subr.mxu0 %v6055
        %6657 = vmatpush2.msra.mxu0 %v6054
        %6658 = vmatprep.subr.mxu0 %v6048
        %6659 = vmatpush2.msra.mxu0 %v6047
        %6660 = vmatprep.mubr.f32.mxu0 %v5924
        %6661 = vmatmul.mubr.f32.gmra.mxu0 %v5923
        %v6662 = vpop.f32.mrf.mxu0
        %v6663 = vadd.f32 0.0, %v6662
        %v6664 = vpop.f32.mrf.mxu0
        %v6665 = vadd.f32 0.0, %v6664
        %6666 = vmatprep.mubr.f32.mxu0 %v5928
        %6667 = vmatmul.mubr.f32.gmra.mxu0 %v5927
        %v6668 = vpop.f32.mrf.mxu0
        %v6669 = vadd.f32 0.0, %v6668
        %v6670 = vpop.f32.mrf.mxu0
        %v6671 = vadd.f32 0.0, %v6670
        %6672 = vdwg.mxu0
        %6673 = vmatprep.subr.mxu0 %v6265
        %6674 = vmatpush1.msra.mxu0 %v6264
        %6675 = vmatprep.subr.mxu0 %v6258
        %6676 = vmatpush1.msra.mxu0 %v6257
        %6677 = vmatprep.subr.mxu0 %v6251
        %6678 = vmatpush1.msra.mxu0 %v6250
        %6679 = vmatprep.subr.mxu0 %v6244
        %6680 = vmatpush1.msra.mxu0 %v6243
        %6681 = vmatprep.subr.mxu0 %v6237
        %6682 = vmatpush1.msra.mxu0 %v6236
        %6683 = vmatprep.subr.mxu0 %v6230
        %6684 = vmatpush1.msra.mxu0 %v6229
        %6685 = vmatprep.subr.mxu0 %v6223
        %6686 = vmatpush1.msra.mxu0 %v6222
        %6687 = vmatprep.subr.mxu0 %v6216
        %6688 = vmatpush1.msra.mxu0 %v6215
        %6689 = vmatprep.subr.mxu0 %v6209
        %6690 = vmatpush1.msra.mxu0 %v6208
        %6691 = vmatprep.subr.mxu0 %v6202
        %6692 = vmatpush1.msra.mxu0 %v6201
        %6693 = vmatprep.subr.mxu0 %v6195
        %6694 = vmatpush1.msra.mxu0 %v6194
        %6695 = vmatprep.subr.mxu0 %v6188
        %6696 = vmatpush1.msra.mxu0 %v6187
        %6697 = vmatprep.subr.mxu0 %v6181
        %6698 = vmatpush1.msra.mxu0 %v6180
        %6699 = vmatprep.subr.mxu0 %v6174
        %6700 = vmatpush1.msra.mxu0 %v6173
        %6701 = vmatprep.subr.mxu0 %v6167
        %6702 = vmatpush1.msra.mxu0 %v6166
        %6703 = vmatprep.subr.mxu0 %v6160
        %6704 = vmatpush1.msra.mxu0 %v6159
        %6705 = vmatprep.subr.mxu0 0.0
        %6706 = vmatpush2.msra.mxu0 0.0
        %6707 = vmatprep.subr.mxu0 0.0
        %6708 = vmatpush2.msra.mxu0 0.0
        %6709 = vmatprep.subr.mxu0 0.0
        %6710 = vmatpush2.msra.mxu0 0.0
        %6711 = vmatprep.subr.mxu0 0.0
        %6712 = vmatpush2.msra.mxu0 0.0
        %6713 = vmatprep.subr.mxu0 0.0
        %6714 = vmatpush2.msra.mxu0 0.0
        %6715 = vmatprep.subr.mxu0 0.0
        %6716 = vmatpush2.msra.mxu0 0.0
        %6717 = vmatprep.subr.mxu0 0.0
        %6718 = vmatpush2.msra.mxu0 0.0
        %6719 = vmatprep.subr.mxu0 0.0
        %6720 = vmatpush2.msra.mxu0 0.0
        %6721 = vmatprep.subr.mxu0 0.0
        %6722 = vmatpush2.msra.mxu0 0.0
        %6723 = vmatprep.subr.mxu0 0.0
        %6724 = vmatpush2.msra.mxu0 0.0
        %6725 = vmatprep.subr.mxu0 0.0
        %6726 = vmatpush2.msra.mxu0 0.0
        %6727 = vmatprep.subr.mxu0 0.0
        %6728 = vmatpush2.msra.mxu0 0.0
        %6729 = vmatprep.subr.mxu0 0.0
        %6730 = vmatpush2.msra.mxu0 0.0
        %6731 = vmatprep.subr.mxu0 0.0
        %6732 = vmatpush2.msra.mxu0 0.0
        %6733 = vmatprep.subr.mxu0 %v6279
        %6734 = vmatpush2.msra.mxu0 %v6278
        %6735 = vmatprep.subr.mxu0 %v6272
        %6736 = vmatpush2.msra.mxu0 %v6271
        %6737 = vmatprep.mubr.f32.mxu0 %v6283
        %6738 = vmatmul.mubr.f32.gmra.mxu0 %v5925
        %v6739 = vpop.f32.mrf.mxu0
        %v6740 = vadd.f32 %v6663, %v6739
        %v6741 = vpop.f32.mrf.mxu0
        %v6742 = vadd.f32 %v6665, %v6741
        %6743 = vmatprep.mubr.f32.mxu0 %v6286
        %6744 = vmatmul.mubr.f32.gmra.mxu0 %v5929
        %v6745 = vpop.f32.mrf.mxu0
        %v6746 = vadd.f32 %v6669, %v6745
        %v6747 = vpop.f32.mrf.mxu0
        %v6748 = vadd.f32 %v6671, %v6747
        %6749 = vdwg.mxu0
        %6750 = vmatprep.subr.mxu0 0.0
        %6751 = vmatpush1.msra.mxu0 %v6042
        %6752 = vmatprep.subr.mxu0 0.0
        %6753 = vmatpush1.msra.mxu0 %v6035
        %6754 = vmatprep.subr.mxu0 0.0
        %6755 = vmatpush1.msra.mxu0 %v6028
        %6756 = vmatprep.subr.mxu0 0.0
        %6757 = vmatpush1.msra.mxu0 %v6021
        %6758 = vmatprep.subr.mxu0 0.0
        %6759 = vmatpush1.msra.mxu0 %v6014
        %6760 = vmatprep.subr.mxu0 0.0
        %6761 = vmatpush1.msra.mxu0 %v6007
        %6762 = vmatprep.subr.mxu0 0.0
        %6763 = vmatpush1.msra.mxu0 %v6000
        %6764 = vmatprep.subr.mxu0 0.0
        %6765 = vmatpush1.msra.mxu0 %v5993
        %6766 = vmatprep.subr.mxu0 0.0
        %6767 = vmatpush1.msra.mxu0 %v5986
        %6768 = vmatprep.subr.mxu0 0.0
        %6769 = vmatpush1.msra.mxu0 %v5979
        %6770 = vmatprep.subr.mxu0 0.0
        %6771 = vmatpush1.msra.mxu0 %v5972
        %6772 = vmatprep.subr.mxu0 0.0
        %6773 = vmatpush1.msra.mxu0 %v5965
        %6774 = vmatprep.subr.mxu0 0.0
        %6775 = vmatpush1.msra.mxu0 %v5958
        %6776 = vmatprep.subr.mxu0 0.0
        %6777 = vmatpush1.msra.mxu0 %v5951
        %6778 = vmatprep.subr.mxu0 0.0
        %6779 = vmatpush1.msra.mxu0 %v5944
        %6780 = vmatprep.subr.mxu0 0.0
        %6781 = vmatpush1.msra.mxu0 %v5937
        %6782 = vmatprep.subr.mxu0 0.0
        %6783 = vmatpush2.msra.mxu0 %v6154
        %6784 = vmatprep.subr.mxu0 0.0
        %6785 = vmatpush2.msra.mxu0 %v6147
        %6786 = vmatprep.subr.mxu0 0.0
        %6787 = vmatpush2.msra.mxu0 %v6140
        %6788 = vmatprep.subr.mxu0 0.0
        %6789 = vmatpush2.msra.mxu0 %v6133
        %6790 = vmatprep.subr.mxu0 0.0
        %6791 = vmatpush2.msra.mxu0 %v6126
        %6792 = vmatprep.subr.mxu0 0.0
        %6793 = vmatpush2.msra.mxu0 %v6119
        %6794 = vmatprep.subr.mxu0 0.0
        %6795 = vmatpush2.msra.mxu0 %v6112
        %6796 = vmatprep.subr.mxu0 0.0
        %6797 = vmatpush2.msra.mxu0 %v6105
        %6798 = vmatprep.subr.mxu0 0.0
        %6799 = vmatpush2.msra.mxu0 %v6098
        %6800 = vmatprep.subr.mxu0 0.0
        %6801 = vmatpush2.msra.mxu0 %v6091
        %6802 = vmatprep.subr.mxu0 0.0
        %6803 = vmatpush2.msra.mxu0 %v6084
        %6804 = vmatprep.subr.mxu0 0.0
        %6805 = vmatpush2.msra.mxu0 %v6077
        %6806 = vmatprep.subr.mxu0 0.0
        %6807 = vmatpush2.msra.mxu0 %v6070
        %6808 = vmatprep.subr.mxu0 0.0
        %6809 = vmatpush2.msra.mxu0 %v6063
        %6810 = vmatprep.subr.mxu0 0.0
        %6811 = vmatpush2.msra.mxu0 %v6056
        %6812 = vmatprep.subr.mxu0 0.0
        %6813 = vmatpush2.msra.mxu0 %v6049
        %6814 = vmatprep.mubr.f32.mxu0 %v5924
        %6815 = vmatmul.mubr.f32.gmra.mxu0 %v5923
        %v6816 = vpop.f32.mrf.mxu0
        %v6817 = vadd.f32 0.0, %v6816
        %v6818 = vpop.f32.mrf.mxu0
        %6819 = vmatprep.mubr.f32.mxu0 %v5928
        %6820 = vmatmul.mubr.f32.gmra.mxu0 %v5927
        %v6821 = vpop.f32.mrf.mxu0
        %v6822 = vadd.f32 0.0, %v6821
        %v6823 = vpop.f32.mrf.mxu0
        %6824 = vdwg.mxu0
        %6825 = vmatprep.subr.mxu0 0.0
        %6826 = vmatpush1.msra.mxu0 %v6266
        %6827 = vmatprep.subr.mxu0 0.0
        %6828 = vmatpush1.msra.mxu0 %v6259
        %6829 = vmatprep.subr.mxu0 0.0
        %6830 = vmatpush1.msra.mxu0 %v6252
        %6831 = vmatprep.subr.mxu0 0.0
        %6832 = vmatpush1.msra.mxu0 %v6245
        %6833 = vmatprep.subr.mxu0 0.0
        %6834 = vmatpush1.msra.mxu0 %v6238
        %6835 = vmatprep.subr.mxu0 0.0
        %6836 = vmatpush1.msra.mxu0 %v6231
        %6837 = vmatprep.subr.mxu0 0.0
        %6838 = vmatpush1.msra.mxu0 %v6224
        %6839 = vmatprep.subr.mxu0 0.0
        %6840 = vmatpush1.msra.mxu0 %v6217
        %6841 = vmatprep.subr.mxu0 0.0
        %6842 = vmatpush1.msra.mxu0 %v6210
        %6843 = vmatprep.subr.mxu0 0.0
        %6844 = vmatpush1.msra.mxu0 %v6203
        %6845 = vmatprep.subr.mxu0 0.0
        %6846 = vmatpush1.msra.mxu0 %v6196
        %6847 = vmatprep.subr.mxu0 0.0
        %6848 = vmatpush1.msra.mxu0 %v6189
        %6849 = vmatprep.subr.mxu0 0.0
        %6850 = vmatpush1.msra.mxu0 %v6182
        %6851 = vmatprep.subr.mxu0 0.0
        %6852 = vmatpush1.msra.mxu0 %v6175
        %6853 = vmatprep.subr.mxu0 0.0
        %6854 = vmatpush1.msra.mxu0 %v6168
        %6855 = vmatprep.subr.mxu0 0.0
        %6856 = vmatpush1.msra.mxu0 %v6161
        %6857 = vmatprep.subr.mxu0 0.0
        %6858 = vmatpush2.msra.mxu0 0.0
        %6859 = vmatprep.subr.mxu0 0.0
        %6860 = vmatpush2.msra.mxu0 0.0
        %6861 = vmatprep.subr.mxu0 0.0
        %6862 = vmatpush2.msra.mxu0 0.0
        %6863 = vmatprep.subr.mxu0 0.0
        %6864 = vmatpush2.msra.mxu0 0.0
        %6865 = vmatprep.subr.mxu0 0.0
        %6866 = vmatpush2.msra.mxu0 0.0
        %6867 = vmatprep.subr.mxu0 0.0
        %6868 = vmatpush2.msra.mxu0 0.0
        %6869 = vmatprep.subr.mxu0 0.0
        %6870 = vmatpush2.msra.mxu0 0.0
        %6871 = vmatprep.subr.mxu0 0.0
        %6872 = vmatpush2.msra.mxu0 0.0
        %6873 = vmatprep.subr.mxu0 0.0
        %6874 = vmatpush2.msra.mxu0 0.0
        %6875 = vmatprep.subr.mxu0 0.0
        %6876 = vmatpush2.msra.mxu0 0.0
        %6877 = vmatprep.subr.mxu0 0.0
        %6878 = vmatpush2.msra.mxu0 0.0
        %6879 = vmatprep.subr.mxu0 0.0
        %6880 = vmatpush2.msra.mxu0 0.0
        %6881 = vmatprep.subr.mxu0 0.0
        %6882 = vmatpush2.msra.mxu0 0.0
        %6883 = vmatprep.subr.mxu0 0.0
        %6884 = vmatpush2.msra.mxu0 0.0
        %6885 = vmatprep.subr.mxu0 0.0
        %6886 = vmatpush2.msra.mxu0 %v6280
        %6887 = vmatprep.subr.mxu0 0.0
        %6888 = vmatpush2.msra.mxu0 %v6273
        %6889 = vmatprep.mubr.f32.mxu0 %v6283
        %6890 = vmatmul.mubr.f32.gmra.mxu0 %v5925
        %v6891 = vpop.f32.mrf.mxu0
        %v6892 = vadd.f32 %v6817, %v6891
        %v6893 = vpop.f32.mrf.mxu0
        %6894 = vmatprep.mubr.f32.mxu0 %v6286
        %6895 = vmatmul.mubr.f32.gmra.mxu0 %v5929
        %v6896 = vpop.f32.mrf.mxu0
        %v6897 = vadd.f32 %v6822, %v6896
        %v6898 = vpop.f32.mrf.mxu0
        %6899 = vdwg.mxu0
        %6914 = vrot.lane.b32.xlu0 %v6432, 1
        %v6915 = vpop.permute.xlu0 %6914
        %6916 = vrot.lane.b32.xlu0 %v6434, 1
        %v6917 = vpop.permute.xlu0 %6916
        %6918 = vrot.lane.b32.xlu0 %v6586, 1
        %v6919 = vpop.permute.xlu0 %6918
        %6920 = vrot.lane.b32.xlu0 %v6588, 1
        %v6921 = vpop.permute.xlu0 %6920
        %6922 = vrot.lane.b32.xlu0 %v6740, 1
        %v6923 = vpop.permute.xlu0 %6922
        %6924 = vrot.lane.b32.xlu0 %v6742, 1
        %v6925 = vpop.permute.xlu0 %6924
        %6926 = vrot.lane.b32.xlu0 %v6892, 1
        %v6927 = vpop.permute.xlu0 %6926
        %6928 = vrot.lane.b32.xlu0 %v6438, 1
        %v6929 = vpop.permute.xlu0 %6928
        %6930 = vrot.lane.b32.xlu0 %v6440, 1
        %v6931 = vpop.permute.xlu0 %6930
        %6932 = vrot.lane.b32.xlu0 %v6592, 1
        %v6933 = vpop.permute.xlu0 %6932
        %6934 = vrot.lane.b32.xlu0 %v6594, 1
        %v6935 = vpop.permute.xlu0 %6934
        %6936 = vrot.lane.b32.xlu0 %v6746, 1
        %v6937 = vpop.permute.xlu0 %6936
        %6938 = vrot.lane.b32.xlu0 %v6748, 1
        %v6939 = vpop.permute.xlu0 %6938
        %6940 = vrot.lane.b32.xlu0 %v6897, 1
        %v6941 = vpop.permute.xlu0 %6940
        %v6942 = vsel %vm4375, %v6915, %v6917
        %v6943 = vsel %vm4375, %v6917, %v6919
        %v6944 = vsel %vm4375, %v6919, %v6921
        %v6945 = vsel %vm4375, %v6921, %v6923
        %v6946 = vsel %vm4375, %v6923, %v6925
        %v6947 = vsel %vm4375, %v6925, %v6927
        %v6948 = vsel %vm4375, %v6929, %v6931
        %v6949 = vsel %vm4375, %v6931, %v6933
        %v6950 = vsel %vm4375, %v6933, %v6935
        %v6951 = vsel %vm4375, %v6935, %v6937
        %v6952 = vsel %vm4375, %v6937, %v6939
        %v6953 = vsel %vm4375, %v6939, %v6941
        %v6968 = vsel %vm4375, 0.0, %v6915
        %v6969 = vsel %vm4375, 0.0, %v6929
        %vm6970 = vcmask 89088
        %v6971 = vsel %vm6970, %v6947, 0.0
        %v6972 = vsel %vm6970, %v6953, 0.0
        %6977 = vrot.lane.b32.xlu0 %v6968, 127
        %v6978 = vpop.permute.xlu0 %6977
        %6979 = vrot.lane.b32.xlu0 %v6942, 127
        %v6980 = vpop.permute.xlu0 %6979
        %6981 = vrot.lane.b32.xlu0 %v6943, 127
        %v6982 = vpop.permute.xlu0 %6981
        %6983 = vrot.lane.b32.xlu0 %v6944, 127
        %v6984 = vpop.permute.xlu0 %6983
        %6985 = vrot.lane.b32.xlu0 %v6945, 127
        %v6986 = vpop.permute.xlu0 %6985
        %6987 = vrot.lane.b32.xlu0 %v6946, 127
        %v6988 = vpop.permute.xlu0 %6987
        %6989 = vrot.lane.b32.xlu0 %v6971, 127
        %v6990 = vpop.permute.xlu0 %6989
        %6991 = vrot.lane.b32.xlu0 %v6969, 127
        %v6992 = vpop.permute.xlu0 %6991
        %6993 = vrot.lane.b32.xlu0 %v6948, 127
        %v6994 = vpop.permute.xlu0 %6993
        %6995 = vrot.lane.b32.xlu0 %v6949, 127
        %v6996 = vpop.permute.xlu0 %6995
        %6997 = vrot.lane.b32.xlu0 %v6950, 127
        %v6998 = vpop.permute.xlu0 %6997
        %6999 = vrot.lane.b32.xlu0 %v6951, 127
        %v7000 = vpop.permute.xlu0 %6999
        %7001 = vrot.lane.b32.xlu0 %v6952, 127
        %v7002 = vpop.permute.xlu0 %7001
        %7003 = vrot.lane.b32.xlu0 %v6972, 127
        %v7004 = vpop.permute.xlu0 %7003
        %v7005 = vsel %vm5102, %v6978, %v6980
        %v7006 = vsel %vm5102, %v6980, %v6982
        %v7007 = vsel %vm5102, %v6982, %v6984
        %v7008 = vsel %vm5102, %v6984, %v6986
        %v7009 = vsel %vm5102, %v6986, %v6988
        %v7010 = vsel %vm5102, %v6988, %v6990
        %v7011 = vsel %vm5102, %v6992, %v6994
        %v7012 = vsel %vm5102, %v6994, %v6996
        %v7013 = vsel %vm5102, %v6996, %v6998
        %v7014 = vsel %vm5102, %v6998, %v7000
        %v7015 = vsel %vm5102, %v7000, %v7002
        %v7016 = vsel %vm5102, %v7002, %v7004
        %7031 = vrot.lane.b32.xlu0 %v6968, 126
        %v7032 = vpop.permute.xlu0 %7031
        %7033 = vrot.lane.b32.xlu0 %v6942, 126
        %v7034 = vpop.permute.xlu0 %7033
        %7035 = vrot.lane.b32.xlu0 %v6943, 126
        %v7036 = vpop.permute.xlu0 %7035
        %7037 = vrot.lane.b32.xlu0 %v6944, 126
        %v7038 = vpop.permute.xlu0 %7037
        %7039 = vrot.lane.b32.xlu0 %v6945, 126
        %v7040 = vpop.permute.xlu0 %7039
        %7041 = vrot.lane.b32.xlu0 %v6946, 126
        %v7042 = vpop.permute.xlu0 %7041
        %7043 = vrot.lane.b32.xlu0 %v6971, 126
        %v7044 = vpop.permute.xlu0 %7043
        %7045 = vrot.lane.b32.xlu0 %v6969, 126
        %v7046 = vpop.permute.xlu0 %7045
        %7047 = vrot.lane.b32.xlu0 %v6948, 126
        %v7048 = vpop.permute.xlu0 %7047
        %7049 = vrot.lane.b32.xlu0 %v6949, 126
        %v7050 = vpop.permute.xlu0 %7049
        %7051 = vrot.lane.b32.xlu0 %v6950, 126
        %v7052 = vpop.permute.xlu0 %7051
        %7053 = vrot.lane.b32.xlu0 %v6951, 126
        %v7054 = vpop.permute.xlu0 %7053
        %7055 = vrot.lane.b32.xlu0 %v6952, 126
        %v7056 = vpop.permute.xlu0 %7055
        %7057 = vrot.lane.b32.xlu0 %v6972, 126
        %v7058 = vpop.permute.xlu0 %7057
        %v7059 = vsel %vm5159, %v7032, %v7034
        %v7060 = vsel %vm5159, %v7034, %v7036
        %v7061 = vsel %vm5159, %v7036, %v7038
        %v7062 = vsel %vm5159, %v7038, %v7040
        %v7063 = vsel %vm5159, %v7040, %v7042
        %v7064 = vsel %vm5159, %v7042, %v7044
        %v7065 = vsel %vm5159, %v7046, %v7048
        %v7066 = vsel %vm5159, %v7048, %v7050
        %v7067 = vsel %vm5159, %v7050, %v7052
        %v7068 = vsel %vm5159, %v7052, %v7054
        %v7069 = vsel %vm5159, %v7054, %v7056
        %v7070 = vsel %vm5159, %v7056, %v7058
        %v7085 = vld [vmem:[%s6] sm:$0xf]
        %v7086 = vpack.c.bf16 %v6969, %v6968
        %v7087 = vpack.c.bf16 %v6948, %v6942
        %v7088 = vpack.c.bf16 %v6949, %v6943
        %v7089 = vpack.c.bf16 %v6950, %v6944
        %v7090 = vpack.c.bf16 %v6951, %v6945
        %v7091 = vpack.c.bf16 %v6952, %v6946
        %v7092 = vpack.c.bf16 %v6972, %v6971
        %v7093 = vpack.c.bf16 %v7011, %v7005
        %v7094 = vpack.c.bf16 %v7012, %v7006
        %v7095 = vpack.c.bf16 %v7013, %v7007
        %v7096 = vpack.c.bf16 %v7014, %v7008
        %v7097 = vpack.c.bf16 %v7015, %v7009
        %v7098 = vpack.c.bf16 %v7016, %v7010
        %v7099 = vpack.c.bf16 %v7004, %v6990
        %v7100 = vpack.c.bf16 %v7065, %v7059
        %v7101 = vpack.c.bf16 %v7066, %v7060
        %v7102 = vpack.c.bf16 %v7067, %v7061
        %v7103 = vpack.c.bf16 %v7068, %v7062
        %v7104 = vpack.c.bf16 %v7069, %v7063
        %v7105 = vpack.c.bf16 %v7070, %v7064
        %v7106 = vpack.c.bf16 %v7058, %v7044
        %vm7107 = vcmask 400384
        %v7109 = vsel %vm7107, %v7085, 0
        %7111 = vmatprep.subr.bf16.mxu0 0
        %7112 = vmatpush1.bf16.msra.mxu0 0
        %7113 = vmatprep.subr.bf16.mxu0 0
        %7114 = vmatpush1.bf16.msra.mxu0 0
        %7115 = vmatprep.subr.bf16.mxu0 0
        %7116 = vmatpush1.bf16.msra.mxu0 0
        %7117 = vmatprep.subr.bf16.mxu0 0
        %7118 = vmatpush1.bf16.msra.mxu0 0
        %7119 = vmatprep.subr.bf16.mxu0 %v4654
        %7120 = vmatpush1.bf16.msra.mxu0 %v4654
        %7121 = vmatprep.subr.bf16.mxu0 %v7101
        %7122 = vmatpush1.bf16.msra.mxu0 %v7100
        %7123 = vmatprep.subr.bf16.mxu0 %v7094
        %7124 = vmatpush1.bf16.msra.mxu0 %v7093
        %7125 = vmatprep.subr.bf16.mxu0 %v7087
        %7126 = vmatpush1.bf16.msra.mxu0 %v7086
        %7127 = vmatprep.subr.bf16.mxu0 0
        %7128 = vmatpush2.bf16.msra.mxu0 0
        %7129 = vmatprep.subr.bf16.mxu0 0
        %7130 = vmatpush2.bf16.msra.mxu0 0
        %7131 = vmatprep.subr.bf16.mxu0 0
        %7132 = vmatpush2.bf16.msra.mxu0 0
        %7133 = vmatprep.subr.bf16.mxu0 0
        %7134 = vmatpush2.bf16.msra.mxu0 0
        %7135 = vmatprep.subr.bf16.mxu0 0
        %7136 = vmatpush2.bf16.msra.mxu0 0
        %7137 = vmatprep.subr.bf16.mxu0 0
        %7138 = vmatpush2.bf16.msra.mxu0 0
        %7139 = vmatprep.subr.bf16.mxu0 0
        %7140 = vmatpush2.bf16.msra.mxu0 0
        %7141 = vmatprep.subr.bf16.mxu0 0
        %7142 = vmatpush2.bf16.msra.mxu0 0
        %7143 = vmatprep.mubr.bf16.mxu0 0
        %7144 = vmatmul.mubr.bf16.gmra.mxu0 %v7109
        %v7145 = vpop.f32.mrf.mxu0
        %v7146 = vadd.f32 0.0, %v7145
        %v7147 = vpop.f32.mrf.mxu0
        %v7148 = vadd.f32 0.0, %v7147
        %v7149 = vpop.f32.mrf.mxu0
        %v7150 = vpop.f32.mrf.mxu0
        %7151 = vdwg.mxu0
        %7152 = vmatprep.subr.bf16.mxu0 0
        %7153 = vmatpush1.bf16.msra.mxu0 0
        %7154 = vmatprep.subr.bf16.mxu0 0
        %7155 = vmatpush1.bf16.msra.mxu0 0
        %7156 = vmatprep.subr.bf16.mxu0 0
        %7157 = vmatpush1.bf16.msra.mxu0 0
        %7158 = vmatprep.subr.bf16.mxu0 0
        %7159 = vmatpush1.bf16.msra.mxu0 0
        %7160 = vmatprep.subr.bf16.mxu0 %v4654
        %7161 = vmatpush1.bf16.msra.mxu0 %v4654
        %7162 = vmatprep.subr.bf16.mxu0 %v7103
        %7163 = vmatpush1.bf16.msra.mxu0 %v7102
        %7164 = vmatprep.subr.bf16.mxu0 %v7096
        %7165 = vmatpush1.bf16.msra.mxu0 %v7095
        %7166 = vmatprep.subr.bf16.mxu0 %v7089
        %7167 = vmatpush1.bf16.msra.mxu0 %v7088
        %7168 = vmatprep.subr.bf16.mxu0 0
        %7169 = vmatpush2.bf16.msra.mxu0 0
        %7170 = vmatprep.subr.bf16.mxu0 0
        %7171 = vmatpush2.bf16.msra.mxu0 0
        %7172 = vmatprep.subr.bf16.mxu0 0
        %7173 = vmatpush2.bf16.msra.mxu0 0
        %7174 = vmatprep.subr.bf16.mxu0 0
        %7175 = vmatpush2.bf16.msra.mxu0 0
        %7176 = vmatprep.subr.bf16.mxu0 0
        %7177 = vmatpush2.bf16.msra.mxu0 0
        %7178 = vmatprep.subr.bf16.mxu0 0
        %7179 = vmatpush2.bf16.msra.mxu0 0
        %7180 = vmatprep.subr.bf16.mxu0 0
        %7181 = vmatpush2.bf16.msra.mxu0 0
        %7182 = vmatprep.subr.bf16.mxu0 0
        %7183 = vmatpush2.bf16.msra.mxu0 0
        %7184 = vmatprep.mubr.bf16.mxu0 0
        %7185 = vmatmul.mubr.bf16.gmra.mxu0 %v7109
        %v7186 = vpop.f32.mrf.mxu0
        %v7187 = vadd.f32 0.0, %v7186
        %v7188 = vpop.f32.mrf.mxu0
        %v7189 = vadd.f32 0.0, %v7188
        %v7190 = vpop.f32.mrf.mxu0
        %v7191 = vpop.f32.mrf.mxu0
        %7192 = vdwg.mxu0
        %7193 = vmatprep.subr.bf16.mxu0 0
        %7194 = vmatpush1.bf16.msra.mxu0 0
        %7195 = vmatprep.subr.bf16.mxu0 0
        %7196 = vmatpush1.bf16.msra.mxu0 0
        %7197 = vmatprep.subr.bf16.mxu0 0
        %7198 = vmatpush1.bf16.msra.mxu0 0
        %7199 = vmatprep.subr.bf16.mxu0 0
        %7200 = vmatpush1.bf16.msra.mxu0 0
        %7201 = vmatprep.subr.bf16.mxu0 %v4654
        %7202 = vmatpush1.bf16.msra.mxu0 %v4654
        %7203 = vmatprep.subr.bf16.mxu0 %v7105
        %7204 = vmatpush1.bf16.msra.mxu0 %v7104
        %7205 = vmatprep.subr.bf16.mxu0 %v7098
        %7206 = vmatpush1.bf16.msra.mxu0 %v7097
        %7207 = vmatprep.subr.bf16.mxu0 %v7091
        %7208 = vmatpush1.bf16.msra.mxu0 %v7090
        %7209 = vmatprep.subr.bf16.mxu0 0
        %7210 = vmatpush2.bf16.msra.mxu0 0
        %7211 = vmatprep.subr.bf16.mxu0 0
        %7212 = vmatpush2.bf16.msra.mxu0 0
        %7213 = vmatprep.subr.bf16.mxu0 0
        %7214 = vmatpush2.bf16.msra.mxu0 0
        %7215 = vmatprep.subr.bf16.mxu0 0
        %7216 = vmatpush2.bf16.msra.mxu0 0
        %7217 = vmatprep.subr.bf16.mxu0 0
        %7218 = vmatpush2.bf16.msra.mxu0 0
        %7219 = vmatprep.subr.bf16.mxu0 0
        %7220 = vmatpush2.bf16.msra.mxu0 0
        %7221 = vmatprep.subr.bf16.mxu0 0
        %7222 = vmatpush2.bf16.msra.mxu0 0
        %7223 = vmatprep.subr.bf16.mxu0 0
        %7224 = vmatpush2.bf16.msra.mxu0 0
        %7225 = vmatprep.mubr.bf16.mxu0 0
        %7226 = vmatmul.mubr.bf16.gmra.mxu0 %v7109
        %v7227 = vpop.f32.mrf.mxu0
        %v7228 = vadd.f32 0.0, %v7227
        %v7229 = vpop.f32.mrf.mxu0
        %v7230 = vadd.f32 0.0, %v7229
        %v7231 = vpop.f32.mrf.mxu0
        %v7232 = vpop.f32.mrf.mxu0
        %7233 = vdwg.mxu0
        %7234 = vmatprep.subr.bf16.mxu0 0
        %7235 = vmatpush1.bf16.msra.mxu0 0
        %7236 = vmatprep.subr.bf16.mxu0 0
        %7237 = vmatpush1.bf16.msra.mxu0 0
        %7238 = vmatprep.subr.bf16.mxu0 0
        %7239 = vmatpush1.bf16.msra.mxu0 0
        %7240 = vmatprep.subr.bf16.mxu0 0
        %7241 = vmatpush1.bf16.msra.mxu0 0
        %7242 = vmatprep.subr.bf16.mxu0 0
        %7243 = vmatpush1.bf16.msra.mxu0 %v4654
        %7244 = vmatprep.subr.bf16.mxu0 0
        %7245 = vmatpush1.bf16.msra.mxu0 %v7106
        %7246 = vmatprep.subr.bf16.mxu0 0
        %7247 = vmatpush1.bf16.msra.mxu0 %v7099
        %7248 = vmatprep.subr.bf16.mxu0 0
        %7249 = vmatpush1.bf16.msra.mxu0 %v7092
        %7250 = vmatprep.subr.bf16.mxu0 0
        %7251 = vmatpush2.bf16.msra.mxu0 0
        %7252 = vmatprep.subr.bf16.mxu0 0
        %7253 = vmatpush2.bf16.msra.mxu0 0
        %7254 = vmatprep.subr.bf16.mxu0 0
        %7255 = vmatpush2.bf16.msra.mxu0 0
        %7256 = vmatprep.subr.bf16.mxu0 0
        %7257 = vmatpush2.bf16.msra.mxu0 0
        %7258 = vmatprep.subr.bf16.mxu0 0
        %7259 = vmatpush2.bf16.msra.mxu0 0
        %7260 = vmatprep.subr.bf16.mxu0 0
        %7261 = vmatpush2.bf16.msra.mxu0 0
        %7262 = vmatprep.subr.bf16.mxu0 0
        %7263 = vmatpush2.bf16.msra.mxu0 0
        %7264 = vmatprep.subr.bf16.mxu0 0
        %7265 = vmatpush2.bf16.msra.mxu0 0
        %7266 = vmatprep.mubr.bf16.mxu0 0
        %7267 = vmatmul.mubr.bf16.gmra.mxu0 %v7109
        %v7268 = vpop.f32.mrf.mxu0
        %v7269 = vadd.f32 0.0, %v7268
        %v7270 = vpop.f32.mrf.mxu0
        %v7271 = vpop.f32.mrf.mxu0
        %v7272 = vpop.f32.mrf.mxu0
        %7273 = vdwg.mxu0
        %v7274 = vmax.f32 %v7146, 0.0
        %v7275 = vmax.f32 %v7148, 0.0
        %v7276 = vmax.f32 %v7187, 0.0
        %v7277 = vmax.f32 %v7189, 0.0
        %v7278 = vmax.f32 %v7228, 0.0
        %v7279 = vmax.f32 %v7230, 0.0
        %v7280 = vmax.f32 %v7269, 0.0
        %7288 = vrot.lane.b32.xlu0 %v7274, 1
        %v7289 = vpop.permute.xlu0 %7288
        %7290 = vrot.lane.b32.xlu0 %v7275, 1
        %v7291 = vpop.permute.xlu0 %7290
        %7292 = vrot.lane.b32.xlu0 %v7276, 1
        %v7293 = vpop.permute.xlu0 %7292
        %7294 = vrot.lane.b32.xlu0 %v7277, 1
        %v7295 = vpop.permute.xlu0 %7294
        %7296 = vrot.lane.b32.xlu0 %v7278, 1
        %v7297 = vpop.permute.xlu0 %7296
        %7298 = vrot.lane.b32.xlu0 %v7279, 1
        %v7299 = vpop.permute.xlu0 %7298
        %7300 = vrot.lane.b32.xlu0 %v7280, 1
        %v7301 = vpop.permute.xlu0 %7300
        %v7302 = vsel %vm4375, %v7289, %v7291
        %v7303 = vsel %vm4375, %v7291, %v7293
        %v7304 = vsel %vm4375, %v7293, %v7295
        %v7305 = vsel %vm4375, %v7295, %v7297
        %v7306 = vsel %vm4375, %v7297, %v7299
        %v7307 = vsel %vm4375, %v7299, %v7301
        %v7315 = vsel %vm4375, 0.0, %v7289
        %v7316 = vsel %vm6970, %v7307, 0.0
        %7319 = vrot.lane.b32.xlu0 %v7315, 127
        %v7320 = vpop.permute.xlu0 %7319
        %7321 = vrot.lane.b32.xlu0 %v7302, 127
        %v7322 = vpop.permute.xlu0 %7321
        %7323 = vrot.lane.b32.xlu0 %v7303, 127
        %v7324 = vpop.permute.xlu0 %7323
        %7325 = vrot.lane.b32.xlu0 %v7304, 127
        %v7326 = vpop.permute.xlu0 %7325
        %7327 = vrot.lane.b32.xlu0 %v7305, 127
        %v7328 = vpop.permute.xlu0 %7327
        %7329 = vrot.lane.b32.xlu0 %v7306, 127
        %v7330 = vpop.permute.xlu0 %7329
        %7331 = vrot.lane.b32.xlu0 %v7316, 127
        %v7332 = vpop.permute.xlu0 %7331
        %v7333 = vsel %vm5102, %v7320, %v7322
        %v7334 = vsel %vm5102, %v7322, %v7324
        %v7335 = vsel %vm5102, %v7324, %v7326
        %v7336 = vsel %vm5102, %v7326, %v7328
        %v7337 = vsel %vm5102, %v7328, %v7330
        %v7338 = vsel %vm5102, %v7330, %v7332
        %7346 = vrot.lane.b32.xlu0 %v7315, 126
        %v7347 = vpop.permute.xlu0 %7346
        %7348 = vrot.lane.b32.xlu0 %v7302, 126
        %v7349 = vpop.permute.xlu0 %7348
        %7350 = vrot.lane.b32.xlu0 %v7303, 126
        %v7351 = vpop.permute.xlu0 %7350
        %7352 = vrot.lane.b32.xlu0 %v7304, 126
        %v7353 = vpop.permute.xlu0 %7352
        %7354 = vrot.lane.b32.xlu0 %v7305, 126
        %v7355 = vpop.permute.xlu0 %7354
        %7356 = vrot.lane.b32.xlu0 %v7306, 126
        %v7357 = vpop.permute.xlu0 %7356
        %7358 = vrot.lane.b32.xlu0 %v7316, 126
        %v7359 = vpop.permute.xlu0 %7358
        %v7360 = vsel %vm5159, %v7347, %v7349
        %v7361 = vsel %vm5159, %v7349, %v7351
        %v7362 = vsel %vm5159, %v7351, %v7353
        %v7363 = vsel %vm5159, %v7353, %v7355
        %v7364 = vsel %vm5159, %v7355, %v7357
        %v7365 = vsel %vm5159, %v7357, %v7359
        %v7373 = vld [vmem:[%s7] sm:$0x3]
        %v7374 = vpack.c.bf16 %v7333, %v7315
        %v7375 = vpack.c.bf16 %v7334, %v7302
        %v7376 = vpack.c.bf16 %v7335, %v7303
        %v7377 = vpack.c.bf16 %v7336, %v7304
        %v7378 = vpack.c.bf16 %v7337, %v7305
        %v7379 = vpack.c.bf16 %v7338, %v7306
        %v7380 = vpack.c.bf16 %v7332, %v7316
        %v7381 = vpack.c.bf16 1.0, %v7360
        %v7382 = vpack.c.bf16 1.0, %v7361
        %v7383 = vpack.c.bf16 1.0, %v7362
        %v7384 = vpack.c.bf16 1.0, %v7363
        %v7385 = vpack.c.bf16 1.0, %v7364
        %v7386 = vpack.c.bf16 1.0, %v7365
        %v7387 = vpack.c.bf16 1.0, %v7359
        %vm7388 = vcmask 203776
        %v7390 = vsel %vm7388, %v7373, 0
        %vm7392 = vcmask 1044480
        %v7393 = vsel %vm4845, 4294967295, 65535
        %v7394 = vsel %vm7392, %v7393, 0
        %v7396 = vand.u32 %v7381, %v7394
        %v7399 = vand.u32 %v7382, %v7394
        %v7402 = vand.u32 %v7383, %v7394
        %v7405 = vand.u32 %v7384, %v7394
        %v7408 = vand.u32 %v7385, %v7394
        %v7411 = vand.u32 %v7386, %v7394
        %v7414 = vand.u32 %v7387, %v7394
        %7416 = vmatprep.subr.bf16.mxu0 0
        %7417 = vmatpush1.bf16.msra.mxu0 0
        %7418 = vmatprep.subr.bf16.mxu0 0
        %7419 = vmatpush1.bf16.msra.mxu0 0
        %7420 = vmatprep.subr.bf16.mxu0 0
        %7421 = vmatpush1.bf16.msra.mxu0 0
        %7422 = vmatprep.subr.bf16.mxu0 0
        %7423 = vmatpush1.bf16.msra.mxu0 0
        %7424 = vmatprep.subr.bf16.mxu0 0
        %7425 = vmatpush1.bf16.msra.mxu0 0
        %7426 = vmatprep.subr.bf16.mxu0 0
        %7427 = vmatpush1.bf16.msra.mxu0 0
        %7428 = vmatprep.subr.bf16.mxu0 %v7399
        %7429 = vmatpush1.bf16.msra.mxu0 %v7396
        %7430 = vmatprep.subr.bf16.mxu0 %v7375
        %7431 = vmatpush1.bf16.msra.mxu0 %v7374
        %7432 = vmatprep.subr.bf16.mxu0 0
        %7433 = vmatpush2.bf16.msra.mxu0 0
        %7434 = vmatprep.subr.bf16.mxu0 0
        %7435 = vmatpush2.bf16.msra.mxu0 0
        %7436 = vmatprep.subr.bf16.mxu0 0
        %7437 = vmatpush2.bf16.msra.mxu0 0
        %7438 = vmatprep.subr.bf16.mxu0 0
        %7439 = vmatpush2.bf16.msra.mxu0 0
        %7440 = vmatprep.subr.bf16.mxu0 0
        %7441 = vmatpush2.bf16.msra.mxu0 0
        %7442 = vmatprep.subr.bf16.mxu0 0
        %7443 = vmatpush2.bf16.msra.mxu0 0
        %7444 = vmatprep.subr.bf16.mxu0 0
        %7445 = vmatpush2.bf16.msra.mxu0 0
        %7446 = vmatprep.subr.bf16.mxu0 0
        %7447 = vmatpush2.bf16.msra.mxu0 0
        %7448 = vmatprep.mubr.bf16.mxu0 0
        %7449 = vmatmul.mubr.bf16.gmra.mxu0 %v7390
        %v7450 = vpop.f32.mrf.mxu0
        %v7451 = vadd.f32 0.0, %v7450
        %v7452 = vpop.f32.mrf.mxu0
        %v7453 = vadd.f32 0.0, %v7452
        %v7454 = vpop.f32.mrf.mxu0
        %v7455 = vpop.f32.mrf.mxu0
        %7456 = vdwg.mxu0
        %7457 = vmatprep.subr.bf16.mxu0 0
        %7458 = vmatpush1.bf16.msra.mxu0 0
        %7459 = vmatprep.subr.bf16.mxu0 0
        %7460 = vmatpush1.bf16.msra.mxu0 0
        %7461 = vmatprep.subr.bf16.mxu0 0
        %7462 = vmatpush1.bf16.msra.mxu0 0
        %7463 = vmatprep.subr.bf16.mxu0 0
        %7464 = vmatpush1.bf16.msra.mxu0 0
        %7465 = vmatprep.subr.bf16.mxu0 0
        %7466 = vmatpush1.bf16.msra.mxu0 0
        %7467 = vmatprep.subr.bf16.mxu0 0
        %7468 = vmatpush1.bf16.msra.mxu0 0
        %7469 = vmatprep.subr.bf16.mxu0 %v7405
        %7470 = vmatpush1.bf16.msra.mxu0 %v7402
        %7471 = vmatprep.subr.bf16.mxu0 %v7377
        %7472 = vmatpush1.bf16.msra.mxu0 %v7376
        %7473 = vmatprep.subr.bf16.mxu0 0
        %7474 = vmatpush2.bf16.msra.mxu0 0
        %7475 = vmatprep.subr.bf16.mxu0 0
        %7476 = vmatpush2.bf16.msra.mxu0 0
        %7477 = vmatprep.subr.bf16.mxu0 0
        %7478 = vmatpush2.bf16.msra.mxu0 0
        %7479 = vmatprep.subr.bf16.mxu0 0
        %7480 = vmatpush2.bf16.msra.mxu0 0
        %7481 = vmatprep.subr.bf16.mxu0 0
        %7482 = vmatpush2.bf16.msra.mxu0 0
        %7483 = vmatprep.subr.bf16.mxu0 0
        %7484 = vmatpush2.bf16.msra.mxu0 0
        %7485 = vmatprep.subr.bf16.mxu0 0
        %7486 = vmatpush2.bf16.msra.mxu0 0
        %7487 = vmatprep.subr.bf16.mxu0 0
        %7488 = vmatpush2.bf16.msra.mxu0 0
        %7489 = vmatprep.mubr.bf16.mxu0 0
        %7490 = vmatmul.mubr.bf16.gmra.mxu0 %v7390
        %v7491 = vpop.f32.mrf.mxu0
        %v7492 = vadd.f32 0.0, %v7491
        %v7493 = vpop.f32.mrf.mxu0
        %v7494 = vadd.f32 0.0, %v7493
        %v7495 = vpop.f32.mrf.mxu0
        %v7496 = vpop.f32.mrf.mxu0
        %7497 = vdwg.mxu0
        %7498 = vmatprep.subr.bf16.mxu0 0
        %7499 = vmatpush1.bf16.msra.mxu0 0
        %7500 = vmatprep.subr.bf16.mxu0 0
        %7501 = vmatpush1.bf16.msra.mxu0 0
        %7502 = vmatprep.subr.bf16.mxu0 0
        %7503 = vmatpush1.bf16.msra.mxu0 0
        %7504 = vmatprep.subr.bf16.mxu0 0
        %7505 = vmatpush1.bf16.msra.mxu0 0
        %7506 = vmatprep.subr.bf16.mxu0 0
        %7507 = vmatpush1.bf16.msra.mxu0 0
        %7508 = vmatprep.subr.bf16.mxu0 0
        %7509 = vmatpush1.bf16.msra.mxu0 0
        %7510 = vmatprep.subr.bf16.mxu0 %v7411
        %7511 = vmatpush1.bf16.msra.mxu0 %v7408
        %7512 = vmatprep.subr.bf16.mxu0 %v7379
        %7513 = vmatpush1.bf16.msra.mxu0 %v7378
        %7514 = vmatprep.subr.bf16.mxu0 0
        %7515 = vmatpush2.bf16.msra.mxu0 0
        %7516 = vmatprep.subr.bf16.mxu0 0
        %7517 = vmatpush2.bf16.msra.mxu0 0
        %7518 = vmatprep.subr.bf16.mxu0 0
        %7519 = vmatpush2.bf16.msra.mxu0 0
        %7520 = vmatprep.subr.bf16.mxu0 0
        %7521 = vmatpush2.bf16.msra.mxu0 0
        %7522 = vmatprep.subr.bf16.mxu0 0
        %7523 = vmatpush2.bf16.msra.mxu0 0
        %7524 = vmatprep.subr.bf16.mxu0 0
        %7525 = vmatpush2.bf16.msra.mxu0 0
        %7526 = vmatprep.subr.bf16.mxu0 0
        %7527 = vmatpush2.bf16.msra.mxu0 0
        %7528 = vmatprep.subr.bf16.mxu0 0
        %7529 = vmatpush2.bf16.msra.mxu0 0
        %7530 = vmatprep.mubr.bf16.mxu0 0
        %7531 = vmatmul.mubr.bf16.gmra.mxu0 %v7390
        %v7532 = vpop.f32.mrf.mxu0
        %v7533 = vadd.f32 0.0, %v7532
        %v7534 = vpop.f32.mrf.mxu0
        %v7535 = vadd.f32 0.0, %v7534
        %v7536 = vpop.f32.mrf.mxu0
        %v7537 = vpop.f32.mrf.mxu0
        %7538 = vdwg.mxu0
        %7539 = vmatprep.subr.bf16.mxu0 0
        %7540 = vmatpush1.bf16.msra.mxu0 0
        %7541 = vmatprep.subr.bf16.mxu0 0
        %7542 = vmatpush1.bf16.msra.mxu0 0
        %7543 = vmatprep.subr.bf16.mxu0 0
        %7544 = vmatpush1.bf16.msra.mxu0 0
        %7545 = vmatprep.subr.bf16.mxu0 0
        %7546 = vmatpush1.bf16.msra.mxu0 0
        %7547 = vmatprep.subr.bf16.mxu0 0
        %7548 = vmatpush1.bf16.msra.mxu0 0
        %7549 = vmatprep.subr.bf16.mxu0 0
        %7550 = vmatpush1.bf16.msra.mxu0 0
        %7551 = vmatprep.subr.bf16.mxu0 0
        %7552 = vmatpush1.bf16.msra.mxu0 %v7414
        %7553 = vmatprep.subr.bf16.mxu0 0
        %7554 = vmatpush1.bf16.msra.mxu0 %v7380
        %7555 = vmatprep.subr.bf16.mxu0 0
        %7556 = vmatpush2.bf16.msra.mxu0 0
        %7557 = vmatprep.subr.bf16.mxu0 0
        %7558 = vmatpush2.bf16.msra.mxu0 0
        %7559 = vmatprep.subr.bf16.mxu0 0
        %7560 = vmatpush2.bf16.msra.mxu0 0
        %7561 = vmatprep.subr.bf16.mxu0 0
        %7562 = vmatpush2.bf16.msra.mxu0 0
        %7563 = vmatprep.subr.bf16.mxu0 0
        %7564 = vmatpush2.bf16.msra.mxu0 0
        %7565 = vmatprep.subr.bf16.mxu0 0
        %7566 = vmatpush2.bf16.msra.mxu0 0
        %7567 = vmatprep.subr.bf16.mxu0 0
        %7568 = vmatpush2.bf16.msra.mxu0 0
        %7569 = vmatprep.subr.bf16.mxu0 0
        %7570 = vmatpush2.bf16.msra.mxu0 0
        %7571 = vmatprep.mubr.bf16.mxu0 0
        %7572 = vmatmul.mubr.bf16.gmra.mxu0 %v7390
        %v7573 = vpop.f32.mrf.mxu0
        %v7574 = vadd.f32 0.0, %v7573
        %v7575 = vpop.f32.mrf.mxu0
        %v7576 = vpop.f32.mrf.mxu0
        %v7577 = vpop.f32.mrf.mxu0
        %7578 = vdwg.mxu0
        %v7585 = vcombine.low %v7451, %v7453
        %v7586 = vcombine.low %v7492, %v7494
        %v7587 = vcombine.low %v7533, %v7535
        %7591 = vst [vmem:[%s297] sm:$0xff] %v7585
        %7592 = vst [vmem:[%s297 + $0x8] sm:$0xff] %v7586
        %7593 = vst [vmem:[%s297 + $0x10] sm:$0xff] %v7587
        %vm7594 = vcmask 76800
        %7595 = vst.msk [vmem:[%s297 + $0x18] sm:$0xf] %vm7594, %v7574
        %s7596 = sand.u32 %s199, 1
        %s7597 = scalar_lea.sflag [#allocation7], %s7596
        %s7598 = sand.u32 %s199, 1
        %s7599 = smul.addr %s7598, 28
        %s7600 = scalar_lea.vmem [#allocation9], %s7599
        // Predicated region
        $region61: #{decoder_forward.1} parent=51 // pred_check
          %p7601 = pneg %p209
        $region62: #{decoder_forward.1} parent=51 // pred_check_branch
          %7603 = sbr.rel (%p7601) target = $region64
        $region63: #{decoder_forward.1} parent=51 // pred_region
          %s7605 = ssub.s32 448, 448
          %7606 = vsyncadd %s7597, %s7605
          %s7607 = smul.addr %s23, 7
          %s7608 = smul.addr %s7607, 64
          %s7609 = scalar_lea.hbm %s8, %s7608
          %s7611 = sshll.u32 %s7600, 4
          %s7612 = int_to_ptr.vmem [resolvable:$true] %s7611
          %7614 = dma.vmem_to_hbm [thread:$0]  %s7612, 448, %s7609, %s7597
        $region64: #{decoder_forward.1} parent=51 // pred_fallthru
          _
      $region52: #{decoder_forward.1} parent=5 // pred_fallthru
        _
      %p7615 = scmp.le.s32.totalorder 2, %s18
      // Predicated region
      $region65: #{decoder_forward.1} parent=5 // pred_check
        %p7616 = pneg %p7615
      $region66: #{decoder_forward.1} parent=5 // pred_check_branch
        %7618 = sbr.rel (%p7616) target = $region68
      $region67: #{decoder_forward.1} parent=5 // pred_region
        %s7619 = ssub.s32 %s18, 2
        // Predicated region
        $region69: #{decoder_forward.1} parent=67 // pred_check
          %p7620 = pneg %p215
        $region70: #{decoder_forward.1} parent=67 // pred_check_branch
          %7622 = sbr.rel (%p7620) target = $region72
        $region71: #{decoder_forward.1} parent=67 // pred_region
          %s7623 = sand.u32 %s200, 1
          %s7624 = scalar_lea.sflag [#allocation7], %s7623
          %s7625 = sand.u32 %s200, 1
          %s7626 = smul.addr %s7625, 28
          %s7627 = scalar_lea.vmem [#allocation9], %s7626
          %7628 = dma.done %s7624, 448
        $region72: #{decoder_forward.1} parent=67 // pred_fallthru
          _
      $region68: #{decoder_forward.1} parent=5 // pred_fallthru
        _
    $region6: #{decoder_forward.1} parent=1 // loop_footer
      %s22 = sadd.s32 1, %s18
    $region7: #{decoder_forward.1} parent=1 // loop_footer_branch
      %17 = sbr.rel target = $region3
    $region8: #{decoder_forward.1} parent=1 // loop_exit
      _
    %7629 = vsyncpa [#allocation7], 1
    %s7630 = scalar_lea.sflag [#allocation7], 1
    %7631 = vsyncpa %s7630, 1
    %7632 = vsyncpa [#allocation8], 1
    %s7633 = scalar_lea.sflag [#allocation8], 1
    %7634 = vsyncpa %s7633, 1

</llo_original>
